<compile_context>
chip_gen: v6e
topology: v6e:2x2x1
jax: 0.10.0
libtpu: 0.0.40
codegen_flags: <defaults>
</compile_context>

<pallas_src>
import functools
import numpy as np
import jax
import jax.numpy as jnp
from jax.experimental import pallas as pl
from jax.experimental.pallas import tpu as pltpu

PAD = 0            # Constants.PAD
LN_EPS = 1e-5      # torch.nn.LayerNorm default
NEG_INF = -1e9     # additive mask value (finite for numerical safety)

# packed per-layer vector-parameter rows:
#   0: bq   1: bkv   2: bo   3: ln1_g   4: ln1_b   5: b1   6: b2   7: ln2_g   8: ln2_b
_N_VEC_ROWS = 9


# ----------------------------- whole-network fused kernel -----------------------------

def _transformer_kernel(g1_ref, g2_ref, m1_ref, m2_ref, np1_ref, np2_ref,
                        wq_ref, wkv_ref, wo_ref, w1_ref, w2_ref, vec_ref,
                        dwqk_ref, dbias_ref, a_ref, *,
                        n_enc_layers, n_head, d_k, d_v, d_model, d_inner,
                        n_out, scale_enc, scale_dec, eps):
    """Full forward for one batch element: all encoder layers (both branches)
    + pair decoder.  Everything stays in VMEM."""
    g1_emb = g1_ref[0]          # (L1, dm)  original g1 embeddings
    g2_emb = g2_ref[0]          # (L2, dm)  original g2 embeddings
    m1 = m1_ref[0]              # (1, L1)   additive mask, -1e9 where g1 key is PAD
    m2 = m2_ref[0]              # (1, L2)   additive mask, -1e9 where g2 key is PAD
    np1 = np1_ref[0]            # (L1, 1)   non-pad mask for g1 query rows
    np2 = np2_ref[0]            # (L2, 1)   non-pad mask for g2 query rows

    hdk = n_head * d_k
    hdv = n_head * d_v

    def layer_norm(x, g, b):
        mu = jnp.mean(x, axis=-1, keepdims=True)
        var = jnp.mean((x - mu) ** 2, axis=-1, keepdims=True)
        return (x - mu) * jax.lax.rsqrt(var + eps) * g + b

    def enc_layer(li, x_q, x_kv, add_mask, npad):
        """One encoder layer (MHA + Add&LN + FFN + Add&LN + non-pad mask)."""
        wq = wq_ref[li]                                   # (dm, H*dk)
        wkv = wkv_ref[li]                                 # (dm, H*dk + H*dv)
        wo = wo_ref[li]                                   # (H*dv, dm)
        w1 = w1_ref[li]                                   # (dm, di)
        w2 = w2_ref[li]                                   # (di, dm)
        vec = vec_ref[li]                                 # (9, P) packed vectors
        bq = vec[0:1, :hdk]
        bkv = vec[1:2, :hdk + hdv]
        bo = vec[2:3, :d_model]
        ln1g = vec[3:4, :d_model]
        ln1b = vec[4:5, :d_model]
        b1 = vec[5:6, :d_inner]
        b2 = vec[6:7, :d_model]
        ln2g = vec[7:8, :d_model]
        ln2b = vec[8:9, :d_model]

        # Fused projections; 1/sqrt(d_k) folded into Q.
        qp = (jnp.dot(x_q, wq, preferred_element_type=jnp.float32) + bq) * scale_enc
        kvp = jnp.dot(x_kv, wkv, preferred_element_type=jnp.float32) + bkv

        # Per-head attention; contexts lane-concatenated for ONE output projection.
        ctx_heads = []
        for h in range(n_head):                            # static unroll
            q_h = qp[:, h * d_k:(h + 1) * d_k]             # (Lq, dk)
            k_h = kvp[:, h * d_k:(h + 1) * d_k]            # (Lk, dk)
            v_h = kvp[:, hdk + h * d_v:hdk + (h + 1) * d_v]  # (Lk, dv)
            s = jax.lax.dot_general(q_h, k_h, (((1,), (1,)), ((), ())),
                                    preferred_element_type=jnp.float32)  # (Lq, Lk)
            s = s + add_mask                               # additive pad mask (1 vadd)
            s = s - jnp.max(s, axis=-1, keepdims=True)
            p = jnp.exp(s)
            attn = p * pl.reciprocal(jnp.sum(p, axis=-1, keepdims=True), approx=True)
            ctx_heads.append(jnp.dot(attn, v_h, preferred_element_type=jnp.float32))
        ctx = jnp.concatenate(ctx_heads, axis=-1)          # (Lq, H*dv)
        proj = jnp.dot(ctx, wo, preferred_element_type=jnp.float32) + bo

        y1 = layer_norm(proj + x_q, ln1g, ln1b) * npad
        hmid = jnp.maximum(
            jnp.dot(y1, w1, preferred_element_type=jnp.float32) + b1, 0.0)
        ffn = jnp.dot(hmid, w2, preferred_element_type=jnp.float32) + b2
        return layer_norm(ffn + y1, ln2g, ln2b) * npad

    # ---- encoder stack: alternating Cross / Self layers (shared weights per layer) ----
    g1_out, g2_out = g1_emb, g2_emb
    for li in range(n_enc_layers):                         # static unroll
        if li % 2 == 0:
            # Cross layer: queries are the ORIGINAL embeddings (reference semantics).
            new_g1 = enc_layer(li, g1_emb, g2_emb, m2, np1)   # g1 queries over g2 keys
            new_g2 = enc_layer(li, g2_emb, g1_emb, m1, np2)   # g2 queries over g1 keys
        else:
            # Self-attention layer on the running outputs.
            new_g1 = enc_layer(li, g1_out, g1_out, m1, np1)
            new_g2 = enc_layer(li, g2_out, g2_out, m2, np2)
        g1_out, g2_out = new_g1, new_g2

    # ---- pair decoder: masked MHA map of g2-queries over g1-keys ----
    hdkd = n_out * d_k
    dwqk = dwqk_ref[...]                                   # (dm, 2*H*dk)  [Wq | Wk]
    dbias = dbias_ref[...]                                 # (2, H*dk)     [bq ; bk]
    dwq = dwqk[:, :hdkd]
    dwk = dwqk[:, hdkd:2 * hdkd]
    dbq = dbias[0:1, :]
    dbk = dbias[1:2, :]
    qp = (jnp.dot(g2_out, dwq, preferred_element_type=jnp.float32) + dbq) * scale_dec
    kp = jnp.dot(g1_out, dwk, preferred_element_type=jnp.float32) + dbk

    attn_heads = []
    for h in range(n_out):                                 # static unroll
        q_h = qp[:, h * d_k:(h + 1) * d_k]
        k_h = kp[:, h * d_k:(h + 1) * d_k]
        s = jax.lax.dot_general(q_h, k_h, (((1,), (1,)), ((), ())),
                                preferred_element_type=jnp.float32)  # (L2, L1)
        s = s + m1                                         # keys are g1 positions
        s = s - jnp.max(s, axis=-1, keepdims=True)
        p = jnp.exp(s)
        # exact division so the returned attention rows sum to 1 to f32 precision
        attn_heads.append(p / jnp.sum(p, axis=-1, keepdims=True))
    # one dense (n_out, L2, L1) store instead of per-head masked stores
    a_ref[0] = jnp.stack(attn_heads, axis=0)


# ----------------------------- wrapper -----------------------------

def transformer_forward(params, g1_embs, g1_nids, g2_embs, g2_nids, cfg):
    n_head, d_k, d_v, n_out = cfg["n_head"], cfg["d_k"], cfg["d_v"], cfg["n_outputs"]
    d_model, d_inner = cfg["d_model"], cfg["d_inner"]
    B, L1, _ = g1_embs.shape
    L2 = g2_embs.shape[1]
    n_enc_layers = params["wq"].shape[0]

    # O(B*L) additive key masks + non-pad masks (never materialize (B, L, L) masks).
    m1 = jnp.where(g1_nids == PAD, jnp.float32(NEG_INF), jnp.float32(0.0))[:, None, :]
    m2 = jnp.where(g2_nids == PAD, jnp.float32(NEG_INF), jnp.float32(0.0))[:, None, :]
    np1 = (g1_nids != PAD).astype(jnp.float32)[..., None]     # (B, L1, 1)
    np2 = (g2_nids != PAD).astype(jnp.float32)[..., None]     # (B, L2, 1)

    kernel = functools.partial(
        _transformer_kernel,
        n_enc_layers=n_enc_layers, n_head=n_head, d_k=d_k, d_v=d_v,
        d_model=d_model, d_inner=d_inner, n_out=n_out,
        scale_enc=1.0 / float(np.sqrt(d_k)), scale_dec=1.0 / float(np.sqrt(d_k)),
        eps=LN_EPS)

    def per_batch(shape):
        nd = len(shape)
        return pl.BlockSpec((1,) + tuple(shape[1:]),
                            lambda b, nd=nd: (b,) + (0,) * (nd - 1))

    def whole(shape):
        nd = len(shape)
        return pl.BlockSpec(tuple(shape), lambda b, nd=nd: (0,) * nd)

    return pl.pallas_call(
        kernel,
        out_shape=jax.ShapeDtypeStruct((B, n_out, L2, L1), jnp.float32),
        grid=(B,),
        in_specs=[
            per_batch(g1_embs.shape), per_batch(g2_embs.shape),
            per_batch(m1.shape), per_batch(m2.shape),
            per_batch(np1.shape), per_batch(np2.shape),
            whole(params["wq"].shape), whole(params["wkv"].shape),
            whole(params["wo"].shape), whole(params["w1"].shape),
            whole(params["w2"].shape), whole(params["vec"].shape),
            whole(params["dec_wqk"].shape), whole(params["dec_b"].shape),
        ],
        out_specs=pl.BlockSpec((1, n_out, L2, L1), lambda b: (b, 0, 0, 0)),
        compiler_params=pltpu.CompilerParams(dimension_semantics=("parallel",)),
    )(g1_embs, g2_embs, m1, m2, np1, np2,
      params["wq"], params["wkv"], params["wo"], params["w1"], params["w2"],
      params["vec"], params["dec_wqk"], params["dec_b"])
    # corresponds to `(g1_g2_attns,)[0]` of the reference


# ----------------------------- deterministic parameter init (packed) -----------------------------

def _init_linear(key, din, dout):
    k1, k2 = jax.random.split(key)
    bound = 1.0 / np.sqrt(din)
    w = jax.random.uniform(k1, (din, dout), jnp.float32, -bound, bound)
    b = jax.random.uniform(k2, (dout,), jnp.float32, -bound, bound)
    return w, b


def _pad_row(v, width):
    return jnp.pad(v, (0, width - v.shape[0]))[None, :]


def init_transformer_params(key, d_model, d_inner, n_layers, n_head, d_k, d_v, n_outputs):
    """Per-layer weights stacked along a leading layer axis; all per-layer
    bias / LayerNorm vectors packed into one (n_enc_layers, 9, P) block."""
    hdk, hdv = n_head * d_k, n_head * d_v
    vec_w = max(hdk, hdk + hdv, d_model, d_inner)
    wq_l, wkv_l, wo_l, w1_l, w2_l, vec_l = [], [], [], [], [], []
    for _ in range(2 * n_layers):                # alternating Cross / Self layers
        key, k_layer = jax.random.split(key)
        ks = jax.random.split(k_layer, 6)
        wq, bq = _init_linear(ks[0], d_model, hdk)
        wk, bk = _init_linear(ks[1], d_model, hdk)
        wv, bv = _init_linear(ks[2], d_model, hdv)
        wo, bo = _init_linear(ks[3], hdv, d_model)
        w1, b1 = _init_linear(ks[4], d_model, d_inner)
        w2, b2 = _init_linear(ks[5], d_inner, d_model)
        wq_l.append(wq)
        wkv_l.append(jnp.concatenate([wk, wv], axis=1))   # fused K|V projection
        wo_l.append(wo)
        w1_l.append(w1)
        w2_l.append(w2)
        ones = jnp.ones((d_model,), jnp.float32)
        zeros = jnp.zeros((d_model,), jnp.float32)
        vec_l.append(jnp.concatenate([
            _pad_row(bq, vec_w),
            _pad_row(jnp.concatenate([bk, bv]), vec_w),
            _pad_row(bo, vec_w),
            _pad_row(ones, vec_w), _pad_row(zeros, vec_w),    # ln1 gamma / beta
            _pad_row(b1, vec_w), _pad_row(b2, vec_w),
            _pad_row(ones, vec_w), _pad_row(zeros, vec_w),    # ln2 gamma / beta
        ], axis=0))
        assert vec_l[-1].shape[0] == _N_VEC_ROWS
    key, kq, kk = jax.random.split(key, 3)
    dwq, dbq = _init_linear(kq, d_model, n_outputs * d_k)
    dwk, dbk = _init_linear(kk, d_model, n_outputs * d_k)
    return dict(
        wq=jnp.stack(wq_l), wkv=jnp.stack(wkv_l), wo=jnp.stack(wo_l),
        w1=jnp.stack(w1_l), w2=jnp.stack(w2_l), vec=jnp.stack(vec_l),
        dec_wqk=jnp.concatenate([dwq, dwk], axis=1),          # (dm, 2*H*dk)
        dec_b=jnp.stack([dbq, dbk], axis=0))                  # (2, H*dk)


# ----------------------------- main -----------------------------

if __name__ == "__main__":
    # small, forward-consistent hyperparameters
    cfg = dict(d_model=32, d_inner=64, n_layers=2, n_head=4, d_k=8, d_v=8, n_outputs=4)
    B, L1, L2 = 2, 8, 8

    key = jax.random.PRNGKey(0)
    k_params, k_g1, k_g2 = jax.random.split(key, 3)

    params = init_transformer_params(k_params, cfg["d_model"], cfg["d_inner"],
                                     cfg["n_layers"], cfg["n_head"], cfg["d_k"],
                                     cfg["d_v"], cfg["n_outputs"])

    g1_embs = jax.random.normal(k_g1, (B, L1, cfg["d_model"]), jnp.float32)
    g2_embs = jax.random.normal(k_g2, (B, L2, cfg["d_model"]), jnp.float32)
    # node-id sequences with a few PAD (= 0) positions
    g1_nids = jnp.array([[5, 3, 7, 2, 1, 9, 0, 0],
                         [4, 6, 2, 8, 0, 0, 0, 0]], dtype=jnp.int32)
    g2_nids = jnp.array([[1, 2, 3, 4, 5, 0, 0, 0],
                         [7, 8, 9, 1, 2, 3, 4, 0]], dtype=jnp.int32)

    fwd = jax.jit(functools.partial(transformer_forward, cfg=cfg))
    sim = fwd(params, g1_embs, g1_nids, g2_embs, g2_nids)
    sim = jax.block_until_ready(sim)

    assert sim.shape == (B, cfg["n_outputs"], L2, L1), sim.shape
    assert bool(jnp.all(jnp.isfinite(sim)))
    # attention rows over (non-pad) keys sum to ~1
    assert bool(jnp.allclose(jnp.sum(sim, axis=-1), 1.0, atol=1e-4))
    print("KERNEL_OK")
</pallas_src>

<mosaic_0001>
module attributes {stable_mosaic.version = 11 : i64} {
  func.func @_transformer_kernel(%arg0: i32, %arg1: memref<1x8x32xf32, #tpu.memory_space<vmem>>, %arg2: memref<1x8x32xf32, #tpu.memory_space<vmem>>, %arg3: memref<1x1x8xf32, #tpu.memory_space<vmem>>, %arg4: memref<1x1x8xf32, #tpu.memory_space<vmem>>, %arg5: memref<1x8x1xf32, #tpu.memory_space<vmem>>, %arg6: memref<1x8x1xf32, #tpu.memory_space<vmem>>, %arg7: memref<4x32x32xf32, #tpu.memory_space<vmem>>, %arg8: memref<4x32x64xf32, #tpu.memory_space<vmem>>, %arg9: memref<4x32x32xf32, #tpu.memory_space<vmem>>, %arg10: memref<4x32x64xf32, #tpu.memory_space<vmem>>, %arg11: memref<4x64x32xf32, #tpu.memory_space<vmem>>, %arg12: memref<4x9x64xf32, #tpu.memory_space<vmem>>, %arg13: memref<32x64xf32, #tpu.memory_space<vmem>>, %arg14: memref<2x32xf32, #tpu.memory_space<vmem>>, %arg15: memref<1x4x8x8xf32, #tpu.memory_space<vmem>>) attributes {dimension_semantics = [#tpu.dimension_semantics<parallel>], iteration_bounds = array<i64: 2>, scalar_prefetch = 0 : i64, scratch_operands = 0 : i64, tpu.core_type = #tpu.core_type<tc>, window_params = [{transform_indices = @transform_0, window_bounds = array<i64: 1, 8, 32>}, {transform_indices = @transform_1, window_bounds = array<i64: 1, 8, 32>}, {transform_indices = @transform_2, window_bounds = array<i64: 1, 1, 8>}, {transform_indices = @transform_3, window_bounds = array<i64: 1, 1, 8>}, {transform_indices = @transform_4, window_bounds = array<i64: 1, 8, 1>}, {transform_indices = @transform_5, window_bounds = array<i64: 1, 8, 1>}, {pipeline_mode = #tpu.pipeline_mode<synchronous>, transform_indices = @transform_6, window_bounds = array<i64: 4, 32, 32>}, {pipeline_mode = #tpu.pipeline_mode<synchronous>, transform_indices = @transform_7, window_bounds = array<i64: 4, 32, 64>}, {pipeline_mode = #tpu.pipeline_mode<synchronous>, transform_indices = @transform_8, window_bounds = array<i64: 4, 32, 32>}, {pipeline_mode = #tpu.pipeline_mode<synchronous>, transform_indices = @transform_9, window_bounds = array<i64: 4, 32, 64>}, {pipeline_mode = #tpu.pipeline_mode<synchronous>, transform_indices = @transform_10, window_bounds = array<i64: 4, 64, 32>}, {pipeline_mode = #tpu.pipeline_mode<synchronous>, transform_indices = @transform_11, window_bounds = array<i64: 4, 9, 64>}, {pipeline_mode = #tpu.pipeline_mode<synchronous>, transform_indices = @transform_12, window_bounds = array<i64: 32, 64>}, {pipeline_mode = #tpu.pipeline_mode<synchronous>, transform_indices = @transform_13, window_bounds = array<i64: 2, 32>}, {transform_indices = @transform_14, window_bounds = array<i64: 1, 4, 8, 8>}]} {
    %c0 = arith.constant 0 : index
    %c0_0 = arith.constant 0 : index
    %c0_1 = arith.constant 0 : index
    %0 = vector.load %arg1[%c0, %c0_0, %c0_1] : memref<1x8x32xf32, #tpu.memory_space<vmem>>, vector<1x8x32xf32>
    %1 = vector.shape_cast %0 : vector<1x8x32xf32> to vector<8x32xf32>
    %c0_2 = arith.constant 0 : index
    %c0_3 = arith.constant 0 : index
    %c0_4 = arith.constant 0 : index
    %2 = vector.load %arg2[%c0_2, %c0_3, %c0_4] : memref<1x8x32xf32, #tpu.memory_space<vmem>>, vector<1x8x32xf32>
    %3 = vector.shape_cast %2 : vector<1x8x32xf32> to vector<8x32xf32>
    %c0_5 = arith.constant 0 : index
    %c0_6 = arith.constant 0 : index
    %c0_7 = arith.constant 0 : index
    %4 = vector.load %arg3[%c0_5, %c0_6, %c0_7] : memref<1x1x8xf32, #tpu.memory_space<vmem>>, vector<1x1x8xf32>
    %5 = vector.shape_cast %4 : vector<1x1x8xf32> to vector<1x8xf32>
    %c0_8 = arith.constant 0 : index
    %c0_9 = arith.constant 0 : index
    %c0_10 = arith.constant 0 : index
    %6 = vector.load %arg4[%c0_8, %c0_9, %c0_10] : memref<1x1x8xf32, #tpu.memory_space<vmem>>, vector<1x1x8xf32>
    %7 = vector.shape_cast %6 : vector<1x1x8xf32> to vector<1x8xf32>
    %c0_11 = arith.constant 0 : index
    %c0_12 = arith.constant 0 : index
    %c0_13 = arith.constant 0 : index
    %8 = vector.load %arg5[%c0_11, %c0_12, %c0_13] : memref<1x8x1xf32, #tpu.memory_space<vmem>>, vector<1x8x1xf32>
    %9 = vector.shape_cast %8 : vector<1x8x1xf32> to vector<8x1xf32>
    %c0_14 = arith.constant 0 : index
    %c0_15 = arith.constant 0 : index
    %c0_16 = arith.constant 0 : index
    %10 = vector.load %arg6[%c0_14, %c0_15, %c0_16] : memref<1x8x1xf32, #tpu.memory_space<vmem>>, vector<1x8x1xf32>
    %11 = vector.shape_cast %10 : vector<1x8x1xf32> to vector<8x1xf32>
    %c2 = arith.constant 2 : index
    %c0_17 = arith.constant 0 : index
    %c0_18 = arith.constant 0 : index
    %12 = vector.load %arg7[%c2, %c0_17, %c0_18] : memref<4x32x32xf32, #tpu.memory_space<vmem>>, vector<1x32x32xf32>
    %13 = vector.shape_cast %12 : vector<1x32x32xf32> to vector<32x32xf32>
    %c2_19 = arith.constant 2 : index
    %c0_20 = arith.constant 0 : index
    %c0_21 = arith.constant 0 : index
    %14 = vector.load %arg8[%c2_19, %c0_20, %c0_21] : memref<4x32x64xf32, #tpu.memory_space<vmem>>, vector<1x32x64xf32>
    %15 = vector.shape_cast %14 : vector<1x32x64xf32> to vector<32x64xf32>
    %c2_22 = arith.constant 2 : index
    %c0_23 = arith.constant 0 : index
    %c0_24 = arith.constant 0 : index
    %16 = vector.load %arg9[%c2_22, %c0_23, %c0_24] : memref<4x32x32xf32, #tpu.memory_space<vmem>>, vector<1x32x32xf32>
    %17 = vector.shape_cast %16 : vector<1x32x32xf32> to vector<32x32xf32>
    %c2_25 = arith.constant 2 : index
    %c0_26 = arith.constant 0 : index
    %c0_27 = arith.constant 0 : index
    %18 = vector.load %arg10[%c2_25, %c0_26, %c0_27] : memref<4x32x64xf32, #tpu.memory_space<vmem>>, vector<1x32x64xf32>
    %19 = vector.shape_cast %18 : vector<1x32x64xf32> to vector<32x64xf32>
    %c2_28 = arith.constant 2 : index
    %c0_29 = arith.constant 0 : index
    %c0_30 = arith.constant 0 : index
    %20 = vector.load %arg11[%c2_28, %c0_29, %c0_30] : memref<4x64x32xf32, #tpu.memory_space<vmem>>, vector<1x64x32xf32>
    %21 = vector.shape_cast %20 : vector<1x64x32xf32> to vector<64x32xf32>
    %c2_31 = arith.constant 2 : index
    %c0_32 = arith.constant 0 : index
    %c0_33 = arith.constant 0 : index
    %22 = vector.load %arg12[%c2_31, %c0_32, %c0_33] : memref<4x9x64xf32, #tpu.memory_space<vmem>>, vector<1x9x64xf32>
    %23 = vector.shape_cast %22 : vector<1x9x64xf32> to vector<9x64xf32>
    %24 = vector.extract_strided_slice %23 {offsets = [0, 0], sizes = [1, 32], strides = [1, 1]} : vector<9x64xf32> to vector<1x32xf32>
    %25 = vector.extract_strided_slice %23 {offsets = [1, 0], sizes = [1, 64], strides = [1, 1]} : vector<9x64xf32> to vector<1x64xf32>
    %26 = vector.extract_strided_slice %23 {offsets = [2, 0], sizes = [1, 32], strides = [1, 1]} : vector<9x64xf32> to vector<1x32xf32>
    %27 = vector.extract_strided_slice %23 {offsets = [3, 0], sizes = [1, 32], strides = [1, 1]} : vector<9x64xf32> to vector<1x32xf32>
    %28 = vector.extract_strided_slice %23 {offsets = [4, 0], sizes = [1, 32], strides = [1, 1]} : vector<9x64xf32> to vector<1x32xf32>
    %29 = vector.extract_strided_slice %23 {offsets = [5, 0], sizes = [1, 64], strides = [1, 1]} : vector<9x64xf32> to vector<1x64xf32>
    %30 = vector.extract_strided_slice %23 {offsets = [6, 0], sizes = [1, 32], strides = [1, 1]} : vector<9x64xf32> to vector<1x32xf32>
    %31 = vector.extract_strided_slice %23 {offsets = [7, 0], sizes = [1, 32], strides = [1, 1]} : vector<9x64xf32> to vector<1x32xf32>
    %32 = vector.extract_strided_slice %23 {offsets = [8, 0], sizes = [1, 32], strides = [1, 1]} : vector<9x64xf32> to vector<1x32xf32>
    %cst = arith.constant dense<0.000000e+00> : vector<8x32xf32>
    %33 = tpu.matmul %1, %13, %cst {dimension_numbers = #tpu.dot_dimension_numbers<[1], [0], [0], [1], [0, 0, 1, 1], [], []>} : vector<8x32xf32>, vector<32x32xf32>, vector<8x32xf32> -> vector<8x32xf32>
    %34 = vector.broadcast %24 : vector<1x32xf32> to vector<8x32xf32>
    %35 = arith.addf %33, %34 : vector<8x32xf32>
    %cst_34 = arith.constant 0.353553385 : f32
    %36 = vector.broadcast %cst_34 : f32 to vector<8x32xf32>
    %37 = arith.mulf %35, %36 : vector<8x32xf32>
    %cst_35 = arith.constant dense<0.000000e+00> : vector<8x64xf32>
    %38 = tpu.matmul %3, %15, %cst_35 {dimension_numbers = #tpu.dot_dimension_numbers<[1], [0], [0], [1], [0, 0, 1, 1], [], []>} : vector<8x32xf32>, vector<32x64xf32>, vector<8x64xf32> -> vector<8x64xf32>
    %39 = vector.broadcast %25 : vector<1x64xf32> to vector<8x64xf32>
    %40 = arith.addf %38, %39 : vector<8x64xf32>
    %41 = vector.extract_strided_slice %37 {offsets = [0, 0], sizes = [8, 8], strides = [1, 1]} : vector<8x32xf32> to vector<8x8xf32>
    %42 = vector.extract_strided_slice %40 {offsets = [0, 0], sizes = [8, 8], strides = [1, 1]} : vector<8x64xf32> to vector<8x8xf32>
    %43 = vector.extract_strided_slice %40 {offsets = [0, 32], sizes = [8, 8], strides = [1, 1]} : vector<8x64xf32> to vector<8x8xf32>
    %cst_36 = arith.constant dense<0.000000e+00> : vector<8x8xf32>
    %44 = tpu.matmul %41, %42, %cst_36 {dimension_numbers = #tpu.dot_dimension_numbers<[1], [1], [0], [0], [0, 0, 1, 0], [], []>} : vector<8x8xf32>, vector<8x8xf32>, vector<8x8xf32> -> vector<8x8xf32>
    %45 = vector.broadcast %7 : vector<1x8xf32> to vector<8x8xf32>
    %46 = arith.addf %44, %45 : vector<8x8xf32>
    %cst_37 = arith.constant dense<0xFF800000> : vector<8xf32>
    %47 = vector.multi_reduction <maximumf>, %46, %cst_37 [1] : vector<8x8xf32> to vector<8xf32>
    %48 = vector.shape_cast %47 : vector<8xf32> to vector<8x1xf32>
    %49 = vector.broadcast %48 : vector<8x1xf32> to vector<8x8xf32>
    %50 = arith.subf %46, %49 : vector<8x8xf32>
    %51 = math.exp %50 : vector<8x8xf32>
    %cst_38 = arith.constant dense<0.000000e+00> : vector<8xf32>
    %52 = vector.multi_reduction <add>, %51, %cst_38 [1] : vector<8x8xf32> to vector<8xf32>
    %53 = vector.shape_cast %52 : vector<8xf32> to vector<8x1xf32>
    %54 = tpu.reciprocal %53 {approx = true} : vector<8x1xf32> -> vector<8x1xf32>
    %55 = vector.broadcast %54 : vector<8x1xf32> to vector<8x8xf32>
    %56 = arith.mulf %51, %55 : vector<8x8xf32>
    %cst_39 = arith.constant dense<0.000000e+00> : vector<8x8xf32>
    %57 = tpu.matmul %56, %43, %cst_39 {dimension_numbers = #tpu.dot_dimension_numbers<[1], [0], [0], [1], [0, 0, 1, 1], [], []>} : vector<8x8xf32>, vector<8x8xf32>, vector<8x8xf32> -> vector<8x8xf32>
    %58 = vector.extract_strided_slice %37 {offsets = [0, 8], sizes = [8, 8], strides = [1, 1]} : vector<8x32xf32> to vector<8x8xf32>
    %59 = vector.extract_strided_slice %40 {offsets = [0, 8], sizes = [8, 8], strides = [1, 1]} : vector<8x64xf32> to vector<8x8xf32>
    %60 = vector.extract_strided_slice %40 {offsets = [0, 40], sizes = [8, 8], strides = [1, 1]} : vector<8x64xf32> to vector<8x8xf32>
    %cst_40 = arith.constant dense<0.000000e+00> : vector<8x8xf32>
    %61 = tpu.matmul %58, %59, %cst_40 {dimension_numbers = #tpu.dot_dimension_numbers<[1], [1], [0], [0], [0, 0, 1, 0], [], []>} : vector<8x8xf32>, vector<8x8xf32>, vector<8x8xf32> -> vector<8x8xf32>
    %62 = vector.broadcast %7 : vector<1x8xf32> to vector<8x8xf32>
    %63 = arith.addf %61, %62 : vector<8x8xf32>
    %cst_41 = arith.constant dense<0xFF800000> : vector<8xf32>
    %64 = vector.multi_reduction <maximumf>, %63, %cst_41 [1] : vector<8x8xf32> to vector<8xf32>
    %65 = vector.shape_cast %64 : vector<8xf32> to vector<8x1xf32>
    %66 = vector.broadcast %65 : vector<8x1xf32> to vector<8x8xf32>
    %67 = arith.subf %63, %66 : vector<8x8xf32>
    %68 = math.exp %67 : vector<8x8xf32>
    %cst_42 = arith.constant dense<0.000000e+00> : vector<8xf32>
    %69 = vector.multi_reduction <add>, %68, %cst_42 [1] : vector<8x8xf32> to vector<8xf32>
    %70 = vector.shape_cast %69 : vector<8xf32> to vector<8x1xf32>
    %71 = tpu.reciprocal %70 {approx = true} : vector<8x1xf32> -> vector<8x1xf32>
    %72 = vector.broadcast %71 : vector<8x1xf32> to vector<8x8xf32>
    %73 = arith.mulf %68, %72 : vector<8x8xf32>
    %cst_43 = arith.constant dense<0.000000e+00> : vector<8x8xf32>
    %74 = tpu.matmul %73, %60, %cst_43 {dimension_numbers = #tpu.dot_dimension_numbers<[1], [0], [0], [1], [0, 0, 1, 1], [], []>} : vector<8x8xf32>, vector<8x8xf32>, vector<8x8xf32> -> vector<8x8xf32>
    %75 = vector.extract_strided_slice %37 {offsets = [0, 16], sizes = [8, 8], strides = [1, 1]} : vector<8x32xf32> to vector<8x8xf32>
    %76 = vector.extract_strided_slice %40 {offsets = [0, 16], sizes = [8, 8], strides = [1, 1]} : vector<8x64xf32> to vector<8x8xf32>
    %77 = vector.extract_strided_slice %40 {offsets = [0, 48], sizes = [8, 8], strides = [1, 1]} : vector<8x64xf32> to vector<8x8xf32>
    %cst_44 = arith.constant dense<0.000000e+00> : vector<8x8xf32>
    %78 = tpu.matmul %75, %76, %cst_44 {dimension_numbers = #tpu.dot_dimension_numbers<[1], [1], [0], [0], [0, 0, 1, 0], [], []>} : vector<8x8xf32>, vector<8x8xf32>, vector<8x8xf32> -> vector<8x8xf32>
    %79 = vector.broadcast %7 : vector<1x8xf32> to vector<8x8xf32>
    %80 = arith.addf %78, %79 : vector<8x8xf32>
    %cst_45 = arith.constant dense<0xFF800000> : vector<8xf32>
    %81 = vector.multi_reduction <maximumf>, %80, %cst_45 [1] : vector<8x8xf32> to vector<8xf32>
    %82 = vector.shape_cast %81 : vector<8xf32> to vector<8x1xf32>
    %83 = vector.broadcast %82 : vector<8x1xf32> to vector<8x8xf32>
    %84 = arith.subf %80, %83 : vector<8x8xf32>
    %85 = math.exp %84 : vector<8x8xf32>
    %cst_46 = arith.constant dense<0.000000e+00> : vector<8xf32>
    %86 = vector.multi_reduction <add>, %85, %cst_46 [1] : vector<8x8xf32> to vector<8xf32>
    %87 = vector.shape_cast %86 : vector<8xf32> to vector<8x1xf32>
    %88 = tpu.reciprocal %87 {approx = true} : vector<8x1xf32> -> vector<8x1xf32>
    %89 = vector.broadcast %88 : vector<8x1xf32> to vector<8x8xf32>
    %90 = arith.mulf %85, %89 : vector<8x8xf32>
    %cst_47 = arith.constant dense<0.000000e+00> : vector<8x8xf32>
    %91 = tpu.matmul %90, %77, %cst_47 {dimension_numbers = #tpu.dot_dimension_numbers<[1], [0], [0], [1], [0, 0, 1, 1], [], []>} : vector<8x8xf32>, vector<8x8xf32>, vector<8x8xf32> -> vector<8x8xf32>
    %92 = vector.extract_strided_slice %37 {offsets = [0, 24], sizes = [8, 8], strides = [1, 1]} : vector<8x32xf32> to vector<8x8xf32>
    %93 = vector.extract_strided_slice %40 {offsets = [0, 24], sizes = [8, 8], strides = [1, 1]} : vector<8x64xf32> to vector<8x8xf32>
    %94 = vector.extract_strided_slice %40 {offsets = [0, 56], sizes = [8, 8], strides = [1, 1]} : vector<8x64xf32> to vector<8x8xf32>
    %cst_48 = arith.constant dense<0.000000e+00> : vector<8x8xf32>
    %95 = tpu.matmul %92, %93, %cst_48 {dimension_numbers = #tpu.dot_dimension_numbers<[1], [1], [0], [0], [0, 0, 1, 0], [], []>} : vector<8x8xf32>, vector<8x8xf32>, vector<8x8xf32> -> vector<8x8xf32>
    %96 = vector.broadcast %7 : vector<1x8xf32> to vector<8x8xf32>
    %97 = arith.addf %95, %96 : vector<8x8xf32>
    %cst_49 = arith.constant dense<0xFF800000> : vector<8xf32>
    %98 = vector.multi_reduction <maximumf>, %97, %cst_49 [1] : vector<8x8xf32> to vector<8xf32>
    %99 = vector.shape_cast %98 : vector<8xf32> to vector<8x1xf32>
    %100 = vector.broadcast %99 : vector<8x1xf32> to vector<8x8xf32>
    %101 = arith.subf %97, %100 : vector<8x8xf32>
    %102 = math.exp %101 : vector<8x8xf32>
    %cst_50 = arith.constant dense<0.000000e+00> : vector<8xf32>
    %103 = vector.multi_reduction <add>, %102, %cst_50 [1] : vector<8x8xf32> to vector<8xf32>
    %104 = vector.shape_cast %103 : vector<8xf32> to vector<8x1xf32>
    %105 = tpu.reciprocal %104 {approx = true} : vector<8x1xf32> -> vector<8x1xf32>
    %106 = vector.broadcast %105 : vector<8x1xf32> to vector<8x8xf32>
    %107 = arith.mulf %102, %106 : vector<8x8xf32>
    %cst_51 = arith.constant dense<0.000000e+00> : vector<8x8xf32>
    %108 = tpu.matmul %107, %94, %cst_51 {dimension_numbers = #tpu.dot_dimension_numbers<[1], [0], [0], [1], [0, 0, 1, 1], [], []>} : vector<8x8xf32>, vector<8x8xf32>, vector<8x8xf32> -> vector<8x8xf32>
    %109 = tpu.concatenate %57, %74, %91, %108 in 1 : vector<8x8xf32>, vector<8x8xf32>, vector<8x8xf32>, vector<8x8xf32> -> vector<8x32xf32>
    %cst_52 = arith.constant dense<0.000000e+00> : vector<8x32xf32>
    %110 = tpu.matmul %109, %17, %cst_52 {dimension_numbers = #tpu.dot_dimension_numbers<[1], [0], [0], [1], [0, 0, 1, 1], [], []>} : vector<8x32xf32>, vector<32x32xf32>, vector<8x32xf32> -> vector<8x32xf32>
    %111 = vector.broadcast %26 : vector<1x32xf32> to vector<8x32xf32>
    %112 = arith.addf %110, %111 : vector<8x32xf32>
    %113 = arith.addf %112, %1 : vector<8x32xf32>
    %cst_53 = arith.constant dense<0.000000e+00> : vector<8xf32>
    %114 = vector.multi_reduction <add>, %113, %cst_53 [1] : vector<8x32xf32> to vector<8xf32>
    %115 = vector.shape_cast %114 : vector<8xf32> to vector<8x1xf32>
    %cst_54 = arith.constant 3.200000e+01 : f32
    %116 = vector.broadcast %cst_54 : f32 to vector<8x1xf32>
    %117 = arith.divf %115, %116 : vector<8x1xf32>
    %118 = vector.broadcast %117 : vector<8x1xf32> to vector<8x32xf32>
    %119 = arith.subf %113, %118 : vector<8x32xf32>
    %120 = arith.mulf %119, %119 : vector<8x32xf32>
    %cst_55 = arith.constant dense<0.000000e+00> : vector<8xf32>
    %121 = vector.multi_reduction <add>, %120, %cst_55 [1] : vector<8x32xf32> to vector<8xf32>
    %122 = vector.shape_cast %121 : vector<8xf32> to vector<8x1xf32>
    %cst_56 = arith.constant 3.200000e+01 : f32
    %123 = vector.broadcast %cst_56 : f32 to vector<8x1xf32>
    %124 = arith.divf %122, %123 : vector<8x1xf32>
    %125 = vector.broadcast %117 : vector<8x1xf32> to vector<8x32xf32>
    %126 = arith.subf %113, %125 : vector<8x32xf32>
    %cst_57 = arith.constant 9.99999974E-6 : f32
    %127 = vector.broadcast %cst_57 : f32 to vector<8x1xf32>
    %128 = arith.addf %124, %127 : vector<8x1xf32>
    %129 = math.rsqrt %128 : vector<8x1xf32>
    %130 = vector.broadcast %129 : vector<8x1xf32> to vector<8x32xf32>
    %131 = arith.mulf %126, %130 : vector<8x32xf32>
    %132 = vector.broadcast %27 : vector<1x32xf32> to vector<8x32xf32>
    %133 = arith.mulf %131, %132 : vector<8x32xf32>
    %134 = vector.broadcast %28 : vector<1x32xf32> to vector<8x32xf32>
    %135 = arith.addf %133, %134 : vector<8x32xf32>
    %136 = vector.broadcast %9 : vector<8x1xf32> to vector<8x32xf32>
    %137 = arith.mulf %135, %136 : vector<8x32xf32>
    %cst_58 = arith.constant dense<0.000000e+00> : vector<8x64xf32>
    %138 = tpu.matmul %137, %19, %cst_58 {dimension_numbers = #tpu.dot_dimension_numbers<[1], [0], [0], [1], [0, 0, 1, 1], [], []>} : vector<8x32xf32>, vector<32x64xf32>, vector<8x64xf32> -> vector<8x64xf32>
    %139 = vector.broadcast %29 : vector<1x64xf32> to vector<8x64xf32>
    %140 = arith.addf %138, %139 : vector<8x64xf32>
    %cst_59 = arith.constant 0.000000e+00 : f32
    %141 = vector.broadcast %cst_59 : f32 to vector<8x64xf32>
    %142 = arith.maximumf %140, %141 : vector<8x64xf32>
    %cst_60 = arith.constant dense<0.000000e+00> : vector<8x32xf32>
    %143 = tpu.matmul %142, %21, %cst_60 {dimension_numbers = #tpu.dot_dimension_numbers<[1], [0], [0], [1], [0, 0, 1, 1], [], []>} : vector<8x64xf32>, vector<64x32xf32>, vector<8x32xf32> -> vector<8x32xf32>
    %144 = vector.broadcast %30 : vector<1x32xf32> to vector<8x32xf32>
    %145 = arith.addf %143, %144 : vector<8x32xf32>
    %146 = arith.addf %145, %137 : vector<8x32xf32>
    %cst_61 = arith.constant dense<0.000000e+00> : vector<8xf32>
    %147 = vector.multi_reduction <add>, %146, %cst_61 [1] : vector<8x32xf32> to vector<8xf32>
    %148 = vector.shape_cast %147 : vector<8xf32> to vector<8x1xf32>
    %cst_62 = arith.constant 3.200000e+01 : f32
    %149 = vector.broadcast %cst_62 : f32 to vector<8x1xf32>
    %150 = arith.divf %148, %149 : vector<8x1xf32>
    %151 = vector.broadcast %150 : vector<8x1xf32> to vector<8x32xf32>
    %152 = arith.subf %146, %151 : vector<8x32xf32>
    %153 = arith.mulf %152, %152 : vector<8x32xf32>
    %cst_63 = arith.constant dense<0.000000e+00> : vector<8xf32>
    %154 = vector.multi_reduction <add>, %153, %cst_63 [1] : vector<8x32xf32> to vector<8xf32>
    %155 = vector.shape_cast %154 : vector<8xf32> to vector<8x1xf32>
    %cst_64 = arith.constant 3.200000e+01 : f32
    %156 = vector.broadcast %cst_64 : f32 to vector<8x1xf32>
    %157 = arith.divf %155, %156 : vector<8x1xf32>
    %158 = vector.broadcast %150 : vector<8x1xf32> to vector<8x32xf32>
    %159 = arith.subf %146, %158 : vector<8x32xf32>
    %cst_65 = arith.constant 9.99999974E-6 : f32
    %160 = vector.broadcast %cst_65 : f32 to vector<8x1xf32>
    %161 = arith.addf %157, %160 : vector<8x1xf32>
    %162 = math.rsqrt %161 : vector<8x1xf32>
    %163 = vector.broadcast %162 : vector<8x1xf32> to vector<8x32xf32>
    %164 = arith.mulf %159, %163 : vector<8x32xf32>
    %165 = vector.broadcast %31 : vector<1x32xf32> to vector<8x32xf32>
    %166 = arith.mulf %164, %165 : vector<8x32xf32>
    %167 = vector.broadcast %32 : vector<1x32xf32> to vector<8x32xf32>
    %168 = arith.addf %166, %167 : vector<8x32xf32>
    %169 = vector.broadcast %9 : vector<8x1xf32> to vector<8x32xf32>
    %170 = arith.mulf %168, %169 : vector<8x32xf32>
    %c2_66 = arith.constant 2 : index
    %c0_67 = arith.constant 0 : index
    %c0_68 = arith.constant 0 : index
    %171 = vector.load %arg7[%c2_66, %c0_67, %c0_68] : memref<4x32x32xf32, #tpu.memory_space<vmem>>, vector<1x32x32xf32>
    %172 = vector.shape_cast %171 : vector<1x32x32xf32> to vector<32x32xf32>
    %c2_69 = arith.constant 2 : index
    %c0_70 = arith.constant 0 : index
    %c0_71 = arith.constant 0 : index
    %173 = vector.load %arg8[%c2_69, %c0_70, %c0_71] : memref<4x32x64xf32, #tpu.memory_space<vmem>>, vector<1x32x64xf32>
    %174 = vector.shape_cast %173 : vector<1x32x64xf32> to vector<32x64xf32>
    %c2_72 = arith.constant 2 : index
    %c0_73 = arith.constant 0 : index
    %c0_74 = arith.constant 0 : index
    %175 = vector.load %arg9[%c2_72, %c0_73, %c0_74] : memref<4x32x32xf32, #tpu.memory_space<vmem>>, vector<1x32x32xf32>
    %176 = vector.shape_cast %175 : vector<1x32x32xf32> to vector<32x32xf32>
    %c2_75 = arith.constant 2 : index
    %c0_76 = arith.constant 0 : index
    %c0_77 = arith.constant 0 : index
    %177 = vector.load %arg10[%c2_75, %c0_76, %c0_77] : memref<4x32x64xf32, #tpu.memory_space<vmem>>, vector<1x32x64xf32>
    %178 = vector.shape_cast %177 : vector<1x32x64xf32> to vector<32x64xf32>
    %c2_78 = arith.constant 2 : index
    %c0_79 = arith.constant 0 : index
    %c0_80 = arith.constant 0 : index
    %179 = vector.load %arg11[%c2_78, %c0_79, %c0_80] : memref<4x64x32xf32, #tpu.memory_space<vmem>>, vector<1x64x32xf32>
    %180 = vector.shape_cast %179 : vector<1x64x32xf32> to vector<64x32xf32>
    %c2_81 = arith.constant 2 : index
    %c0_82 = arith.constant 0 : index
    %c0_83 = arith.constant 0 : index
    %181 = vector.load %arg12[%c2_81, %c0_82, %c0_83] : memref<4x9x64xf32, #tpu.memory_space<vmem>>, vector<1x9x64xf32>
    %182 = vector.shape_cast %181 : vector<1x9x64xf32> to vector<9x64xf32>
    %183 = vector.extract_strided_slice %182 {offsets = [0, 0], sizes = [1, 32], strides = [1, 1]} : vector<9x64xf32> to vector<1x32xf32>
    %184 = vector.extract_strided_slice %182 {offsets = [1, 0], sizes = [1, 64], strides = [1, 1]} : vector<9x64xf32> to vector<1x64xf32>
    %185 = vector.extract_strided_slice %182 {offsets = [2, 0], sizes = [1, 32], strides = [1, 1]} : vector<9x64xf32> to vector<1x32xf32>
    %186 = vector.extract_strided_slice %182 {offsets = [3, 0], sizes = [1, 32], strides = [1, 1]} : vector<9x64xf32> to vector<1x32xf32>
    %187 = vector.extract_strided_slice %182 {offsets = [4, 0], sizes = [1, 32], strides = [1, 1]} : vector<9x64xf32> to vector<1x32xf32>
    %188 = vector.extract_strided_slice %182 {offsets = [5, 0], sizes = [1, 64], strides = [1, 1]} : vector<9x64xf32> to vector<1x64xf32>
    %189 = vector.extract_strided_slice %182 {offsets = [6, 0], sizes = [1, 32], strides = [1, 1]} : vector<9x64xf32> to vector<1x32xf32>
    %190 = vector.extract_strided_slice %182 {offsets = [7, 0], sizes = [1, 32], strides = [1, 1]} : vector<9x64xf32> to vector<1x32xf32>
    %191 = vector.extract_strided_slice %182 {offsets = [8, 0], sizes = [1, 32], strides = [1, 1]} : vector<9x64xf32> to vector<1x32xf32>
    %cst_84 = arith.constant dense<0.000000e+00> : vector<8x32xf32>
    %192 = tpu.matmul %3, %172, %cst_84 {dimension_numbers = #tpu.dot_dimension_numbers<[1], [0], [0], [1], [0, 0, 1, 1], [], []>} : vector<8x32xf32>, vector<32x32xf32>, vector<8x32xf32> -> vector<8x32xf32>
    %193 = vector.broadcast %183 : vector<1x32xf32> to vector<8x32xf32>
    %194 = arith.addf %192, %193 : vector<8x32xf32>
    %cst_85 = arith.constant 0.353553385 : f32
    %195 = vector.broadcast %cst_85 : f32 to vector<8x32xf32>
    %196 = arith.mulf %194, %195 : vector<8x32xf32>
    %cst_86 = arith.constant dense<0.000000e+00> : vector<8x64xf32>
    %197 = tpu.matmul %1, %174, %cst_86 {dimension_numbers = #tpu.dot_dimension_numbers<[1], [0], [0], [1], [0, 0, 1, 1], [], []>} : vector<8x32xf32>, vector<32x64xf32>, vector<8x64xf32> -> vector<8x64xf32>
    %198 = vector.broadcast %184 : vector<1x64xf32> to vector<8x64xf32>
    %199 = arith.addf %197, %198 : vector<8x64xf32>
    %200 = vector.extract_strided_slice %196 {offsets = [0, 0], sizes = [8, 8], strides = [1, 1]} : vector<8x32xf32> to vector<8x8xf32>
    %201 = vector.extract_strided_slice %199 {offsets = [0, 0], sizes = [8, 8], strides = [1, 1]} : vector<8x64xf32> to vector<8x8xf32>
    %202 = vector.extract_strided_slice %199 {offsets = [0, 32], sizes = [8, 8], strides = [1, 1]} : vector<8x64xf32> to vector<8x8xf32>
    %cst_87 = arith.constant dense<0.000000e+00> : vector<8x8xf32>
    %203 = tpu.matmul %200, %201, %cst_87 {dimension_numbers = #tpu.dot_dimension_numbers<[1], [1], [0], [0], [0, 0, 1, 0], [], []>} : vector<8x8xf32>, vector<8x8xf32>, vector<8x8xf32> -> vector<8x8xf32>
    %204 = vector.broadcast %5 : vector<1x8xf32> to vector<8x8xf32>
    %205 = arith.addf %203, %204 : vector<8x8xf32>
    %cst_88 = arith.constant dense<0xFF800000> : vector<8xf32>
    %206 = vector.multi_reduction <maximumf>, %205, %cst_88 [1] : vector<8x8xf32> to vector<8xf32>
    %207 = vector.shape_cast %206 : vector<8xf32> to vector<8x1xf32>
    %208 = vector.broadcast %207 : vector<8x1xf32> to vector<8x8xf32>
    %209 = arith.subf %205, %208 : vector<8x8xf32>
    %210 = math.exp %209 : vector<8x8xf32>
    %cst_89 = arith.constant dense<0.000000e+00> : vector<8xf32>
    %211 = vector.multi_reduction <add>, %210, %cst_89 [1] : vector<8x8xf32> to vector<8xf32>
    %212 = vector.shape_cast %211 : vector<8xf32> to vector<8x1xf32>
    %213 = tpu.reciprocal %212 {approx = true} : vector<8x1xf32> -> vector<8x1xf32>
    %214 = vector.broadcast %213 : vector<8x1xf32> to vector<8x8xf32>
    %215 = arith.mulf %210, %214 : vector<8x8xf32>
    %cst_90 = arith.constant dense<0.000000e+00> : vector<8x8xf32>
    %216 = tpu.matmul %215, %202, %cst_90 {dimension_numbers = #tpu.dot_dimension_numbers<[1], [0], [0], [1], [0, 0, 1, 1], [], []>} : vector<8x8xf32>, vector<8x8xf32>, vector<8x8xf32> -> vector<8x8xf32>
    %217 = vector.extract_strided_slice %196 {offsets = [0, 8], sizes = [8, 8], strides = [1, 1]} : vector<8x32xf32> to vector<8x8xf32>
    %218 = vector.extract_strided_slice %199 {offsets = [0, 8], sizes = [8, 8], strides = [1, 1]} : vector<8x64xf32> to vector<8x8xf32>
    %219 = vector.extract_strided_slice %199 {offsets = [0, 40], sizes = [8, 8], strides = [1, 1]} : vector<8x64xf32> to vector<8x8xf32>
    %cst_91 = arith.constant dense<0.000000e+00> : vector<8x8xf32>
    %220 = tpu.matmul %217, %218, %cst_91 {dimension_numbers = #tpu.dot_dimension_numbers<[1], [1], [0], [0], [0, 0, 1, 0], [], []>} : vector<8x8xf32>, vector<8x8xf32>, vector<8x8xf32> -> vector<8x8xf32>
    %221 = vector.broadcast %5 : vector<1x8xf32> to vector<8x8xf32>
    %222 = arith.addf %220, %221 : vector<8x8xf32>
    %cst_92 = arith.constant dense<0xFF800000> : vector<8xf32>
    %223 = vector.multi_reduction <maximumf>, %222, %cst_92 [1] : vector<8x8xf32> to vector<8xf32>
    %224 = vector.shape_cast %223 : vector<8xf32> to vector<8x1xf32>
    %225 = vector.broadcast %224 : vector<8x1xf32> to vector<8x8xf32>
    %226 = arith.subf %222, %225 : vector<8x8xf32>
    %227 = math.exp %226 : vector<8x8xf32>
    %cst_93 = arith.constant dense<0.000000e+00> : vector<8xf32>
    %228 = vector.multi_reduction <add>, %227, %cst_93 [1] : vector<8x8xf32> to vector<8xf32>
    %229 = vector.shape_cast %228 : vector<8xf32> to vector<8x1xf32>
    %230 = tpu.reciprocal %229 {approx = true} : vector<8x1xf32> -> vector<8x1xf32>
    %231 = vector.broadcast %230 : vector<8x1xf32> to vector<8x8xf32>
    %232 = arith.mulf %227, %231 : vector<8x8xf32>
    %cst_94 = arith.constant dense<0.000000e+00> : vector<8x8xf32>
    %233 = tpu.matmul %232, %219, %cst_94 {dimension_numbers = #tpu.dot_dimension_numbers<[1], [0], [0], [1], [0, 0, 1, 1], [], []>} : vector<8x8xf32>, vector<8x8xf32>, vector<8x8xf32> -> vector<8x8xf32>
    %234 = vector.extract_strided_slice %196 {offsets = [0, 16], sizes = [8, 8], strides = [1, 1]} : vector<8x32xf32> to vector<8x8xf32>
    %235 = vector.extract_strided_slice %199 {offsets = [0, 16], sizes = [8, 8], strides = [1, 1]} : vector<8x64xf32> to vector<8x8xf32>
    %236 = vector.extract_strided_slice %199 {offsets = [0, 48], sizes = [8, 8], strides = [1, 1]} : vector<8x64xf32> to vector<8x8xf32>
    %cst_95 = arith.constant dense<0.000000e+00> : vector<8x8xf32>
    %237 = tpu.matmul %234, %235, %cst_95 {dimension_numbers = #tpu.dot_dimension_numbers<[1], [1], [0], [0], [0, 0, 1, 0], [], []>} : vector<8x8xf32>, vector<8x8xf32>, vector<8x8xf32> -> vector<8x8xf32>
    %238 = vector.broadcast %5 : vector<1x8xf32> to vector<8x8xf32>
    %239 = arith.addf %237, %238 : vector<8x8xf32>
    %cst_96 = arith.constant dense<0xFF800000> : vector<8xf32>
    %240 = vector.multi_reduction <maximumf>, %239, %cst_96 [1] : vector<8x8xf32> to vector<8xf32>
    %241 = vector.shape_cast %240 : vector<8xf32> to vector<8x1xf32>
    %242 = vector.broadcast %241 : vector<8x1xf32> to vector<8x8xf32>
    %243 = arith.subf %239, %242 : vector<8x8xf32>
    %244 = math.exp %243 : vector<8x8xf32>
    %cst_97 = arith.constant dense<0.000000e+00> : vector<8xf32>
    %245 = vector.multi_reduction <add>, %244, %cst_97 [1] : vector<8x8xf32> to vector<8xf32>
    %246 = vector.shape_cast %245 : vector<8xf32> to vector<8x1xf32>
    %247 = tpu.reciprocal %246 {approx = true} : vector<8x1xf32> -> vector<8x1xf32>
    %248 = vector.broadcast %247 : vector<8x1xf32> to vector<8x8xf32>
    %249 = arith.mulf %244, %248 : vector<8x8xf32>
    %cst_98 = arith.constant dense<0.000000e+00> : vector<8x8xf32>
    %250 = tpu.matmul %249, %236, %cst_98 {dimension_numbers = #tpu.dot_dimension_numbers<[1], [0], [0], [1], [0, 0, 1, 1], [], []>} : vector<8x8xf32>, vector<8x8xf32>, vector<8x8xf32> -> vector<8x8xf32>
    %251 = vector.extract_strided_slice %196 {offsets = [0, 24], sizes = [8, 8], strides = [1, 1]} : vector<8x32xf32> to vector<8x8xf32>
    %252 = vector.extract_strided_slice %199 {offsets = [0, 24], sizes = [8, 8], strides = [1, 1]} : vector<8x64xf32> to vector<8x8xf32>
    %253 = vector.extract_strided_slice %199 {offsets = [0, 56], sizes = [8, 8], strides = [1, 1]} : vector<8x64xf32> to vector<8x8xf32>
    %cst_99 = arith.constant dense<0.000000e+00> : vector<8x8xf32>
    %254 = tpu.matmul %251, %252, %cst_99 {dimension_numbers = #tpu.dot_dimension_numbers<[1], [1], [0], [0], [0, 0, 1, 0], [], []>} : vector<8x8xf32>, vector<8x8xf32>, vector<8x8xf32> -> vector<8x8xf32>
    %255 = vector.broadcast %5 : vector<1x8xf32> to vector<8x8xf32>
    %256 = arith.addf %254, %255 : vector<8x8xf32>
    %cst_100 = arith.constant dense<0xFF800000> : vector<8xf32>
    %257 = vector.multi_reduction <maximumf>, %256, %cst_100 [1] : vector<8x8xf32> to vector<8xf32>
    %258 = vector.shape_cast %257 : vector<8xf32> to vector<8x1xf32>
    %259 = vector.broadcast %258 : vector<8x1xf32> to vector<8x8xf32>
    %260 = arith.subf %256, %259 : vector<8x8xf32>
    %261 = math.exp %260 : vector<8x8xf32>
    %cst_101 = arith.constant dense<0.000000e+00> : vector<8xf32>
    %262 = vector.multi_reduction <add>, %261, %cst_101 [1] : vector<8x8xf32> to vector<8xf32>
    %263 = vector.shape_cast %262 : vector<8xf32> to vector<8x1xf32>
    %264 = tpu.reciprocal %263 {approx = true} : vector<8x1xf32> -> vector<8x1xf32>
    %265 = vector.broadcast %264 : vector<8x1xf32> to vector<8x8xf32>
    %266 = arith.mulf %261, %265 : vector<8x8xf32>
    %cst_102 = arith.constant dense<0.000000e+00> : vector<8x8xf32>
    %267 = tpu.matmul %266, %253, %cst_102 {dimension_numbers = #tpu.dot_dimension_numbers<[1], [0], [0], [1], [0, 0, 1, 1], [], []>} : vector<8x8xf32>, vector<8x8xf32>, vector<8x8xf32> -> vector<8x8xf32>
    %268 = tpu.concatenate %216, %233, %250, %267 in 1 : vector<8x8xf32>, vector<8x8xf32>, vector<8x8xf32>, vector<8x8xf32> -> vector<8x32xf32>
    %cst_103 = arith.constant dense<0.000000e+00> : vector<8x32xf32>
    %269 = tpu.matmul %268, %176, %cst_103 {dimension_numbers = #tpu.dot_dimension_numbers<[1], [0], [0], [1], [0, 0, 1, 1], [], []>} : vector<8x32xf32>, vector<32x32xf32>, vector<8x32xf32> -> vector<8x32xf32>
    %270 = vector.broadcast %185 : vector<1x32xf32> to vector<8x32xf32>
    %271 = arith.addf %269, %270 : vector<8x32xf32>
    %272 = arith.addf %271, %3 : vector<8x32xf32>
    %cst_104 = arith.constant dense<0.000000e+00> : vector<8xf32>
    %273 = vector.multi_reduction <add>, %272, %cst_104 [1] : vector<8x32xf32> to vector<8xf32>
    %274 = vector.shape_cast %273 : vector<8xf32> to vector<8x1xf32>
    %cst_105 = arith.constant 3.200000e+01 : f32
    %275 = vector.broadcast %cst_105 : f32 to vector<8x1xf32>
    %276 = arith.divf %274, %275 : vector<8x1xf32>
    %277 = vector.broadcast %276 : vector<8x1xf32> to vector<8x32xf32>
    %278 = arith.subf %272, %277 : vector<8x32xf32>
    %279 = arith.mulf %278, %278 : vector<8x32xf32>
    %cst_106 = arith.constant dense<0.000000e+00> : vector<8xf32>
    %280 = vector.multi_reduction <add>, %279, %cst_106 [1] : vector<8x32xf32> to vector<8xf32>
    %281 = vector.shape_cast %280 : vector<8xf32> to vector<8x1xf32>
    %cst_107 = arith.constant 3.200000e+01 : f32
    %282 = vector.broadcast %cst_107 : f32 to vector<8x1xf32>
    %283 = arith.divf %281, %282 : vector<8x1xf32>
    %284 = vector.broadcast %276 : vector<8x1xf32> to vector<8x32xf32>
    %285 = arith.subf %272, %284 : vector<8x32xf32>
    %cst_108 = arith.constant 9.99999974E-6 : f32
    %286 = vector.broadcast %cst_108 : f32 to vector<8x1xf32>
    %287 = arith.addf %283, %286 : vector<8x1xf32>
    %288 = math.rsqrt %287 : vector<8x1xf32>
    %289 = vector.broadcast %288 : vector<8x1xf32> to vector<8x32xf32>
    %290 = arith.mulf %285, %289 : vector<8x32xf32>
    %291 = vector.broadcast %186 : vector<1x32xf32> to vector<8x32xf32>
    %292 = arith.mulf %290, %291 : vector<8x32xf32>
    %293 = vector.broadcast %187 : vector<1x32xf32> to vector<8x32xf32>
    %294 = arith.addf %292, %293 : vector<8x32xf32>
    %295 = vector.broadcast %11 : vector<8x1xf32> to vector<8x32xf32>
    %296 = arith.mulf %294, %295 : vector<8x32xf32>
    %cst_109 = arith.constant dense<0.000000e+00> : vector<8x64xf32>
    %297 = tpu.matmul %296, %178, %cst_109 {dimension_numbers = #tpu.dot_dimension_numbers<[1], [0], [0], [1], [0, 0, 1, 1], [], []>} : vector<8x32xf32>, vector<32x64xf32>, vector<8x64xf32> -> vector<8x64xf32>
    %298 = vector.broadcast %188 : vector<1x64xf32> to vector<8x64xf32>
    %299 = arith.addf %297, %298 : vector<8x64xf32>
    %cst_110 = arith.constant 0.000000e+00 : f32
    %300 = vector.broadcast %cst_110 : f32 to vector<8x64xf32>
    %301 = arith.maximumf %299, %300 : vector<8x64xf32>
    %cst_111 = arith.constant dense<0.000000e+00> : vector<8x32xf32>
    %302 = tpu.matmul %301, %180, %cst_111 {dimension_numbers = #tpu.dot_dimension_numbers<[1], [0], [0], [1], [0, 0, 1, 1], [], []>} : vector<8x64xf32>, vector<64x32xf32>, vector<8x32xf32> -> vector<8x32xf32>
    %303 = vector.broadcast %189 : vector<1x32xf32> to vector<8x32xf32>
    %304 = arith.addf %302, %303 : vector<8x32xf32>
    %305 = arith.addf %304, %296 : vector<8x32xf32>
    %cst_112 = arith.constant dense<0.000000e+00> : vector<8xf32>
    %306 = vector.multi_reduction <add>, %305, %cst_112 [1] : vector<8x32xf32> to vector<8xf32>
    %307 = vector.shape_cast %306 : vector<8xf32> to vector<8x1xf32>
    %cst_113 = arith.constant 3.200000e+01 : f32
    %308 = vector.broadcast %cst_113 : f32 to vector<8x1xf32>
    %309 = arith.divf %307, %308 : vector<8x1xf32>
    %310 = vector.broadcast %309 : vector<8x1xf32> to vector<8x32xf32>
    %311 = arith.subf %305, %310 : vector<8x32xf32>
    %312 = arith.mulf %311, %311 : vector<8x32xf32>
    %cst_114 = arith.constant dense<0.000000e+00> : vector<8xf32>
    %313 = vector.multi_reduction <add>, %312, %cst_114 [1] : vector<8x32xf32> to vector<8xf32>
    %314 = vector.shape_cast %313 : vector<8xf32> to vector<8x1xf32>
    %cst_115 = arith.constant 3.200000e+01 : f32
    %315 = vector.broadcast %cst_115 : f32 to vector<8x1xf32>
    %316 = arith.divf %314, %315 : vector<8x1xf32>
    %317 = vector.broadcast %309 : vector<8x1xf32> to vector<8x32xf32>
    %318 = arith.subf %305, %317 : vector<8x32xf32>
    %cst_116 = arith.constant 9.99999974E-6 : f32
    %319 = vector.broadcast %cst_116 : f32 to vector<8x1xf32>
    %320 = arith.addf %316, %319 : vector<8x1xf32>
    %321 = math.rsqrt %320 : vector<8x1xf32>
    %322 = vector.broadcast %321 : vector<8x1xf32> to vector<8x32xf32>
    %323 = arith.mulf %318, %322 : vector<8x32xf32>
    %324 = vector.broadcast %190 : vector<1x32xf32> to vector<8x32xf32>
    %325 = arith.mulf %323, %324 : vector<8x32xf32>
    %326 = vector.broadcast %191 : vector<1x32xf32> to vector<8x32xf32>
    %327 = arith.addf %325, %326 : vector<8x32xf32>
    %328 = vector.broadcast %11 : vector<8x1xf32> to vector<8x32xf32>
    %329 = arith.mulf %327, %328 : vector<8x32xf32>
    %c3 = arith.constant 3 : index
    %c0_117 = arith.constant 0 : index
    %c0_118 = arith.constant 0 : index
    %330 = vector.load %arg7[%c3, %c0_117, %c0_118] : memref<4x32x32xf32, #tpu.memory_space<vmem>>, vector<1x32x32xf32>
    %331 = vector.shape_cast %330 : vector<1x32x32xf32> to vector<32x32xf32>
    %c3_119 = arith.constant 3 : index
    %c0_120 = arith.constant 0 : index
    %c0_121 = arith.constant 0 : index
    %332 = vector.load %arg8[%c3_119, %c0_120, %c0_121] : memref<4x32x64xf32, #tpu.memory_space<vmem>>, vector<1x32x64xf32>
    %333 = vector.shape_cast %332 : vector<1x32x64xf32> to vector<32x64xf32>
    %c3_122 = arith.constant 3 : index
    %c0_123 = arith.constant 0 : index
    %c0_124 = arith.constant 0 : index
    %334 = vector.load %arg9[%c3_122, %c0_123, %c0_124] : memref<4x32x32xf32, #tpu.memory_space<vmem>>, vector<1x32x32xf32>
    %335 = vector.shape_cast %334 : vector<1x32x32xf32> to vector<32x32xf32>
    %c3_125 = arith.constant 3 : index
    %c0_126 = arith.constant 0 : index
    %c0_127 = arith.constant 0 : index
    %336 = vector.load %arg10[%c3_125, %c0_126, %c0_127] : memref<4x32x64xf32, #tpu.memory_space<vmem>>, vector<1x32x64xf32>
    %337 = vector.shape_cast %336 : vector<1x32x64xf32> to vector<32x64xf32>
    %c3_128 = arith.constant 3 : index
    %c0_129 = arith.constant 0 : index
    %c0_130 = arith.constant 0 : index
    %338 = vector.load %arg11[%c3_128, %c0_129, %c0_130] : memref<4x64x32xf32, #tpu.memory_space<vmem>>, vector<1x64x32xf32>
    %339 = vector.shape_cast %338 : vector<1x64x32xf32> to vector<64x32xf32>
    %c3_131 = arith.constant 3 : index
    %c0_132 = arith.constant 0 : index
    %c0_133 = arith.constant 0 : index
    %340 = vector.load %arg12[%c3_131, %c0_132, %c0_133] : memref<4x9x64xf32, #tpu.memory_space<vmem>>, vector<1x9x64xf32>
    %341 = vector.shape_cast %340 : vector<1x9x64xf32> to vector<9x64xf32>
    %342 = vector.extract_strided_slice %341 {offsets = [0, 0], sizes = [1, 32], strides = [1, 1]} : vector<9x64xf32> to vector<1x32xf32>
    %343 = vector.extract_strided_slice %341 {offsets = [1, 0], sizes = [1, 64], strides = [1, 1]} : vector<9x64xf32> to vector<1x64xf32>
    %344 = vector.extract_strided_slice %341 {offsets = [2, 0], sizes = [1, 32], strides = [1, 1]} : vector<9x64xf32> to vector<1x32xf32>
    %345 = vector.extract_strided_slice %341 {offsets = [3, 0], sizes = [1, 32], strides = [1, 1]} : vector<9x64xf32> to vector<1x32xf32>
    %346 = vector.extract_strided_slice %341 {offsets = [4, 0], sizes = [1, 32], strides = [1, 1]} : vector<9x64xf32> to vector<1x32xf32>
    %347 = vector.extract_strided_slice %341 {offsets = [5, 0], sizes = [1, 64], strides = [1, 1]} : vector<9x64xf32> to vector<1x64xf32>
    %348 = vector.extract_strided_slice %341 {offsets = [6, 0], sizes = [1, 32], strides = [1, 1]} : vector<9x64xf32> to vector<1x32xf32>
    %349 = vector.extract_strided_slice %341 {offsets = [7, 0], sizes = [1, 32], strides = [1, 1]} : vector<9x64xf32> to vector<1x32xf32>
    %350 = vector.extract_strided_slice %341 {offsets = [8, 0], sizes = [1, 32], strides = [1, 1]} : vector<9x64xf32> to vector<1x32xf32>
    %cst_134 = arith.constant dense<0.000000e+00> : vector<8x32xf32>
    %351 = tpu.matmul %170, %331, %cst_134 {dimension_numbers = #tpu.dot_dimension_numbers<[1], [0], [0], [1], [0, 0, 1, 1], [], []>} : vector<8x32xf32>, vector<32x32xf32>, vector<8x32xf32> -> vector<8x32xf32>
    %352 = vector.broadcast %342 : vector<1x32xf32> to vector<8x32xf32>
    %353 = arith.addf %351, %352 : vector<8x32xf32>
    %cst_135 = arith.constant 0.353553385 : f32
    %354 = vector.broadcast %cst_135 : f32 to vector<8x32xf32>
    %355 = arith.mulf %353, %354 : vector<8x32xf32>
    %cst_136 = arith.constant dense<0.000000e+00> : vector<8x64xf32>
    %356 = tpu.matmul %170, %333, %cst_136 {dimension_numbers = #tpu.dot_dimension_numbers<[1], [0], [0], [1], [0, 0, 1, 1], [], []>} : vector<8x32xf32>, vector<32x64xf32>, vector<8x64xf32> -> vector<8x64xf32>
    %357 = vector.broadcast %343 : vector<1x64xf32> to vector<8x64xf32>
    %358 = arith.addf %356, %357 : vector<8x64xf32>
    %359 = vector.extract_strided_slice %355 {offsets = [0, 0], sizes = [8, 8], strides = [1, 1]} : vector<8x32xf32> to vector<8x8xf32>
    %360 = vector.extract_strided_slice %358 {offsets = [0, 0], sizes = [8, 8], strides = [1, 1]} : vector<8x64xf32> to vector<8x8xf32>
    %361 = vector.extract_strided_slice %358 {offsets = [0, 32], sizes = [8, 8], strides = [1, 1]} : vector<8x64xf32> to vector<8x8xf32>
    %cst_137 = arith.constant dense<0.000000e+00> : vector<8x8xf32>
    %362 = tpu.matmul %359, %360, %cst_137 {dimension_numbers = #tpu.dot_dimension_numbers<[1], [1], [0], [0], [0, 0, 1, 0], [], []>} : vector<8x8xf32>, vector<8x8xf32>, vector<8x8xf32> -> vector<8x8xf32>
    %363 = vector.broadcast %5 : vector<1x8xf32> to vector<8x8xf32>
    %364 = arith.addf %362, %363 : vector<8x8xf32>
    %cst_138 = arith.constant dense<0xFF800000> : vector<8xf32>
    %365 = vector.multi_reduction <maximumf>, %364, %cst_138 [1] : vector<8x8xf32> to vector<8xf32>
    %366 = vector.shape_cast %365 : vector<8xf32> to vector<8x1xf32>
    %367 = vector.broadcast %366 : vector<8x1xf32> to vector<8x8xf32>
    %368 = arith.subf %364, %367 : vector<8x8xf32>
    %369 = math.exp %368 : vector<8x8xf32>
    %cst_139 = arith.constant dense<0.000000e+00> : vector<8xf32>
    %370 = vector.multi_reduction <add>, %369, %cst_139 [1] : vector<8x8xf32> to vector<8xf32>
    %371 = vector.shape_cast %370 : vector<8xf32> to vector<8x1xf32>
    %372 = tpu.reciprocal %371 {approx = true} : vector<8x1xf32> -> vector<8x1xf32>
    %373 = vector.broadcast %372 : vector<8x1xf32> to vector<8x8xf32>
    %374 = arith.mulf %369, %373 : vector<8x8xf32>
    %cst_140 = arith.constant dense<0.000000e+00> : vector<8x8xf32>
    %375 = tpu.matmul %374, %361, %cst_140 {dimension_numbers = #tpu.dot_dimension_numbers<[1], [0], [0], [1], [0, 0, 1, 1], [], []>} : vector<8x8xf32>, vector<8x8xf32>, vector<8x8xf32> -> vector<8x8xf32>
    %376 = vector.extract_strided_slice %355 {offsets = [0, 8], sizes = [8, 8], strides = [1, 1]} : vector<8x32xf32> to vector<8x8xf32>
    %377 = vector.extract_strided_slice %358 {offsets = [0, 8], sizes = [8, 8], strides = [1, 1]} : vector<8x64xf32> to vector<8x8xf32>
    %378 = vector.extract_strided_slice %358 {offsets = [0, 40], sizes = [8, 8], strides = [1, 1]} : vector<8x64xf32> to vector<8x8xf32>
    %cst_141 = arith.constant dense<0.000000e+00> : vector<8x8xf32>
    %379 = tpu.matmul %376, %377, %cst_141 {dimension_numbers = #tpu.dot_dimension_numbers<[1], [1], [0], [0], [0, 0, 1, 0], [], []>} : vector<8x8xf32>, vector<8x8xf32>, vector<8x8xf32> -> vector<8x8xf32>
    %380 = vector.broadcast %5 : vector<1x8xf32> to vector<8x8xf32>
    %381 = arith.addf %379, %380 : vector<8x8xf32>
    %cst_142 = arith.constant dense<0xFF800000> : vector<8xf32>
    %382 = vector.multi_reduction <maximumf>, %381, %cst_142 [1] : vector<8x8xf32> to vector<8xf32>
    %383 = vector.shape_cast %382 : vector<8xf32> to vector<8x1xf32>
    %384 = vector.broadcast %383 : vector<8x1xf32> to vector<8x8xf32>
    %385 = arith.subf %381, %384 : vector<8x8xf32>
    %386 = math.exp %385 : vector<8x8xf32>
    %cst_143 = arith.constant dense<0.000000e+00> : vector<8xf32>
    %387 = vector.multi_reduction <add>, %386, %cst_143 [1] : vector<8x8xf32> to vector<8xf32>
    %388 = vector.shape_cast %387 : vector<8xf32> to vector<8x1xf32>
    %389 = tpu.reciprocal %388 {approx = true} : vector<8x1xf32> -> vector<8x1xf32>
    %390 = vector.broadcast %389 : vector<8x1xf32> to vector<8x8xf32>
    %391 = arith.mulf %386, %390 : vector<8x8xf32>
    %cst_144 = arith.constant dense<0.000000e+00> : vector<8x8xf32>
    %392 = tpu.matmul %391, %378, %cst_144 {dimension_numbers = #tpu.dot_dimension_numbers<[1], [0], [0], [1], [0, 0, 1, 1], [], []>} : vector<8x8xf32>, vector<8x8xf32>, vector<8x8xf32> -> vector<8x8xf32>
    %393 = vector.extract_strided_slice %355 {offsets = [0, 16], sizes = [8, 8], strides = [1, 1]} : vector<8x32xf32> to vector<8x8xf32>
    %394 = vector.extract_strided_slice %358 {offsets = [0, 16], sizes = [8, 8], strides = [1, 1]} : vector<8x64xf32> to vector<8x8xf32>
    %395 = vector.extract_strided_slice %358 {offsets = [0, 48], sizes = [8, 8], strides = [1, 1]} : vector<8x64xf32> to vector<8x8xf32>
    %cst_145 = arith.constant dense<0.000000e+00> : vector<8x8xf32>
    %396 = tpu.matmul %393, %394, %cst_145 {dimension_numbers = #tpu.dot_dimension_numbers<[1], [1], [0], [0], [0, 0, 1, 0], [], []>} : vector<8x8xf32>, vector<8x8xf32>, vector<8x8xf32> -> vector<8x8xf32>
    %397 = vector.broadcast %5 : vector<1x8xf32> to vector<8x8xf32>
    %398 = arith.addf %396, %397 : vector<8x8xf32>
    %cst_146 = arith.constant dense<0xFF800000> : vector<8xf32>
    %399 = vector.multi_reduction <maximumf>, %398, %cst_146 [1] : vector<8x8xf32> to vector<8xf32>
    %400 = vector.shape_cast %399 : vector<8xf32> to vector<8x1xf32>
    %401 = vector.broadcast %400 : vector<8x1xf32> to vector<8x8xf32>
    %402 = arith.subf %398, %401 : vector<8x8xf32>
    %403 = math.exp %402 : vector<8x8xf32>
    %cst_147 = arith.constant dense<0.000000e+00> : vector<8xf32>
    %404 = vector.multi_reduction <add>, %403, %cst_147 [1] : vector<8x8xf32> to vector<8xf32>
    %405 = vector.shape_cast %404 : vector<8xf32> to vector<8x1xf32>
    %406 = tpu.reciprocal %405 {approx = true} : vector<8x1xf32> -> vector<8x1xf32>
    %407 = vector.broadcast %406 : vector<8x1xf32> to vector<8x8xf32>
    %408 = arith.mulf %403, %407 : vector<8x8xf32>
    %cst_148 = arith.constant dense<0.000000e+00> : vector<8x8xf32>
    %409 = tpu.matmul %408, %395, %cst_148 {dimension_numbers = #tpu.dot_dimension_numbers<[1], [0], [0], [1], [0, 0, 1, 1], [], []>} : vector<8x8xf32>, vector<8x8xf32>, vector<8x8xf32> -> vector<8x8xf32>
    %410 = vector.extract_strided_slice %355 {offsets = [0, 24], sizes = [8, 8], strides = [1, 1]} : vector<8x32xf32> to vector<8x8xf32>
    %411 = vector.extract_strided_slice %358 {offsets = [0, 24], sizes = [8, 8], strides = [1, 1]} : vector<8x64xf32> to vector<8x8xf32>
    %412 = vector.extract_strided_slice %358 {offsets = [0, 56], sizes = [8, 8], strides = [1, 1]} : vector<8x64xf32> to vector<8x8xf32>
    %cst_149 = arith.constant dense<0.000000e+00> : vector<8x8xf32>
    %413 = tpu.matmul %410, %411, %cst_149 {dimension_numbers = #tpu.dot_dimension_numbers<[1], [1], [0], [0], [0, 0, 1, 0], [], []>} : vector<8x8xf32>, vector<8x8xf32>, vector<8x8xf32> -> vector<8x8xf32>
    %414 = vector.broadcast %5 : vector<1x8xf32> to vector<8x8xf32>
    %415 = arith.addf %413, %414 : vector<8x8xf32>
    %cst_150 = arith.constant dense<0xFF800000> : vector<8xf32>
    %416 = vector.multi_reduction <maximumf>, %415, %cst_150 [1] : vector<8x8xf32> to vector<8xf32>
    %417 = vector.shape_cast %416 : vector<8xf32> to vector<8x1xf32>
    %418 = vector.broadcast %417 : vector<8x1xf32> to vector<8x8xf32>
    %419 = arith.subf %415, %418 : vector<8x8xf32>
    %420 = math.exp %419 : vector<8x8xf32>
    %cst_151 = arith.constant dense<0.000000e+00> : vector<8xf32>
    %421 = vector.multi_reduction <add>, %420, %cst_151 [1] : vector<8x8xf32> to vector<8xf32>
    %422 = vector.shape_cast %421 : vector<8xf32> to vector<8x1xf32>
    %423 = tpu.reciprocal %422 {approx = true} : vector<8x1xf32> -> vector<8x1xf32>
    %424 = vector.broadcast %423 : vector<8x1xf32> to vector<8x8xf32>
    %425 = arith.mulf %420, %424 : vector<8x8xf32>
    %cst_152 = arith.constant dense<0.000000e+00> : vector<8x8xf32>
    %426 = tpu.matmul %425, %412, %cst_152 {dimension_numbers = #tpu.dot_dimension_numbers<[1], [0], [0], [1], [0, 0, 1, 1], [], []>} : vector<8x8xf32>, vector<8x8xf32>, vector<8x8xf32> -> vector<8x8xf32>
    %427 = tpu.concatenate %375, %392, %409, %426 in 1 : vector<8x8xf32>, vector<8x8xf32>, vector<8x8xf32>, vector<8x8xf32> -> vector<8x32xf32>
    %cst_153 = arith.constant dense<0.000000e+00> : vector<8x32xf32>
    %428 = tpu.matmul %427, %335, %cst_153 {dimension_numbers = #tpu.dot_dimension_numbers<[1], [0], [0], [1], [0, 0, 1, 1], [], []>} : vector<8x32xf32>, vector<32x32xf32>, vector<8x32xf32> -> vector<8x32xf32>
    %429 = vector.broadcast %344 : vector<1x32xf32> to vector<8x32xf32>
    %430 = arith.addf %428, %429 : vector<8x32xf32>
    %431 = arith.addf %430, %170 : vector<8x32xf32>
    %cst_154 = arith.constant dense<0.000000e+00> : vector<8xf32>
    %432 = vector.multi_reduction <add>, %431, %cst_154 [1] : vector<8x32xf32> to vector<8xf32>
    %433 = vector.shape_cast %432 : vector<8xf32> to vector<8x1xf32>
    %cst_155 = arith.constant 3.200000e+01 : f32
    %434 = vector.broadcast %cst_155 : f32 to vector<8x1xf32>
    %435 = arith.divf %433, %434 : vector<8x1xf32>
    %436 = vector.broadcast %435 : vector<8x1xf32> to vector<8x32xf32>
    %437 = arith.subf %431, %436 : vector<8x32xf32>
    %438 = arith.mulf %437, %437 : vector<8x32xf32>
    %cst_156 = arith.constant dense<0.000000e+00> : vector<8xf32>
    %439 = vector.multi_reduction <add>, %438, %cst_156 [1] : vector<8x32xf32> to vector<8xf32>
    %440 = vector.shape_cast %439 : vector<8xf32> to vector<8x1xf32>
    %cst_157 = arith.constant 3.200000e+01 : f32
    %441 = vector.broadcast %cst_157 : f32 to vector<8x1xf32>
    %442 = arith.divf %440, %441 : vector<8x1xf32>
    %443 = vector.broadcast %435 : vector<8x1xf32> to vector<8x32xf32>
    %444 = arith.subf %431, %443 : vector<8x32xf32>
    %cst_158 = arith.constant 9.99999974E-6 : f32
    %445 = vector.broadcast %cst_158 : f32 to vector<8x1xf32>
    %446 = arith.addf %442, %445 : vector<8x1xf32>
    %447 = math.rsqrt %446 : vector<8x1xf32>
    %448 = vector.broadcast %447 : vector<8x1xf32> to vector<8x32xf32>
    %449 = arith.mulf %444, %448 : vector<8x32xf32>
    %450 = vector.broadcast %345 : vector<1x32xf32> to vector<8x32xf32>
    %451 = arith.mulf %449, %450 : vector<8x32xf32>
    %452 = vector.broadcast %346 : vector<1x32xf32> to vector<8x32xf32>
    %453 = arith.addf %451, %452 : vector<8x32xf32>
    %454 = vector.broadcast %9 : vector<8x1xf32> to vector<8x32xf32>
    %455 = arith.mulf %453, %454 : vector<8x32xf32>
    %cst_159 = arith.constant dense<0.000000e+00> : vector<8x64xf32>
    %456 = tpu.matmul %455, %337, %cst_159 {dimension_numbers = #tpu.dot_dimension_numbers<[1], [0], [0], [1], [0, 0, 1, 1], [], []>} : vector<8x32xf32>, vector<32x64xf32>, vector<8x64xf32> -> vector<8x64xf32>
    %457 = vector.broadcast %347 : vector<1x64xf32> to vector<8x64xf32>
    %458 = arith.addf %456, %457 : vector<8x64xf32>
    %cst_160 = arith.constant 0.000000e+00 : f32
    %459 = vector.broadcast %cst_160 : f32 to vector<8x64xf32>
    %460 = arith.maximumf %458, %459 : vector<8x64xf32>
    %cst_161 = arith.constant dense<0.000000e+00> : vector<8x32xf32>
    %461 = tpu.matmul %460, %339, %cst_161 {dimension_numbers = #tpu.dot_dimension_numbers<[1], [0], [0], [1], [0, 0, 1, 1], [], []>} : vector<8x64xf32>, vector<64x32xf32>, vector<8x32xf32> -> vector<8x32xf32>
    %462 = vector.broadcast %348 : vector<1x32xf32> to vector<8x32xf32>
    %463 = arith.addf %461, %462 : vector<8x32xf32>
    %464 = arith.addf %463, %455 : vector<8x32xf32>
    %cst_162 = arith.constant dense<0.000000e+00> : vector<8xf32>
    %465 = vector.multi_reduction <add>, %464, %cst_162 [1] : vector<8x32xf32> to vector<8xf32>
    %466 = vector.shape_cast %465 : vector<8xf32> to vector<8x1xf32>
    %cst_163 = arith.constant 3.200000e+01 : f32
    %467 = vector.broadcast %cst_163 : f32 to vector<8x1xf32>
    %468 = arith.divf %466, %467 : vector<8x1xf32>
    %469 = vector.broadcast %468 : vector<8x1xf32> to vector<8x32xf32>
    %470 = arith.subf %464, %469 : vector<8x32xf32>
    %471 = arith.mulf %470, %470 : vector<8x32xf32>
    %cst_164 = arith.constant dense<0.000000e+00> : vector<8xf32>
    %472 = vector.multi_reduction <add>, %471, %cst_164 [1] : vector<8x32xf32> to vector<8xf32>
    %473 = vector.shape_cast %472 : vector<8xf32> to vector<8x1xf32>
    %cst_165 = arith.constant 3.200000e+01 : f32
    %474 = vector.broadcast %cst_165 : f32 to vector<8x1xf32>
    %475 = arith.divf %473, %474 : vector<8x1xf32>
    %476 = vector.broadcast %468 : vector<8x1xf32> to vector<8x32xf32>
    %477 = arith.subf %464, %476 : vector<8x32xf32>
    %cst_166 = arith.constant 9.99999974E-6 : f32
    %478 = vector.broadcast %cst_166 : f32 to vector<8x1xf32>
    %479 = arith.addf %475, %478 : vector<8x1xf32>
    %480 = math.rsqrt %479 : vector<8x1xf32>
    %481 = vector.broadcast %480 : vector<8x1xf32> to vector<8x32xf32>
    %482 = arith.mulf %477, %481 : vector<8x32xf32>
    %483 = vector.broadcast %349 : vector<1x32xf32> to vector<8x32xf32>
    %484 = arith.mulf %482, %483 : vector<8x32xf32>
    %485 = vector.broadcast %350 : vector<1x32xf32> to vector<8x32xf32>
    %486 = arith.addf %484, %485 : vector<8x32xf32>
    %487 = vector.broadcast %9 : vector<8x1xf32> to vector<8x32xf32>
    %488 = arith.mulf %486, %487 : vector<8x32xf32>
    %c3_167 = arith.constant 3 : index
    %c0_168 = arith.constant 0 : index
    %c0_169 = arith.constant 0 : index
    %489 = vector.load %arg7[%c3_167, %c0_168, %c0_169] : memref<4x32x32xf32, #tpu.memory_space<vmem>>, vector<1x32x32xf32>
    %490 = vector.shape_cast %489 : vector<1x32x32xf32> to vector<32x32xf32>
    %c3_170 = arith.constant 3 : index
    %c0_171 = arith.constant 0 : index
    %c0_172 = arith.constant 0 : index
    %491 = vector.load %arg8[%c3_170, %c0_171, %c0_172] : memref<4x32x64xf32, #tpu.memory_space<vmem>>, vector<1x32x64xf32>
    %492 = vector.shape_cast %491 : vector<1x32x64xf32> to vector<32x64xf32>
    %c3_173 = arith.constant 3 : index
    %c0_174 = arith.constant 0 : index
    %c0_175 = arith.constant 0 : index
    %493 = vector.load %arg9[%c3_173, %c0_174, %c0_175] : memref<4x32x32xf32, #tpu.memory_space<vmem>>, vector<1x32x32xf32>
    %494 = vector.shape_cast %493 : vector<1x32x32xf32> to vector<32x32xf32>
    %c3_176 = arith.constant 3 : index
    %c0_177 = arith.constant 0 : index
    %c0_178 = arith.constant 0 : index
    %495 = vector.load %arg10[%c3_176, %c0_177, %c0_178] : memref<4x32x64xf32, #tpu.memory_space<vmem>>, vector<1x32x64xf32>
    %496 = vector.shape_cast %495 : vector<1x32x64xf32> to vector<32x64xf32>
    %c3_179 = arith.constant 3 : index
    %c0_180 = arith.constant 0 : index
    %c0_181 = arith.constant 0 : index
    %497 = vector.load %arg11[%c3_179, %c0_180, %c0_181] : memref<4x64x32xf32, #tpu.memory_space<vmem>>, vector<1x64x32xf32>
    %498 = vector.shape_cast %497 : vector<1x64x32xf32> to vector<64x32xf32>
    %c3_182 = arith.constant 3 : index
    %c0_183 = arith.constant 0 : index
    %c0_184 = arith.constant 0 : index
    %499 = vector.load %arg12[%c3_182, %c0_183, %c0_184] : memref<4x9x64xf32, #tpu.memory_space<vmem>>, vector<1x9x64xf32>
    %500 = vector.shape_cast %499 : vector<1x9x64xf32> to vector<9x64xf32>
    %501 = vector.extract_strided_slice %500 {offsets = [0, 0], sizes = [1, 32], strides = [1, 1]} : vector<9x64xf32> to vector<1x32xf32>
    %502 = vector.extract_strided_slice %500 {offsets = [1, 0], sizes = [1, 64], strides = [1, 1]} : vector<9x64xf32> to vector<1x64xf32>
    %503 = vector.extract_strided_slice %500 {offsets = [2, 0], sizes = [1, 32], strides = [1, 1]} : vector<9x64xf32> to vector<1x32xf32>
    %504 = vector.extract_strided_slice %500 {offsets = [3, 0], sizes = [1, 32], strides = [1, 1]} : vector<9x64xf32> to vector<1x32xf32>
    %505 = vector.extract_strided_slice %500 {offsets = [4, 0], sizes = [1, 32], strides = [1, 1]} : vector<9x64xf32> to vector<1x32xf32>
    %506 = vector.extract_strided_slice %500 {offsets = [5, 0], sizes = [1, 64], strides = [1, 1]} : vector<9x64xf32> to vector<1x64xf32>
    %507 = vector.extract_strided_slice %500 {offsets = [6, 0], sizes = [1, 32], strides = [1, 1]} : vector<9x64xf32> to vector<1x32xf32>
    %508 = vector.extract_strided_slice %500 {offsets = [7, 0], sizes = [1, 32], strides = [1, 1]} : vector<9x64xf32> to vector<1x32xf32>
    %509 = vector.extract_strided_slice %500 {offsets = [8, 0], sizes = [1, 32], strides = [1, 1]} : vector<9x64xf32> to vector<1x32xf32>
    %cst_185 = arith.constant dense<0.000000e+00> : vector<8x32xf32>
    %510 = tpu.matmul %329, %490, %cst_185 {dimension_numbers = #tpu.dot_dimension_numbers<[1], [0], [0], [1], [0, 0, 1, 1], [], []>} : vector<8x32xf32>, vector<32x32xf32>, vector<8x32xf32> -> vector<8x32xf32>
    %511 = vector.broadcast %501 : vector<1x32xf32> to vector<8x32xf32>
    %512 = arith.addf %510, %511 : vector<8x32xf32>
    %cst_186 = arith.constant 0.353553385 : f32
    %513 = vector.broadcast %cst_186 : f32 to vector<8x32xf32>
    %514 = arith.mulf %512, %513 : vector<8x32xf32>
    %cst_187 = arith.constant dense<0.000000e+00> : vector<8x64xf32>
    %515 = tpu.matmul %329, %492, %cst_187 {dimension_numbers = #tpu.dot_dimension_numbers<[1], [0], [0], [1], [0, 0, 1, 1], [], []>} : vector<8x32xf32>, vector<32x64xf32>, vector<8x64xf32> -> vector<8x64xf32>
    %516 = vector.broadcast %502 : vector<1x64xf32> to vector<8x64xf32>
    %517 = arith.addf %515, %516 : vector<8x64xf32>
    %518 = vector.extract_strided_slice %514 {offsets = [0, 0], sizes = [8, 8], strides = [1, 1]} : vector<8x32xf32> to vector<8x8xf32>
    %519 = vector.extract_strided_slice %517 {offsets = [0, 0], sizes = [8, 8], strides = [1, 1]} : vector<8x64xf32> to vector<8x8xf32>
    %520 = vector.extract_strided_slice %517 {offsets = [0, 32], sizes = [8, 8], strides = [1, 1]} : vector<8x64xf32> to vector<8x8xf32>
    %cst_188 = arith.constant dense<0.000000e+00> : vector<8x8xf32>
    %521 = tpu.matmul %518, %519, %cst_188 {dimension_numbers = #tpu.dot_dimension_numbers<[1], [1], [0], [0], [0, 0, 1, 0], [], []>} : vector<8x8xf32>, vector<8x8xf32>, vector<8x8xf32> -> vector<8x8xf32>
    %522 = vector.broadcast %7 : vector<1x8xf32> to vector<8x8xf32>
    %523 = arith.addf %521, %522 : vector<8x8xf32>
    %cst_189 = arith.constant dense<0xFF800000> : vector<8xf32>
    %524 = vector.multi_reduction <maximumf>, %523, %cst_189 [1] : vector<8x8xf32> to vector<8xf32>
    %525 = vector.shape_cast %524 : vector<8xf32> to vector<8x1xf32>
    %526 = vector.broadcast %525 : vector<8x1xf32> to vector<8x8xf32>
    %527 = arith.subf %523, %526 : vector<8x8xf32>
    %528 = math.exp %527 : vector<8x8xf32>
    %cst_190 = arith.constant dense<0.000000e+00> : vector<8xf32>
    %529 = vector.multi_reduction <add>, %528, %cst_190 [1] : vector<8x8xf32> to vector<8xf32>
    %530 = vector.shape_cast %529 : vector<8xf32> to vector<8x1xf32>
    %531 = tpu.reciprocal %530 {approx = true} : vector<8x1xf32> -> vector<8x1xf32>
    %532 = vector.broadcast %531 : vector<8x1xf32> to vector<8x8xf32>
    %533 = arith.mulf %528, %532 : vector<8x8xf32>
    %cst_191 = arith.constant dense<0.000000e+00> : vector<8x8xf32>
    %534 = tpu.matmul %533, %520, %cst_191 {dimension_numbers = #tpu.dot_dimension_numbers<[1], [0], [0], [1], [0, 0, 1, 1], [], []>} : vector<8x8xf32>, vector<8x8xf32>, vector<8x8xf32> -> vector<8x8xf32>
    %535 = vector.extract_strided_slice %514 {offsets = [0, 8], sizes = [8, 8], strides = [1, 1]} : vector<8x32xf32> to vector<8x8xf32>
    %536 = vector.extract_strided_slice %517 {offsets = [0, 8], sizes = [8, 8], strides = [1, 1]} : vector<8x64xf32> to vector<8x8xf32>
    %537 = vector.extract_strided_slice %517 {offsets = [0, 40], sizes = [8, 8], strides = [1, 1]} : vector<8x64xf32> to vector<8x8xf32>
    %cst_192 = arith.constant dense<0.000000e+00> : vector<8x8xf32>
    %538 = tpu.matmul %535, %536, %cst_192 {dimension_numbers = #tpu.dot_dimension_numbers<[1], [1], [0], [0], [0, 0, 1, 0], [], []>} : vector<8x8xf32>, vector<8x8xf32>, vector<8x8xf32> -> vector<8x8xf32>
    %539 = vector.broadcast %7 : vector<1x8xf32> to vector<8x8xf32>
    %540 = arith.addf %538, %539 : vector<8x8xf32>
    %cst_193 = arith.constant dense<0xFF800000> : vector<8xf32>
    %541 = vector.multi_reduction <maximumf>, %540, %cst_193 [1] : vector<8x8xf32> to vector<8xf32>
    %542 = vector.shape_cast %541 : vector<8xf32> to vector<8x1xf32>
    %543 = vector.broadcast %542 : vector<8x1xf32> to vector<8x8xf32>
    %544 = arith.subf %540, %543 : vector<8x8xf32>
    %545 = math.exp %544 : vector<8x8xf32>
    %cst_194 = arith.constant dense<0.000000e+00> : vector<8xf32>
    %546 = vector.multi_reduction <add>, %545, %cst_194 [1] : vector<8x8xf32> to vector<8xf32>
    %547 = vector.shape_cast %546 : vector<8xf32> to vector<8x1xf32>
    %548 = tpu.reciprocal %547 {approx = true} : vector<8x1xf32> -> vector<8x1xf32>
    %549 = vector.broadcast %548 : vector<8x1xf32> to vector<8x8xf32>
    %550 = arith.mulf %545, %549 : vector<8x8xf32>
    %cst_195 = arith.constant dense<0.000000e+00> : vector<8x8xf32>
    %551 = tpu.matmul %550, %537, %cst_195 {dimension_numbers = #tpu.dot_dimension_numbers<[1], [0], [0], [1], [0, 0, 1, 1], [], []>} : vector<8x8xf32>, vector<8x8xf32>, vector<8x8xf32> -> vector<8x8xf32>
    %552 = vector.extract_strided_slice %514 {offsets = [0, 16], sizes = [8, 8], strides = [1, 1]} : vector<8x32xf32> to vector<8x8xf32>
    %553 = vector.extract_strided_slice %517 {offsets = [0, 16], sizes = [8, 8], strides = [1, 1]} : vector<8x64xf32> to vector<8x8xf32>
    %554 = vector.extract_strided_slice %517 {offsets = [0, 48], sizes = [8, 8], strides = [1, 1]} : vector<8x64xf32> to vector<8x8xf32>
    %cst_196 = arith.constant dense<0.000000e+00> : vector<8x8xf32>
    %555 = tpu.matmul %552, %553, %cst_196 {dimension_numbers = #tpu.dot_dimension_numbers<[1], [1], [0], [0], [0, 0, 1, 0], [], []>} : vector<8x8xf32>, vector<8x8xf32>, vector<8x8xf32> -> vector<8x8xf32>
    %556 = vector.broadcast %7 : vector<1x8xf32> to vector<8x8xf32>
    %557 = arith.addf %555, %556 : vector<8x8xf32>
    %cst_197 = arith.constant dense<0xFF800000> : vector<8xf32>
    %558 = vector.multi_reduction <maximumf>, %557, %cst_197 [1] : vector<8x8xf32> to vector<8xf32>
    %559 = vector.shape_cast %558 : vector<8xf32> to vector<8x1xf32>
    %560 = vector.broadcast %559 : vector<8x1xf32> to vector<8x8xf32>
    %561 = arith.subf %557, %560 : vector<8x8xf32>
    %562 = math.exp %561 : vector<8x8xf32>
    %cst_198 = arith.constant dense<0.000000e+00> : vector<8xf32>
    %563 = vector.multi_reduction <add>, %562, %cst_198 [1] : vector<8x8xf32> to vector<8xf32>
    %564 = vector.shape_cast %563 : vector<8xf32> to vector<8x1xf32>
    %565 = tpu.reciprocal %564 {approx = true} : vector<8x1xf32> -> vector<8x1xf32>
    %566 = vector.broadcast %565 : vector<8x1xf32> to vector<8x8xf32>
    %567 = arith.mulf %562, %566 : vector<8x8xf32>
    %cst_199 = arith.constant dense<0.000000e+00> : vector<8x8xf32>
    %568 = tpu.matmul %567, %554, %cst_199 {dimension_numbers = #tpu.dot_dimension_numbers<[1], [0], [0], [1], [0, 0, 1, 1], [], []>} : vector<8x8xf32>, vector<8x8xf32>, vector<8x8xf32> -> vector<8x8xf32>
    %569 = vector.extract_strided_slice %514 {offsets = [0, 24], sizes = [8, 8], strides = [1, 1]} : vector<8x32xf32> to vector<8x8xf32>
    %570 = vector.extract_strided_slice %517 {offsets = [0, 24], sizes = [8, 8], strides = [1, 1]} : vector<8x64xf32> to vector<8x8xf32>
    %571 = vector.extract_strided_slice %517 {offsets = [0, 56], sizes = [8, 8], strides = [1, 1]} : vector<8x64xf32> to vector<8x8xf32>
    %cst_200 = arith.constant dense<0.000000e+00> : vector<8x8xf32>
    %572 = tpu.matmul %569, %570, %cst_200 {dimension_numbers = #tpu.dot_dimension_numbers<[1], [1], [0], [0], [0, 0, 1, 0], [], []>} : vector<8x8xf32>, vector<8x8xf32>, vector<8x8xf32> -> vector<8x8xf32>
    %573 = vector.broadcast %7 : vector<1x8xf32> to vector<8x8xf32>
    %574 = arith.addf %572, %573 : vector<8x8xf32>
    %cst_201 = arith.constant dense<0xFF800000> : vector<8xf32>
    %575 = vector.multi_reduction <maximumf>, %574, %cst_201 [1] : vector<8x8xf32> to vector<8xf32>
    %576 = vector.shape_cast %575 : vector<8xf32> to vector<8x1xf32>
    %577 = vector.broadcast %576 : vector<8x1xf32> to vector<8x8xf32>
    %578 = arith.subf %574, %577 : vector<8x8xf32>
    %579 = math.exp %578 : vector<8x8xf32>
    %cst_202 = arith.constant dense<0.000000e+00> : vector<8xf32>
    %580 = vector.multi_reduction <add>, %579, %cst_202 [1] : vector<8x8xf32> to vector<8xf32>
    %581 = vector.shape_cast %580 : vector<8xf32> to vector<8x1xf32>
    %582 = tpu.reciprocal %581 {approx = true} : vector<8x1xf32> -> vector<8x1xf32>
    %583 = vector.broadcast %582 : vector<8x1xf32> to vector<8x8xf32>
    %584 = arith.mulf %579, %583 : vector<8x8xf32>
    %cst_203 = arith.constant dense<0.000000e+00> : vector<8x8xf32>
    %585 = tpu.matmul %584, %571, %cst_203 {dimension_numbers = #tpu.dot_dimension_numbers<[1], [0], [0], [1], [0, 0, 1, 1], [], []>} : vector<8x8xf32>, vector<8x8xf32>, vector<8x8xf32> -> vector<8x8xf32>
    %586 = tpu.concatenate %534, %551, %568, %585 in 1 : vector<8x8xf32>, vector<8x8xf32>, vector<8x8xf32>, vector<8x8xf32> -> vector<8x32xf32>
    %cst_204 = arith.constant dense<0.000000e+00> : vector<8x32xf32>
    %587 = tpu.matmul %586, %494, %cst_204 {dimension_numbers = #tpu.dot_dimension_numbers<[1], [0], [0], [1], [0, 0, 1, 1], [], []>} : vector<8x32xf32>, vector<32x32xf32>, vector<8x32xf32> -> vector<8x32xf32>
    %588 = vector.broadcast %503 : vector<1x32xf32> to vector<8x32xf32>
    %589 = arith.addf %587, %588 : vector<8x32xf32>
    %590 = arith.addf %589, %329 : vector<8x32xf32>
    %cst_205 = arith.constant dense<0.000000e+00> : vector<8xf32>
    %591 = vector.multi_reduction <add>, %590, %cst_205 [1] : vector<8x32xf32> to vector<8xf32>
    %592 = vector.shape_cast %591 : vector<8xf32> to vector<8x1xf32>
    %cst_206 = arith.constant 3.200000e+01 : f32
    %593 = vector.broadcast %cst_206 : f32 to vector<8x1xf32>
    %594 = arith.divf %592, %593 : vector<8x1xf32>
    %595 = vector.broadcast %594 : vector<8x1xf32> to vector<8x32xf32>
    %596 = arith.subf %590, %595 : vector<8x32xf32>
    %597 = arith.mulf %596, %596 : vector<8x32xf32>
    %cst_207 = arith.constant dense<0.000000e+00> : vector<8xf32>
    %598 = vector.multi_reduction <add>, %597, %cst_207 [1] : vector<8x32xf32> to vector<8xf32>
    %599 = vector.shape_cast %598 : vector<8xf32> to vector<8x1xf32>
    %cst_208 = arith.constant 3.200000e+01 : f32
    %600 = vector.broadcast %cst_208 : f32 to vector<8x1xf32>
    %601 = arith.divf %599, %600 : vector<8x1xf32>
    %602 = vector.broadcast %594 : vector<8x1xf32> to vector<8x32xf32>
    %603 = arith.subf %590, %602 : vector<8x32xf32>
    %cst_209 = arith.constant 9.99999974E-6 : f32
    %604 = vector.broadcast %cst_209 : f32 to vector<8x1xf32>
    %605 = arith.addf %601, %604 : vector<8x1xf32>
    %606 = math.rsqrt %605 : vector<8x1xf32>
    %607 = vector.broadcast %606 : vector<8x1xf32> to vector<8x32xf32>
    %608 = arith.mulf %603, %607 : vector<8x32xf32>
    %609 = vector.broadcast %504 : vector<1x32xf32> to vector<8x32xf32>
    %610 = arith.mulf %608, %609 : vector<8x32xf32>
    %611 = vector.broadcast %505 : vector<1x32xf32> to vector<8x32xf32>
    %612 = arith.addf %610, %611 : vector<8x32xf32>
    %613 = vector.broadcast %11 : vector<8x1xf32> to vector<8x32xf32>
    %614 = arith.mulf %612, %613 : vector<8x32xf32>
    %cst_210 = arith.constant dense<0.000000e+00> : vector<8x64xf32>
    %615 = tpu.matmul %614, %496, %cst_210 {dimension_numbers = #tpu.dot_dimension_numbers<[1], [0], [0], [1], [0, 0, 1, 1], [], []>} : vector<8x32xf32>, vector<32x64xf32>, vector<8x64xf32> -> vector<8x64xf32>
    %616 = vector.broadcast %506 : vector<1x64xf32> to vector<8x64xf32>
    %617 = arith.addf %615, %616 : vector<8x64xf32>
    %cst_211 = arith.constant 0.000000e+00 : f32
    %618 = vector.broadcast %cst_211 : f32 to vector<8x64xf32>
    %619 = arith.maximumf %617, %618 : vector<8x64xf32>
    %cst_212 = arith.constant dense<0.000000e+00> : vector<8x32xf32>
    %620 = tpu.matmul %619, %498, %cst_212 {dimension_numbers = #tpu.dot_dimension_numbers<[1], [0], [0], [1], [0, 0, 1, 1], [], []>} : vector<8x64xf32>, vector<64x32xf32>, vector<8x32xf32> -> vector<8x32xf32>
    %621 = vector.broadcast %507 : vector<1x32xf32> to vector<8x32xf32>
    %622 = arith.addf %620, %621 : vector<8x32xf32>
    %623 = arith.addf %622, %614 : vector<8x32xf32>
    %cst_213 = arith.constant dense<0.000000e+00> : vector<8xf32>
    %624 = vector.multi_reduction <add>, %623, %cst_213 [1] : vector<8x32xf32> to vector<8xf32>
    %625 = vector.shape_cast %624 : vector<8xf32> to vector<8x1xf32>
    %cst_214 = arith.constant 3.200000e+01 : f32
    %626 = vector.broadcast %cst_214 : f32 to vector<8x1xf32>
    %627 = arith.divf %625, %626 : vector<8x1xf32>
    %628 = vector.broadcast %627 : vector<8x1xf32> to vector<8x32xf32>
    %629 = arith.subf %623, %628 : vector<8x32xf32>
    %630 = arith.mulf %629, %629 : vector<8x32xf32>
    %cst_215 = arith.constant dense<0.000000e+00> : vector<8xf32>
    %631 = vector.multi_reduction <add>, %630, %cst_215 [1] : vector<8x32xf32> to vector<8xf32>
    %632 = vector.shape_cast %631 : vector<8xf32> to vector<8x1xf32>
    %cst_216 = arith.constant 3.200000e+01 : f32
    %633 = vector.broadcast %cst_216 : f32 to vector<8x1xf32>
    %634 = arith.divf %632, %633 : vector<8x1xf32>
    %635 = vector.broadcast %627 : vector<8x1xf32> to vector<8x32xf32>
    %636 = arith.subf %623, %635 : vector<8x32xf32>
    %cst_217 = arith.constant 9.99999974E-6 : f32
    %637 = vector.broadcast %cst_217 : f32 to vector<8x1xf32>
    %638 = arith.addf %634, %637 : vector<8x1xf32>
    %639 = math.rsqrt %638 : vector<8x1xf32>
    %640 = vector.broadcast %639 : vector<8x1xf32> to vector<8x32xf32>
    %641 = arith.mulf %636, %640 : vector<8x32xf32>
    %642 = vector.broadcast %508 : vector<1x32xf32> to vector<8x32xf32>
    %643 = arith.mulf %641, %642 : vector<8x32xf32>
    %644 = vector.broadcast %509 : vector<1x32xf32> to vector<8x32xf32>
    %645 = arith.addf %643, %644 : vector<8x32xf32>
    %646 = vector.broadcast %11 : vector<8x1xf32> to vector<8x32xf32>
    %647 = arith.mulf %645, %646 : vector<8x32xf32>
    %c0_218 = arith.constant 0 : index
    %c0_219 = arith.constant 0 : index
    %648 = vector.load %arg13[%c0_218, %c0_219] : memref<32x64xf32, #tpu.memory_space<vmem>>, vector<32x64xf32>
    %c0_220 = arith.constant 0 : index
    %c0_221 = arith.constant 0 : index
    %649 = vector.load %arg14[%c0_220, %c0_221] : memref<2x32xf32, #tpu.memory_space<vmem>>, vector<2x32xf32>
    %650 = vector.extract_strided_slice %648 {offsets = [0, 0], sizes = [32, 32], strides = [1, 1]} : vector<32x64xf32> to vector<32x32xf32>
    %651 = vector.extract_strided_slice %648 {offsets = [0, 32], sizes = [32, 32], strides = [1, 1]} : vector<32x64xf32> to vector<32x32xf32>
    %652 = vector.extract_strided_slice %649 {offsets = [0, 0], sizes = [1, 32], strides = [1, 1]} : vector<2x32xf32> to vector<1x32xf32>
    %653 = vector.extract_strided_slice %649 {offsets = [1, 0], sizes = [1, 32], strides = [1, 1]} : vector<2x32xf32> to vector<1x32xf32>
    %cst_222 = arith.constant dense<0.000000e+00> : vector<8x32xf32>
    %654 = tpu.matmul %647, %650, %cst_222 {dimension_numbers = #tpu.dot_dimension_numbers<[1], [0], [0], [1], [0, 0, 1, 1], [], []>} : vector<8x32xf32>, vector<32x32xf32>, vector<8x32xf32> -> vector<8x32xf32>
    %655 = vector.broadcast %652 : vector<1x32xf32> to vector<8x32xf32>
    %656 = arith.addf %654, %655 : vector<8x32xf32>
    %cst_223 = arith.constant 0.353553385 : f32
    %657 = vector.broadcast %cst_223 : f32 to vector<8x32xf32>
    %658 = arith.mulf %656, %657 : vector<8x32xf32>
    %cst_224 = arith.constant dense<0.000000e+00> : vector<8x32xf32>
    %659 = tpu.matmul %488, %651, %cst_224 {dimension_numbers = #tpu.dot_dimension_numbers<[1], [0], [0], [1], [0, 0, 1, 1], [], []>} : vector<8x32xf32>, vector<32x32xf32>, vector<8x32xf32> -> vector<8x32xf32>
    %660 = vector.broadcast %653 : vector<1x32xf32> to vector<8x32xf32>
    %661 = arith.addf %659, %660 : vector<8x32xf32>
    %662 = vector.extract_strided_slice %658 {offsets = [0, 0], sizes = [8, 8], strides = [1, 1]} : vector<8x32xf32> to vector<8x8xf32>
    %663 = vector.extract_strided_slice %661 {offsets = [0, 0], sizes = [8, 8], strides = [1, 1]} : vector<8x32xf32> to vector<8x8xf32>
    %cst_225 = arith.constant dense<0.000000e+00> : vector<8x8xf32>
    %664 = tpu.matmul %662, %663, %cst_225 {dimension_numbers = #tpu.dot_dimension_numbers<[1], [1], [0], [0], [0, 0, 1, 0], [], []>} : vector<8x8xf32>, vector<8x8xf32>, vector<8x8xf32> -> vector<8x8xf32>
    %665 = vector.broadcast %5 : vector<1x8xf32> to vector<8x8xf32>
    %666 = arith.addf %664, %665 : vector<8x8xf32>
    %cst_226 = arith.constant dense<0xFF800000> : vector<8xf32>
    %667 = vector.multi_reduction <maximumf>, %666, %cst_226 [1] : vector<8x8xf32> to vector<8xf32>
    %668 = vector.shape_cast %667 : vector<8xf32> to vector<8x1xf32>
    %669 = vector.broadcast %668 : vector<8x1xf32> to vector<8x8xf32>
    %670 = arith.subf %666, %669 : vector<8x8xf32>
    %671 = math.exp %670 : vector<8x8xf32>
    %cst_227 = arith.constant dense<0.000000e+00> : vector<8xf32>
    %672 = vector.multi_reduction <add>, %671, %cst_227 [1] : vector<8x8xf32> to vector<8xf32>
    %673 = vector.shape_cast %672 : vector<8xf32> to vector<8x1xf32>
    %674 = vector.broadcast %673 : vector<8x1xf32> to vector<8x8xf32>
    %675 = arith.divf %671, %674 : vector<8x8xf32>
    %676 = vector.extract_strided_slice %658 {offsets = [0, 8], sizes = [8, 8], strides = [1, 1]} : vector<8x32xf32> to vector<8x8xf32>
    %677 = vector.extract_strided_slice %661 {offsets = [0, 8], sizes = [8, 8], strides = [1, 1]} : vector<8x32xf32> to vector<8x8xf32>
    %cst_228 = arith.constant dense<0.000000e+00> : vector<8x8xf32>
    %678 = tpu.matmul %676, %677, %cst_228 {dimension_numbers = #tpu.dot_dimension_numbers<[1], [1], [0], [0], [0, 0, 1, 0], [], []>} : vector<8x8xf32>, vector<8x8xf32>, vector<8x8xf32> -> vector<8x8xf32>
    %679 = vector.broadcast %5 : vector<1x8xf32> to vector<8x8xf32>
    %680 = arith.addf %678, %679 : vector<8x8xf32>
    %cst_229 = arith.constant dense<0xFF800000> : vector<8xf32>
    %681 = vector.multi_reduction <maximumf>, %680, %cst_229 [1] : vector<8x8xf32> to vector<8xf32>
    %682 = vector.shape_cast %681 : vector<8xf32> to vector<8x1xf32>
    %683 = vector.broadcast %682 : vector<8x1xf32> to vector<8x8xf32>
    %684 = arith.subf %680, %683 : vector<8x8xf32>
    %685 = math.exp %684 : vector<8x8xf32>
    %cst_230 = arith.constant dense<0.000000e+00> : vector<8xf32>
    %686 = vector.multi_reduction <add>, %685, %cst_230 [1] : vector<8x8xf32> to vector<8xf32>
    %687 = vector.shape_cast %686 : vector<8xf32> to vector<8x1xf32>
    %688 = vector.broadcast %687 : vector<8x1xf32> to vector<8x8xf32>
    %689 = arith.divf %685, %688 : vector<8x8xf32>
    %690 = vector.extract_strided_slice %658 {offsets = [0, 16], sizes = [8, 8], strides = [1, 1]} : vector<8x32xf32> to vector<8x8xf32>
    %691 = vector.extract_strided_slice %661 {offsets = [0, 16], sizes = [8, 8], strides = [1, 1]} : vector<8x32xf32> to vector<8x8xf32>
    %cst_231 = arith.constant dense<0.000000e+00> : vector<8x8xf32>
    %692 = tpu.matmul %690, %691, %cst_231 {dimension_numbers = #tpu.dot_dimension_numbers<[1], [1], [0], [0], [0, 0, 1, 0], [], []>} : vector<8x8xf32>, vector<8x8xf32>, vector<8x8xf32> -> vector<8x8xf32>
    %693 = vector.broadcast %5 : vector<1x8xf32> to vector<8x8xf32>
    %694 = arith.addf %692, %693 : vector<8x8xf32>
    %cst_232 = arith.constant dense<0xFF800000> : vector<8xf32>
    %695 = vector.multi_reduction <maximumf>, %694, %cst_232 [1] : vector<8x8xf32> to vector<8xf32>
    %696 = vector.shape_cast %695 : vector<8xf32> to vector<8x1xf32>
    %697 = vector.broadcast %696 : vector<8x1xf32> to vector<8x8xf32>
    %698 = arith.subf %694, %697 : vector<8x8xf32>
    %699 = math.exp %698 : vector<8x8xf32>
    %cst_233 = arith.constant dense<0.000000e+00> : vector<8xf32>
    %700 = vector.multi_reduction <add>, %699, %cst_233 [1] : vector<8x8xf32> to vector<8xf32>
    %701 = vector.shape_cast %700 : vector<8xf32> to vector<8x1xf32>
    %702 = vector.broadcast %701 : vector<8x1xf32> to vector<8x8xf32>
    %703 = arith.divf %699, %702 : vector<8x8xf32>
    %704 = vector.extract_strided_slice %658 {offsets = [0, 24], sizes = [8, 8], strides = [1, 1]} : vector<8x32xf32> to vector<8x8xf32>
    %705 = vector.extract_strided_slice %661 {offsets = [0, 24], sizes = [8, 8], strides = [1, 1]} : vector<8x32xf32> to vector<8x8xf32>
    %cst_234 = arith.constant dense<0.000000e+00> : vector<8x8xf32>
    %706 = tpu.matmul %704, %705, %cst_234 {dimension_numbers = #tpu.dot_dimension_numbers<[1], [1], [0], [0], [0, 0, 1, 0], [], []>} : vector<8x8xf32>, vector<8x8xf32>, vector<8x8xf32> -> vector<8x8xf32>
    %707 = vector.broadcast %5 : vector<1x8xf32> to vector<8x8xf32>
    %708 = arith.addf %706, %707 : vector<8x8xf32>
    %cst_235 = arith.constant dense<0xFF800000> : vector<8xf32>
    %709 = vector.multi_reduction <maximumf>, %708, %cst_235 [1] : vector<8x8xf32> to vector<8xf32>
    %710 = vector.shape_cast %709 : vector<8xf32> to vector<8x1xf32>
    %711 = vector.broadcast %710 : vector<8x1xf32> to vector<8x8xf32>
    %712 = arith.subf %708, %711 : vector<8x8xf32>
    %713 = math.exp %712 : vector<8x8xf32>
    %cst_236 = arith.constant dense<0.000000e+00> : vector<8xf32>
    %714 = vector.multi_reduction <add>, %713, %cst_236 [1] : vector<8x8xf32> to vector<8xf32>
    %715 = vector.shape_cast %714 : vector<8xf32> to vector<8x1xf32>
    %716 = vector.broadcast %715 : vector<8x1xf32> to vector<8x8xf32>
    %717 = arith.divf %713, %716 : vector<8x8xf32>
    %718 = vector.shape_cast %675 : vector<8x8xf32> to vector<1x8x8xf32>
    %719 = vector.shape_cast %689 : vector<8x8xf32> to vector<1x8x8xf32>
    %720 = vector.shape_cast %703 : vector<8x8xf32> to vector<1x8x8xf32>
    %721 = vector.shape_cast %717 : vector<8x8xf32> to vector<1x8x8xf32>
    %722 = tpu.concatenate %718, %719, %720, %721 in 0 : vector<1x8x8xf32>, vector<1x8x8xf32>, vector<1x8x8xf32>, vector<1x8x8xf32> -> vector<4x8x8xf32>
    %c0_237 = arith.constant 0 : index
    %c0_238 = arith.constant 0 : index
    %c0_239 = arith.constant 0 : index
    %c0_240 = arith.constant 0 : index
    %723 = vector.load %arg15[%c0_237, %c0_238, %c0_239, %c0_240] : memref<1x4x8x8xf32, #tpu.memory_space<vmem>>, vector<1x4x8x8xf32>
    %724 = vector.shape_cast %723 : vector<1x4x8x8xf32> to vector<4x8x8xf32>
    %725 = vector.shape_cast %722 : vector<4x8x8xf32> to vector<1x4x8x8xf32>
    tpu.vector_store %arg15[%c0_237, %c0_238, %c0_239, %c0_240], %725 {strides = array<i32>} : memref<1x4x8x8xf32, #tpu.memory_space<vmem>>, vector<1x4x8x8xf32>,
    return
  }
  func.func @transform_0(%arg0: i32) -> (i32, i32, i32) {
    %c0_i32 = arith.constant 0 : i32
    %c0_i32_0 = arith.constant 0 : i32
    %c0_i32_1 = arith.constant 0 : i32
    return %arg0, %c0_i32, %c0_i32_0 : i32, i32, i32
  }
  func.func @transform_1(%arg0: i32) -> (i32, i32, i32) {
    %c0_i32 = arith.constant 0 : i32
    %c0_i32_0 = arith.constant 0 : i32
    %c0_i32_1 = arith.constant 0 : i32
    return %arg0, %c0_i32, %c0_i32_0 : i32, i32, i32
  }
  func.func @transform_2(%arg0: i32) -> (i32, i32, i32) {
    %c0_i32 = arith.constant 0 : i32
    %c0_i32_0 = arith.constant 0 : i32
    %c0_i32_1 = arith.constant 0 : i32
    return %arg0, %c0_i32, %c0_i32_0 : i32, i32, i32
  }
  func.func @transform_3(%arg0: i32) -> (i32, i32, i32) {
    %c0_i32 = arith.constant 0 : i32
    %c0_i32_0 = arith.constant 0 : i32
    %c0_i32_1 = arith.constant 0 : i32
    return %arg0, %c0_i32, %c0_i32_0 : i32, i32, i32
  }
  func.func @transform_4(%arg0: i32) -> (i32, i32, i32) {
    %c0_i32 = arith.constant 0 : i32
    %c0_i32_0 = arith.constant 0 : i32
    %c0_i32_1 = arith.constant 0 : i32
    return %arg0, %c0_i32, %c0_i32_0 : i32, i32, i32
  }
  func.func @transform_5(%arg0: i32) -> (i32, i32, i32) {
    %c0_i32 = arith.constant 0 : i32
    %c0_i32_0 = arith.constant 0 : i32
    %c0_i32_1 = arith.constant 0 : i32
    return %arg0, %c0_i32, %c0_i32_0 : i32, i32, i32
  }
  func.func @transform_6(%arg0: i32) -> (i32, i32, i32) {
    %c0_i32 = arith.constant 0 : i32
    %c0_i32_0 = arith.constant 0 : i32
    %c0_i32_1 = arith.constant 0 : i32
    %c0_i32_2 = arith.constant 0 : i32
    return %c0_i32, %c0_i32_0, %c0_i32_1 : i32, i32, i32
  }
  func.func @transform_7(%arg0: i32) -> (i32, i32, i32) {
    %c0_i32 = arith.constant 0 : i32
    %c0_i32_0 = arith.constant 0 : i32
    %c0_i32_1 = arith.constant 0 : i32
    %c0_i32_2 = arith.constant 0 : i32
    return %c0_i32, %c0_i32_0, %c0_i32_1 : i32, i32, i32
  }
  func.func @transform_8(%arg0: i32) -> (i32, i32, i32) {
    %c0_i32 = arith.constant 0 : i32
    %c0_i32_0 = arith.constant 0 : i32
    %c0_i32_1 = arith.constant 0 : i32
    %c0_i32_2 = arith.constant 0 : i32
    return %c0_i32, %c0_i32_0, %c0_i32_1 : i32, i32, i32
  }
  func.func @transform_9(%arg0: i32) -> (i32, i32, i32) {
    %c0_i32 = arith.constant 0 : i32
    %c0_i32_0 = arith.constant 0 : i32
    %c0_i32_1 = arith.constant 0 : i32
    %c0_i32_2 = arith.constant 0 : i32
    return %c0_i32, %c0_i32_0, %c0_i32_1 : i32, i32, i32
  }
  func.func @transform_10(%arg0: i32) -> (i32, i32, i32) {
    %c0_i32 = arith.constant 0 : i32
    %c0_i32_0 = arith.constant 0 : i32
    %c0_i32_1 = arith.constant 0 : i32
    %c0_i32_2 = arith.constant 0 : i32
    return %c0_i32, %c0_i32_0, %c0_i32_1 : i32, i32, i32
  }
  func.func @transform_11(%arg0: i32) -> (i32, i32, i32) {
    %c0_i32 = arith.constant 0 : i32
    %c0_i32_0 = arith.constant 0 : i32
    %c0_i32_1 = arith.constant 0 : i32
    %c0_i32_2 = arith.constant 0 : i32
    return %c0_i32, %c0_i32_0, %c0_i32_1 : i32, i32, i32
  }
  func.func @transform_12(%arg0: i32) -> (i32, i32) {
    %c0_i32 = arith.constant 0 : i32
    %c0_i32_0 = arith.constant 0 : i32
    %c0_i32_1 = arith.constant 0 : i32
    return %c0_i32, %c0_i32_0 : i32, i32
  }
  func.func @transform_13(%arg0: i32) -> (i32, i32) {
    %c0_i32 = arith.constant 0 : i32
    %c0_i32_0 = arith.constant 0 : i32
    %c0_i32_1 = arith.constant 0 : i32
    return %c0_i32, %c0_i32_0 : i32, i32
  }
  func.func @transform_14(%arg0: i32) -> (i32, i32, i32, i32) {
    %c0_i32 = arith.constant 0 : i32
    %c0_i32_0 = arith.constant 0 : i32
    %c0_i32_1 = arith.constant 0 : i32
    %c0_i32_2 = arith.constant 0 : i32
    return %arg0, %c0_i32, %c0_i32_0, %c0_i32_1 : i32, i32, i32, i32
  }
}

</mosaic_0001>

<llo_original>
// kernel: transformer_forward.1
$region0: #{transformer_forward.1}
  #allocation0 [shape = 'u32[]', space=smem, size = 0x4, offset = 0x4, fixed_abs, tag = 'smem constant byte address 0x4 - core index']
  #allocation1 [shape = 'u32[144,128]{1,0:T(1,128)}', space=vmem, size = 0x12000, scoped, tag = 'internal scratch']
  %s0 = inlined_call_operand.vmem [shape: f32[2,8,32], index: 0, kind: input, shape index: {}]
  %s1 = inlined_call_operand.vmem [shape: f32[2,8,32], index: 1, kind: input, shape index: {}]
  %s2 = inlined_call_operand.vmem [shape: f32[2,1,8], index: 2, kind: input, shape index: {}]
  %s3 = inlined_call_operand.vmem [shape: f32[2,1,8], index: 3, kind: input, shape index: {}]
  %s4 = inlined_call_operand.vmem [shape: f32[2,8,1], index: 4, kind: input, shape index: {}]
  %s5 = inlined_call_operand.vmem [shape: f32[2,8,1], index: 5, kind: input, shape index: {}]
  %s6 = inlined_call_operand.vmem [shape: f32[4,32,32], index: 6, kind: input, shape index: {}]
  %s7 = inlined_call_operand.vmem [shape: f32[4,32,64], index: 7, kind: input, shape index: {}]
  %s8 = inlined_call_operand.vmem [shape: f32[4,32,32], index: 8, kind: input, shape index: {}]
  %s9 = inlined_call_operand.vmem [shape: f32[4,32,64], index: 9, kind: input, shape index: {}]
  %s10 = inlined_call_operand.vmem [shape: f32[4,64,32], index: 10, kind: input, shape index: {}]
  %s11 = inlined_call_operand.vmem [shape: f32[4,9,64], index: 11, kind: input, shape index: {}]
  %s12 = inlined_call_operand.hbm [shape: f32[32,64], index: 12, kind: input, shape index: {}]
  %s13 = inlined_call_operand.hbm [shape: f32[2,32], index: 13, kind: input, shape index: {}]
  %s14 = inlined_call_operand.hbm [shape: f32[2,4,8,8], index: 14, kind: output, shape index: {}]
  %s15 = sld [smem:[#allocation0]]
  $region97: #{transformer_forward.1} parent=0
    _
  %s17 = ssub.s32 1, %s15
  %s18 = scalar_select 0, %s17, %s15
  $region1: #{transformer_forward.1} parent=0
    #allocation2 [shape = 'u8[16384]{0}', space=vmem, size = 0x4000, scoped, tag = 'input window, operand 12, single buffered']
    #allocation3 [shape = 's32[2]{0}', space=sflag, size = 0x8, scoped, tag = 'scoped memory for transformer_forward.1']
    #allocation4 [shape = 's32[2]{0}', space=sflag, size = 0x8, scoped, tag = 'scoped memory for transformer_forward.1']
    #allocation5 [shape = 'u8[1024]{0}', space=vmem, size = 0x400, scoped, tag = 'input window, operand 13, single buffered']
    #allocation6 [shape = 's32[1]{0}', space=sflag, size = 0x4, scoped, tag = 'scoped memory for transformer_forward.1']
    #allocation7 [shape = 'u8[32768]{0}', space=vmem, size = 0x8000, scoped, tag = 'output window, operand 0']
    %19 = vsyncpa [#allocation3], 0
    %20 = vsyncpa [#allocation6], 0
    %21 = vsyncpa [#allocation4], 0
    %s22 = scalar_lea.sflag [#allocation4], 1
    %23 = vsyncpa %s22, 0
    loop: start=0, step=1, limit=4
    $region2: #{transformer_forward.1} parent=1 // loop_pre_header
      _
    $region3: #{transformer_forward.1} parent=1 // loop_header
      %s25 = sphi 0, %s29
      %p26 = scmp.ge.s32.totalorder %s25, 4
      %s35 = sphi 0, %s37
      %s38 = sphi 0, %s35
      %s39 = sphi 0, %s38
      %s55 = sphi 0, %s39
      %s61 = sphi 0, %s63
      %s64 = sphi 0, %s61
      %s65 = sphi 0, %s64
      %s81 = sphi 0, %s65
      %s87 = sphi 0, %s89
      %s90 = sphi 0, %s87
      %s91 = sphi 0, %s90
      %s107 = sphi 0, %s91
      %s113 = sphi 0, %s115
      %s116 = sphi 0, %s113
      %s117 = sphi 0, %s116
      %s133 = sphi 0, %s117
      %s139 = sphi 0, %s141
      %s142 = sphi 0, %s139
      %s143 = sphi 0, %s142
      %s159 = sphi 0, %s143
      %s165 = sphi 0, %s167
      %s168 = sphi 0, %s165
      %s169 = sphi 0, %s168
      %s185 = sphi 0, %s169
      %s189 = sphi 0, %s189
      %s191 = sphi 0, %s189
      %s192 = sphi 0, %s191
      %s206 = sphi 0, %s192
      %s210 = sphi 0, %s210
      %s212 = sphi 0, %s210
      %s213 = sphi 0, %s212
      %s227 = sphi 0, %s213
      %s231 = sphi 0, %s231
      %s233 = sphi 0, %s231
      %s234 = sphi 0, %s233
      %s248 = sphi 0, %s234
      %s252 = sphi 0, %s252
      %s254 = sphi 0, %s252
      %s255 = sphi 0, %s254
      %s269 = sphi 0, %s255
      %s273 = sphi 0, %s273
      %s275 = sphi 0, %s273
      %s276 = sphi 0, %s275
      %s290 = sphi 0, %s276
      %s294 = sphi 0, %s294
      %s296 = sphi 0, %s294
      %s297 = sphi 0, %s296
      %s311 = sphi 0, %s297
      %s315 = sphi 0, %s315
      %s317 = sphi 0, %s315
      %s318 = sphi 0, %s317
      %s332 = sphi 0, %s318
      %s336 = sphi 0, %s336
      %s338 = sphi 0, %s336
      %s339 = sphi 0, %s338
      %s353 = sphi 0, %s339
      %s359 = sphi 0, %s361
      %s362 = sphi 0, %s359
      %s363 = sphi 0, %s362
      %s379 = sphi 0, %s363
    $region4: #{transformer_forward.1} parent=1 // loop_header_branch
      %28 = sbr.rel (%p26) target = $region8
    $region5: #{transformer_forward.1} parent=1 // loop_body
      %s30 = ssub.s32 %s25, 1
      %s31 = ssub.s32 %s25, 2
      %s32 = sadd.s32 %s25, 1
      %s33 = ssub.s32 %s25, %s32
      %p34 = scmp.eq.s32.totalorder %s33, 0
      %s36 = sadd.s32 %s35, 1
      %s37 = scalar_select %p34, %s35, %s36
      %p40 = pneg %p34
      %p41 = scmp.eq.s32.totalorder %s25, 1
      %p42 = por %p40, %p41
      %p43 = scmp.ne.s32.totalorder %s35, %s38
      %p44 = scmp.eq.s32.totalorder %s25, 0
      %p45 = por %p43, %p44
      %p46 = scmp.ne.s32.totalorder %s35, %s38
      %p47 = scmp.eq.s32.totalorder %s30, 1
      %p48 = por %p46, %p47
      %p49 = scmp.ne.s32.totalorder %s38, %s39
      %p50 = scmp.eq.s32.totalorder %s30, 0
      %p51 = por %p49, %p50
      %p52 = scmp.ne.s32.totalorder %s38, %s39
      %p53 = scmp.eq.s32.totalorder %s31, 1
      %p54 = por %p52, %p53
      %p56 = scmp.ne.s32.totalorder %s39, %s55
      %p57 = scmp.eq.s32.totalorder %s31, 0
      %p58 = por %p56, %p57
      %s59 = ssub.s32 %s25, %s32
      %p60 = scmp.eq.s32.totalorder %s59, 0
      %s62 = sadd.s32 %s61, 1
      %s63 = scalar_select %p60, %s61, %s62
      %p66 = pneg %p60
      %p67 = scmp.eq.s32.totalorder %s25, 1
      %p68 = por %p66, %p67
      %p69 = scmp.ne.s32.totalorder %s61, %s64
      %p70 = scmp.eq.s32.totalorder %s25, 0
      %p71 = por %p69, %p70
      %p72 = scmp.ne.s32.totalorder %s61, %s64
      %p73 = scmp.eq.s32.totalorder %s30, 1
      %p74 = por %p72, %p73
      %p75 = scmp.ne.s32.totalorder %s64, %s65
      %p76 = scmp.eq.s32.totalorder %s30, 0
      %p77 = por %p75, %p76
      %p78 = scmp.ne.s32.totalorder %s64, %s65
      %p79 = scmp.eq.s32.totalorder %s31, 1
      %p80 = por %p78, %p79
      %p82 = scmp.ne.s32.totalorder %s65, %s81
      %p83 = scmp.eq.s32.totalorder %s31, 0
      %p84 = por %p82, %p83
      %s85 = ssub.s32 %s25, %s32
      %p86 = scmp.eq.s32.totalorder %s85, 0
      %s88 = sadd.s32 %s87, 1
      %s89 = scalar_select %p86, %s87, %s88
      %p92 = pneg %p86
      %p93 = scmp.eq.s32.totalorder %s25, 1
      %p94 = por %p92, %p93
      %p95 = scmp.ne.s32.totalorder %s87, %s90
      %p96 = scmp.eq.s32.totalorder %s25, 0
      %p97 = por %p95, %p96
      %p98 = scmp.ne.s32.totalorder %s87, %s90
      %p99 = scmp.eq.s32.totalorder %s30, 1
      %p100 = por %p98, %p99
      %p101 = scmp.ne.s32.totalorder %s90, %s91
      %p102 = scmp.eq.s32.totalorder %s30, 0
      %p103 = por %p101, %p102
      %p104 = scmp.ne.s32.totalorder %s90, %s91
      %p105 = scmp.eq.s32.totalorder %s31, 1
      %p106 = por %p104, %p105
      %p108 = scmp.ne.s32.totalorder %s91, %s107
      %p109 = scmp.eq.s32.totalorder %s31, 0
      %p110 = por %p108, %p109
      %s111 = ssub.s32 %s25, %s32
      %p112 = scmp.eq.s32.totalorder %s111, 0
      %s114 = sadd.s32 %s113, 1
      %s115 = scalar_select %p112, %s113, %s114
      %p118 = pneg %p112
      %p119 = scmp.eq.s32.totalorder %s25, 1
      %p120 = por %p118, %p119
      %p121 = scmp.ne.s32.totalorder %s113, %s116
      %p122 = scmp.eq.s32.totalorder %s25, 0
      %p123 = por %p121, %p122
      %p124 = scmp.ne.s32.totalorder %s113, %s116
      %p125 = scmp.eq.s32.totalorder %s30, 1
      %p126 = por %p124, %p125
      %p127 = scmp.ne.s32.totalorder %s116, %s117
      %p128 = scmp.eq.s32.totalorder %s30, 0
      %p129 = por %p127, %p128
      %p130 = scmp.ne.s32.totalorder %s116, %s117
      %p131 = scmp.eq.s32.totalorder %s31, 1
      %p132 = por %p130, %p131
      %p134 = scmp.ne.s32.totalorder %s117, %s133
      %p135 = scmp.eq.s32.totalorder %s31, 0
      %p136 = por %p134, %p135
      %s137 = ssub.s32 %s25, %s32
      %p138 = scmp.eq.s32.totalorder %s137, 0
      %s140 = sadd.s32 %s139, 1
      %s141 = scalar_select %p138, %s139, %s140
      %p144 = pneg %p138
      %p145 = scmp.eq.s32.totalorder %s25, 1
      %p146 = por %p144, %p145
      %p147 = scmp.ne.s32.totalorder %s139, %s142
      %p148 = scmp.eq.s32.totalorder %s25, 0
      %p149 = por %p147, %p148
      %p150 = scmp.ne.s32.totalorder %s139, %s142
      %p151 = scmp.eq.s32.totalorder %s30, 1
      %p152 = por %p150, %p151
      %p153 = scmp.ne.s32.totalorder %s142, %s143
      %p154 = scmp.eq.s32.totalorder %s30, 0
      %p155 = por %p153, %p154
      %p156 = scmp.ne.s32.totalorder %s142, %s143
      %p157 = scmp.eq.s32.totalorder %s31, 1
      %p158 = por %p156, %p157
      %p160 = scmp.ne.s32.totalorder %s143, %s159
      %p161 = scmp.eq.s32.totalorder %s31, 0
      %p162 = por %p160, %p161
      %s163 = ssub.s32 %s25, %s32
      %p164 = scmp.eq.s32.totalorder %s163, 0
      %s166 = sadd.s32 %s165, 1
      %s167 = scalar_select %p164, %s165, %s166
      %p170 = pneg %p164
      %p171 = scmp.eq.s32.totalorder %s25, 1
      %p172 = por %p170, %p171
      %p173 = scmp.ne.s32.totalorder %s165, %s168
      %p174 = scmp.eq.s32.totalorder %s25, 0
      %p175 = por %p173, %p174
      %p176 = scmp.ne.s32.totalorder %s165, %s168
      %p177 = scmp.eq.s32.totalorder %s30, 1
      %p178 = por %p176, %p177
      %p179 = scmp.ne.s32.totalorder %s168, %s169
      %p180 = scmp.eq.s32.totalorder %s30, 0
      %p181 = por %p179, %p180
      %p182 = scmp.ne.s32.totalorder %s168, %s169
      %p183 = scmp.eq.s32.totalorder %s31, 1
      %p184 = por %p182, %p183
      %p186 = scmp.ne.s32.totalorder %s169, %s185
      %p187 = scmp.eq.s32.totalorder %s31, 0
      %p188 = por %p186, %p187
      %s190 = sadd.s32 %s189, 1
      %p193 = scmp.eq.s32.totalorder %s25, 1
      %p194 = scmp.ne.s32.totalorder %s189, %s191
      %p195 = scmp.eq.s32.totalorder %s25, 0
      %p196 = por %p194, %p195
      %p197 = scmp.ne.s32.totalorder %s189, %s191
      %p198 = scmp.eq.s32.totalorder %s30, 1
      %p199 = por %p197, %p198
      %p200 = scmp.ne.s32.totalorder %s191, %s192
      %p201 = scmp.eq.s32.totalorder %s30, 0
      %p202 = por %p200, %p201
      %p203 = scmp.ne.s32.totalorder %s191, %s192
      %p204 = scmp.eq.s32.totalorder %s31, 1
      %p205 = por %p203, %p204
      %p207 = scmp.ne.s32.totalorder %s192, %s206
      %p208 = scmp.eq.s32.totalorder %s31, 0
      %p209 = por %p207, %p208
      %s211 = sadd.s32 %s210, 1
      %p214 = scmp.eq.s32.totalorder %s25, 1
      %p215 = scmp.ne.s32.totalorder %s210, %s212
      %p216 = scmp.eq.s32.totalorder %s25, 0
      %p217 = por %p215, %p216
      %p218 = scmp.ne.s32.totalorder %s210, %s212
      %p219 = scmp.eq.s32.totalorder %s30, 1
      %p220 = por %p218, %p219
      %p221 = scmp.ne.s32.totalorder %s212, %s213
      %p222 = scmp.eq.s32.totalorder %s30, 0
      %p223 = por %p221, %p222
      %p224 = scmp.ne.s32.totalorder %s212, %s213
      %p225 = scmp.eq.s32.totalorder %s31, 1
      %p226 = por %p224, %p225
      %p228 = scmp.ne.s32.totalorder %s213, %s227
      %p229 = scmp.eq.s32.totalorder %s31, 0
      %p230 = por %p228, %p229
      %s232 = sadd.s32 %s231, 1
      %p235 = scmp.eq.s32.totalorder %s25, 1
      %p236 = scmp.ne.s32.totalorder %s231, %s233
      %p237 = scmp.eq.s32.totalorder %s25, 0
      %p238 = por %p236, %p237
      %p239 = scmp.ne.s32.totalorder %s231, %s233
      %p240 = scmp.eq.s32.totalorder %s30, 1
      %p241 = por %p239, %p240
      %p242 = scmp.ne.s32.totalorder %s233, %s234
      %p243 = scmp.eq.s32.totalorder %s30, 0
      %p244 = por %p242, %p243
      %p245 = scmp.ne.s32.totalorder %s233, %s234
      %p246 = scmp.eq.s32.totalorder %s31, 1
      %p247 = por %p245, %p246
      %p249 = scmp.ne.s32.totalorder %s234, %s248
      %p250 = scmp.eq.s32.totalorder %s31, 0
      %p251 = por %p249, %p250
      %s253 = sadd.s32 %s252, 1
      %p256 = scmp.eq.s32.totalorder %s25, 1
      %p257 = scmp.ne.s32.totalorder %s252, %s254
      %p258 = scmp.eq.s32.totalorder %s25, 0
      %p259 = por %p257, %p258
      %p260 = scmp.ne.s32.totalorder %s252, %s254
      %p261 = scmp.eq.s32.totalorder %s30, 1
      %p262 = por %p260, %p261
      %p263 = scmp.ne.s32.totalorder %s254, %s255
      %p264 = scmp.eq.s32.totalorder %s30, 0
      %p265 = por %p263, %p264
      %p266 = scmp.ne.s32.totalorder %s254, %s255
      %p267 = scmp.eq.s32.totalorder %s31, 1
      %p268 = por %p266, %p267
      %p270 = scmp.ne.s32.totalorder %s255, %s269
      %p271 = scmp.eq.s32.totalorder %s31, 0
      %p272 = por %p270, %p271
      %s274 = sadd.s32 %s273, 1
      %p277 = scmp.eq.s32.totalorder %s25, 1
      %p278 = scmp.ne.s32.totalorder %s273, %s275
      %p279 = scmp.eq.s32.totalorder %s25, 0
      %p280 = por %p278, %p279
      %p281 = scmp.ne.s32.totalorder %s273, %s275
      %p282 = scmp.eq.s32.totalorder %s30, 1
      %p283 = por %p281, %p282
      %p284 = scmp.ne.s32.totalorder %s275, %s276
      %p285 = scmp.eq.s32.totalorder %s30, 0
      %p286 = por %p284, %p285
      %p287 = scmp.ne.s32.totalorder %s275, %s276
      %p288 = scmp.eq.s32.totalorder %s31, 1
      %p289 = por %p287, %p288
      %p291 = scmp.ne.s32.totalorder %s276, %s290
      %p292 = scmp.eq.s32.totalorder %s31, 0
      %p293 = por %p291, %p292
      %s295 = sadd.s32 %s294, 1
      %p298 = scmp.eq.s32.totalorder %s25, 1
      %p299 = scmp.ne.s32.totalorder %s294, %s296
      %p300 = scmp.eq.s32.totalorder %s25, 0
      %p301 = por %p299, %p300
      %p302 = scmp.ne.s32.totalorder %s294, %s296
      %p303 = scmp.eq.s32.totalorder %s30, 1
      %p304 = por %p302, %p303
      %p305 = scmp.ne.s32.totalorder %s296, %s297
      %p306 = scmp.eq.s32.totalorder %s30, 0
      %p307 = por %p305, %p306
      %p308 = scmp.ne.s32.totalorder %s296, %s297
      %p309 = scmp.eq.s32.totalorder %s31, 1
      %p310 = por %p308, %p309
      %p312 = scmp.ne.s32.totalorder %s297, %s311
      %p313 = scmp.eq.s32.totalorder %s31, 0
      %p314 = por %p312, %p313
      %s316 = sadd.s32 %s315, 1
      %p319 = scmp.eq.s32.totalorder %s25, 1
      %p320 = scmp.ne.s32.totalorder %s315, %s317
      %p321 = scmp.eq.s32.totalorder %s25, 0
      %p322 = por %p320, %p321
      %p323 = scmp.ne.s32.totalorder %s315, %s317
      %p324 = scmp.eq.s32.totalorder %s30, 1
      %p325 = por %p323, %p324
      %p326 = scmp.ne.s32.totalorder %s317, %s318
      %p327 = scmp.eq.s32.totalorder %s30, 0
      %p328 = por %p326, %p327
      %p329 = scmp.ne.s32.totalorder %s317, %s318
      %p330 = scmp.eq.s32.totalorder %s31, 1
      %p331 = por %p329, %p330
      %p333 = scmp.ne.s32.totalorder %s318, %s332
      %p334 = scmp.eq.s32.totalorder %s31, 0
      %p335 = por %p333, %p334
      %s337 = sadd.s32 %s336, 1
      %p340 = scmp.eq.s32.totalorder %s25, 1
      %p341 = scmp.ne.s32.totalorder %s336, %s338
      %p342 = scmp.eq.s32.totalorder %s25, 0
      %p343 = por %p341, %p342
      %p344 = scmp.ne.s32.totalorder %s336, %s338
      %p345 = scmp.eq.s32.totalorder %s30, 1
      %p346 = por %p344, %p345
      %p347 = scmp.ne.s32.totalorder %s338, %s339
      %p348 = scmp.eq.s32.totalorder %s30, 0
      %p349 = por %p347, %p348
      %p350 = scmp.ne.s32.totalorder %s338, %s339
      %p351 = scmp.eq.s32.totalorder %s31, 1
      %p352 = por %p350, %p351
      %p354 = scmp.ne.s32.totalorder %s339, %s353
      %p355 = scmp.eq.s32.totalorder %s31, 0
      %p356 = por %p354, %p355
      %s357 = ssub.s32 %s25, %s32
      %p358 = scmp.eq.s32.totalorder %s357, 0
      %s360 = sadd.s32 %s359, 1
      %s361 = scalar_select %p358, %s359, %s360
      %p364 = pneg %p358
      %p365 = scmp.eq.s32.totalorder %s25, 1
      %p366 = por %p364, %p365
      %p367 = scmp.ne.s32.totalorder %s359, %s362
      %p368 = scmp.eq.s32.totalorder %s25, 0
      %p369 = por %p367, %p368
      %p370 = scmp.ne.s32.totalorder %s359, %s362
      %p371 = scmp.eq.s32.totalorder %s30, 1
      %p372 = por %p370, %p371
      %p373 = scmp.ne.s32.totalorder %s362, %s363
      %p374 = scmp.eq.s32.totalorder %s30, 0
      %p375 = por %p373, %p374
      %p376 = scmp.ne.s32.totalorder %s362, %s363
      %p377 = scmp.eq.s32.totalorder %s31, 1
      %p378 = por %p376, %p377
      %p380 = scmp.ne.s32.totalorder %s363, %s379
      %p381 = scmp.eq.s32.totalorder %s31, 0
      %p382 = por %p380, %p381
      %p383 = scmp.le.s32.totalorder 1, %s25
      %p384 = scmp.lt.s32.totalorder %s25, 3
      %p385 = pnand %p383, %p384
      %p386 = pneg %p385
      // Predicated region
      $region9: #{transformer_forward.1} parent=5 // pred_check
        _
      $region10: #{transformer_forward.1} parent=5 // pred_check_branch
        %388 = sbr.rel (%p385) target = $region12
      $region11: #{transformer_forward.1} parent=5 // pred_region
        %s389 = ssub.s32 %s25, 1
        // Predicated region
        $region13: #{transformer_forward.1} parent=11 // pred_check
          %p390 = pneg %p202
        $region14: #{transformer_forward.1} parent=11 // pred_check_branch
          %392 = sbr.rel (%p390) target = $region16
        $region15: #{transformer_forward.1} parent=11 // pred_region
          _
        $region16: #{transformer_forward.1} parent=11 // pred_fallthru
          _
        // Predicated region
        $region17: #{transformer_forward.1} parent=11 // pred_check
          %p393 = pneg %p223
        $region18: #{transformer_forward.1} parent=11 // pred_check_branch
          %395 = sbr.rel (%p393) target = $region20
        $region19: #{transformer_forward.1} parent=11 // pred_region
          _
        $region20: #{transformer_forward.1} parent=11 // pred_fallthru
          _
        // Predicated region
        $region21: #{transformer_forward.1} parent=11 // pred_check
          %p396 = pneg %p244
        $region22: #{transformer_forward.1} parent=11 // pred_check_branch
          %398 = sbr.rel (%p396) target = $region24
        $region23: #{transformer_forward.1} parent=11 // pred_region
          _
        $region24: #{transformer_forward.1} parent=11 // pred_fallthru
          _
        // Predicated region
        $region25: #{transformer_forward.1} parent=11 // pred_check
          %p399 = pneg %p265
        $region26: #{transformer_forward.1} parent=11 // pred_check_branch
          %401 = sbr.rel (%p399) target = $region28
        $region27: #{transformer_forward.1} parent=11 // pred_region
          _
        $region28: #{transformer_forward.1} parent=11 // pred_fallthru
          _
        // Predicated region
        $region29: #{transformer_forward.1} parent=11 // pred_check
          %p402 = pneg %p286
        $region30: #{transformer_forward.1} parent=11 // pred_check_branch
          %404 = sbr.rel (%p402) target = $region32
        $region31: #{transformer_forward.1} parent=11 // pred_region
          _
        $region32: #{transformer_forward.1} parent=11 // pred_fallthru
          _
        // Predicated region
        $region33: #{transformer_forward.1} parent=11 // pred_check
          %p405 = pneg %p307
        $region34: #{transformer_forward.1} parent=11 // pred_check_branch
          %407 = sbr.rel (%p405) target = $region36
        $region35: #{transformer_forward.1} parent=11 // pred_region
          _
        $region36: #{transformer_forward.1} parent=11 // pred_fallthru
          _
        // Predicated region
        $region37: #{transformer_forward.1} parent=11 // pred_check
          %p408 = pneg %p328
        $region38: #{transformer_forward.1} parent=11 // pred_check_branch
          %410 = sbr.rel (%p408) target = $region40
        $region39: #{transformer_forward.1} parent=11 // pred_region
          %s412 = ssub.s32 512, 512
          %413 = vsyncadd [#allocation3], %s412
          %s414 = sshll.u32 [#allocation2], 4
          %s415 = int_to_ptr.vmem [resolvable:$true] %s414
          %420 = dma.hbm_to_vmem [thread:$0]  %s12, 512, %s415, [#allocation3], 128, 128, 8
        $region40: #{transformer_forward.1} parent=11 // pred_fallthru
          _
        // Predicated region
        $region41: #{transformer_forward.1} parent=11 // pred_check
          %p421 = pneg %p349
        $region42: #{transformer_forward.1} parent=11 // pred_check_branch
          %423 = sbr.rel (%p421) target = $region44
        $region43: #{transformer_forward.1} parent=11 // pred_region
          %s425 = ssub.s32 32, 32
          %426 = vsyncadd [#allocation6], %s425
          %s428 = sshll.u32 [#allocation5], 4
          %s429 = int_to_ptr.vmem [resolvable:$true] %s428
          %431 = dma.hbm_to_vmem [thread:$0]  %s13, 32, %s429, [#allocation6]
        $region44: #{transformer_forward.1} parent=11 // pred_fallthru
          _
      $region12: #{transformer_forward.1} parent=5 // pred_fallthru
        _
      %p432 = scmp.lt.s32.totalorder %s25, 2
      // Predicated region
      $region45: #{transformer_forward.1} parent=5 // pred_check
        %p433 = pneg %p432
      $region46: #{transformer_forward.1} parent=5 // pred_check_branch
        %435 = sbr.rel (%p433) target = $region48
      $region47: #{transformer_forward.1} parent=5 // pred_region
        // Predicated region
        $region49: #{transformer_forward.1} parent=47 // pred_check
          %p436 = pneg %p45
        $region50: #{transformer_forward.1} parent=47 // pred_check_branch
          %438 = sbr.rel (%p436) target = $region52
        $region51: #{transformer_forward.1} parent=47 // pred_region
          %p439 = scmp.lt.s32.totalorder %s25, 1
          %s440 = scalar_select %p439, %s25, 1
          %s441 = smul.addr %s440, 8
          %s442 = scalar_lea.vmem %s0, %s441
        $region52: #{transformer_forward.1} parent=47 // pred_fallthru
          _
        // Predicated region
        $region53: #{transformer_forward.1} parent=47 // pred_check
          %p443 = pneg %p71
        $region54: #{transformer_forward.1} parent=47 // pred_check_branch
          %445 = sbr.rel (%p443) target = $region56
        $region55: #{transformer_forward.1} parent=47 // pred_region
          %p446 = scmp.lt.s32.totalorder %s25, 1
          %s447 = scalar_select %p446, %s25, 1
          %s448 = smul.addr %s447, 8
          %s449 = scalar_lea.vmem %s1, %s448
        $region56: #{transformer_forward.1} parent=47 // pred_fallthru
          _
        // Predicated region
        $region57: #{transformer_forward.1} parent=47 // pred_check
          %p450 = pneg %p97
        $region58: #{transformer_forward.1} parent=47 // pred_check_branch
          %452 = sbr.rel (%p450) target = $region60
        $region59: #{transformer_forward.1} parent=47 // pred_region
          %p453 = scmp.lt.s32.totalorder %s25, 1
          %s454 = scalar_select %p453, %s25, 1
          %s455 = scalar_lea.vmem %s2, %s454
        $region60: #{transformer_forward.1} parent=47 // pred_fallthru
          _
        // Predicated region
        $region61: #{transformer_forward.1} parent=47 // pred_check
          %p456 = pneg %p123
        $region62: #{transformer_forward.1} parent=47 // pred_check_branch
          %458 = sbr.rel (%p456) target = $region64
        $region63: #{transformer_forward.1} parent=47 // pred_region
          %p459 = scmp.lt.s32.totalorder %s25, 1
          %s460 = scalar_select %p459, %s25, 1
          %s461 = scalar_lea.vmem %s3, %s460
        $region64: #{transformer_forward.1} parent=47 // pred_fallthru
          _
        // Predicated region
        $region65: #{transformer_forward.1} parent=47 // pred_check
          %p462 = pneg %p149
        $region66: #{transformer_forward.1} parent=47 // pred_check_branch
          %464 = sbr.rel (%p462) target = $region68
        $region67: #{transformer_forward.1} parent=47 // pred_region
          %p465 = scmp.lt.s32.totalorder %s25, 1
          %s466 = scalar_select %p465, %s25, 1
          %s467 = smul.addr %s466, 8
          %s468 = scalar_lea.vmem %s4, %s467
        $region68: #{transformer_forward.1} parent=47 // pred_fallthru
          _
        // Predicated region
        $region69: #{transformer_forward.1} parent=47 // pred_check
          %p469 = pneg %p175
        $region70: #{transformer_forward.1} parent=47 // pred_check_branch
          %471 = sbr.rel (%p469) target = $region72
        $region71: #{transformer_forward.1} parent=47 // pred_region
          %p472 = scmp.lt.s32.totalorder %s25, 1
          %s473 = scalar_select %p472, %s25, 1
          %s474 = smul.addr %s473, 8
          %s475 = scalar_lea.vmem %s5, %s474
        $region72: #{transformer_forward.1} parent=47 // pred_fallthru
          _
      $region48: #{transformer_forward.1} parent=5 // pred_fallthru
        _
      %p476 = scmp.le.s32.totalorder 1, %s25
      %p477 = scmp.lt.s32.totalorder %s25, 3
      %p478 = pnand %p476, %p477
      %p479 = pneg %p478
      // Predicated region
      $region73: #{transformer_forward.1} parent=5 // pred_check
        _
      $region74: #{transformer_forward.1} parent=5 // pred_check_branch
        %481 = sbr.rel (%p478) target = $region76
      $region75: #{transformer_forward.1} parent=5 // pred_region
        %s482 = ssub.s32 %s25, 1
        // Predicated region
        $region77: #{transformer_forward.1} parent=75 // pred_check
          %p483 = pneg %p328
        $region78: #{transformer_forward.1} parent=75 // pred_check_branch
          %485 = sbr.rel (%p483) target = $region80
        $region79: #{transformer_forward.1} parent=75 // pred_region
          %486 = dma.done [#allocation3], 512
        $region80: #{transformer_forward.1} parent=75 // pred_fallthru
          _
        // Predicated region
        $region81: #{transformer_forward.1} parent=75 // pred_check
          %p487 = pneg %p349
        $region82: #{transformer_forward.1} parent=75 // pred_check_branch
          %489 = sbr.rel (%p487) target = $region84
        $region83: #{transformer_forward.1} parent=75 // pred_region
          %490 = dma.done [#allocation6], 32
        $region84: #{transformer_forward.1} parent=75 // pred_fallthru
          _
        %p491 = scmp.lt.s32.totalorder %s30, 1
        %s492 = scalar_select %p491, %s30, 1
        %s493 = smul.addr %s492, 8
        %s494 = scalar_lea.vmem %s0, %s493
        %p495 = pneg %p51
        %p496 = pneg %p48
        %p497 = scmp.lt.s32.totalorder %s30, 1
        %s498 = scalar_select %p497, %s30, 1
        %s499 = smul.addr %s498, 8
        %s500 = scalar_lea.vmem %s1, %s499
        %p501 = pneg %p77
        %p502 = pneg %p74
        %p503 = scmp.lt.s32.totalorder %s30, 1
        %s504 = scalar_select %p503, %s30, 1
        %s505 = scalar_lea.vmem %s2, %s504
        %p506 = pneg %p103
        %p507 = pneg %p100
        %p508 = scmp.lt.s32.totalorder %s30, 1
        %s509 = scalar_select %p508, %s30, 1
        %s510 = scalar_lea.vmem %s3, %s509
        %p511 = pneg %p129
        %p512 = pneg %p126
        %p513 = scmp.lt.s32.totalorder %s30, 1
        %s514 = scalar_select %p513, %s30, 1
        %s515 = smul.addr %s514, 8
        %s516 = scalar_lea.vmem %s4, %s515
        %p517 = pneg %p155
        %p518 = pneg %p152
        %p519 = scmp.lt.s32.totalorder %s30, 1
        %s520 = scalar_select %p519, %s30, 1
        %s521 = smul.addr %s520, 8
        %s522 = scalar_lea.vmem %s5, %s521
        %p523 = pneg %p181
        %p524 = pneg %p178
        %p525 = pneg %p202
        %p526 = pneg %p199
        %p527 = pneg %p223
        %p528 = pneg %p220
        %p529 = pneg %p244
        %p530 = pneg %p241
        %p531 = pneg %p265
        %p532 = pneg %p262
        %p533 = pneg %p286
        %p534 = pneg %p283
        %p535 = pneg %p307
        %p536 = pneg %p304
        %p537 = pneg %p328
        %p538 = pneg %p325
        %p539 = pneg %p349
        %p540 = pneg %p346
        %p541 = pneg %p375
        %p542 = pneg %p372
        %s543 = sand.u32 %s362, 1
        %s544 = scalar_lea.sflag [#allocation4], %s543
        %s545 = sand.u32 %s362, 1
        %s546 = smul.addr %s545, 32
        %s547 = scalar_lea.vmem [#allocation7], %s546
        %p548 = scmp.lt.s32.totalorder %s30, 1
        %s549 = scalar_select %p548, %s30, 1
        %s550 = smul.addr %s549, 8
        %s551 = scalar_lea.vmem %s0, %s550
        %p552 = scmp.lt.s32.totalorder %s30, 1
        %s553 = scalar_select %p552, %s30, 1
        %s554 = smul.addr %s553, 8
        %s555 = scalar_lea.vmem %s1, %s554
        %p556 = scmp.lt.s32.totalorder %s30, 1
        %s557 = scalar_select %p556, %s30, 1
        %s558 = scalar_lea.vmem %s2, %s557
        %p559 = scmp.lt.s32.totalorder %s30, 1
        %s560 = scalar_select %p559, %s30, 1
        %s561 = scalar_lea.vmem %s3, %s560
        %p562 = scmp.lt.s32.totalorder %s30, 1
        %s563 = scalar_select %p562, %s30, 1
        %s564 = smul.addr %s563, 8
        %s565 = scalar_lea.vmem %s4, %s564
        %p566 = scmp.lt.s32.totalorder %s30, 1
        %s567 = scalar_select %p566, %s30, 1
        %s568 = smul.addr %s567, 8
        %s569 = scalar_lea.vmem %s5, %s568
        %v570 = vld [vmem:[%s551] sm:$0xff]
        %v571 = vld [vmem:[%s555] sm:$0xff]
        %v572 = vld [vmem:[%s558] sm:$0x1]
        %v573 = vld [vmem:[%s561] sm:$0x1]
        %v574 = vld [vmem:[%s565] sm:$0xff]
        %v575 = vld [vmem:[%s569] sm:$0xff]
        %s576 = scalar_lea.vmem %s6, 64
        %v577 = vld [vmem:[%s576] sm:$0xff]
        %v578 = vld [vmem:[%s576 + $0x8] sm:$0xff]
        %v579 = vld [vmem:[%s576 + $0x10] sm:$0xff]
        %v580 = vld [vmem:[%s576 + $0x18] sm:$0xff]
        %s581 = scalar_lea.vmem %s7, 64
        %v582 = vld [vmem:[%s581] sm:$0xff]
        %v583 = vld [vmem:[%s581 + $0x8] sm:$0xff]
        %v584 = vld [vmem:[%s581 + $0x10] sm:$0xff]
        %v585 = vld [vmem:[%s581 + $0x18] sm:$0xff]
        %s586 = scalar_lea.vmem %s8, 64
        %v587 = vld [vmem:[%s586] sm:$0xff]
        %v588 = vld [vmem:[%s586 + $0x8] sm:$0xff]
        %v589 = vld [vmem:[%s586 + $0x10] sm:$0xff]
        %v590 = vld [vmem:[%s586 + $0x18] sm:$0xff]
        %s591 = scalar_lea.vmem %s9, 64
        %v592 = vld [vmem:[%s591] sm:$0xff]
        %v593 = vld [vmem:[%s591 + $0x8] sm:$0xff]
        %v594 = vld [vmem:[%s591 + $0x10] sm:$0xff]
        %v595 = vld [vmem:[%s591 + $0x18] sm:$0xff]
        %s596 = scalar_lea.vmem %s10, 128
        %v597 = vld [vmem:[%s596] sm:$0xff]
        %v598 = vld [vmem:[%s596 + $0x8] sm:$0xff]
        %v599 = vld [vmem:[%s596 + $0x10] sm:$0xff]
        %v600 = vld [vmem:[%s596 + $0x18] sm:$0xff]
        %v601 = vld [vmem:[%s596 + $0x20] sm:$0xff]
        %v602 = vld [vmem:[%s596 + $0x28] sm:$0xff]
        %v603 = vld [vmem:[%s596 + $0x30] sm:$0xff]
        %v604 = vld [vmem:[%s596 + $0x38] sm:$0xff]
        %s605 = scalar_lea.vmem %s11, 32
        %v606 = vld [vmem:[%s605] sm:$0xff]
        %v607 = vld [vmem:[%s605 + $0x8] sm:$0x1]
        %v608 = vlaneseq
        %v609 = vshrl.u32 %v608, 7
        %v610 = vsub.s32 0, %v609
        %v611 = vrot.slane %v606, %v610
        %vm612 = vcmask 261120
        %v614 = vsel %vm612, %v570, 0
        %616 = vmatprep.subr.mxu0 0.0
        %617 = vmatpush1.msra.mxu0 0.0
        %618 = vmatprep.subr.mxu0 0.0
        %619 = vmatpush1.msra.mxu0 0.0
        %620 = vmatprep.subr.mxu0 0.0
        %621 = vmatpush1.msra.mxu0 0.0
        %622 = vmatprep.subr.mxu0 0.0
        %623 = vmatpush1.msra.mxu0 0.0
        %624 = vmatprep.subr.mxu0 0.0
        %625 = vmatpush1.msra.mxu0 0.0
        %626 = vmatprep.subr.mxu0 0.0
        %627 = vmatpush1.msra.mxu0 0.0
        %628 = vmatprep.subr.mxu0 0.0
        %629 = vmatpush1.msra.mxu0 0.0
        %630 = vmatprep.subr.mxu0 0.0
        %631 = vmatpush1.msra.mxu0 0.0
        %632 = vmatprep.subr.mxu0 0.0
        %633 = vmatpush1.msra.mxu0 0.0
        %634 = vmatprep.subr.mxu0 0.0
        %635 = vmatpush1.msra.mxu0 0.0
        %636 = vmatprep.subr.mxu0 0.0
        %637 = vmatpush1.msra.mxu0 0.0
        %638 = vmatprep.subr.mxu0 0.0
        %639 = vmatpush1.msra.mxu0 0.0
        %640 = vmatprep.subr.mxu0 0.0
        %641 = vmatpush1.msra.mxu0 %v580
        %642 = vmatprep.subr.mxu0 0.0
        %643 = vmatpush1.msra.mxu0 %v579
        %644 = vmatprep.subr.mxu0 0.0
        %645 = vmatpush1.msra.mxu0 %v578
        %646 = vmatprep.subr.mxu0 0.0
        %647 = vmatpush1.msra.mxu0 %v577
        %648 = vmatprep.subr.mxu0 0.0
        %649 = vmatpush2.msra.mxu0 0.0
        %650 = vmatprep.subr.mxu0 0.0
        %651 = vmatpush2.msra.mxu0 0.0
        %652 = vmatprep.subr.mxu0 0.0
        %653 = vmatpush2.msra.mxu0 0.0
        %654 = vmatprep.subr.mxu0 0.0
        %655 = vmatpush2.msra.mxu0 0.0
        %656 = vmatprep.subr.mxu0 0.0
        %657 = vmatpush2.msra.mxu0 0.0
        %658 = vmatprep.subr.mxu0 0.0
        %659 = vmatpush2.msra.mxu0 0.0
        %660 = vmatprep.subr.mxu0 0.0
        %661 = vmatpush2.msra.mxu0 0.0
        %662 = vmatprep.subr.mxu0 0.0
        %663 = vmatpush2.msra.mxu0 0.0
        %664 = vmatprep.subr.mxu0 0.0
        %665 = vmatpush2.msra.mxu0 0.0
        %666 = vmatprep.subr.mxu0 0.0
        %667 = vmatpush2.msra.mxu0 0.0
        %668 = vmatprep.subr.mxu0 0.0
        %669 = vmatpush2.msra.mxu0 0.0
        %670 = vmatprep.subr.mxu0 0.0
        %671 = vmatpush2.msra.mxu0 0.0
        %672 = vmatprep.subr.mxu0 0.0
        %673 = vmatpush2.msra.mxu0 0.0
        %674 = vmatprep.subr.mxu0 0.0
        %675 = vmatpush2.msra.mxu0 0.0
        %676 = vmatprep.subr.mxu0 0.0
        %677 = vmatpush2.msra.mxu0 0.0
        %678 = vmatprep.subr.mxu0 0.0
        %679 = vmatpush2.msra.mxu0 0.0
        %680 = vmatprep.mubr.f32.mxu0 0.0
        %681 = vmatmul.mubr.f32.gmra.mxu0 %v614
        %v682 = vpop.f32.mrf.mxu0
        %v683 = vadd.f32 %v611, %v682
        %v684 = vpop.f32.mrf.mxu0
        %685 = vdwg.mxu0
        %v686 = vmul.f32 %v683, 0.35355338
        %v687 = vlaneseq
        %v688 = vshrl.u32 %v687, 7
        %v689 = vsub.s32 1, %v688
        %v690 = vrot.slane %v606, %v689
        %v692 = vsel %vm612, %v571, 0
        %694 = vmatprep.subr.mxu0 0.0
        %695 = vmatpush1.msra.mxu0 0.0
        %696 = vmatprep.subr.mxu0 0.0
        %697 = vmatpush1.msra.mxu0 0.0
        %698 = vmatprep.subr.mxu0 0.0
        %699 = vmatpush1.msra.mxu0 0.0
        %700 = vmatprep.subr.mxu0 0.0
        %701 = vmatpush1.msra.mxu0 0.0
        %702 = vmatprep.subr.mxu0 0.0
        %703 = vmatpush1.msra.mxu0 0.0
        %704 = vmatprep.subr.mxu0 0.0
        %705 = vmatpush1.msra.mxu0 0.0
        %706 = vmatprep.subr.mxu0 0.0
        %707 = vmatpush1.msra.mxu0 0.0
        %708 = vmatprep.subr.mxu0 0.0
        %709 = vmatpush1.msra.mxu0 0.0
        %710 = vmatprep.subr.mxu0 0.0
        %711 = vmatpush1.msra.mxu0 0.0
        %712 = vmatprep.subr.mxu0 0.0
        %713 = vmatpush1.msra.mxu0 0.0
        %714 = vmatprep.subr.mxu0 0.0
        %715 = vmatpush1.msra.mxu0 0.0
        %716 = vmatprep.subr.mxu0 0.0
        %717 = vmatpush1.msra.mxu0 0.0
        %718 = vmatprep.subr.mxu0 0.0
        %719 = vmatpush1.msra.mxu0 %v585
        %720 = vmatprep.subr.mxu0 0.0
        %721 = vmatpush1.msra.mxu0 %v584
        %722 = vmatprep.subr.mxu0 0.0
        %723 = vmatpush1.msra.mxu0 %v583
        %724 = vmatprep.subr.mxu0 0.0
        %725 = vmatpush1.msra.mxu0 %v582
        %726 = vmatprep.subr.mxu0 0.0
        %727 = vmatpush2.msra.mxu0 0.0
        %728 = vmatprep.subr.mxu0 0.0
        %729 = vmatpush2.msra.mxu0 0.0
        %730 = vmatprep.subr.mxu0 0.0
        %731 = vmatpush2.msra.mxu0 0.0
        %732 = vmatprep.subr.mxu0 0.0
        %733 = vmatpush2.msra.mxu0 0.0
        %734 = vmatprep.subr.mxu0 0.0
        %735 = vmatpush2.msra.mxu0 0.0
        %736 = vmatprep.subr.mxu0 0.0
        %737 = vmatpush2.msra.mxu0 0.0
        %738 = vmatprep.subr.mxu0 0.0
        %739 = vmatpush2.msra.mxu0 0.0
        %740 = vmatprep.subr.mxu0 0.0
        %741 = vmatpush2.msra.mxu0 0.0
        %742 = vmatprep.subr.mxu0 0.0
        %743 = vmatpush2.msra.mxu0 0.0
        %744 = vmatprep.subr.mxu0 0.0
        %745 = vmatpush2.msra.mxu0 0.0
        %746 = vmatprep.subr.mxu0 0.0
        %747 = vmatpush2.msra.mxu0 0.0
        %748 = vmatprep.subr.mxu0 0.0
        %749 = vmatpush2.msra.mxu0 0.0
        %750 = vmatprep.subr.mxu0 0.0
        %751 = vmatpush2.msra.mxu0 0.0
        %752 = vmatprep.subr.mxu0 0.0
        %753 = vmatpush2.msra.mxu0 0.0
        %754 = vmatprep.subr.mxu0 0.0
        %755 = vmatpush2.msra.mxu0 0.0
        %756 = vmatprep.subr.mxu0 0.0
        %757 = vmatpush2.msra.mxu0 0.0
        %758 = vmatprep.mubr.f32.mxu0 0.0
        %759 = vmatmul.mubr.f32.gmra.mxu0 %v692
        %v760 = vpop.f32.mrf.mxu0
        %v761 = vadd.f32 %v690, %v760
        %v762 = vpop.f32.mrf.mxu0
        %763 = vdwg.mxu0
        %v765 = vlaneseq
        %v766 = vshrl.u32 %v765, 7
        %v767 = vsub.s32 0, %v766
        %v768 = vrot.slane %v573, %v767
        %vm770 = vcmask 64512
        %v772 = vsel %vm770, %v686, 0
        %v775 = vsel %vm770, %v761, 0
        %777 = vmatprep.subr.mxu0 0.0
        %778 = vmatpush1.xpose.msra.mxu0 0.0
        %779 = vmatprep.subr.mxu0 0.0
        %780 = vmatpush1.xpose.msra.mxu0 0.0
        %781 = vmatprep.subr.mxu0 0.0
        %782 = vmatpush1.xpose.msra.mxu0 0.0
        %783 = vmatprep.subr.mxu0 0.0
        %784 = vmatpush1.xpose.msra.mxu0 0.0
        %785 = vmatprep.subr.mxu0 0.0
        %786 = vmatpush1.xpose.msra.mxu0 0.0
        %787 = vmatprep.subr.mxu0 0.0
        %788 = vmatpush1.xpose.msra.mxu0 0.0
        %789 = vmatprep.subr.mxu0 0.0
        %790 = vmatpush1.xpose.msra.mxu0 0.0
        %791 = vmatprep.subr.mxu0 0.0
        %792 = vmatpush1.xpose.msra.mxu0 0.0
        %793 = vmatprep.subr.mxu0 0.0
        %794 = vmatpush1.xpose.msra.mxu0 0.0
        %795 = vmatprep.subr.mxu0 0.0
        %796 = vmatpush1.xpose.msra.mxu0 0.0
        %797 = vmatprep.subr.mxu0 0.0
        %798 = vmatpush1.xpose.msra.mxu0 0.0
        %799 = vmatprep.subr.mxu0 0.0
        %800 = vmatpush1.xpose.msra.mxu0 0.0
        %801 = vmatprep.subr.mxu0 0.0
        %802 = vmatpush1.xpose.msra.mxu0 0.0
        %803 = vmatprep.subr.mxu0 0.0
        %804 = vmatpush1.xpose.msra.mxu0 0.0
        %805 = vmatprep.subr.mxu0 0.0
        %806 = vmatpush1.xpose.msra.mxu0 0.0
        %807 = vmatprep.subr.mxu0 0.0
        %808 = vmatpush1.xpose.msra.mxu0 %v775
        %809 = vmatprep.subr.mxu0 0.0
        %810 = vmatpush2.xpose.msra.mxu0 0.0
        %811 = vmatprep.subr.mxu0 0.0
        %812 = vmatpush2.xpose.msra.mxu0 0.0
        %813 = vmatprep.subr.mxu0 0.0
        %814 = vmatpush2.xpose.msra.mxu0 0.0
        %815 = vmatprep.subr.mxu0 0.0
        %816 = vmatpush2.xpose.msra.mxu0 0.0
        %817 = vmatprep.subr.mxu0 0.0
        %818 = vmatpush2.xpose.msra.mxu0 0.0
        %819 = vmatprep.subr.mxu0 0.0
        %820 = vmatpush2.xpose.msra.mxu0 0.0
        %821 = vmatprep.subr.mxu0 0.0
        %822 = vmatpush2.xpose.msra.mxu0 0.0
        %823 = vmatprep.subr.mxu0 0.0
        %824 = vmatpush2.xpose.msra.mxu0 0.0
        %825 = vmatprep.subr.mxu0 0.0
        %826 = vmatpush2.xpose.msra.mxu0 0.0
        %827 = vmatprep.subr.mxu0 0.0
        %828 = vmatpush2.xpose.msra.mxu0 0.0
        %829 = vmatprep.subr.mxu0 0.0
        %830 = vmatpush2.xpose.msra.mxu0 0.0
        %831 = vmatprep.subr.mxu0 0.0
        %832 = vmatpush2.xpose.msra.mxu0 0.0
        %833 = vmatprep.subr.mxu0 0.0
        %834 = vmatpush2.xpose.msra.mxu0 0.0
        %835 = vmatprep.subr.mxu0 0.0
        %836 = vmatpush2.xpose.msra.mxu0 0.0
        %837 = vmatprep.subr.mxu0 0.0
        %838 = vmatpush2.xpose.msra.mxu0 0.0
        %839 = vmatprep.subr.mxu0 0.0
        %840 = vmatpush2.xpose.msra.mxu0 0.0
        %841 = vmatprep.mubr.f32.mxu0 0.0
        %842 = vmatmul.mubr.f32.gmra.mxu0 %v772
        %v843 = vpop.f32.mrf.mxu0
        %v844 = vadd.f32 %v768, %v843
        %v845 = vpop.f32.mrf.mxu0
        %846 = vdwg.mxu0
        %v847 = vsel %vm770, %v844, -inf
        %848 = vmax.xlane.f32.xlu0 %v847
        %v849 = vpop.xlane.xlu0 %848
        %v850 = vsub.f32 %v844, %v849
        %v851 = vmul.f32 %v850, 1.442695
        %v852 = vpow.pop %v851
        %v853 = vsel %vm770, %v852, 0.0
        %854 = vadd.xlane.f32.xlu0 %v853
        %v855 = vpop.xlane.xlu0 %854
        %v856 = vrcp.pop %v855
        %v857 = vmul.f32 %v852, %v856
        %858 = vrot.lane.b32.xlu0 %v761, 96
        %v859 = vpop.permute.xlu0 %858
        %v862 = vsel %vm770, %v857, 0
        %864 = vmatprep.subr.mxu0 0.0
        %865 = vmatpush1.msra.mxu0 0.0
        %866 = vmatprep.subr.mxu0 0.0
        %867 = vmatpush1.msra.mxu0 0.0
        %868 = vmatprep.subr.mxu0 0.0
        %869 = vmatpush1.msra.mxu0 0.0
        %870 = vmatprep.subr.mxu0 0.0
        %871 = vmatpush1.msra.mxu0 0.0
        %872 = vmatprep.subr.mxu0 0.0
        %873 = vmatpush1.msra.mxu0 0.0
        %874 = vmatprep.subr.mxu0 0.0
        %875 = vmatpush1.msra.mxu0 0.0
        %876 = vmatprep.subr.mxu0 0.0
        %877 = vmatpush1.msra.mxu0 0.0
        %878 = vmatprep.subr.mxu0 0.0
        %879 = vmatpush1.msra.mxu0 0.0
        %880 = vmatprep.subr.mxu0 0.0
        %881 = vmatpush1.msra.mxu0 0.0
        %882 = vmatprep.subr.mxu0 0.0
        %883 = vmatpush1.msra.mxu0 0.0
        %884 = vmatprep.subr.mxu0 0.0
        %885 = vmatpush1.msra.mxu0 0.0
        %886 = vmatprep.subr.mxu0 0.0
        %887 = vmatpush1.msra.mxu0 0.0
        %888 = vmatprep.subr.mxu0 0.0
        %889 = vmatpush1.msra.mxu0 0.0
        %890 = vmatprep.subr.mxu0 0.0
        %891 = vmatpush1.msra.mxu0 0.0
        %892 = vmatprep.subr.mxu0 0.0
        %893 = vmatpush1.msra.mxu0 0.0
        %894 = vmatprep.subr.mxu0 0.0
        %895 = vmatpush1.msra.mxu0 %v859
        %896 = vmatprep.subr.mxu0 0.0
        %897 = vmatpush2.msra.mxu0 0.0
        %898 = vmatprep.subr.mxu0 0.0
        %899 = vmatpush2.msra.mxu0 0.0
        %900 = vmatprep.subr.mxu0 0.0
        %901 = vmatpush2.msra.mxu0 0.0
        %902 = vmatprep.subr.mxu0 0.0
        %903 = vmatpush2.msra.mxu0 0.0
        %904 = vmatprep.subr.mxu0 0.0
        %905 = vmatpush2.msra.mxu0 0.0
        %906 = vmatprep.subr.mxu0 0.0
        %907 = vmatpush2.msra.mxu0 0.0
        %908 = vmatprep.subr.mxu0 0.0
        %909 = vmatpush2.msra.mxu0 0.0
        %910 = vmatprep.subr.mxu0 0.0
        %911 = vmatpush2.msra.mxu0 0.0
        %912 = vmatprep.subr.mxu0 0.0
        %913 = vmatpush2.msra.mxu0 0.0
        %914 = vmatprep.subr.mxu0 0.0
        %915 = vmatpush2.msra.mxu0 0.0
        %916 = vmatprep.subr.mxu0 0.0
        %917 = vmatpush2.msra.mxu0 0.0
        %918 = vmatprep.subr.mxu0 0.0
        %919 = vmatpush2.msra.mxu0 0.0
        %920 = vmatprep.subr.mxu0 0.0
        %921 = vmatpush2.msra.mxu0 0.0
        %922 = vmatprep.subr.mxu0 0.0
        %923 = vmatpush2.msra.mxu0 0.0
        %924 = vmatprep.subr.mxu0 0.0
        %925 = vmatpush2.msra.mxu0 0.0
        %926 = vmatprep.subr.mxu0 0.0
        %927 = vmatpush2.msra.mxu0 0.0
        %928 = vmatprep.mubr.f32.mxu0 0.0
        %929 = vmatmul.mubr.f32.gmra.mxu0 %v862
        %v930 = vpop.f32.mrf.mxu0
        %v931 = vadd.f32 0.0, %v930
        %v932 = vpop.f32.mrf.mxu0
        %933 = vdwg.mxu0
        %934 = vrot.lane.b32.xlu0 %v686, 120
        %v935 = vpop.permute.xlu0 %934
        %936 = vrot.lane.b32.xlu0 %v761, 120
        %v937 = vpop.permute.xlu0 %936
        %v938 = vsel %vm770, %v935, 0
        %v940 = vsel %vm770, %v937, 0
        %942 = vmatprep.subr.mxu0 0.0
        %943 = vmatpush1.xpose.msra.mxu0 0.0
        %944 = vmatprep.subr.mxu0 0.0
        %945 = vmatpush1.xpose.msra.mxu0 0.0
        %946 = vmatprep.subr.mxu0 0.0
        %947 = vmatpush1.xpose.msra.mxu0 0.0
        %948 = vmatprep.subr.mxu0 0.0
        %949 = vmatpush1.xpose.msra.mxu0 0.0
        %950 = vmatprep.subr.mxu0 0.0
        %951 = vmatpush1.xpose.msra.mxu0 0.0
        %952 = vmatprep.subr.mxu0 0.0
        %953 = vmatpush1.xpose.msra.mxu0 0.0
        %954 = vmatprep.subr.mxu0 0.0
        %955 = vmatpush1.xpose.msra.mxu0 0.0
        %956 = vmatprep.subr.mxu0 0.0
        %957 = vmatpush1.xpose.msra.mxu0 0.0
        %958 = vmatprep.subr.mxu0 0.0
        %959 = vmatpush1.xpose.msra.mxu0 0.0
        %960 = vmatprep.subr.mxu0 0.0
        %961 = vmatpush1.xpose.msra.mxu0 0.0
        %962 = vmatprep.subr.mxu0 0.0
        %963 = vmatpush1.xpose.msra.mxu0 0.0
        %964 = vmatprep.subr.mxu0 0.0
        %965 = vmatpush1.xpose.msra.mxu0 0.0
        %966 = vmatprep.subr.mxu0 0.0
        %967 = vmatpush1.xpose.msra.mxu0 0.0
        %968 = vmatprep.subr.mxu0 0.0
        %969 = vmatpush1.xpose.msra.mxu0 0.0
        %970 = vmatprep.subr.mxu0 0.0
        %971 = vmatpush1.xpose.msra.mxu0 0.0
        %972 = vmatprep.subr.mxu0 0.0
        %973 = vmatpush1.xpose.msra.mxu0 %v940
        %974 = vmatprep.subr.mxu0 0.0
        %975 = vmatpush2.xpose.msra.mxu0 0.0
        %976 = vmatprep.subr.mxu0 0.0
        %977 = vmatpush2.xpose.msra.mxu0 0.0
        %978 = vmatprep.subr.mxu0 0.0
        %979 = vmatpush2.xpose.msra.mxu0 0.0
        %980 = vmatprep.subr.mxu0 0.0
        %981 = vmatpush2.xpose.msra.mxu0 0.0
        %982 = vmatprep.subr.mxu0 0.0
        %983 = vmatpush2.xpose.msra.mxu0 0.0
        %984 = vmatprep.subr.mxu0 0.0
        %985 = vmatpush2.xpose.msra.mxu0 0.0
        %986 = vmatprep.subr.mxu0 0.0
        %987 = vmatpush2.xpose.msra.mxu0 0.0
        %988 = vmatprep.subr.mxu0 0.0
        %989 = vmatpush2.xpose.msra.mxu0 0.0
        %990 = vmatprep.subr.mxu0 0.0
        %991 = vmatpush2.xpose.msra.mxu0 0.0
        %992 = vmatprep.subr.mxu0 0.0
        %993 = vmatpush2.xpose.msra.mxu0 0.0
        %994 = vmatprep.subr.mxu0 0.0
        %995 = vmatpush2.xpose.msra.mxu0 0.0
        %996 = vmatprep.subr.mxu0 0.0
        %997 = vmatpush2.xpose.msra.mxu0 0.0
        %998 = vmatprep.subr.mxu0 0.0
        %999 = vmatpush2.xpose.msra.mxu0 0.0
        %1000 = vmatprep.subr.mxu0 0.0
        %1001 = vmatpush2.xpose.msra.mxu0 0.0
        %1002 = vmatprep.subr.mxu0 0.0
        %1003 = vmatpush2.xpose.msra.mxu0 0.0
        %1004 = vmatprep.subr.mxu0 0.0
        %1005 = vmatpush2.xpose.msra.mxu0 0.0
        %1006 = vmatprep.mubr.f32.mxu0 0.0
        %1007 = vmatmul.mubr.f32.gmra.mxu0 %v938
        %v1008 = vpop.f32.mrf.mxu0
        %v1009 = vadd.f32 %v768, %v1008
        %v1010 = vpop.f32.mrf.mxu0
        %1011 = vdwg.mxu0
        %v1012 = vsel %vm770, %v1009, -inf
        %1013 = vmax.xlane.f32.xlu0 %v1012
        %v1014 = vpop.xlane.xlu0 %1013
        %v1015 = vsub.f32 %v1009, %v1014
        %v1016 = vmul.f32 %v1015, 1.442695
        %v1017 = vpow.pop %v1016
        %v1018 = vsel %vm770, %v1017, 0.0
        %1019 = vadd.xlane.f32.xlu0 %v1018
        %v1020 = vpop.xlane.xlu0 %1019
        %v1021 = vrcp.pop %v1020
        %v1022 = vmul.f32 %v1017, %v1021
        %1023 = vrot.lane.b32.xlu0 %v761, 88
        %v1024 = vpop.permute.xlu0 %1023
        %v1027 = vsel %vm770, %v1022, 0
        %1029 = vmatprep.subr.mxu0 0.0
        %1030 = vmatpush1.msra.mxu0 0.0
        %1031 = vmatprep.subr.mxu0 0.0
        %1032 = vmatpush1.msra.mxu0 0.0
        %1033 = vmatprep.subr.mxu0 0.0
        %1034 = vmatpush1.msra.mxu0 0.0
        %1035 = vmatprep.subr.mxu0 0.0
        %1036 = vmatpush1.msra.mxu0 0.0
        %1037 = vmatprep.subr.mxu0 0.0
        %1038 = vmatpush1.msra.mxu0 0.0
        %1039 = vmatprep.subr.mxu0 0.0
        %1040 = vmatpush1.msra.mxu0 0.0
        %1041 = vmatprep.subr.mxu0 0.0
        %1042 = vmatpush1.msra.mxu0 0.0
        %1043 = vmatprep.subr.mxu0 0.0
        %1044 = vmatpush1.msra.mxu0 0.0
        %1045 = vmatprep.subr.mxu0 0.0
        %1046 = vmatpush1.msra.mxu0 0.0
        %1047 = vmatprep.subr.mxu0 0.0
        %1048 = vmatpush1.msra.mxu0 0.0
        %1049 = vmatprep.subr.mxu0 0.0
        %1050 = vmatpush1.msra.mxu0 0.0
        %1051 = vmatprep.subr.mxu0 0.0
        %1052 = vmatpush1.msra.mxu0 0.0
        %1053 = vmatprep.subr.mxu0 0.0
        %1054 = vmatpush1.msra.mxu0 0.0
        %1055 = vmatprep.subr.mxu0 0.0
        %1056 = vmatpush1.msra.mxu0 0.0
        %1057 = vmatprep.subr.mxu0 0.0
        %1058 = vmatpush1.msra.mxu0 0.0
        %1059 = vmatprep.subr.mxu0 0.0
        %1060 = vmatpush1.msra.mxu0 %v1024
        %1061 = vmatprep.subr.mxu0 0.0
        %1062 = vmatpush2.msra.mxu0 0.0
        %1063 = vmatprep.subr.mxu0 0.0
        %1064 = vmatpush2.msra.mxu0 0.0
        %1065 = vmatprep.subr.mxu0 0.0
        %1066 = vmatpush2.msra.mxu0 0.0
        %1067 = vmatprep.subr.mxu0 0.0
        %1068 = vmatpush2.msra.mxu0 0.0
        %1069 = vmatprep.subr.mxu0 0.0
        %1070 = vmatpush2.msra.mxu0 0.0
        %1071 = vmatprep.subr.mxu0 0.0
        %1072 = vmatpush2.msra.mxu0 0.0
        %1073 = vmatprep.subr.mxu0 0.0
        %1074 = vmatpush2.msra.mxu0 0.0
        %1075 = vmatprep.subr.mxu0 0.0
        %1076 = vmatpush2.msra.mxu0 0.0
        %1077 = vmatprep.subr.mxu0 0.0
        %1078 = vmatpush2.msra.mxu0 0.0
        %1079 = vmatprep.subr.mxu0 0.0
        %1080 = vmatpush2.msra.mxu0 0.0
        %1081 = vmatprep.subr.mxu0 0.0
        %1082 = vmatpush2.msra.mxu0 0.0
        %1083 = vmatprep.subr.mxu0 0.0
        %1084 = vmatpush2.msra.mxu0 0.0
        %1085 = vmatprep.subr.mxu0 0.0
        %1086 = vmatpush2.msra.mxu0 0.0
        %1087 = vmatprep.subr.mxu0 0.0
        %1088 = vmatpush2.msra.mxu0 0.0
        %1089 = vmatprep.subr.mxu0 0.0
        %1090 = vmatpush2.msra.mxu0 0.0
        %1091 = vmatprep.subr.mxu0 0.0
        %1092 = vmatpush2.msra.mxu0 0.0
        %1093 = vmatprep.mubr.f32.mxu0 0.0
        %1094 = vmatmul.mubr.f32.gmra.mxu0 %v1027
        %v1095 = vpop.f32.mrf.mxu0
        %v1096 = vadd.f32 0.0, %v1095
        %v1097 = vpop.f32.mrf.mxu0
        %1098 = vdwg.mxu0
        %1099 = vrot.lane.b32.xlu0 %v686, 112
        %v1100 = vpop.permute.xlu0 %1099
        %1101 = vrot.lane.b32.xlu0 %v761, 112
        %v1102 = vpop.permute.xlu0 %1101
        %v1103 = vsel %vm770, %v1100, 0
        %v1105 = vsel %vm770, %v1102, 0
        %1107 = vmatprep.subr.mxu0 0.0
        %1108 = vmatpush1.xpose.msra.mxu0 0.0
        %1109 = vmatprep.subr.mxu0 0.0
        %1110 = vmatpush1.xpose.msra.mxu0 0.0
        %1111 = vmatprep.subr.mxu0 0.0
        %1112 = vmatpush1.xpose.msra.mxu0 0.0
        %1113 = vmatprep.subr.mxu0 0.0
        %1114 = vmatpush1.xpose.msra.mxu0 0.0
        %1115 = vmatprep.subr.mxu0 0.0
        %1116 = vmatpush1.xpose.msra.mxu0 0.0
        %1117 = vmatprep.subr.mxu0 0.0
        %1118 = vmatpush1.xpose.msra.mxu0 0.0
        %1119 = vmatprep.subr.mxu0 0.0
        %1120 = vmatpush1.xpose.msra.mxu0 0.0
        %1121 = vmatprep.subr.mxu0 0.0
        %1122 = vmatpush1.xpose.msra.mxu0 0.0
        %1123 = vmatprep.subr.mxu0 0.0
        %1124 = vmatpush1.xpose.msra.mxu0 0.0
        %1125 = vmatprep.subr.mxu0 0.0
        %1126 = vmatpush1.xpose.msra.mxu0 0.0
        %1127 = vmatprep.subr.mxu0 0.0
        %1128 = vmatpush1.xpose.msra.mxu0 0.0
        %1129 = vmatprep.subr.mxu0 0.0
        %1130 = vmatpush1.xpose.msra.mxu0 0.0
        %1131 = vmatprep.subr.mxu0 0.0
        %1132 = vmatpush1.xpose.msra.mxu0 0.0
        %1133 = vmatprep.subr.mxu0 0.0
        %1134 = vmatpush1.xpose.msra.mxu0 0.0
        %1135 = vmatprep.subr.mxu0 0.0
        %1136 = vmatpush1.xpose.msra.mxu0 0.0
        %1137 = vmatprep.subr.mxu0 0.0
        %1138 = vmatpush1.xpose.msra.mxu0 %v1105
        %1139 = vmatprep.subr.mxu0 0.0
        %1140 = vmatpush2.xpose.msra.mxu0 0.0
        %1141 = vmatprep.subr.mxu0 0.0
        %1142 = vmatpush2.xpose.msra.mxu0 0.0
        %1143 = vmatprep.subr.mxu0 0.0
        %1144 = vmatpush2.xpose.msra.mxu0 0.0
        %1145 = vmatprep.subr.mxu0 0.0
        %1146 = vmatpush2.xpose.msra.mxu0 0.0
        %1147 = vmatprep.subr.mxu0 0.0
        %1148 = vmatpush2.xpose.msra.mxu0 0.0
        %1149 = vmatprep.subr.mxu0 0.0
        %1150 = vmatpush2.xpose.msra.mxu0 0.0
        %1151 = vmatprep.subr.mxu0 0.0
        %1152 = vmatpush2.xpose.msra.mxu0 0.0
        %1153 = vmatprep.subr.mxu0 0.0
        %1154 = vmatpush2.xpose.msra.mxu0 0.0
        %1155 = vmatprep.subr.mxu0 0.0
        %1156 = vmatpush2.xpose.msra.mxu0 0.0
        %1157 = vmatprep.subr.mxu0 0.0
        %1158 = vmatpush2.xpose.msra.mxu0 0.0
        %1159 = vmatprep.subr.mxu0 0.0
        %1160 = vmatpush2.xpose.msra.mxu0 0.0
        %1161 = vmatprep.subr.mxu0 0.0
        %1162 = vmatpush2.xpose.msra.mxu0 0.0
        %1163 = vmatprep.subr.mxu0 0.0
        %1164 = vmatpush2.xpose.msra.mxu0 0.0
        %1165 = vmatprep.subr.mxu0 0.0
        %1166 = vmatpush2.xpose.msra.mxu0 0.0
        %1167 = vmatprep.subr.mxu0 0.0
        %1168 = vmatpush2.xpose.msra.mxu0 0.0
        %1169 = vmatprep.subr.mxu0 0.0
        %1170 = vmatpush2.xpose.msra.mxu0 0.0
        %1171 = vmatprep.mubr.f32.mxu0 0.0
        %1172 = vmatmul.mubr.f32.gmra.mxu0 %v1103
        %v1173 = vpop.f32.mrf.mxu0
        %v1174 = vadd.f32 %v768, %v1173
        %v1175 = vpop.f32.mrf.mxu0
        %1176 = vdwg.mxu0
        %v1177 = vsel %vm770, %v1174, -inf
        %1178 = vmax.xlane.f32.xlu0 %v1177
        %v1179 = vpop.xlane.xlu0 %1178
        %v1180 = vsub.f32 %v1174, %v1179
        %v1181 = vmul.f32 %v1180, 1.442695
        %v1182 = vpow.pop %v1181
        %v1183 = vsel %vm770, %v1182, 0.0
        %1184 = vadd.xlane.f32.xlu0 %v1183
        %v1185 = vpop.xlane.xlu0 %1184
        %v1186 = vrcp.pop %v1185
        %v1187 = vmul.f32 %v1182, %v1186
        %1188 = vrot.lane.b32.xlu0 %v761, 80
        %v1189 = vpop.permute.xlu0 %1188
        %v1192 = vsel %vm770, %v1187, 0
        %1194 = vmatprep.subr.mxu0 0.0
        %1195 = vmatpush1.msra.mxu0 0.0
        %1196 = vmatprep.subr.mxu0 0.0
        %1197 = vmatpush1.msra.mxu0 0.0
        %1198 = vmatprep.subr.mxu0 0.0
        %1199 = vmatpush1.msra.mxu0 0.0
        %1200 = vmatprep.subr.mxu0 0.0
        %1201 = vmatpush1.msra.mxu0 0.0
        %1202 = vmatprep.subr.mxu0 0.0
        %1203 = vmatpush1.msra.mxu0 0.0
        %1204 = vmatprep.subr.mxu0 0.0
        %1205 = vmatpush1.msra.mxu0 0.0
        %1206 = vmatprep.subr.mxu0 0.0
        %1207 = vmatpush1.msra.mxu0 0.0
        %1208 = vmatprep.subr.mxu0 0.0
        %1209 = vmatpush1.msra.mxu0 0.0
        %1210 = vmatprep.subr.mxu0 0.0
        %1211 = vmatpush1.msra.mxu0 0.0
        %1212 = vmatprep.subr.mxu0 0.0
        %1213 = vmatpush1.msra.mxu0 0.0
        %1214 = vmatprep.subr.mxu0 0.0
        %1215 = vmatpush1.msra.mxu0 0.0
        %1216 = vmatprep.subr.mxu0 0.0
        %1217 = vmatpush1.msra.mxu0 0.0
        %1218 = vmatprep.subr.mxu0 0.0
        %1219 = vmatpush1.msra.mxu0 0.0
        %1220 = vmatprep.subr.mxu0 0.0
        %1221 = vmatpush1.msra.mxu0 0.0
        %1222 = vmatprep.subr.mxu0 0.0
        %1223 = vmatpush1.msra.mxu0 0.0
        %1224 = vmatprep.subr.mxu0 0.0
        %1225 = vmatpush1.msra.mxu0 %v1189
        %1226 = vmatprep.subr.mxu0 0.0
        %1227 = vmatpush2.msra.mxu0 0.0
        %1228 = vmatprep.subr.mxu0 0.0
        %1229 = vmatpush2.msra.mxu0 0.0
        %1230 = vmatprep.subr.mxu0 0.0
        %1231 = vmatpush2.msra.mxu0 0.0
        %1232 = vmatprep.subr.mxu0 0.0
        %1233 = vmatpush2.msra.mxu0 0.0
        %1234 = vmatprep.subr.mxu0 0.0
        %1235 = vmatpush2.msra.mxu0 0.0
        %1236 = vmatprep.subr.mxu0 0.0
        %1237 = vmatpush2.msra.mxu0 0.0
        %1238 = vmatprep.subr.mxu0 0.0
        %1239 = vmatpush2.msra.mxu0 0.0
        %1240 = vmatprep.subr.mxu0 0.0
        %1241 = vmatpush2.msra.mxu0 0.0
        %1242 = vmatprep.subr.mxu0 0.0
        %1243 = vmatpush2.msra.mxu0 0.0
        %1244 = vmatprep.subr.mxu0 0.0
        %1245 = vmatpush2.msra.mxu0 0.0
        %1246 = vmatprep.subr.mxu0 0.0
        %1247 = vmatpush2.msra.mxu0 0.0
        %1248 = vmatprep.subr.mxu0 0.0
        %1249 = vmatpush2.msra.mxu0 0.0
        %1250 = vmatprep.subr.mxu0 0.0
        %1251 = vmatpush2.msra.mxu0 0.0
        %1252 = vmatprep.subr.mxu0 0.0
        %1253 = vmatpush2.msra.mxu0 0.0
        %1254 = vmatprep.subr.mxu0 0.0
        %1255 = vmatpush2.msra.mxu0 0.0
        %1256 = vmatprep.subr.mxu0 0.0
        %1257 = vmatpush2.msra.mxu0 0.0
        %1258 = vmatprep.mubr.f32.mxu0 0.0
        %1259 = vmatmul.mubr.f32.gmra.mxu0 %v1192
        %v1260 = vpop.f32.mrf.mxu0
        %v1261 = vadd.f32 0.0, %v1260
        %v1262 = vpop.f32.mrf.mxu0
        %1263 = vdwg.mxu0
        %1264 = vrot.lane.b32.xlu0 %v686, 104
        %v1265 = vpop.permute.xlu0 %1264
        %1266 = vrot.lane.b32.xlu0 %v761, 104
        %v1267 = vpop.permute.xlu0 %1266
        %v1268 = vsel %vm770, %v1265, 0
        %v1270 = vsel %vm770, %v1267, 0
        %1272 = vmatprep.subr.mxu0 0.0
        %1273 = vmatpush1.xpose.msra.mxu0 0.0
        %1274 = vmatprep.subr.mxu0 0.0
        %1275 = vmatpush1.xpose.msra.mxu0 0.0
        %1276 = vmatprep.subr.mxu0 0.0
        %1277 = vmatpush1.xpose.msra.mxu0 0.0
        %1278 = vmatprep.subr.mxu0 0.0
        %1279 = vmatpush1.xpose.msra.mxu0 0.0
        %1280 = vmatprep.subr.mxu0 0.0
        %1281 = vmatpush1.xpose.msra.mxu0 0.0
        %1282 = vmatprep.subr.mxu0 0.0
        %1283 = vmatpush1.xpose.msra.mxu0 0.0
        %1284 = vmatprep.subr.mxu0 0.0
        %1285 = vmatpush1.xpose.msra.mxu0 0.0
        %1286 = vmatprep.subr.mxu0 0.0
        %1287 = vmatpush1.xpose.msra.mxu0 0.0
        %1288 = vmatprep.subr.mxu0 0.0
        %1289 = vmatpush1.xpose.msra.mxu0 0.0
        %1290 = vmatprep.subr.mxu0 0.0
        %1291 = vmatpush1.xpose.msra.mxu0 0.0
        %1292 = vmatprep.subr.mxu0 0.0
        %1293 = vmatpush1.xpose.msra.mxu0 0.0
        %1294 = vmatprep.subr.mxu0 0.0
        %1295 = vmatpush1.xpose.msra.mxu0 0.0
        %1296 = vmatprep.subr.mxu0 0.0
        %1297 = vmatpush1.xpose.msra.mxu0 0.0
        %1298 = vmatprep.subr.mxu0 0.0
        %1299 = vmatpush1.xpose.msra.mxu0 0.0
        %1300 = vmatprep.subr.mxu0 0.0
        %1301 = vmatpush1.xpose.msra.mxu0 0.0
        %1302 = vmatprep.subr.mxu0 0.0
        %1303 = vmatpush1.xpose.msra.mxu0 %v1270
        %1304 = vmatprep.subr.mxu0 0.0
        %1305 = vmatpush2.xpose.msra.mxu0 0.0
        %1306 = vmatprep.subr.mxu0 0.0
        %1307 = vmatpush2.xpose.msra.mxu0 0.0
        %1308 = vmatprep.subr.mxu0 0.0
        %1309 = vmatpush2.xpose.msra.mxu0 0.0
        %1310 = vmatprep.subr.mxu0 0.0
        %1311 = vmatpush2.xpose.msra.mxu0 0.0
        %1312 = vmatprep.subr.mxu0 0.0
        %1313 = vmatpush2.xpose.msra.mxu0 0.0
        %1314 = vmatprep.subr.mxu0 0.0
        %1315 = vmatpush2.xpose.msra.mxu0 0.0
        %1316 = vmatprep.subr.mxu0 0.0
        %1317 = vmatpush2.xpose.msra.mxu0 0.0
        %1318 = vmatprep.subr.mxu0 0.0
        %1319 = vmatpush2.xpose.msra.mxu0 0.0
        %1320 = vmatprep.subr.mxu0 0.0
        %1321 = vmatpush2.xpose.msra.mxu0 0.0
        %1322 = vmatprep.subr.mxu0 0.0
        %1323 = vmatpush2.xpose.msra.mxu0 0.0
        %1324 = vmatprep.subr.mxu0 0.0
        %1325 = vmatpush2.xpose.msra.mxu0 0.0
        %1326 = vmatprep.subr.mxu0 0.0
        %1327 = vmatpush2.xpose.msra.mxu0 0.0
        %1328 = vmatprep.subr.mxu0 0.0
        %1329 = vmatpush2.xpose.msra.mxu0 0.0
        %1330 = vmatprep.subr.mxu0 0.0
        %1331 = vmatpush2.xpose.msra.mxu0 0.0
        %1332 = vmatprep.subr.mxu0 0.0
        %1333 = vmatpush2.xpose.msra.mxu0 0.0
        %1334 = vmatprep.subr.mxu0 0.0
        %1335 = vmatpush2.xpose.msra.mxu0 0.0
        %1336 = vmatprep.mubr.f32.mxu0 0.0
        %1337 = vmatmul.mubr.f32.gmra.mxu0 %v1268
        %v1338 = vpop.f32.mrf.mxu0
        %v1339 = vadd.f32 %v768, %v1338
        %v1340 = vpop.f32.mrf.mxu0
        %1341 = vdwg.mxu0
        %v1342 = vsel %vm770, %v1339, -inf
        %1343 = vmax.xlane.f32.xlu0 %v1342
        %v1344 = vpop.xlane.xlu0 %1343
        %v1345 = vsub.f32 %v1339, %v1344
        %v1346 = vmul.f32 %v1345, 1.442695
        %v1347 = vpow.pop %v1346
        %v1348 = vsel %vm770, %v1347, 0.0
        %1349 = vadd.xlane.f32.xlu0 %v1348
        %v1350 = vpop.xlane.xlu0 %1349
        %v1351 = vrcp.pop %v1350
        %v1352 = vmul.f32 %v1347, %v1351
        %1353 = vrot.lane.b32.xlu0 %v761, 72
        %v1354 = vpop.permute.xlu0 %1353
        %v1357 = vsel %vm770, %v1352, 0
        %1359 = vmatprep.subr.mxu0 0.0
        %1360 = vmatpush1.msra.mxu0 0.0
        %1361 = vmatprep.subr.mxu0 0.0
        %1362 = vmatpush1.msra.mxu0 0.0
        %1363 = vmatprep.subr.mxu0 0.0
        %1364 = vmatpush1.msra.mxu0 0.0
        %1365 = vmatprep.subr.mxu0 0.0
        %1366 = vmatpush1.msra.mxu0 0.0
        %1367 = vmatprep.subr.mxu0 0.0
        %1368 = vmatpush1.msra.mxu0 0.0
        %1369 = vmatprep.subr.mxu0 0.0
        %1370 = vmatpush1.msra.mxu0 0.0
        %1371 = vmatprep.subr.mxu0 0.0
        %1372 = vmatpush1.msra.mxu0 0.0
        %1373 = vmatprep.subr.mxu0 0.0
        %1374 = vmatpush1.msra.mxu0 0.0
        %1375 = vmatprep.subr.mxu0 0.0
        %1376 = vmatpush1.msra.mxu0 0.0
        %1377 = vmatprep.subr.mxu0 0.0
        %1378 = vmatpush1.msra.mxu0 0.0
        %1379 = vmatprep.subr.mxu0 0.0
        %1380 = vmatpush1.msra.mxu0 0.0
        %1381 = vmatprep.subr.mxu0 0.0
        %1382 = vmatpush1.msra.mxu0 0.0
        %1383 = vmatprep.subr.mxu0 0.0
        %1384 = vmatpush1.msra.mxu0 0.0
        %1385 = vmatprep.subr.mxu0 0.0
        %1386 = vmatpush1.msra.mxu0 0.0
        %1387 = vmatprep.subr.mxu0 0.0
        %1388 = vmatpush1.msra.mxu0 0.0
        %1389 = vmatprep.subr.mxu0 0.0
        %1390 = vmatpush1.msra.mxu0 %v1354
        %1391 = vmatprep.subr.mxu0 0.0
        %1392 = vmatpush2.msra.mxu0 0.0
        %1393 = vmatprep.subr.mxu0 0.0
        %1394 = vmatpush2.msra.mxu0 0.0
        %1395 = vmatprep.subr.mxu0 0.0
        %1396 = vmatpush2.msra.mxu0 0.0
        %1397 = vmatprep.subr.mxu0 0.0
        %1398 = vmatpush2.msra.mxu0 0.0
        %1399 = vmatprep.subr.mxu0 0.0
        %1400 = vmatpush2.msra.mxu0 0.0
        %1401 = vmatprep.subr.mxu0 0.0
        %1402 = vmatpush2.msra.mxu0 0.0
        %1403 = vmatprep.subr.mxu0 0.0
        %1404 = vmatpush2.msra.mxu0 0.0
        %1405 = vmatprep.subr.mxu0 0.0
        %1406 = vmatpush2.msra.mxu0 0.0
        %1407 = vmatprep.subr.mxu0 0.0
        %1408 = vmatpush2.msra.mxu0 0.0
        %1409 = vmatprep.subr.mxu0 0.0
        %1410 = vmatpush2.msra.mxu0 0.0
        %1411 = vmatprep.subr.mxu0 0.0
        %1412 = vmatpush2.msra.mxu0 0.0
        %1413 = vmatprep.subr.mxu0 0.0
        %1414 = vmatpush2.msra.mxu0 0.0
        %1415 = vmatprep.subr.mxu0 0.0
        %1416 = vmatpush2.msra.mxu0 0.0
        %1417 = vmatprep.subr.mxu0 0.0
        %1418 = vmatpush2.msra.mxu0 0.0
        %1419 = vmatprep.subr.mxu0 0.0
        %1420 = vmatpush2.msra.mxu0 0.0
        %1421 = vmatprep.subr.mxu0 0.0
        %1422 = vmatpush2.msra.mxu0 0.0
        %1423 = vmatprep.mubr.f32.mxu0 0.0
        %1424 = vmatmul.mubr.f32.gmra.mxu0 %v1357
        %v1425 = vpop.f32.mrf.mxu0
        %v1426 = vadd.f32 0.0, %v1425
        %v1427 = vpop.f32.mrf.mxu0
        %1428 = vdwg.mxu0
        %1430 = vrot.lane.b32.xlu0 %v1096, 8
        %v1431 = vpop.permute.xlu0 %1430
        %1434 = vrot.lane.b32.xlu0 %v1261, 16
        %v1435 = vpop.permute.xlu0 %1434
        %1438 = vrot.lane.b32.xlu0 %v1426, 24
        %v1439 = vpop.permute.xlu0 %1438
        %v1441 = vsel %vm770, %v931, %v1431
        %vm1442 = vcmask 130048
        %v1443 = vsel %vm1442, %v1441, %v1435
        %vm1444 = vcmask 195584
        %v1445 = vsel %vm1444, %v1443, %v1439
        %v1446 = vlaneseq
        %v1447 = vshrl.u32 %v1446, 7
        %v1448 = vsub.s32 2, %v1447
        %v1449 = vrot.slane %v606, %v1448
        %v1451 = vsel %vm612, %v1445, 0
        %1453 = vmatprep.subr.mxu0 0.0
        %1454 = vmatpush1.msra.mxu0 0.0
        %1455 = vmatprep.subr.mxu0 0.0
        %1456 = vmatpush1.msra.mxu0 0.0
        %1457 = vmatprep.subr.mxu0 0.0
        %1458 = vmatpush1.msra.mxu0 0.0
        %1459 = vmatprep.subr.mxu0 0.0
        %1460 = vmatpush1.msra.mxu0 0.0
        %1461 = vmatprep.subr.mxu0 0.0
        %1462 = vmatpush1.msra.mxu0 0.0
        %1463 = vmatprep.subr.mxu0 0.0
        %1464 = vmatpush1.msra.mxu0 0.0
        %1465 = vmatprep.subr.mxu0 0.0
        %1466 = vmatpush1.msra.mxu0 0.0
        %1467 = vmatprep.subr.mxu0 0.0
        %1468 = vmatpush1.msra.mxu0 0.0
        %1469 = vmatprep.subr.mxu0 0.0
        %1470 = vmatpush1.msra.mxu0 0.0
        %1471 = vmatprep.subr.mxu0 0.0
        %1472 = vmatpush1.msra.mxu0 0.0
        %1473 = vmatprep.subr.mxu0 0.0
        %1474 = vmatpush1.msra.mxu0 0.0
        %1475 = vmatprep.subr.mxu0 0.0
        %1476 = vmatpush1.msra.mxu0 0.0
        %1477 = vmatprep.subr.mxu0 0.0
        %1478 = vmatpush1.msra.mxu0 %v590
        %1479 = vmatprep.subr.mxu0 0.0
        %1480 = vmatpush1.msra.mxu0 %v589
        %1481 = vmatprep.subr.mxu0 0.0
        %1482 = vmatpush1.msra.mxu0 %v588
        %1483 = vmatprep.subr.mxu0 0.0
        %1484 = vmatpush1.msra.mxu0 %v587
        %1485 = vmatprep.subr.mxu0 0.0
        %1486 = vmatpush2.msra.mxu0 0.0
        %1487 = vmatprep.subr.mxu0 0.0
        %1488 = vmatpush2.msra.mxu0 0.0
        %1489 = vmatprep.subr.mxu0 0.0
        %1490 = vmatpush2.msra.mxu0 0.0
        %1491 = vmatprep.subr.mxu0 0.0
        %1492 = vmatpush2.msra.mxu0 0.0
        %1493 = vmatprep.subr.mxu0 0.0
        %1494 = vmatpush2.msra.mxu0 0.0
        %1495 = vmatprep.subr.mxu0 0.0
        %1496 = vmatpush2.msra.mxu0 0.0
        %1497 = vmatprep.subr.mxu0 0.0
        %1498 = vmatpush2.msra.mxu0 0.0
        %1499 = vmatprep.subr.mxu0 0.0
        %1500 = vmatpush2.msra.mxu0 0.0
        %1501 = vmatprep.subr.mxu0 0.0
        %1502 = vmatpush2.msra.mxu0 0.0
        %1503 = vmatprep.subr.mxu0 0.0
        %1504 = vmatpush2.msra.mxu0 0.0
        %1505 = vmatprep.subr.mxu0 0.0
        %1506 = vmatpush2.msra.mxu0 0.0
        %1507 = vmatprep.subr.mxu0 0.0
        %1508 = vmatpush2.msra.mxu0 0.0
        %1509 = vmatprep.subr.mxu0 0.0
        %1510 = vmatpush2.msra.mxu0 0.0
        %1511 = vmatprep.subr.mxu0 0.0
        %1512 = vmatpush2.msra.mxu0 0.0
        %1513 = vmatprep.subr.mxu0 0.0
        %1514 = vmatpush2.msra.mxu0 0.0
        %1515 = vmatprep.subr.mxu0 0.0
        %1516 = vmatpush2.msra.mxu0 0.0
        %1517 = vmatprep.mubr.f32.mxu0 0.0
        %1518 = vmatmul.mubr.f32.gmra.mxu0 %v1451
        %v1519 = vpop.f32.mrf.mxu0
        %v1520 = vadd.f32 %v1449, %v1519
        %v1521 = vpop.f32.mrf.mxu0
        %1522 = vdwg.mxu0
        %v1523 = vadd.f32 %v1520, %v570
        %v1524 = vsel %vm612, %v1523, 0.0
        %1525 = vadd.xlane.f32.xlu0 %v1524
        %v1526 = vpop.xlane.xlu0 %1525
        %v1527 = vrcp.pop 32.0
        %v1528 = vmul.f32 %v1526, %v1527
        %v1529 = vsub.f32 %v1523, %v1528
        %v1530 = vmul.f32 %v1529, %v1529
        %v1531 = vsel %vm612, %v1530, 0.0
        %1532 = vadd.xlane.f32.xlu0 %v1531
        %v1533 = vpop.xlane.xlu0 %1532
        %v1534 = vmul.f32 %v1533, %v1527
        %v1535 = vadd.f32 %v1534, 1e-05
        %v1536 = vrsqrt.pop %v1535
        %v1537 = vmul.f32 %v1529, %v1536
        %v1538 = vlaneseq
        %v1539 = vshrl.u32 %v1538, 7
        %v1540 = vsub.s32 3, %v1539
        %v1541 = vrot.slane %v606, %v1540
        %v1542 = vmul.f32 %v1537, %v1541
        %v1543 = vlaneseq
        %v1544 = vshrl.u32 %v1543, 7
        %v1545 = vsub.s32 4, %v1544
        %v1546 = vrot.slane %v606, %v1545
        %v1547 = vadd.f32 %v1542, %v1546
        %1549 = vset.pattern.permute.xlu0 0
        %1550 = vperm.xlu0 %1549, %v574
        %v1551 = vpop.permute.xlu0 %1550
        %v1553 = vmul.f32 %v1547, %v1551
        %v1554 = vlaneseq
        %v1555 = vshrl.u32 %v1554, 7
        %v1556 = vsub.s32 5, %v1555
        %v1557 = vrot.slane %v606, %v1556
        %v1559 = vsel %vm612, %v1553, 0
        %1561 = vmatprep.subr.mxu0 0.0
        %1562 = vmatpush1.msra.mxu0 0.0
        %1563 = vmatprep.subr.mxu0 0.0
        %1564 = vmatpush1.msra.mxu0 0.0
        %1565 = vmatprep.subr.mxu0 0.0
        %1566 = vmatpush1.msra.mxu0 0.0
        %1567 = vmatprep.subr.mxu0 0.0
        %1568 = vmatpush1.msra.mxu0 0.0
        %1569 = vmatprep.subr.mxu0 0.0
        %1570 = vmatpush1.msra.mxu0 0.0
        %1571 = vmatprep.subr.mxu0 0.0
        %1572 = vmatpush1.msra.mxu0 0.0
        %1573 = vmatprep.subr.mxu0 0.0
        %1574 = vmatpush1.msra.mxu0 0.0
        %1575 = vmatprep.subr.mxu0 0.0
        %1576 = vmatpush1.msra.mxu0 0.0
        %1577 = vmatprep.subr.mxu0 0.0
        %1578 = vmatpush1.msra.mxu0 0.0
        %1579 = vmatprep.subr.mxu0 0.0
        %1580 = vmatpush1.msra.mxu0 0.0
        %1581 = vmatprep.subr.mxu0 0.0
        %1582 = vmatpush1.msra.mxu0 0.0
        %1583 = vmatprep.subr.mxu0 0.0
        %1584 = vmatpush1.msra.mxu0 0.0
        %1585 = vmatprep.subr.mxu0 0.0
        %1586 = vmatpush1.msra.mxu0 %v595
        %1587 = vmatprep.subr.mxu0 0.0
        %1588 = vmatpush1.msra.mxu0 %v594
        %1589 = vmatprep.subr.mxu0 0.0
        %1590 = vmatpush1.msra.mxu0 %v593
        %1591 = vmatprep.subr.mxu0 0.0
        %1592 = vmatpush1.msra.mxu0 %v592
        %1593 = vmatprep.subr.mxu0 0.0
        %1594 = vmatpush2.msra.mxu0 0.0
        %1595 = vmatprep.subr.mxu0 0.0
        %1596 = vmatpush2.msra.mxu0 0.0
        %1597 = vmatprep.subr.mxu0 0.0
        %1598 = vmatpush2.msra.mxu0 0.0
        %1599 = vmatprep.subr.mxu0 0.0
        %1600 = vmatpush2.msra.mxu0 0.0
        %1601 = vmatprep.subr.mxu0 0.0
        %1602 = vmatpush2.msra.mxu0 0.0
        %1603 = vmatprep.subr.mxu0 0.0
        %1604 = vmatpush2.msra.mxu0 0.0
        %1605 = vmatprep.subr.mxu0 0.0
        %1606 = vmatpush2.msra.mxu0 0.0
        %1607 = vmatprep.subr.mxu0 0.0
        %1608 = vmatpush2.msra.mxu0 0.0
        %1609 = vmatprep.subr.mxu0 0.0
        %1610 = vmatpush2.msra.mxu0 0.0
        %1611 = vmatprep.subr.mxu0 0.0
        %1612 = vmatpush2.msra.mxu0 0.0
        %1613 = vmatprep.subr.mxu0 0.0
        %1614 = vmatpush2.msra.mxu0 0.0
        %1615 = vmatprep.subr.mxu0 0.0
        %1616 = vmatpush2.msra.mxu0 0.0
        %1617 = vmatprep.subr.mxu0 0.0
        %1618 = vmatpush2.msra.mxu0 0.0
        %1619 = vmatprep.subr.mxu0 0.0
        %1620 = vmatpush2.msra.mxu0 0.0
        %1621 = vmatprep.subr.mxu0 0.0
        %1622 = vmatpush2.msra.mxu0 0.0
        %1623 = vmatprep.subr.mxu0 0.0
        %1624 = vmatpush2.msra.mxu0 0.0
        %1625 = vmatprep.mubr.f32.mxu0 0.0
        %1626 = vmatmul.mubr.f32.gmra.mxu0 %v1559
        %v1627 = vpop.f32.mrf.mxu0
        %v1628 = vadd.f32 %v1557, %v1627
        %v1629 = vpop.f32.mrf.mxu0
        %1630 = vdwg.mxu0
        %v1631 = vmax.f32 %v1628, 0.0
        %v1632 = vlaneseq
        %v1633 = vshrl.u32 %v1632, 7
        %v1634 = vsub.s32 6, %v1633
        %v1635 = vrot.slane %v606, %v1634
        %vm1636 = vcmask 523264
        %v1638 = vsel %vm1636, %v1631, 0
        %1640 = vmatprep.subr.mxu0 0.0
        %1641 = vmatpush1.msra.mxu0 0.0
        %1642 = vmatprep.subr.mxu0 0.0
        %1643 = vmatpush1.msra.mxu0 0.0
        %1644 = vmatprep.subr.mxu0 0.0
        %1645 = vmatpush1.msra.mxu0 0.0
        %1646 = vmatprep.subr.mxu0 0.0
        %1647 = vmatpush1.msra.mxu0 0.0
        %1648 = vmatprep.subr.mxu0 0.0
        %1649 = vmatpush1.msra.mxu0 0.0
        %1650 = vmatprep.subr.mxu0 0.0
        %1651 = vmatpush1.msra.mxu0 0.0
        %1652 = vmatprep.subr.mxu0 0.0
        %1653 = vmatpush1.msra.mxu0 0.0
        %1654 = vmatprep.subr.mxu0 0.0
        %1655 = vmatpush1.msra.mxu0 0.0
        %1656 = vmatprep.subr.mxu0 0.0
        %1657 = vmatpush1.msra.mxu0 %v604
        %1658 = vmatprep.subr.mxu0 0.0
        %1659 = vmatpush1.msra.mxu0 %v603
        %1660 = vmatprep.subr.mxu0 0.0
        %1661 = vmatpush1.msra.mxu0 %v602
        %1662 = vmatprep.subr.mxu0 0.0
        %1663 = vmatpush1.msra.mxu0 %v601
        %1664 = vmatprep.subr.mxu0 0.0
        %1665 = vmatpush1.msra.mxu0 %v600
        %1666 = vmatprep.subr.mxu0 0.0
        %1667 = vmatpush1.msra.mxu0 %v599
        %1668 = vmatprep.subr.mxu0 0.0
        %1669 = vmatpush1.msra.mxu0 %v598
        %1670 = vmatprep.subr.mxu0 0.0
        %1671 = vmatpush1.msra.mxu0 %v597
        %1672 = vmatprep.subr.mxu0 0.0
        %1673 = vmatpush2.msra.mxu0 0.0
        %1674 = vmatprep.subr.mxu0 0.0
        %1675 = vmatpush2.msra.mxu0 0.0
        %1676 = vmatprep.subr.mxu0 0.0
        %1677 = vmatpush2.msra.mxu0 0.0
        %1678 = vmatprep.subr.mxu0 0.0
        %1679 = vmatpush2.msra.mxu0 0.0
        %1680 = vmatprep.subr.mxu0 0.0
        %1681 = vmatpush2.msra.mxu0 0.0
        %1682 = vmatprep.subr.mxu0 0.0
        %1683 = vmatpush2.msra.mxu0 0.0
        %1684 = vmatprep.subr.mxu0 0.0
        %1685 = vmatpush2.msra.mxu0 0.0
        %1686 = vmatprep.subr.mxu0 0.0
        %1687 = vmatpush2.msra.mxu0 0.0
        %1688 = vmatprep.subr.mxu0 0.0
        %1689 = vmatpush2.msra.mxu0 0.0
        %1690 = vmatprep.subr.mxu0 0.0
        %1691 = vmatpush2.msra.mxu0 0.0
        %1692 = vmatprep.subr.mxu0 0.0
        %1693 = vmatpush2.msra.mxu0 0.0
        %1694 = vmatprep.subr.mxu0 0.0
        %1695 = vmatpush2.msra.mxu0 0.0
        %1696 = vmatprep.subr.mxu0 0.0
        %1697 = vmatpush2.msra.mxu0 0.0
        %1698 = vmatprep.subr.mxu0 0.0
        %1699 = vmatpush2.msra.mxu0 0.0
        %1700 = vmatprep.subr.mxu0 0.0
        %1701 = vmatpush2.msra.mxu0 0.0
        %1702 = vmatprep.subr.mxu0 0.0
        %1703 = vmatpush2.msra.mxu0 0.0
        %1704 = vmatprep.mubr.f32.mxu0 0.0
        %1705 = vmatmul.mubr.f32.gmra.mxu0 %v1638
        %v1706 = vpop.f32.mrf.mxu0
        %v1707 = vadd.f32 %v1635, %v1706
        %v1708 = vpop.f32.mrf.mxu0
        %1709 = vdwg.mxu0
        %v1710 = vadd.f32 %v1707, %v1553
        %v1711 = vsel %vm612, %v1710, 0.0
        %1712 = vadd.xlane.f32.xlu0 %v1711
        %v1713 = vpop.xlane.xlu0 %1712
        %v1714 = vmul.f32 %v1713, %v1527
        %v1715 = vsub.f32 %v1710, %v1714
        %v1716 = vmul.f32 %v1715, %v1715
        %v1717 = vsel %vm612, %v1716, 0.0
        %1718 = vadd.xlane.f32.xlu0 %v1717
        %v1719 = vpop.xlane.xlu0 %1718
        %v1720 = vmul.f32 %v1719, %v1527
        %v1721 = vadd.f32 %v1720, 1e-05
        %v1722 = vrsqrt.pop %v1721
        %v1723 = vmul.f32 %v1715, %v1722
        %v1724 = vlaneseq
        %v1725 = vshrl.u32 %v1724, 7
        %v1726 = vsub.s32 7, %v1725
        %v1727 = vrot.slane %v606, %v1726
        %v1728 = vmul.f32 %v1723, %v1727
        %v1729 = vlaneseq
        %v1730 = vshrl.u32 %v1729, 7
        %v1731 = vsub.s32 0, %v1730
        %v1732 = vrot.slane %v607, %v1731
        %v1733 = vadd.f32 %v1728, %v1732
        %v1734 = vmul.f32 %v1733, %v1551
        %1735 = vmatprep.subr.mxu0 0.0
        %1736 = vmatpush1.msra.mxu0 0.0
        %1737 = vmatprep.subr.mxu0 0.0
        %1738 = vmatpush1.msra.mxu0 0.0
        %1739 = vmatprep.subr.mxu0 0.0
        %1740 = vmatpush1.msra.mxu0 0.0
        %1741 = vmatprep.subr.mxu0 0.0
        %1742 = vmatpush1.msra.mxu0 0.0
        %1743 = vmatprep.subr.mxu0 0.0
        %1744 = vmatpush1.msra.mxu0 0.0
        %1745 = vmatprep.subr.mxu0 0.0
        %1746 = vmatpush1.msra.mxu0 0.0
        %1747 = vmatprep.subr.mxu0 0.0
        %1748 = vmatpush1.msra.mxu0 0.0
        %1749 = vmatprep.subr.mxu0 0.0
        %1750 = vmatpush1.msra.mxu0 0.0
        %1751 = vmatprep.subr.mxu0 0.0
        %1752 = vmatpush1.msra.mxu0 0.0
        %1753 = vmatprep.subr.mxu0 0.0
        %1754 = vmatpush1.msra.mxu0 0.0
        %1755 = vmatprep.subr.mxu0 0.0
        %1756 = vmatpush1.msra.mxu0 0.0
        %1757 = vmatprep.subr.mxu0 0.0
        %1758 = vmatpush1.msra.mxu0 0.0
        %1759 = vmatprep.subr.mxu0 0.0
        %1760 = vmatpush1.msra.mxu0 %v580
        %1761 = vmatprep.subr.mxu0 0.0
        %1762 = vmatpush1.msra.mxu0 %v579
        %1763 = vmatprep.subr.mxu0 0.0
        %1764 = vmatpush1.msra.mxu0 %v578
        %1765 = vmatprep.subr.mxu0 0.0
        %1766 = vmatpush1.msra.mxu0 %v577
        %1767 = vmatprep.subr.mxu0 0.0
        %1768 = vmatpush2.msra.mxu0 0.0
        %1769 = vmatprep.subr.mxu0 0.0
        %1770 = vmatpush2.msra.mxu0 0.0
        %1771 = vmatprep.subr.mxu0 0.0
        %1772 = vmatpush2.msra.mxu0 0.0
        %1773 = vmatprep.subr.mxu0 0.0
        %1774 = vmatpush2.msra.mxu0 0.0
        %1775 = vmatprep.subr.mxu0 0.0
        %1776 = vmatpush2.msra.mxu0 0.0
        %1777 = vmatprep.subr.mxu0 0.0
        %1778 = vmatpush2.msra.mxu0 0.0
        %1779 = vmatprep.subr.mxu0 0.0
        %1780 = vmatpush2.msra.mxu0 0.0
        %1781 = vmatprep.subr.mxu0 0.0
        %1782 = vmatpush2.msra.mxu0 0.0
        %1783 = vmatprep.subr.mxu0 0.0
        %1784 = vmatpush2.msra.mxu0 0.0
        %1785 = vmatprep.subr.mxu0 0.0
        %1786 = vmatpush2.msra.mxu0 0.0
        %1787 = vmatprep.subr.mxu0 0.0
        %1788 = vmatpush2.msra.mxu0 0.0
        %1789 = vmatprep.subr.mxu0 0.0
        %1790 = vmatpush2.msra.mxu0 0.0
        %1791 = vmatprep.subr.mxu0 0.0
        %1792 = vmatpush2.msra.mxu0 0.0
        %1793 = vmatprep.subr.mxu0 0.0
        %1794 = vmatpush2.msra.mxu0 0.0
        %1795 = vmatprep.subr.mxu0 0.0
        %1796 = vmatpush2.msra.mxu0 0.0
        %1797 = vmatprep.subr.mxu0 0.0
        %1798 = vmatpush2.msra.mxu0 0.0
        %1799 = vmatprep.mubr.f32.mxu0 0.0
        %1800 = vmatmul.mubr.f32.gmra.mxu0 %v692
        %v1801 = vpop.f32.mrf.mxu0
        %v1802 = vadd.f32 %v611, %v1801
        %v1803 = vpop.f32.mrf.mxu0
        %1804 = vdwg.mxu0
        %v1805 = vmul.f32 %v1802, 0.35355338
        %1806 = vmatprep.subr.mxu0 0.0
        %1807 = vmatpush1.msra.mxu0 0.0
        %1808 = vmatprep.subr.mxu0 0.0
        %1809 = vmatpush1.msra.mxu0 0.0
        %1810 = vmatprep.subr.mxu0 0.0
        %1811 = vmatpush1.msra.mxu0 0.0
        %1812 = vmatprep.subr.mxu0 0.0
        %1813 = vmatpush1.msra.mxu0 0.0
        %1814 = vmatprep.subr.mxu0 0.0
        %1815 = vmatpush1.msra.mxu0 0.0
        %1816 = vmatprep.subr.mxu0 0.0
        %1817 = vmatpush1.msra.mxu0 0.0
        %1818 = vmatprep.subr.mxu0 0.0
        %1819 = vmatpush1.msra.mxu0 0.0
        %1820 = vmatprep.subr.mxu0 0.0
        %1821 = vmatpush1.msra.mxu0 0.0
        %1822 = vmatprep.subr.mxu0 0.0
        %1823 = vmatpush1.msra.mxu0 0.0
        %1824 = vmatprep.subr.mxu0 0.0
        %1825 = vmatpush1.msra.mxu0 0.0
        %1826 = vmatprep.subr.mxu0 0.0
        %1827 = vmatpush1.msra.mxu0 0.0
        %1828 = vmatprep.subr.mxu0 0.0
        %1829 = vmatpush1.msra.mxu0 0.0
        %1830 = vmatprep.subr.mxu0 0.0
        %1831 = vmatpush1.msra.mxu0 %v585
        %1832 = vmatprep.subr.mxu0 0.0
        %1833 = vmatpush1.msra.mxu0 %v584
        %1834 = vmatprep.subr.mxu0 0.0
        %1835 = vmatpush1.msra.mxu0 %v583
        %1836 = vmatprep.subr.mxu0 0.0
        %1837 = vmatpush1.msra.mxu0 %v582
        %1838 = vmatprep.subr.mxu0 0.0
        %1839 = vmatpush2.msra.mxu0 0.0
        %1840 = vmatprep.subr.mxu0 0.0
        %1841 = vmatpush2.msra.mxu0 0.0
        %1842 = vmatprep.subr.mxu0 0.0
        %1843 = vmatpush2.msra.mxu0 0.0
        %1844 = vmatprep.subr.mxu0 0.0
        %1845 = vmatpush2.msra.mxu0 0.0
        %1846 = vmatprep.subr.mxu0 0.0
        %1847 = vmatpush2.msra.mxu0 0.0
        %1848 = vmatprep.subr.mxu0 0.0
        %1849 = vmatpush2.msra.mxu0 0.0
        %1850 = vmatprep.subr.mxu0 0.0
        %1851 = vmatpush2.msra.mxu0 0.0
        %1852 = vmatprep.subr.mxu0 0.0
        %1853 = vmatpush2.msra.mxu0 0.0
        %1854 = vmatprep.subr.mxu0 0.0
        %1855 = vmatpush2.msra.mxu0 0.0
        %1856 = vmatprep.subr.mxu0 0.0
        %1857 = vmatpush2.msra.mxu0 0.0
        %1858 = vmatprep.subr.mxu0 0.0
        %1859 = vmatpush2.msra.mxu0 0.0
        %1860 = vmatprep.subr.mxu0 0.0
        %1861 = vmatpush2.msra.mxu0 0.0
        %1862 = vmatprep.subr.mxu0 0.0
        %1863 = vmatpush2.msra.mxu0 0.0
        %1864 = vmatprep.subr.mxu0 0.0
        %1865 = vmatpush2.msra.mxu0 0.0
        %1866 = vmatprep.subr.mxu0 0.0
        %1867 = vmatpush2.msra.mxu0 0.0
        %1868 = vmatprep.subr.mxu0 0.0
        %1869 = vmatpush2.msra.mxu0 0.0
        %1870 = vmatprep.mubr.f32.mxu0 0.0
        %1871 = vmatmul.mubr.f32.gmra.mxu0 %v614
        %v1872 = vpop.f32.mrf.mxu0
        %v1873 = vadd.f32 %v690, %v1872
        %v1874 = vpop.f32.mrf.mxu0
        %1875 = vdwg.mxu0
        %v1877 = vlaneseq
        %v1878 = vshrl.u32 %v1877, 7
        %v1879 = vsub.s32 0, %v1878
        %v1880 = vrot.slane %v572, %v1879
        %v1883 = vsel %vm770, %v1805, 0
        %v1886 = vsel %vm770, %v1873, 0
        %1888 = vmatprep.subr.mxu0 0.0
        %1889 = vmatpush1.xpose.msra.mxu0 0.0
        %1890 = vmatprep.subr.mxu0 0.0
        %1891 = vmatpush1.xpose.msra.mxu0 0.0
        %1892 = vmatprep.subr.mxu0 0.0
        %1893 = vmatpush1.xpose.msra.mxu0 0.0
        %1894 = vmatprep.subr.mxu0 0.0
        %1895 = vmatpush1.xpose.msra.mxu0 0.0
        %1896 = vmatprep.subr.mxu0 0.0
        %1897 = vmatpush1.xpose.msra.mxu0 0.0
        %1898 = vmatprep.subr.mxu0 0.0
        %1899 = vmatpush1.xpose.msra.mxu0 0.0
        %1900 = vmatprep.subr.mxu0 0.0
        %1901 = vmatpush1.xpose.msra.mxu0 0.0
        %1902 = vmatprep.subr.mxu0 0.0
        %1903 = vmatpush1.xpose.msra.mxu0 0.0
        %1904 = vmatprep.subr.mxu0 0.0
        %1905 = vmatpush1.xpose.msra.mxu0 0.0
        %1906 = vmatprep.subr.mxu0 0.0
        %1907 = vmatpush1.xpose.msra.mxu0 0.0
        %1908 = vmatprep.subr.mxu0 0.0
        %1909 = vmatpush1.xpose.msra.mxu0 0.0
        %1910 = vmatprep.subr.mxu0 0.0
        %1911 = vmatpush1.xpose.msra.mxu0 0.0
        %1912 = vmatprep.subr.mxu0 0.0
        %1913 = vmatpush1.xpose.msra.mxu0 0.0
        %1914 = vmatprep.subr.mxu0 0.0
        %1915 = vmatpush1.xpose.msra.mxu0 0.0
        %1916 = vmatprep.subr.mxu0 0.0
        %1917 = vmatpush1.xpose.msra.mxu0 0.0
        %1918 = vmatprep.subr.mxu0 0.0
        %1919 = vmatpush1.xpose.msra.mxu0 %v1886
        %1920 = vmatprep.subr.mxu0 0.0
        %1921 = vmatpush2.xpose.msra.mxu0 0.0
        %1922 = vmatprep.subr.mxu0 0.0
        %1923 = vmatpush2.xpose.msra.mxu0 0.0
        %1924 = vmatprep.subr.mxu0 0.0
        %1925 = vmatpush2.xpose.msra.mxu0 0.0
        %1926 = vmatprep.subr.mxu0 0.0
        %1927 = vmatpush2.xpose.msra.mxu0 0.0
        %1928 = vmatprep.subr.mxu0 0.0
        %1929 = vmatpush2.xpose.msra.mxu0 0.0
        %1930 = vmatprep.subr.mxu0 0.0
        %1931 = vmatpush2.xpose.msra.mxu0 0.0
        %1932 = vmatprep.subr.mxu0 0.0
        %1933 = vmatpush2.xpose.msra.mxu0 0.0
        %1934 = vmatprep.subr.mxu0 0.0
        %1935 = vmatpush2.xpose.msra.mxu0 0.0
        %1936 = vmatprep.subr.mxu0 0.0
        %1937 = vmatpush2.xpose.msra.mxu0 0.0
        %1938 = vmatprep.subr.mxu0 0.0
        %1939 = vmatpush2.xpose.msra.mxu0 0.0
        %1940 = vmatprep.subr.mxu0 0.0
        %1941 = vmatpush2.xpose.msra.mxu0 0.0
        %1942 = vmatprep.subr.mxu0 0.0
        %1943 = vmatpush2.xpose.msra.mxu0 0.0
        %1944 = vmatprep.subr.mxu0 0.0
        %1945 = vmatpush2.xpose.msra.mxu0 0.0
        %1946 = vmatprep.subr.mxu0 0.0
        %1947 = vmatpush2.xpose.msra.mxu0 0.0
        %1948 = vmatprep.subr.mxu0 0.0
        %1949 = vmatpush2.xpose.msra.mxu0 0.0
        %1950 = vmatprep.subr.mxu0 0.0
        %1951 = vmatpush2.xpose.msra.mxu0 0.0
        %1952 = vmatprep.mubr.f32.mxu0 0.0
        %1953 = vmatmul.mubr.f32.gmra.mxu0 %v1883
        %v1954 = vpop.f32.mrf.mxu0
        %v1955 = vadd.f32 %v1880, %v1954
        %v1956 = vpop.f32.mrf.mxu0
        %1957 = vdwg.mxu0
        %v1958 = vsel %vm770, %v1955, -inf
        %1959 = vmax.xlane.f32.xlu0 %v1958
        %v1960 = vpop.xlane.xlu0 %1959
        %v1961 = vsub.f32 %v1955, %v1960
        %v1962 = vmul.f32 %v1961, 1.442695
        %v1963 = vpow.pop %v1962
        %v1964 = vsel %vm770, %v1963, 0.0
        %1965 = vadd.xlane.f32.xlu0 %v1964
        %v1966 = vpop.xlane.xlu0 %1965
        %v1967 = vrcp.pop %v1966
        %v1968 = vmul.f32 %v1963, %v1967
        %1969 = vrot.lane.b32.xlu0 %v1873, 96
        %v1970 = vpop.permute.xlu0 %1969
        %v1973 = vsel %vm770, %v1968, 0
        %1975 = vmatprep.subr.mxu0 0.0
        %1976 = vmatpush1.msra.mxu0 0.0
        %1977 = vmatprep.subr.mxu0 0.0
        %1978 = vmatpush1.msra.mxu0 0.0
        %1979 = vmatprep.subr.mxu0 0.0
        %1980 = vmatpush1.msra.mxu0 0.0
        %1981 = vmatprep.subr.mxu0 0.0
        %1982 = vmatpush1.msra.mxu0 0.0
        %1983 = vmatprep.subr.mxu0 0.0
        %1984 = vmatpush1.msra.mxu0 0.0
        %1985 = vmatprep.subr.mxu0 0.0
        %1986 = vmatpush1.msra.mxu0 0.0
        %1987 = vmatprep.subr.mxu0 0.0
        %1988 = vmatpush1.msra.mxu0 0.0
        %1989 = vmatprep.subr.mxu0 0.0
        %1990 = vmatpush1.msra.mxu0 0.0
        %1991 = vmatprep.subr.mxu0 0.0
        %1992 = vmatpush1.msra.mxu0 0.0
        %1993 = vmatprep.subr.mxu0 0.0
        %1994 = vmatpush1.msra.mxu0 0.0
        %1995 = vmatprep.subr.mxu0 0.0
        %1996 = vmatpush1.msra.mxu0 0.0
        %1997 = vmatprep.subr.mxu0 0.0
        %1998 = vmatpush1.msra.mxu0 0.0
        %1999 = vmatprep.subr.mxu0 0.0
        %2000 = vmatpush1.msra.mxu0 0.0
        %2001 = vmatprep.subr.mxu0 0.0
        %2002 = vmatpush1.msra.mxu0 0.0
        %2003 = vmatprep.subr.mxu0 0.0
        %2004 = vmatpush1.msra.mxu0 0.0
        %2005 = vmatprep.subr.mxu0 0.0
        %2006 = vmatpush1.msra.mxu0 %v1970
        %2007 = vmatprep.subr.mxu0 0.0
        %2008 = vmatpush2.msra.mxu0 0.0
        %2009 = vmatprep.subr.mxu0 0.0
        %2010 = vmatpush2.msra.mxu0 0.0
        %2011 = vmatprep.subr.mxu0 0.0
        %2012 = vmatpush2.msra.mxu0 0.0
        %2013 = vmatprep.subr.mxu0 0.0
        %2014 = vmatpush2.msra.mxu0 0.0
        %2015 = vmatprep.subr.mxu0 0.0
        %2016 = vmatpush2.msra.mxu0 0.0
        %2017 = vmatprep.subr.mxu0 0.0
        %2018 = vmatpush2.msra.mxu0 0.0
        %2019 = vmatprep.subr.mxu0 0.0
        %2020 = vmatpush2.msra.mxu0 0.0
        %2021 = vmatprep.subr.mxu0 0.0
        %2022 = vmatpush2.msra.mxu0 0.0
        %2023 = vmatprep.subr.mxu0 0.0
        %2024 = vmatpush2.msra.mxu0 0.0
        %2025 = vmatprep.subr.mxu0 0.0
        %2026 = vmatpush2.msra.mxu0 0.0
        %2027 = vmatprep.subr.mxu0 0.0
        %2028 = vmatpush2.msra.mxu0 0.0
        %2029 = vmatprep.subr.mxu0 0.0
        %2030 = vmatpush2.msra.mxu0 0.0
        %2031 = vmatprep.subr.mxu0 0.0
        %2032 = vmatpush2.msra.mxu0 0.0
        %2033 = vmatprep.subr.mxu0 0.0
        %2034 = vmatpush2.msra.mxu0 0.0
        %2035 = vmatprep.subr.mxu0 0.0
        %2036 = vmatpush2.msra.mxu0 0.0
        %2037 = vmatprep.subr.mxu0 0.0
        %2038 = vmatpush2.msra.mxu0 0.0
        %2039 = vmatprep.mubr.f32.mxu0 0.0
        %2040 = vmatmul.mubr.f32.gmra.mxu0 %v1973
        %v2041 = vpop.f32.mrf.mxu0
        %v2042 = vadd.f32 0.0, %v2041
        %v2043 = vpop.f32.mrf.mxu0
        %2044 = vdwg.mxu0
        %2045 = vrot.lane.b32.xlu0 %v1805, 120
        %v2046 = vpop.permute.xlu0 %2045
        %2047 = vrot.lane.b32.xlu0 %v1873, 120
        %v2048 = vpop.permute.xlu0 %2047
        %v2049 = vsel %vm770, %v2046, 0
        %v2051 = vsel %vm770, %v2048, 0
        %2053 = vmatprep.subr.mxu0 0.0
        %2054 = vmatpush1.xpose.msra.mxu0 0.0
        %2055 = vmatprep.subr.mxu0 0.0
        %2056 = vmatpush1.xpose.msra.mxu0 0.0
        %2057 = vmatprep.subr.mxu0 0.0
        %2058 = vmatpush1.xpose.msra.mxu0 0.0
        %2059 = vmatprep.subr.mxu0 0.0
        %2060 = vmatpush1.xpose.msra.mxu0 0.0
        %2061 = vmatprep.subr.mxu0 0.0
        %2062 = vmatpush1.xpose.msra.mxu0 0.0
        %2063 = vmatprep.subr.mxu0 0.0
        %2064 = vmatpush1.xpose.msra.mxu0 0.0
        %2065 = vmatprep.subr.mxu0 0.0
        %2066 = vmatpush1.xpose.msra.mxu0 0.0
        %2067 = vmatprep.subr.mxu0 0.0
        %2068 = vmatpush1.xpose.msra.mxu0 0.0
        %2069 = vmatprep.subr.mxu0 0.0
        %2070 = vmatpush1.xpose.msra.mxu0 0.0
        %2071 = vmatprep.subr.mxu0 0.0
        %2072 = vmatpush1.xpose.msra.mxu0 0.0
        %2073 = vmatprep.subr.mxu0 0.0
        %2074 = vmatpush1.xpose.msra.mxu0 0.0
        %2075 = vmatprep.subr.mxu0 0.0
        %2076 = vmatpush1.xpose.msra.mxu0 0.0
        %2077 = vmatprep.subr.mxu0 0.0
        %2078 = vmatpush1.xpose.msra.mxu0 0.0
        %2079 = vmatprep.subr.mxu0 0.0
        %2080 = vmatpush1.xpose.msra.mxu0 0.0
        %2081 = vmatprep.subr.mxu0 0.0
        %2082 = vmatpush1.xpose.msra.mxu0 0.0
        %2083 = vmatprep.subr.mxu0 0.0
        %2084 = vmatpush1.xpose.msra.mxu0 %v2051
        %2085 = vmatprep.subr.mxu0 0.0
        %2086 = vmatpush2.xpose.msra.mxu0 0.0
        %2087 = vmatprep.subr.mxu0 0.0
        %2088 = vmatpush2.xpose.msra.mxu0 0.0
        %2089 = vmatprep.subr.mxu0 0.0
        %2090 = vmatpush2.xpose.msra.mxu0 0.0
        %2091 = vmatprep.subr.mxu0 0.0
        %2092 = vmatpush2.xpose.msra.mxu0 0.0
        %2093 = vmatprep.subr.mxu0 0.0
        %2094 = vmatpush2.xpose.msra.mxu0 0.0
        %2095 = vmatprep.subr.mxu0 0.0
        %2096 = vmatpush2.xpose.msra.mxu0 0.0
        %2097 = vmatprep.subr.mxu0 0.0
        %2098 = vmatpush2.xpose.msra.mxu0 0.0
        %2099 = vmatprep.subr.mxu0 0.0
        %2100 = vmatpush2.xpose.msra.mxu0 0.0
        %2101 = vmatprep.subr.mxu0 0.0
        %2102 = vmatpush2.xpose.msra.mxu0 0.0
        %2103 = vmatprep.subr.mxu0 0.0
        %2104 = vmatpush2.xpose.msra.mxu0 0.0
        %2105 = vmatprep.subr.mxu0 0.0
        %2106 = vmatpush2.xpose.msra.mxu0 0.0
        %2107 = vmatprep.subr.mxu0 0.0
        %2108 = vmatpush2.xpose.msra.mxu0 0.0
        %2109 = vmatprep.subr.mxu0 0.0
        %2110 = vmatpush2.xpose.msra.mxu0 0.0
        %2111 = vmatprep.subr.mxu0 0.0
        %2112 = vmatpush2.xpose.msra.mxu0 0.0
        %2113 = vmatprep.subr.mxu0 0.0
        %2114 = vmatpush2.xpose.msra.mxu0 0.0
        %2115 = vmatprep.subr.mxu0 0.0
        %2116 = vmatpush2.xpose.msra.mxu0 0.0
        %2117 = vmatprep.mubr.f32.mxu0 0.0
        %2118 = vmatmul.mubr.f32.gmra.mxu0 %v2049
        %v2119 = vpop.f32.mrf.mxu0
        %v2120 = vadd.f32 %v1880, %v2119
        %v2121 = vpop.f32.mrf.mxu0
        %2122 = vdwg.mxu0
        %v2123 = vsel %vm770, %v2120, -inf
        %2124 = vmax.xlane.f32.xlu0 %v2123
        %v2125 = vpop.xlane.xlu0 %2124
        %v2126 = vsub.f32 %v2120, %v2125
        %v2127 = vmul.f32 %v2126, 1.442695
        %v2128 = vpow.pop %v2127
        %v2129 = vsel %vm770, %v2128, 0.0
        %2130 = vadd.xlane.f32.xlu0 %v2129
        %v2131 = vpop.xlane.xlu0 %2130
        %v2132 = vrcp.pop %v2131
        %v2133 = vmul.f32 %v2128, %v2132
        %2134 = vrot.lane.b32.xlu0 %v1873, 88
        %v2135 = vpop.permute.xlu0 %2134
        %v2138 = vsel %vm770, %v2133, 0
        %2140 = vmatprep.subr.mxu0 0.0
        %2141 = vmatpush1.msra.mxu0 0.0
        %2142 = vmatprep.subr.mxu0 0.0
        %2143 = vmatpush1.msra.mxu0 0.0
        %2144 = vmatprep.subr.mxu0 0.0
        %2145 = vmatpush1.msra.mxu0 0.0
        %2146 = vmatprep.subr.mxu0 0.0
        %2147 = vmatpush1.msra.mxu0 0.0
        %2148 = vmatprep.subr.mxu0 0.0
        %2149 = vmatpush1.msra.mxu0 0.0
        %2150 = vmatprep.subr.mxu0 0.0
        %2151 = vmatpush1.msra.mxu0 0.0
        %2152 = vmatprep.subr.mxu0 0.0
        %2153 = vmatpush1.msra.mxu0 0.0
        %2154 = vmatprep.subr.mxu0 0.0
        %2155 = vmatpush1.msra.mxu0 0.0
        %2156 = vmatprep.subr.mxu0 0.0
        %2157 = vmatpush1.msra.mxu0 0.0
        %2158 = vmatprep.subr.mxu0 0.0
        %2159 = vmatpush1.msra.mxu0 0.0
        %2160 = vmatprep.subr.mxu0 0.0
        %2161 = vmatpush1.msra.mxu0 0.0
        %2162 = vmatprep.subr.mxu0 0.0
        %2163 = vmatpush1.msra.mxu0 0.0
        %2164 = vmatprep.subr.mxu0 0.0
        %2165 = vmatpush1.msra.mxu0 0.0
        %2166 = vmatprep.subr.mxu0 0.0
        %2167 = vmatpush1.msra.mxu0 0.0
        %2168 = vmatprep.subr.mxu0 0.0
        %2169 = vmatpush1.msra.mxu0 0.0
        %2170 = vmatprep.subr.mxu0 0.0
        %2171 = vmatpush1.msra.mxu0 %v2135
        %2172 = vmatprep.subr.mxu0 0.0
        %2173 = vmatpush2.msra.mxu0 0.0
        %2174 = vmatprep.subr.mxu0 0.0
        %2175 = vmatpush2.msra.mxu0 0.0
        %2176 = vmatprep.subr.mxu0 0.0
        %2177 = vmatpush2.msra.mxu0 0.0
        %2178 = vmatprep.subr.mxu0 0.0
        %2179 = vmatpush2.msra.mxu0 0.0
        %2180 = vmatprep.subr.mxu0 0.0
        %2181 = vmatpush2.msra.mxu0 0.0
        %2182 = vmatprep.subr.mxu0 0.0
        %2183 = vmatpush2.msra.mxu0 0.0
        %2184 = vmatprep.subr.mxu0 0.0
        %2185 = vmatpush2.msra.mxu0 0.0
        %2186 = vmatprep.subr.mxu0 0.0
        %2187 = vmatpush2.msra.mxu0 0.0
        %2188 = vmatprep.subr.mxu0 0.0
        %2189 = vmatpush2.msra.mxu0 0.0
        %2190 = vmatprep.subr.mxu0 0.0
        %2191 = vmatpush2.msra.mxu0 0.0
        %2192 = vmatprep.subr.mxu0 0.0
        %2193 = vmatpush2.msra.mxu0 0.0
        %2194 = vmatprep.subr.mxu0 0.0
        %2195 = vmatpush2.msra.mxu0 0.0
        %2196 = vmatprep.subr.mxu0 0.0
        %2197 = vmatpush2.msra.mxu0 0.0
        %2198 = vmatprep.subr.mxu0 0.0
        %2199 = vmatpush2.msra.mxu0 0.0
        %2200 = vmatprep.subr.mxu0 0.0
        %2201 = vmatpush2.msra.mxu0 0.0
        %2202 = vmatprep.subr.mxu0 0.0
        %2203 = vmatpush2.msra.mxu0 0.0
        %2204 = vmatprep.mubr.f32.mxu0 0.0
        %2205 = vmatmul.mubr.f32.gmra.mxu0 %v2138
        %v2206 = vpop.f32.mrf.mxu0
        %v2207 = vadd.f32 0.0, %v2206
        %v2208 = vpop.f32.mrf.mxu0
        %2209 = vdwg.mxu0
        %2210 = vrot.lane.b32.xlu0 %v1805, 112
        %v2211 = vpop.permute.xlu0 %2210
        %2212 = vrot.lane.b32.xlu0 %v1873, 112
        %v2213 = vpop.permute.xlu0 %2212
        %v2214 = vsel %vm770, %v2211, 0
        %v2216 = vsel %vm770, %v2213, 0
        %2218 = vmatprep.subr.mxu0 0.0
        %2219 = vmatpush1.xpose.msra.mxu0 0.0
        %2220 = vmatprep.subr.mxu0 0.0
        %2221 = vmatpush1.xpose.msra.mxu0 0.0
        %2222 = vmatprep.subr.mxu0 0.0
        %2223 = vmatpush1.xpose.msra.mxu0 0.0
        %2224 = vmatprep.subr.mxu0 0.0
        %2225 = vmatpush1.xpose.msra.mxu0 0.0
        %2226 = vmatprep.subr.mxu0 0.0
        %2227 = vmatpush1.xpose.msra.mxu0 0.0
        %2228 = vmatprep.subr.mxu0 0.0
        %2229 = vmatpush1.xpose.msra.mxu0 0.0
        %2230 = vmatprep.subr.mxu0 0.0
        %2231 = vmatpush1.xpose.msra.mxu0 0.0
        %2232 = vmatprep.subr.mxu0 0.0
        %2233 = vmatpush1.xpose.msra.mxu0 0.0
        %2234 = vmatprep.subr.mxu0 0.0
        %2235 = vmatpush1.xpose.msra.mxu0 0.0
        %2236 = vmatprep.subr.mxu0 0.0
        %2237 = vmatpush1.xpose.msra.mxu0 0.0
        %2238 = vmatprep.subr.mxu0 0.0
        %2239 = vmatpush1.xpose.msra.mxu0 0.0
        %2240 = vmatprep.subr.mxu0 0.0
        %2241 = vmatpush1.xpose.msra.mxu0 0.0
        %2242 = vmatprep.subr.mxu0 0.0
        %2243 = vmatpush1.xpose.msra.mxu0 0.0
        %2244 = vmatprep.subr.mxu0 0.0
        %2245 = vmatpush1.xpose.msra.mxu0 0.0
        %2246 = vmatprep.subr.mxu0 0.0
        %2247 = vmatpush1.xpose.msra.mxu0 0.0
        %2248 = vmatprep.subr.mxu0 0.0
        %2249 = vmatpush1.xpose.msra.mxu0 %v2216
        %2250 = vmatprep.subr.mxu0 0.0
        %2251 = vmatpush2.xpose.msra.mxu0 0.0
        %2252 = vmatprep.subr.mxu0 0.0
        %2253 = vmatpush2.xpose.msra.mxu0 0.0
        %2254 = vmatprep.subr.mxu0 0.0
        %2255 = vmatpush2.xpose.msra.mxu0 0.0
        %2256 = vmatprep.subr.mxu0 0.0
        %2257 = vmatpush2.xpose.msra.mxu0 0.0
        %2258 = vmatprep.subr.mxu0 0.0
        %2259 = vmatpush2.xpose.msra.mxu0 0.0
        %2260 = vmatprep.subr.mxu0 0.0
        %2261 = vmatpush2.xpose.msra.mxu0 0.0
        %2262 = vmatprep.subr.mxu0 0.0
        %2263 = vmatpush2.xpose.msra.mxu0 0.0
        %2264 = vmatprep.subr.mxu0 0.0
        %2265 = vmatpush2.xpose.msra.mxu0 0.0
        %2266 = vmatprep.subr.mxu0 0.0
        %2267 = vmatpush2.xpose.msra.mxu0 0.0
        %2268 = vmatprep.subr.mxu0 0.0
        %2269 = vmatpush2.xpose.msra.mxu0 0.0
        %2270 = vmatprep.subr.mxu0 0.0
        %2271 = vmatpush2.xpose.msra.mxu0 0.0
        %2272 = vmatprep.subr.mxu0 0.0
        %2273 = vmatpush2.xpose.msra.mxu0 0.0
        %2274 = vmatprep.subr.mxu0 0.0
        %2275 = vmatpush2.xpose.msra.mxu0 0.0
        %2276 = vmatprep.subr.mxu0 0.0
        %2277 = vmatpush2.xpose.msra.mxu0 0.0
        %2278 = vmatprep.subr.mxu0 0.0
        %2279 = vmatpush2.xpose.msra.mxu0 0.0
        %2280 = vmatprep.subr.mxu0 0.0
        %2281 = vmatpush2.xpose.msra.mxu0 0.0
        %2282 = vmatprep.mubr.f32.mxu0 0.0
        %2283 = vmatmul.mubr.f32.gmra.mxu0 %v2214
        %v2284 = vpop.f32.mrf.mxu0
        %v2285 = vadd.f32 %v1880, %v2284
        %v2286 = vpop.f32.mrf.mxu0
        %2287 = vdwg.mxu0
        %v2288 = vsel %vm770, %v2285, -inf
        %2289 = vmax.xlane.f32.xlu0 %v2288
        %v2290 = vpop.xlane.xlu0 %2289
        %v2291 = vsub.f32 %v2285, %v2290
        %v2292 = vmul.f32 %v2291, 1.442695
        %v2293 = vpow.pop %v2292
        %v2294 = vsel %vm770, %v2293, 0.0
        %2295 = vadd.xlane.f32.xlu0 %v2294
        %v2296 = vpop.xlane.xlu0 %2295
        %v2297 = vrcp.pop %v2296
        %v2298 = vmul.f32 %v2293, %v2297
        %2299 = vrot.lane.b32.xlu0 %v1873, 80
        %v2300 = vpop.permute.xlu0 %2299
        %v2303 = vsel %vm770, %v2298, 0
        %2305 = vmatprep.subr.mxu0 0.0
        %2306 = vmatpush1.msra.mxu0 0.0
        %2307 = vmatprep.subr.mxu0 0.0
        %2308 = vmatpush1.msra.mxu0 0.0
        %2309 = vmatprep.subr.mxu0 0.0
        %2310 = vmatpush1.msra.mxu0 0.0
        %2311 = vmatprep.subr.mxu0 0.0
        %2312 = vmatpush1.msra.mxu0 0.0
        %2313 = vmatprep.subr.mxu0 0.0
        %2314 = vmatpush1.msra.mxu0 0.0
        %2315 = vmatprep.subr.mxu0 0.0
        %2316 = vmatpush1.msra.mxu0 0.0
        %2317 = vmatprep.subr.mxu0 0.0
        %2318 = vmatpush1.msra.mxu0 0.0
        %2319 = vmatprep.subr.mxu0 0.0
        %2320 = vmatpush1.msra.mxu0 0.0
        %2321 = vmatprep.subr.mxu0 0.0
        %2322 = vmatpush1.msra.mxu0 0.0
        %2323 = vmatprep.subr.mxu0 0.0
        %2324 = vmatpush1.msra.mxu0 0.0
        %2325 = vmatprep.subr.mxu0 0.0
        %2326 = vmatpush1.msra.mxu0 0.0
        %2327 = vmatprep.subr.mxu0 0.0
        %2328 = vmatpush1.msra.mxu0 0.0
        %2329 = vmatprep.subr.mxu0 0.0
        %2330 = vmatpush1.msra.mxu0 0.0
        %2331 = vmatprep.subr.mxu0 0.0
        %2332 = vmatpush1.msra.mxu0 0.0
        %2333 = vmatprep.subr.mxu0 0.0
        %2334 = vmatpush1.msra.mxu0 0.0
        %2335 = vmatprep.subr.mxu0 0.0
        %2336 = vmatpush1.msra.mxu0 %v2300
        %2337 = vmatprep.subr.mxu0 0.0
        %2338 = vmatpush2.msra.mxu0 0.0
        %2339 = vmatprep.subr.mxu0 0.0
        %2340 = vmatpush2.msra.mxu0 0.0
        %2341 = vmatprep.subr.mxu0 0.0
        %2342 = vmatpush2.msra.mxu0 0.0
        %2343 = vmatprep.subr.mxu0 0.0
        %2344 = vmatpush2.msra.mxu0 0.0
        %2345 = vmatprep.subr.mxu0 0.0
        %2346 = vmatpush2.msra.mxu0 0.0
        %2347 = vmatprep.subr.mxu0 0.0
        %2348 = vmatpush2.msra.mxu0 0.0
        %2349 = vmatprep.subr.mxu0 0.0
        %2350 = vmatpush2.msra.mxu0 0.0
        %2351 = vmatprep.subr.mxu0 0.0
        %2352 = vmatpush2.msra.mxu0 0.0
        %2353 = vmatprep.subr.mxu0 0.0
        %2354 = vmatpush2.msra.mxu0 0.0
        %2355 = vmatprep.subr.mxu0 0.0
        %2356 = vmatpush2.msra.mxu0 0.0
        %2357 = vmatprep.subr.mxu0 0.0
        %2358 = vmatpush2.msra.mxu0 0.0
        %2359 = vmatprep.subr.mxu0 0.0
        %2360 = vmatpush2.msra.mxu0 0.0
        %2361 = vmatprep.subr.mxu0 0.0
        %2362 = vmatpush2.msra.mxu0 0.0
        %2363 = vmatprep.subr.mxu0 0.0
        %2364 = vmatpush2.msra.mxu0 0.0
        %2365 = vmatprep.subr.mxu0 0.0
        %2366 = vmatpush2.msra.mxu0 0.0
        %2367 = vmatprep.subr.mxu0 0.0
        %2368 = vmatpush2.msra.mxu0 0.0
        %2369 = vmatprep.mubr.f32.mxu0 0.0
        %2370 = vmatmul.mubr.f32.gmra.mxu0 %v2303
        %v2371 = vpop.f32.mrf.mxu0
        %v2372 = vadd.f32 0.0, %v2371
        %v2373 = vpop.f32.mrf.mxu0
        %2374 = vdwg.mxu0
        %2375 = vrot.lane.b32.xlu0 %v1805, 104
        %v2376 = vpop.permute.xlu0 %2375
        %2377 = vrot.lane.b32.xlu0 %v1873, 104
        %v2378 = vpop.permute.xlu0 %2377
        %v2379 = vsel %vm770, %v2376, 0
        %v2381 = vsel %vm770, %v2378, 0
        %2383 = vmatprep.subr.mxu0 0.0
        %2384 = vmatpush1.xpose.msra.mxu0 0.0
        %2385 = vmatprep.subr.mxu0 0.0
        %2386 = vmatpush1.xpose.msra.mxu0 0.0
        %2387 = vmatprep.subr.mxu0 0.0
        %2388 = vmatpush1.xpose.msra.mxu0 0.0
        %2389 = vmatprep.subr.mxu0 0.0
        %2390 = vmatpush1.xpose.msra.mxu0 0.0
        %2391 = vmatprep.subr.mxu0 0.0
        %2392 = vmatpush1.xpose.msra.mxu0 0.0
        %2393 = vmatprep.subr.mxu0 0.0
        %2394 = vmatpush1.xpose.msra.mxu0 0.0
        %2395 = vmatprep.subr.mxu0 0.0
        %2396 = vmatpush1.xpose.msra.mxu0 0.0
        %2397 = vmatprep.subr.mxu0 0.0
        %2398 = vmatpush1.xpose.msra.mxu0 0.0
        %2399 = vmatprep.subr.mxu0 0.0
        %2400 = vmatpush1.xpose.msra.mxu0 0.0
        %2401 = vmatprep.subr.mxu0 0.0
        %2402 = vmatpush1.xpose.msra.mxu0 0.0
        %2403 = vmatprep.subr.mxu0 0.0
        %2404 = vmatpush1.xpose.msra.mxu0 0.0
        %2405 = vmatprep.subr.mxu0 0.0
        %2406 = vmatpush1.xpose.msra.mxu0 0.0
        %2407 = vmatprep.subr.mxu0 0.0
        %2408 = vmatpush1.xpose.msra.mxu0 0.0
        %2409 = vmatprep.subr.mxu0 0.0
        %2410 = vmatpush1.xpose.msra.mxu0 0.0
        %2411 = vmatprep.subr.mxu0 0.0
        %2412 = vmatpush1.xpose.msra.mxu0 0.0
        %2413 = vmatprep.subr.mxu0 0.0
        %2414 = vmatpush1.xpose.msra.mxu0 %v2381
        %2415 = vmatprep.subr.mxu0 0.0
        %2416 = vmatpush2.xpose.msra.mxu0 0.0
        %2417 = vmatprep.subr.mxu0 0.0
        %2418 = vmatpush2.xpose.msra.mxu0 0.0
        %2419 = vmatprep.subr.mxu0 0.0
        %2420 = vmatpush2.xpose.msra.mxu0 0.0
        %2421 = vmatprep.subr.mxu0 0.0
        %2422 = vmatpush2.xpose.msra.mxu0 0.0
        %2423 = vmatprep.subr.mxu0 0.0
        %2424 = vmatpush2.xpose.msra.mxu0 0.0
        %2425 = vmatprep.subr.mxu0 0.0
        %2426 = vmatpush2.xpose.msra.mxu0 0.0
        %2427 = vmatprep.subr.mxu0 0.0
        %2428 = vmatpush2.xpose.msra.mxu0 0.0
        %2429 = vmatprep.subr.mxu0 0.0
        %2430 = vmatpush2.xpose.msra.mxu0 0.0
        %2431 = vmatprep.subr.mxu0 0.0
        %2432 = vmatpush2.xpose.msra.mxu0 0.0
        %2433 = vmatprep.subr.mxu0 0.0
        %2434 = vmatpush2.xpose.msra.mxu0 0.0
        %2435 = vmatprep.subr.mxu0 0.0
        %2436 = vmatpush2.xpose.msra.mxu0 0.0
        %2437 = vmatprep.subr.mxu0 0.0
        %2438 = vmatpush2.xpose.msra.mxu0 0.0
        %2439 = vmatprep.subr.mxu0 0.0
        %2440 = vmatpush2.xpose.msra.mxu0 0.0
        %2441 = vmatprep.subr.mxu0 0.0
        %2442 = vmatpush2.xpose.msra.mxu0 0.0
        %2443 = vmatprep.subr.mxu0 0.0
        %2444 = vmatpush2.xpose.msra.mxu0 0.0
        %2445 = vmatprep.subr.mxu0 0.0
        %2446 = vmatpush2.xpose.msra.mxu0 0.0
        %2447 = vmatprep.mubr.f32.mxu0 0.0
        %2448 = vmatmul.mubr.f32.gmra.mxu0 %v2379
        %v2449 = vpop.f32.mrf.mxu0
        %v2450 = vadd.f32 %v1880, %v2449
        %v2451 = vpop.f32.mrf.mxu0
        %2452 = vdwg.mxu0
        %v2453 = vsel %vm770, %v2450, -inf
        %2454 = vmax.xlane.f32.xlu0 %v2453
        %v2455 = vpop.xlane.xlu0 %2454
        %v2456 = vsub.f32 %v2450, %v2455
        %v2457 = vmul.f32 %v2456, 1.442695
        %v2458 = vpow.pop %v2457
        %v2459 = vsel %vm770, %v2458, 0.0
        %2460 = vadd.xlane.f32.xlu0 %v2459
        %v2461 = vpop.xlane.xlu0 %2460
        %v2462 = vrcp.pop %v2461
        %v2463 = vmul.f32 %v2458, %v2462
        %2464 = vrot.lane.b32.xlu0 %v1873, 72
        %v2465 = vpop.permute.xlu0 %2464
        %v2468 = vsel %vm770, %v2463, 0
        %2470 = vmatprep.subr.mxu0 0.0
        %2471 = vmatpush1.msra.mxu0 0.0
        %2472 = vmatprep.subr.mxu0 0.0
        %2473 = vmatpush1.msra.mxu0 0.0
        %2474 = vmatprep.subr.mxu0 0.0
        %2475 = vmatpush1.msra.mxu0 0.0
        %2476 = vmatprep.subr.mxu0 0.0
        %2477 = vmatpush1.msra.mxu0 0.0
        %2478 = vmatprep.subr.mxu0 0.0
        %2479 = vmatpush1.msra.mxu0 0.0
        %2480 = vmatprep.subr.mxu0 0.0
        %2481 = vmatpush1.msra.mxu0 0.0
        %2482 = vmatprep.subr.mxu0 0.0
        %2483 = vmatpush1.msra.mxu0 0.0
        %2484 = vmatprep.subr.mxu0 0.0
        %2485 = vmatpush1.msra.mxu0 0.0
        %2486 = vmatprep.subr.mxu0 0.0
        %2487 = vmatpush1.msra.mxu0 0.0
        %2488 = vmatprep.subr.mxu0 0.0
        %2489 = vmatpush1.msra.mxu0 0.0
        %2490 = vmatprep.subr.mxu0 0.0
        %2491 = vmatpush1.msra.mxu0 0.0
        %2492 = vmatprep.subr.mxu0 0.0
        %2493 = vmatpush1.msra.mxu0 0.0
        %2494 = vmatprep.subr.mxu0 0.0
        %2495 = vmatpush1.msra.mxu0 0.0
        %2496 = vmatprep.subr.mxu0 0.0
        %2497 = vmatpush1.msra.mxu0 0.0
        %2498 = vmatprep.subr.mxu0 0.0
        %2499 = vmatpush1.msra.mxu0 0.0
        %2500 = vmatprep.subr.mxu0 0.0
        %2501 = vmatpush1.msra.mxu0 %v2465
        %2502 = vmatprep.subr.mxu0 0.0
        %2503 = vmatpush2.msra.mxu0 0.0
        %2504 = vmatprep.subr.mxu0 0.0
        %2505 = vmatpush2.msra.mxu0 0.0
        %2506 = vmatprep.subr.mxu0 0.0
        %2507 = vmatpush2.msra.mxu0 0.0
        %2508 = vmatprep.subr.mxu0 0.0
        %2509 = vmatpush2.msra.mxu0 0.0
        %2510 = vmatprep.subr.mxu0 0.0
        %2511 = vmatpush2.msra.mxu0 0.0
        %2512 = vmatprep.subr.mxu0 0.0
        %2513 = vmatpush2.msra.mxu0 0.0
        %2514 = vmatprep.subr.mxu0 0.0
        %2515 = vmatpush2.msra.mxu0 0.0
        %2516 = vmatprep.subr.mxu0 0.0
        %2517 = vmatpush2.msra.mxu0 0.0
        %2518 = vmatprep.subr.mxu0 0.0
        %2519 = vmatpush2.msra.mxu0 0.0
        %2520 = vmatprep.subr.mxu0 0.0
        %2521 = vmatpush2.msra.mxu0 0.0
        %2522 = vmatprep.subr.mxu0 0.0
        %2523 = vmatpush2.msra.mxu0 0.0
        %2524 = vmatprep.subr.mxu0 0.0
        %2525 = vmatpush2.msra.mxu0 0.0
        %2526 = vmatprep.subr.mxu0 0.0
        %2527 = vmatpush2.msra.mxu0 0.0
        %2528 = vmatprep.subr.mxu0 0.0
        %2529 = vmatpush2.msra.mxu0 0.0
        %2530 = vmatprep.subr.mxu0 0.0
        %2531 = vmatpush2.msra.mxu0 0.0
        %2532 = vmatprep.subr.mxu0 0.0
        %2533 = vmatpush2.msra.mxu0 0.0
        %2534 = vmatprep.mubr.f32.mxu0 0.0
        %2535 = vmatmul.mubr.f32.gmra.mxu0 %v2468
        %v2536 = vpop.f32.mrf.mxu0
        %v2537 = vadd.f32 0.0, %v2536
        %v2538 = vpop.f32.mrf.mxu0
        %2539 = vdwg.mxu0
        %2541 = vrot.lane.b32.xlu0 %v2207, 8
        %v2542 = vpop.permute.xlu0 %2541
        %2545 = vrot.lane.b32.xlu0 %v2372, 16
        %v2546 = vpop.permute.xlu0 %2545
        %2549 = vrot.lane.b32.xlu0 %v2537, 24
        %v2550 = vpop.permute.xlu0 %2549
        %v2552 = vsel %vm770, %v2042, %v2542
        %v2553 = vsel %vm1442, %v2552, %v2546
        %v2554 = vsel %vm1444, %v2553, %v2550
        %v2556 = vsel %vm612, %v2554, 0
        %2558 = vmatprep.subr.mxu0 0.0
        %2559 = vmatpush1.msra.mxu0 0.0
        %2560 = vmatprep.subr.mxu0 0.0
        %2561 = vmatpush1.msra.mxu0 0.0
        %2562 = vmatprep.subr.mxu0 0.0
        %2563 = vmatpush1.msra.mxu0 0.0
        %2564 = vmatprep.subr.mxu0 0.0
        %2565 = vmatpush1.msra.mxu0 0.0
        %2566 = vmatprep.subr.mxu0 0.0
        %2567 = vmatpush1.msra.mxu0 0.0
        %2568 = vmatprep.subr.mxu0 0.0
        %2569 = vmatpush1.msra.mxu0 0.0
        %2570 = vmatprep.subr.mxu0 0.0
        %2571 = vmatpush1.msra.mxu0 0.0
        %2572 = vmatprep.subr.mxu0 0.0
        %2573 = vmatpush1.msra.mxu0 0.0
        %2574 = vmatprep.subr.mxu0 0.0
        %2575 = vmatpush1.msra.mxu0 0.0
        %2576 = vmatprep.subr.mxu0 0.0
        %2577 = vmatpush1.msra.mxu0 0.0
        %2578 = vmatprep.subr.mxu0 0.0
        %2579 = vmatpush1.msra.mxu0 0.0
        %2580 = vmatprep.subr.mxu0 0.0
        %2581 = vmatpush1.msra.mxu0 0.0
        %2582 = vmatprep.subr.mxu0 0.0
        %2583 = vmatpush1.msra.mxu0 %v590
        %2584 = vmatprep.subr.mxu0 0.0
        %2585 = vmatpush1.msra.mxu0 %v589
        %2586 = vmatprep.subr.mxu0 0.0
        %2587 = vmatpush1.msra.mxu0 %v588
        %2588 = vmatprep.subr.mxu0 0.0
        %2589 = vmatpush1.msra.mxu0 %v587
        %2590 = vmatprep.subr.mxu0 0.0
        %2591 = vmatpush2.msra.mxu0 0.0
        %2592 = vmatprep.subr.mxu0 0.0
        %2593 = vmatpush2.msra.mxu0 0.0
        %2594 = vmatprep.subr.mxu0 0.0
        %2595 = vmatpush2.msra.mxu0 0.0
        %2596 = vmatprep.subr.mxu0 0.0
        %2597 = vmatpush2.msra.mxu0 0.0
        %2598 = vmatprep.subr.mxu0 0.0
        %2599 = vmatpush2.msra.mxu0 0.0
        %2600 = vmatprep.subr.mxu0 0.0
        %2601 = vmatpush2.msra.mxu0 0.0
        %2602 = vmatprep.subr.mxu0 0.0
        %2603 = vmatpush2.msra.mxu0 0.0
        %2604 = vmatprep.subr.mxu0 0.0
        %2605 = vmatpush2.msra.mxu0 0.0
        %2606 = vmatprep.subr.mxu0 0.0
        %2607 = vmatpush2.msra.mxu0 0.0
        %2608 = vmatprep.subr.mxu0 0.0
        %2609 = vmatpush2.msra.mxu0 0.0
        %2610 = vmatprep.subr.mxu0 0.0
        %2611 = vmatpush2.msra.mxu0 0.0
        %2612 = vmatprep.subr.mxu0 0.0
        %2613 = vmatpush2.msra.mxu0 0.0
        %2614 = vmatprep.subr.mxu0 0.0
        %2615 = vmatpush2.msra.mxu0 0.0
        %2616 = vmatprep.subr.mxu0 0.0
        %2617 = vmatpush2.msra.mxu0 0.0
        %2618 = vmatprep.subr.mxu0 0.0
        %2619 = vmatpush2.msra.mxu0 0.0
        %2620 = vmatprep.subr.mxu0 0.0
        %2621 = vmatpush2.msra.mxu0 0.0
        %2622 = vmatprep.mubr.f32.mxu0 0.0
        %2623 = vmatmul.mubr.f32.gmra.mxu0 %v2556
        %v2624 = vpop.f32.mrf.mxu0
        %v2625 = vadd.f32 %v1449, %v2624
        %v2626 = vpop.f32.mrf.mxu0
        %2627 = vdwg.mxu0
        %v2628 = vadd.f32 %v2625, %v571
        %v2629 = vsel %vm612, %v2628, 0.0
        %2630 = vadd.xlane.f32.xlu0 %v2629
        %v2631 = vpop.xlane.xlu0 %2630
        %v2632 = vmul.f32 %v2631, %v1527
        %v2633 = vsub.f32 %v2628, %v2632
        %v2634 = vmul.f32 %v2633, %v2633
        %v2635 = vsel %vm612, %v2634, 0.0
        %2636 = vadd.xlane.f32.xlu0 %v2635
        %v2637 = vpop.xlane.xlu0 %2636
        %v2638 = vmul.f32 %v2637, %v1527
        %v2639 = vadd.f32 %v2638, 1e-05
        %v2640 = vrsqrt.pop %v2639
        %v2641 = vmul.f32 %v2633, %v2640
        %v2642 = vmul.f32 %v2641, %v1541
        %v2643 = vadd.f32 %v2642, %v1546
        %2645 = vset.pattern.permute.xlu0 0
        %2646 = vperm.xlu0 %2645, %v575
        %v2647 = vpop.permute.xlu0 %2646
        %v2649 = vmul.f32 %v2643, %v2647
        %v2651 = vsel %vm612, %v2649, 0
        %2653 = vmatprep.subr.mxu0 0.0
        %2654 = vmatpush1.msra.mxu0 0.0
        %2655 = vmatprep.subr.mxu0 0.0
        %2656 = vmatpush1.msra.mxu0 0.0
        %2657 = vmatprep.subr.mxu0 0.0
        %2658 = vmatpush1.msra.mxu0 0.0
        %2659 = vmatprep.subr.mxu0 0.0
        %2660 = vmatpush1.msra.mxu0 0.0
        %2661 = vmatprep.subr.mxu0 0.0
        %2662 = vmatpush1.msra.mxu0 0.0
        %2663 = vmatprep.subr.mxu0 0.0
        %2664 = vmatpush1.msra.mxu0 0.0
        %2665 = vmatprep.subr.mxu0 0.0
        %2666 = vmatpush1.msra.mxu0 0.0
        %2667 = vmatprep.subr.mxu0 0.0
        %2668 = vmatpush1.msra.mxu0 0.0
        %2669 = vmatprep.subr.mxu0 0.0
        %2670 = vmatpush1.msra.mxu0 0.0
        %2671 = vmatprep.subr.mxu0 0.0
        %2672 = vmatpush1.msra.mxu0 0.0
        %2673 = vmatprep.subr.mxu0 0.0
        %2674 = vmatpush1.msra.mxu0 0.0
        %2675 = vmatprep.subr.mxu0 0.0
        %2676 = vmatpush1.msra.mxu0 0.0
        %2677 = vmatprep.subr.mxu0 0.0
        %2678 = vmatpush1.msra.mxu0 %v595
        %2679 = vmatprep.subr.mxu0 0.0
        %2680 = vmatpush1.msra.mxu0 %v594
        %2681 = vmatprep.subr.mxu0 0.0
        %2682 = vmatpush1.msra.mxu0 %v593
        %2683 = vmatprep.subr.mxu0 0.0
        %2684 = vmatpush1.msra.mxu0 %v592
        %2685 = vmatprep.subr.mxu0 0.0
        %2686 = vmatpush2.msra.mxu0 0.0
        %2687 = vmatprep.subr.mxu0 0.0
        %2688 = vmatpush2.msra.mxu0 0.0
        %2689 = vmatprep.subr.mxu0 0.0
        %2690 = vmatpush2.msra.mxu0 0.0
        %2691 = vmatprep.subr.mxu0 0.0
        %2692 = vmatpush2.msra.mxu0 0.0
        %2693 = vmatprep.subr.mxu0 0.0
        %2694 = vmatpush2.msra.mxu0 0.0
        %2695 = vmatprep.subr.mxu0 0.0
        %2696 = vmatpush2.msra.mxu0 0.0
        %2697 = vmatprep.subr.mxu0 0.0
        %2698 = vmatpush2.msra.mxu0 0.0
        %2699 = vmatprep.subr.mxu0 0.0
        %2700 = vmatpush2.msra.mxu0 0.0
        %2701 = vmatprep.subr.mxu0 0.0
        %2702 = vmatpush2.msra.mxu0 0.0
        %2703 = vmatprep.subr.mxu0 0.0
        %2704 = vmatpush2.msra.mxu0 0.0
        %2705 = vmatprep.subr.mxu0 0.0
        %2706 = vmatpush2.msra.mxu0 0.0
        %2707 = vmatprep.subr.mxu0 0.0
        %2708 = vmatpush2.msra.mxu0 0.0
        %2709 = vmatprep.subr.mxu0 0.0
        %2710 = vmatpush2.msra.mxu0 0.0
        %2711 = vmatprep.subr.mxu0 0.0
        %2712 = vmatpush2.msra.mxu0 0.0
        %2713 = vmatprep.subr.mxu0 0.0
        %2714 = vmatpush2.msra.mxu0 0.0
        %2715 = vmatprep.subr.mxu0 0.0
        %2716 = vmatpush2.msra.mxu0 0.0
        %2717 = vmatprep.mubr.f32.mxu0 0.0
        %2718 = vmatmul.mubr.f32.gmra.mxu0 %v2651
        %v2719 = vpop.f32.mrf.mxu0
        %v2720 = vadd.f32 %v1557, %v2719
        %v2721 = vpop.f32.mrf.mxu0
        %2722 = vdwg.mxu0
        %v2723 = vmax.f32 %v2720, 0.0
        %v2725 = vsel %vm1636, %v2723, 0
        %2727 = vmatprep.subr.mxu0 0.0
        %2728 = vmatpush1.msra.mxu0 0.0
        %2729 = vmatprep.subr.mxu0 0.0
        %2730 = vmatpush1.msra.mxu0 0.0
        %2731 = vmatprep.subr.mxu0 0.0
        %2732 = vmatpush1.msra.mxu0 0.0
        %2733 = vmatprep.subr.mxu0 0.0
        %2734 = vmatpush1.msra.mxu0 0.0
        %2735 = vmatprep.subr.mxu0 0.0
        %2736 = vmatpush1.msra.mxu0 0.0
        %2737 = vmatprep.subr.mxu0 0.0
        %2738 = vmatpush1.msra.mxu0 0.0
        %2739 = vmatprep.subr.mxu0 0.0
        %2740 = vmatpush1.msra.mxu0 0.0
        %2741 = vmatprep.subr.mxu0 0.0
        %2742 = vmatpush1.msra.mxu0 0.0
        %2743 = vmatprep.subr.mxu0 0.0
        %2744 = vmatpush1.msra.mxu0 %v604
        %2745 = vmatprep.subr.mxu0 0.0
        %2746 = vmatpush1.msra.mxu0 %v603
        %2747 = vmatprep.subr.mxu0 0.0
        %2748 = vmatpush1.msra.mxu0 %v602
        %2749 = vmatprep.subr.mxu0 0.0
        %2750 = vmatpush1.msra.mxu0 %v601
        %2751 = vmatprep.subr.mxu0 0.0
        %2752 = vmatpush1.msra.mxu0 %v600
        %2753 = vmatprep.subr.mxu0 0.0
        %2754 = vmatpush1.msra.mxu0 %v599
        %2755 = vmatprep.subr.mxu0 0.0
        %2756 = vmatpush1.msra.mxu0 %v598
        %2757 = vmatprep.subr.mxu0 0.0
        %2758 = vmatpush1.msra.mxu0 %v597
        %2759 = vmatprep.subr.mxu0 0.0
        %2760 = vmatpush2.msra.mxu0 0.0
        %2761 = vmatprep.subr.mxu0 0.0
        %2762 = vmatpush2.msra.mxu0 0.0
        %2763 = vmatprep.subr.mxu0 0.0
        %2764 = vmatpush2.msra.mxu0 0.0
        %2765 = vmatprep.subr.mxu0 0.0
        %2766 = vmatpush2.msra.mxu0 0.0
        %2767 = vmatprep.subr.mxu0 0.0
        %2768 = vmatpush2.msra.mxu0 0.0
        %2769 = vmatprep.subr.mxu0 0.0
        %2770 = vmatpush2.msra.mxu0 0.0
        %2771 = vmatprep.subr.mxu0 0.0
        %2772 = vmatpush2.msra.mxu0 0.0
        %2773 = vmatprep.subr.mxu0 0.0
        %2774 = vmatpush2.msra.mxu0 0.0
        %2775 = vmatprep.subr.mxu0 0.0
        %2776 = vmatpush2.msra.mxu0 0.0
        %2777 = vmatprep.subr.mxu0 0.0
        %2778 = vmatpush2.msra.mxu0 0.0
        %2779 = vmatprep.subr.mxu0 0.0
        %2780 = vmatpush2.msra.mxu0 0.0
        %2781 = vmatprep.subr.mxu0 0.0
        %2782 = vmatpush2.msra.mxu0 0.0
        %2783 = vmatprep.subr.mxu0 0.0
        %2784 = vmatpush2.msra.mxu0 0.0
        %2785 = vmatprep.subr.mxu0 0.0
        %2786 = vmatpush2.msra.mxu0 0.0
        %2787 = vmatprep.subr.mxu0 0.0
        %2788 = vmatpush2.msra.mxu0 0.0
        %2789 = vmatprep.subr.mxu0 0.0
        %2790 = vmatpush2.msra.mxu0 0.0
        %2791 = vmatprep.mubr.f32.mxu0 0.0
        %2792 = vmatmul.mubr.f32.gmra.mxu0 %v2725
        %v2793 = vpop.f32.mrf.mxu0
        %v2794 = vadd.f32 %v1635, %v2793
        %v2795 = vpop.f32.mrf.mxu0
        %2796 = vdwg.mxu0
        %v2797 = vadd.f32 %v2794, %v2649
        %v2798 = vsel %vm612, %v2797, 0.0
        %2799 = vadd.xlane.f32.xlu0 %v2798
        %v2800 = vpop.xlane.xlu0 %2799
        %v2801 = vmul.f32 %v2800, %v1527
        %v2802 = vsub.f32 %v2797, %v2801
        %v2803 = vmul.f32 %v2802, %v2802
        %v2804 = vsel %vm612, %v2803, 0.0
        %2805 = vadd.xlane.f32.xlu0 %v2804
        %v2806 = vpop.xlane.xlu0 %2805
        %v2807 = vmul.f32 %v2806, %v1527
        %v2808 = vadd.f32 %v2807, 1e-05
        %v2809 = vrsqrt.pop %v2808
        %v2810 = vmul.f32 %v2802, %v2809
        %v2811 = vmul.f32 %v2810, %v1727
        %v2812 = vadd.f32 %v2811, %v1732
        %v2813 = vmul.f32 %v2812, %v2647
        %s2814 = scalar_lea.vmem %s6, 96
        %v2815 = vld [vmem:[%s2814] sm:$0xff]
        %v2816 = vld [vmem:[%s2814 + $0x8] sm:$0xff]
        %v2817 = vld [vmem:[%s2814 + $0x10] sm:$0xff]
        %v2818 = vld [vmem:[%s2814 + $0x18] sm:$0xff]
        %s2819 = scalar_lea.vmem %s7, 96
        %v2820 = vld [vmem:[%s2819] sm:$0xff]
        %v2821 = vld [vmem:[%s2819 + $0x8] sm:$0xff]
        %v2822 = vld [vmem:[%s2819 + $0x10] sm:$0xff]
        %v2823 = vld [vmem:[%s2819 + $0x18] sm:$0xff]
        %s2824 = scalar_lea.vmem %s8, 96
        %v2825 = vld [vmem:[%s2824] sm:$0xff]
        %v2826 = vld [vmem:[%s2824 + $0x8] sm:$0xff]
        %v2827 = vld [vmem:[%s2824 + $0x10] sm:$0xff]
        %v2828 = vld [vmem:[%s2824 + $0x18] sm:$0xff]
        %s2829 = scalar_lea.vmem %s9, 96
        %v2830 = vld [vmem:[%s2829] sm:$0xff]
        %v2831 = vld [vmem:[%s2829 + $0x8] sm:$0xff]
        %v2832 = vld [vmem:[%s2829 + $0x10] sm:$0xff]
        %v2833 = vld [vmem:[%s2829 + $0x18] sm:$0xff]
        %s2834 = scalar_lea.vmem %s10, 192
        %v2835 = vld [vmem:[%s2834] sm:$0xff]
        %v2836 = vld [vmem:[%s2834 + $0x8] sm:$0xff]
        %v2837 = vld [vmem:[%s2834 + $0x10] sm:$0xff]
        %v2838 = vld [vmem:[%s2834 + $0x18] sm:$0xff]
        %v2839 = vld [vmem:[%s2834 + $0x20] sm:$0xff]
        %v2840 = vld [vmem:[%s2834 + $0x28] sm:$0xff]
        %v2841 = vld [vmem:[%s2834 + $0x30] sm:$0xff]
        %v2842 = vld [vmem:[%s2834 + $0x38] sm:$0xff]
        %s2843 = scalar_lea.vmem %s11, 48
        %v2844 = vld [vmem:[%s2843] sm:$0xff]
        %v2845 = vld [vmem:[%s2843 + $0x8] sm:$0x1]
        %v2846 = vlaneseq
        %v2847 = vshrl.u32 %v2846, 7
        %v2848 = vsub.s32 0, %v2847
        %v2849 = vrot.slane %v2844, %v2848
        %v2851 = vsel %vm612, %v1734, 0
        %2853 = vmatprep.subr.mxu0 0.0
        %2854 = vmatpush1.msra.mxu0 0.0
        %2855 = vmatprep.subr.mxu0 0.0
        %2856 = vmatpush1.msra.mxu0 0.0
        %2857 = vmatprep.subr.mxu0 0.0
        %2858 = vmatpush1.msra.mxu0 0.0
        %2859 = vmatprep.subr.mxu0 0.0
        %2860 = vmatpush1.msra.mxu0 0.0
        %2861 = vmatprep.subr.mxu0 0.0
        %2862 = vmatpush1.msra.mxu0 0.0
        %2863 = vmatprep.subr.mxu0 0.0
        %2864 = vmatpush1.msra.mxu0 0.0
        %2865 = vmatprep.subr.mxu0 0.0
        %2866 = vmatpush1.msra.mxu0 0.0
        %2867 = vmatprep.subr.mxu0 0.0
        %2868 = vmatpush1.msra.mxu0 0.0
        %2869 = vmatprep.subr.mxu0 0.0
        %2870 = vmatpush1.msra.mxu0 0.0
        %2871 = vmatprep.subr.mxu0 0.0
        %2872 = vmatpush1.msra.mxu0 0.0
        %2873 = vmatprep.subr.mxu0 0.0
        %2874 = vmatpush1.msra.mxu0 0.0
        %2875 = vmatprep.subr.mxu0 0.0
        %2876 = vmatpush1.msra.mxu0 0.0
        %2877 = vmatprep.subr.mxu0 0.0
        %2878 = vmatpush1.msra.mxu0 %v2818
        %2879 = vmatprep.subr.mxu0 0.0
        %2880 = vmatpush1.msra.mxu0 %v2817
        %2881 = vmatprep.subr.mxu0 0.0
        %2882 = vmatpush1.msra.mxu0 %v2816
        %2883 = vmatprep.subr.mxu0 0.0
        %2884 = vmatpush1.msra.mxu0 %v2815
        %2885 = vmatprep.subr.mxu0 0.0
        %2886 = vmatpush2.msra.mxu0 0.0
        %2887 = vmatprep.subr.mxu0 0.0
        %2888 = vmatpush2.msra.mxu0 0.0
        %2889 = vmatprep.subr.mxu0 0.0
        %2890 = vmatpush2.msra.mxu0 0.0
        %2891 = vmatprep.subr.mxu0 0.0
        %2892 = vmatpush2.msra.mxu0 0.0
        %2893 = vmatprep.subr.mxu0 0.0
        %2894 = vmatpush2.msra.mxu0 0.0
        %2895 = vmatprep.subr.mxu0 0.0
        %2896 = vmatpush2.msra.mxu0 0.0
        %2897 = vmatprep.subr.mxu0 0.0
        %2898 = vmatpush2.msra.mxu0 0.0
        %2899 = vmatprep.subr.mxu0 0.0
        %2900 = vmatpush2.msra.mxu0 0.0
        %2901 = vmatprep.subr.mxu0 0.0
        %2902 = vmatpush2.msra.mxu0 0.0
        %2903 = vmatprep.subr.mxu0 0.0
        %2904 = vmatpush2.msra.mxu0 0.0
        %2905 = vmatprep.subr.mxu0 0.0
        %2906 = vmatpush2.msra.mxu0 0.0
        %2907 = vmatprep.subr.mxu0 0.0
        %2908 = vmatpush2.msra.mxu0 0.0
        %2909 = vmatprep.subr.mxu0 0.0
        %2910 = vmatpush2.msra.mxu0 0.0
        %2911 = vmatprep.subr.mxu0 0.0
        %2912 = vmatpush2.msra.mxu0 0.0
        %2913 = vmatprep.subr.mxu0 0.0
        %2914 = vmatpush2.msra.mxu0 0.0
        %2915 = vmatprep.subr.mxu0 0.0
        %2916 = vmatpush2.msra.mxu0 0.0
        %2917 = vmatprep.mubr.f32.mxu0 0.0
        %2918 = vmatmul.mubr.f32.gmra.mxu0 %v2851
        %v2919 = vpop.f32.mrf.mxu0
        %v2920 = vadd.f32 %v2849, %v2919
        %v2921 = vpop.f32.mrf.mxu0
        %2922 = vdwg.mxu0
        %v2923 = vmul.f32 %v2920, 0.35355338
        %v2924 = vlaneseq
        %v2925 = vshrl.u32 %v2924, 7
        %v2926 = vsub.s32 1, %v2925
        %v2927 = vrot.slane %v2844, %v2926
        %2928 = vmatprep.subr.mxu0 0.0
        %2929 = vmatpush1.msra.mxu0 0.0
        %2930 = vmatprep.subr.mxu0 0.0
        %2931 = vmatpush1.msra.mxu0 0.0
        %2932 = vmatprep.subr.mxu0 0.0
        %2933 = vmatpush1.msra.mxu0 0.0
        %2934 = vmatprep.subr.mxu0 0.0
        %2935 = vmatpush1.msra.mxu0 0.0
        %2936 = vmatprep.subr.mxu0 0.0
        %2937 = vmatpush1.msra.mxu0 0.0
        %2938 = vmatprep.subr.mxu0 0.0
        %2939 = vmatpush1.msra.mxu0 0.0
        %2940 = vmatprep.subr.mxu0 0.0
        %2941 = vmatpush1.msra.mxu0 0.0
        %2942 = vmatprep.subr.mxu0 0.0
        %2943 = vmatpush1.msra.mxu0 0.0
        %2944 = vmatprep.subr.mxu0 0.0
        %2945 = vmatpush1.msra.mxu0 0.0
        %2946 = vmatprep.subr.mxu0 0.0
        %2947 = vmatpush1.msra.mxu0 0.0
        %2948 = vmatprep.subr.mxu0 0.0
        %2949 = vmatpush1.msra.mxu0 0.0
        %2950 = vmatprep.subr.mxu0 0.0
        %2951 = vmatpush1.msra.mxu0 0.0
        %2952 = vmatprep.subr.mxu0 0.0
        %2953 = vmatpush1.msra.mxu0 %v2823
        %2954 = vmatprep.subr.mxu0 0.0
        %2955 = vmatpush1.msra.mxu0 %v2822
        %2956 = vmatprep.subr.mxu0 0.0
        %2957 = vmatpush1.msra.mxu0 %v2821
        %2958 = vmatprep.subr.mxu0 0.0
        %2959 = vmatpush1.msra.mxu0 %v2820
        %2960 = vmatprep.subr.mxu0 0.0
        %2961 = vmatpush2.msra.mxu0 0.0
        %2962 = vmatprep.subr.mxu0 0.0
        %2963 = vmatpush2.msra.mxu0 0.0
        %2964 = vmatprep.subr.mxu0 0.0
        %2965 = vmatpush2.msra.mxu0 0.0
        %2966 = vmatprep.subr.mxu0 0.0
        %2967 = vmatpush2.msra.mxu0 0.0
        %2968 = vmatprep.subr.mxu0 0.0
        %2969 = vmatpush2.msra.mxu0 0.0
        %2970 = vmatprep.subr.mxu0 0.0
        %2971 = vmatpush2.msra.mxu0 0.0
        %2972 = vmatprep.subr.mxu0 0.0
        %2973 = vmatpush2.msra.mxu0 0.0
        %2974 = vmatprep.subr.mxu0 0.0
        %2975 = vmatpush2.msra.mxu0 0.0
        %2976 = vmatprep.subr.mxu0 0.0
        %2977 = vmatpush2.msra.mxu0 0.0
        %2978 = vmatprep.subr.mxu0 0.0
        %2979 = vmatpush2.msra.mxu0 0.0
        %2980 = vmatprep.subr.mxu0 0.0
        %2981 = vmatpush2.msra.mxu0 0.0
        %2982 = vmatprep.subr.mxu0 0.0
        %2983 = vmatpush2.msra.mxu0 0.0
        %2984 = vmatprep.subr.mxu0 0.0
        %2985 = vmatpush2.msra.mxu0 0.0
        %2986 = vmatprep.subr.mxu0 0.0
        %2987 = vmatpush2.msra.mxu0 0.0
        %2988 = vmatprep.subr.mxu0 0.0
        %2989 = vmatpush2.msra.mxu0 0.0
        %2990 = vmatprep.subr.mxu0 0.0
        %2991 = vmatpush2.msra.mxu0 0.0
        %2992 = vmatprep.mubr.f32.mxu0 0.0
        %2993 = vmatmul.mubr.f32.gmra.mxu0 %v2851
        %v2994 = vpop.f32.mrf.mxu0
        %v2995 = vadd.f32 %v2927, %v2994
        %v2996 = vpop.f32.mrf.mxu0
        %2997 = vdwg.mxu0
        %v2999 = vsel %vm770, %v2923, 0
        %v3002 = vsel %vm770, %v2995, 0
        %3004 = vmatprep.subr.mxu0 0.0
        %3005 = vmatpush1.xpose.msra.mxu0 0.0
        %3006 = vmatprep.subr.mxu0 0.0
        %3007 = vmatpush1.xpose.msra.mxu0 0.0
        %3008 = vmatprep.subr.mxu0 0.0
        %3009 = vmatpush1.xpose.msra.mxu0 0.0
        %3010 = vmatprep.subr.mxu0 0.0
        %3011 = vmatpush1.xpose.msra.mxu0 0.0
        %3012 = vmatprep.subr.mxu0 0.0
        %3013 = vmatpush1.xpose.msra.mxu0 0.0
        %3014 = vmatprep.subr.mxu0 0.0
        %3015 = vmatpush1.xpose.msra.mxu0 0.0
        %3016 = vmatprep.subr.mxu0 0.0
        %3017 = vmatpush1.xpose.msra.mxu0 0.0
        %3018 = vmatprep.subr.mxu0 0.0
        %3019 = vmatpush1.xpose.msra.mxu0 0.0
        %3020 = vmatprep.subr.mxu0 0.0
        %3021 = vmatpush1.xpose.msra.mxu0 0.0
        %3022 = vmatprep.subr.mxu0 0.0
        %3023 = vmatpush1.xpose.msra.mxu0 0.0
        %3024 = vmatprep.subr.mxu0 0.0
        %3025 = vmatpush1.xpose.msra.mxu0 0.0
        %3026 = vmatprep.subr.mxu0 0.0
        %3027 = vmatpush1.xpose.msra.mxu0 0.0
        %3028 = vmatprep.subr.mxu0 0.0
        %3029 = vmatpush1.xpose.msra.mxu0 0.0
        %3030 = vmatprep.subr.mxu0 0.0
        %3031 = vmatpush1.xpose.msra.mxu0 0.0
        %3032 = vmatprep.subr.mxu0 0.0
        %3033 = vmatpush1.xpose.msra.mxu0 0.0
        %3034 = vmatprep.subr.mxu0 0.0
        %3035 = vmatpush1.xpose.msra.mxu0 %v3002
        %3036 = vmatprep.subr.mxu0 0.0
        %3037 = vmatpush2.xpose.msra.mxu0 0.0
        %3038 = vmatprep.subr.mxu0 0.0
        %3039 = vmatpush2.xpose.msra.mxu0 0.0
        %3040 = vmatprep.subr.mxu0 0.0
        %3041 = vmatpush2.xpose.msra.mxu0 0.0
        %3042 = vmatprep.subr.mxu0 0.0
        %3043 = vmatpush2.xpose.msra.mxu0 0.0
        %3044 = vmatprep.subr.mxu0 0.0
        %3045 = vmatpush2.xpose.msra.mxu0 0.0
        %3046 = vmatprep.subr.mxu0 0.0
        %3047 = vmatpush2.xpose.msra.mxu0 0.0
        %3048 = vmatprep.subr.mxu0 0.0
        %3049 = vmatpush2.xpose.msra.mxu0 0.0
        %3050 = vmatprep.subr.mxu0 0.0
        %3051 = vmatpush2.xpose.msra.mxu0 0.0
        %3052 = vmatprep.subr.mxu0 0.0
        %3053 = vmatpush2.xpose.msra.mxu0 0.0
        %3054 = vmatprep.subr.mxu0 0.0
        %3055 = vmatpush2.xpose.msra.mxu0 0.0
        %3056 = vmatprep.subr.mxu0 0.0
        %3057 = vmatpush2.xpose.msra.mxu0 0.0
        %3058 = vmatprep.subr.mxu0 0.0
        %3059 = vmatpush2.xpose.msra.mxu0 0.0
        %3060 = vmatprep.subr.mxu0 0.0
        %3061 = vmatpush2.xpose.msra.mxu0 0.0
        %3062 = vmatprep.subr.mxu0 0.0
        %3063 = vmatpush2.xpose.msra.mxu0 0.0
        %3064 = vmatprep.subr.mxu0 0.0
        %3065 = vmatpush2.xpose.msra.mxu0 0.0
        %3066 = vmatprep.subr.mxu0 0.0
        %3067 = vmatpush2.xpose.msra.mxu0 0.0
        %3068 = vmatprep.mubr.f32.mxu0 0.0
        %3069 = vmatmul.mubr.f32.gmra.mxu0 %v2999
        %v3070 = vpop.f32.mrf.mxu0
        %v3071 = vadd.f32 %v1880, %v3070
        %v3072 = vpop.f32.mrf.mxu0
        %3073 = vdwg.mxu0
        %v3074 = vsel %vm770, %v3071, -inf
        %3075 = vmax.xlane.f32.xlu0 %v3074
        %v3076 = vpop.xlane.xlu0 %3075
        %v3077 = vsub.f32 %v3071, %v3076
        %v3078 = vmul.f32 %v3077, 1.442695
        %v3079 = vpow.pop %v3078
        %v3080 = vsel %vm770, %v3079, 0.0
        %3081 = vadd.xlane.f32.xlu0 %v3080
        %v3082 = vpop.xlane.xlu0 %3081
        %v3083 = vrcp.pop %v3082
        %v3084 = vmul.f32 %v3079, %v3083
        %3085 = vrot.lane.b32.xlu0 %v2995, 96
        %v3086 = vpop.permute.xlu0 %3085
        %v3089 = vsel %vm770, %v3084, 0
        %3091 = vmatprep.subr.mxu0 0.0
        %3092 = vmatpush1.msra.mxu0 0.0
        %3093 = vmatprep.subr.mxu0 0.0
        %3094 = vmatpush1.msra.mxu0 0.0
        %3095 = vmatprep.subr.mxu0 0.0
        %3096 = vmatpush1.msra.mxu0 0.0
        %3097 = vmatprep.subr.mxu0 0.0
        %3098 = vmatpush1.msra.mxu0 0.0
        %3099 = vmatprep.subr.mxu0 0.0
        %3100 = vmatpush1.msra.mxu0 0.0
        %3101 = vmatprep.subr.mxu0 0.0
        %3102 = vmatpush1.msra.mxu0 0.0
        %3103 = vmatprep.subr.mxu0 0.0
        %3104 = vmatpush1.msra.mxu0 0.0
        %3105 = vmatprep.subr.mxu0 0.0
        %3106 = vmatpush1.msra.mxu0 0.0
        %3107 = vmatprep.subr.mxu0 0.0
        %3108 = vmatpush1.msra.mxu0 0.0
        %3109 = vmatprep.subr.mxu0 0.0
        %3110 = vmatpush1.msra.mxu0 0.0
        %3111 = vmatprep.subr.mxu0 0.0
        %3112 = vmatpush1.msra.mxu0 0.0
        %3113 = vmatprep.subr.mxu0 0.0
        %3114 = vmatpush1.msra.mxu0 0.0
        %3115 = vmatprep.subr.mxu0 0.0
        %3116 = vmatpush1.msra.mxu0 0.0
        %3117 = vmatprep.subr.mxu0 0.0
        %3118 = vmatpush1.msra.mxu0 0.0
        %3119 = vmatprep.subr.mxu0 0.0
        %3120 = vmatpush1.msra.mxu0 0.0
        %3121 = vmatprep.subr.mxu0 0.0
        %3122 = vmatpush1.msra.mxu0 %v3086
        %3123 = vmatprep.subr.mxu0 0.0
        %3124 = vmatpush2.msra.mxu0 0.0
        %3125 = vmatprep.subr.mxu0 0.0
        %3126 = vmatpush2.msra.mxu0 0.0
        %3127 = vmatprep.subr.mxu0 0.0
        %3128 = vmatpush2.msra.mxu0 0.0
        %3129 = vmatprep.subr.mxu0 0.0
        %3130 = vmatpush2.msra.mxu0 0.0
        %3131 = vmatprep.subr.mxu0 0.0
        %3132 = vmatpush2.msra.mxu0 0.0
        %3133 = vmatprep.subr.mxu0 0.0
        %3134 = vmatpush2.msra.mxu0 0.0
        %3135 = vmatprep.subr.mxu0 0.0
        %3136 = vmatpush2.msra.mxu0 0.0
        %3137 = vmatprep.subr.mxu0 0.0
        %3138 = vmatpush2.msra.mxu0 0.0
        %3139 = vmatprep.subr.mxu0 0.0
        %3140 = vmatpush2.msra.mxu0 0.0
        %3141 = vmatprep.subr.mxu0 0.0
        %3142 = vmatpush2.msra.mxu0 0.0
        %3143 = vmatprep.subr.mxu0 0.0
        %3144 = vmatpush2.msra.mxu0 0.0
        %3145 = vmatprep.subr.mxu0 0.0
        %3146 = vmatpush2.msra.mxu0 0.0
        %3147 = vmatprep.subr.mxu0 0.0
        %3148 = vmatpush2.msra.mxu0 0.0
        %3149 = vmatprep.subr.mxu0 0.0
        %3150 = vmatpush2.msra.mxu0 0.0
        %3151 = vmatprep.subr.mxu0 0.0
        %3152 = vmatpush2.msra.mxu0 0.0
        %3153 = vmatprep.subr.mxu0 0.0
        %3154 = vmatpush2.msra.mxu0 0.0
        %3155 = vmatprep.mubr.f32.mxu0 0.0
        %3156 = vmatmul.mubr.f32.gmra.mxu0 %v3089
        %v3157 = vpop.f32.mrf.mxu0
        %v3158 = vadd.f32 0.0, %v3157
        %v3159 = vpop.f32.mrf.mxu0
        %3160 = vdwg.mxu0
        %3161 = vrot.lane.b32.xlu0 %v2923, 120
        %v3162 = vpop.permute.xlu0 %3161
        %3163 = vrot.lane.b32.xlu0 %v2995, 120
        %v3164 = vpop.permute.xlu0 %3163
        %v3165 = vsel %vm770, %v3162, 0
        %v3167 = vsel %vm770, %v3164, 0
        %3169 = vmatprep.subr.mxu0 0.0
        %3170 = vmatpush1.xpose.msra.mxu0 0.0
        %3171 = vmatprep.subr.mxu0 0.0
        %3172 = vmatpush1.xpose.msra.mxu0 0.0
        %3173 = vmatprep.subr.mxu0 0.0
        %3174 = vmatpush1.xpose.msra.mxu0 0.0
        %3175 = vmatprep.subr.mxu0 0.0
        %3176 = vmatpush1.xpose.msra.mxu0 0.0
        %3177 = vmatprep.subr.mxu0 0.0
        %3178 = vmatpush1.xpose.msra.mxu0 0.0
        %3179 = vmatprep.subr.mxu0 0.0
        %3180 = vmatpush1.xpose.msra.mxu0 0.0
        %3181 = vmatprep.subr.mxu0 0.0
        %3182 = vmatpush1.xpose.msra.mxu0 0.0
        %3183 = vmatprep.subr.mxu0 0.0
        %3184 = vmatpush1.xpose.msra.mxu0 0.0
        %3185 = vmatprep.subr.mxu0 0.0
        %3186 = vmatpush1.xpose.msra.mxu0 0.0
        %3187 = vmatprep.subr.mxu0 0.0
        %3188 = vmatpush1.xpose.msra.mxu0 0.0
        %3189 = vmatprep.subr.mxu0 0.0
        %3190 = vmatpush1.xpose.msra.mxu0 0.0
        %3191 = vmatprep.subr.mxu0 0.0
        %3192 = vmatpush1.xpose.msra.mxu0 0.0
        %3193 = vmatprep.subr.mxu0 0.0
        %3194 = vmatpush1.xpose.msra.mxu0 0.0
        %3195 = vmatprep.subr.mxu0 0.0
        %3196 = vmatpush1.xpose.msra.mxu0 0.0
        %3197 = vmatprep.subr.mxu0 0.0
        %3198 = vmatpush1.xpose.msra.mxu0 0.0
        %3199 = vmatprep.subr.mxu0 0.0
        %3200 = vmatpush1.xpose.msra.mxu0 %v3167
        %3201 = vmatprep.subr.mxu0 0.0
        %3202 = vmatpush2.xpose.msra.mxu0 0.0
        %3203 = vmatprep.subr.mxu0 0.0
        %3204 = vmatpush2.xpose.msra.mxu0 0.0
        %3205 = vmatprep.subr.mxu0 0.0
        %3206 = vmatpush2.xpose.msra.mxu0 0.0
        %3207 = vmatprep.subr.mxu0 0.0
        %3208 = vmatpush2.xpose.msra.mxu0 0.0
        %3209 = vmatprep.subr.mxu0 0.0
        %3210 = vmatpush2.xpose.msra.mxu0 0.0
        %3211 = vmatprep.subr.mxu0 0.0
        %3212 = vmatpush2.xpose.msra.mxu0 0.0
        %3213 = vmatprep.subr.mxu0 0.0
        %3214 = vmatpush2.xpose.msra.mxu0 0.0
        %3215 = vmatprep.subr.mxu0 0.0
        %3216 = vmatpush2.xpose.msra.mxu0 0.0
        %3217 = vmatprep.subr.mxu0 0.0
        %3218 = vmatpush2.xpose.msra.mxu0 0.0
        %3219 = vmatprep.subr.mxu0 0.0
        %3220 = vmatpush2.xpose.msra.mxu0 0.0
        %3221 = vmatprep.subr.mxu0 0.0
        %3222 = vmatpush2.xpose.msra.mxu0 0.0
        %3223 = vmatprep.subr.mxu0 0.0
        %3224 = vmatpush2.xpose.msra.mxu0 0.0
        %3225 = vmatprep.subr.mxu0 0.0
        %3226 = vmatpush2.xpose.msra.mxu0 0.0
        %3227 = vmatprep.subr.mxu0 0.0
        %3228 = vmatpush2.xpose.msra.mxu0 0.0
        %3229 = vmatprep.subr.mxu0 0.0
        %3230 = vmatpush2.xpose.msra.mxu0 0.0
        %3231 = vmatprep.subr.mxu0 0.0
        %3232 = vmatpush2.xpose.msra.mxu0 0.0
        %3233 = vmatprep.mubr.f32.mxu0 0.0
        %3234 = vmatmul.mubr.f32.gmra.mxu0 %v3165
        %v3235 = vpop.f32.mrf.mxu0
        %v3236 = vadd.f32 %v1880, %v3235
        %v3237 = vpop.f32.mrf.mxu0
        %3238 = vdwg.mxu0
        %v3239 = vsel %vm770, %v3236, -inf
        %3240 = vmax.xlane.f32.xlu0 %v3239
        %v3241 = vpop.xlane.xlu0 %3240
        %v3242 = vsub.f32 %v3236, %v3241
        %v3243 = vmul.f32 %v3242, 1.442695
        %v3244 = vpow.pop %v3243
        %v3245 = vsel %vm770, %v3244, 0.0
        %3246 = vadd.xlane.f32.xlu0 %v3245
        %v3247 = vpop.xlane.xlu0 %3246
        %v3248 = vrcp.pop %v3247
        %v3249 = vmul.f32 %v3244, %v3248
        %3250 = vrot.lane.b32.xlu0 %v2995, 88
        %v3251 = vpop.permute.xlu0 %3250
        %v3254 = vsel %vm770, %v3249, 0
        %3256 = vmatprep.subr.mxu0 0.0
        %3257 = vmatpush1.msra.mxu0 0.0
        %3258 = vmatprep.subr.mxu0 0.0
        %3259 = vmatpush1.msra.mxu0 0.0
        %3260 = vmatprep.subr.mxu0 0.0
        %3261 = vmatpush1.msra.mxu0 0.0
        %3262 = vmatprep.subr.mxu0 0.0
        %3263 = vmatpush1.msra.mxu0 0.0
        %3264 = vmatprep.subr.mxu0 0.0
        %3265 = vmatpush1.msra.mxu0 0.0
        %3266 = vmatprep.subr.mxu0 0.0
        %3267 = vmatpush1.msra.mxu0 0.0
        %3268 = vmatprep.subr.mxu0 0.0
        %3269 = vmatpush1.msra.mxu0 0.0
        %3270 = vmatprep.subr.mxu0 0.0
        %3271 = vmatpush1.msra.mxu0 0.0
        %3272 = vmatprep.subr.mxu0 0.0
        %3273 = vmatpush1.msra.mxu0 0.0
        %3274 = vmatprep.subr.mxu0 0.0
        %3275 = vmatpush1.msra.mxu0 0.0
        %3276 = vmatprep.subr.mxu0 0.0
        %3277 = vmatpush1.msra.mxu0 0.0
        %3278 = vmatprep.subr.mxu0 0.0
        %3279 = vmatpush1.msra.mxu0 0.0
        %3280 = vmatprep.subr.mxu0 0.0
        %3281 = vmatpush1.msra.mxu0 0.0
        %3282 = vmatprep.subr.mxu0 0.0
        %3283 = vmatpush1.msra.mxu0 0.0
        %3284 = vmatprep.subr.mxu0 0.0
        %3285 = vmatpush1.msra.mxu0 0.0
        %3286 = vmatprep.subr.mxu0 0.0
        %3287 = vmatpush1.msra.mxu0 %v3251
        %3288 = vmatprep.subr.mxu0 0.0
        %3289 = vmatpush2.msra.mxu0 0.0
        %3290 = vmatprep.subr.mxu0 0.0
        %3291 = vmatpush2.msra.mxu0 0.0
        %3292 = vmatprep.subr.mxu0 0.0
        %3293 = vmatpush2.msra.mxu0 0.0
        %3294 = vmatprep.subr.mxu0 0.0
        %3295 = vmatpush2.msra.mxu0 0.0
        %3296 = vmatprep.subr.mxu0 0.0
        %3297 = vmatpush2.msra.mxu0 0.0
        %3298 = vmatprep.subr.mxu0 0.0
        %3299 = vmatpush2.msra.mxu0 0.0
        %3300 = vmatprep.subr.mxu0 0.0
        %3301 = vmatpush2.msra.mxu0 0.0
        %3302 = vmatprep.subr.mxu0 0.0
        %3303 = vmatpush2.msra.mxu0 0.0
        %3304 = vmatprep.subr.mxu0 0.0
        %3305 = vmatpush2.msra.mxu0 0.0
        %3306 = vmatprep.subr.mxu0 0.0
        %3307 = vmatpush2.msra.mxu0 0.0
        %3308 = vmatprep.subr.mxu0 0.0
        %3309 = vmatpush2.msra.mxu0 0.0
        %3310 = vmatprep.subr.mxu0 0.0
        %3311 = vmatpush2.msra.mxu0 0.0
        %3312 = vmatprep.subr.mxu0 0.0
        %3313 = vmatpush2.msra.mxu0 0.0
        %3314 = vmatprep.subr.mxu0 0.0
        %3315 = vmatpush2.msra.mxu0 0.0
        %3316 = vmatprep.subr.mxu0 0.0
        %3317 = vmatpush2.msra.mxu0 0.0
        %3318 = vmatprep.subr.mxu0 0.0
        %3319 = vmatpush2.msra.mxu0 0.0
        %3320 = vmatprep.mubr.f32.mxu0 0.0
        %3321 = vmatmul.mubr.f32.gmra.mxu0 %v3254
        %v3322 = vpop.f32.mrf.mxu0
        %v3323 = vadd.f32 0.0, %v3322
        %v3324 = vpop.f32.mrf.mxu0
        %3325 = vdwg.mxu0
        %3326 = vrot.lane.b32.xlu0 %v2923, 112
        %v3327 = vpop.permute.xlu0 %3326
        %3328 = vrot.lane.b32.xlu0 %v2995, 112
        %v3329 = vpop.permute.xlu0 %3328
        %v3330 = vsel %vm770, %v3327, 0
        %v3332 = vsel %vm770, %v3329, 0
        %3334 = vmatprep.subr.mxu0 0.0
        %3335 = vmatpush1.xpose.msra.mxu0 0.0
        %3336 = vmatprep.subr.mxu0 0.0
        %3337 = vmatpush1.xpose.msra.mxu0 0.0
        %3338 = vmatprep.subr.mxu0 0.0
        %3339 = vmatpush1.xpose.msra.mxu0 0.0
        %3340 = vmatprep.subr.mxu0 0.0
        %3341 = vmatpush1.xpose.msra.mxu0 0.0
        %3342 = vmatprep.subr.mxu0 0.0
        %3343 = vmatpush1.xpose.msra.mxu0 0.0
        %3344 = vmatprep.subr.mxu0 0.0
        %3345 = vmatpush1.xpose.msra.mxu0 0.0
        %3346 = vmatprep.subr.mxu0 0.0
        %3347 = vmatpush1.xpose.msra.mxu0 0.0
        %3348 = vmatprep.subr.mxu0 0.0
        %3349 = vmatpush1.xpose.msra.mxu0 0.0
        %3350 = vmatprep.subr.mxu0 0.0
        %3351 = vmatpush1.xpose.msra.mxu0 0.0
        %3352 = vmatprep.subr.mxu0 0.0
        %3353 = vmatpush1.xpose.msra.mxu0 0.0
        %3354 = vmatprep.subr.mxu0 0.0
        %3355 = vmatpush1.xpose.msra.mxu0 0.0
        %3356 = vmatprep.subr.mxu0 0.0
        %3357 = vmatpush1.xpose.msra.mxu0 0.0
        %3358 = vmatprep.subr.mxu0 0.0
        %3359 = vmatpush1.xpose.msra.mxu0 0.0
        %3360 = vmatprep.subr.mxu0 0.0
        %3361 = vmatpush1.xpose.msra.mxu0 0.0
        %3362 = vmatprep.subr.mxu0 0.0
        %3363 = vmatpush1.xpose.msra.mxu0 0.0
        %3364 = vmatprep.subr.mxu0 0.0
        %3365 = vmatpush1.xpose.msra.mxu0 %v3332
        %3366 = vmatprep.subr.mxu0 0.0
        %3367 = vmatpush2.xpose.msra.mxu0 0.0
        %3368 = vmatprep.subr.mxu0 0.0
        %3369 = vmatpush2.xpose.msra.mxu0 0.0
        %3370 = vmatprep.subr.mxu0 0.0
        %3371 = vmatpush2.xpose.msra.mxu0 0.0
        %3372 = vmatprep.subr.mxu0 0.0
        %3373 = vmatpush2.xpose.msra.mxu0 0.0
        %3374 = vmatprep.subr.mxu0 0.0
        %3375 = vmatpush2.xpose.msra.mxu0 0.0
        %3376 = vmatprep.subr.mxu0 0.0
        %3377 = vmatpush2.xpose.msra.mxu0 0.0
        %3378 = vmatprep.subr.mxu0 0.0
        %3379 = vmatpush2.xpose.msra.mxu0 0.0
        %3380 = vmatprep.subr.mxu0 0.0
        %3381 = vmatpush2.xpose.msra.mxu0 0.0
        %3382 = vmatprep.subr.mxu0 0.0
        %3383 = vmatpush2.xpose.msra.mxu0 0.0
        %3384 = vmatprep.subr.mxu0 0.0
        %3385 = vmatpush2.xpose.msra.mxu0 0.0
        %3386 = vmatprep.subr.mxu0 0.0
        %3387 = vmatpush2.xpose.msra.mxu0 0.0
        %3388 = vmatprep.subr.mxu0 0.0
        %3389 = vmatpush2.xpose.msra.mxu0 0.0
        %3390 = vmatprep.subr.mxu0 0.0
        %3391 = vmatpush2.xpose.msra.mxu0 0.0
        %3392 = vmatprep.subr.mxu0 0.0
        %3393 = vmatpush2.xpose.msra.mxu0 0.0
        %3394 = vmatprep.subr.mxu0 0.0
        %3395 = vmatpush2.xpose.msra.mxu0 0.0
        %3396 = vmatprep.subr.mxu0 0.0
        %3397 = vmatpush2.xpose.msra.mxu0 0.0
        %3398 = vmatprep.mubr.f32.mxu0 0.0
        %3399 = vmatmul.mubr.f32.gmra.mxu0 %v3330
        %v3400 = vpop.f32.mrf.mxu0
        %v3401 = vadd.f32 %v1880, %v3400
        %v3402 = vpop.f32.mrf.mxu0
        %3403 = vdwg.mxu0
        %v3404 = vsel %vm770, %v3401, -inf
        %3405 = vmax.xlane.f32.xlu0 %v3404
        %v3406 = vpop.xlane.xlu0 %3405
        %v3407 = vsub.f32 %v3401, %v3406
        %v3408 = vmul.f32 %v3407, 1.442695
        %v3409 = vpow.pop %v3408
        %v3410 = vsel %vm770, %v3409, 0.0
        %3411 = vadd.xlane.f32.xlu0 %v3410
        %v3412 = vpop.xlane.xlu0 %3411
        %v3413 = vrcp.pop %v3412
        %v3414 = vmul.f32 %v3409, %v3413
        %3415 = vrot.lane.b32.xlu0 %v2995, 80
        %v3416 = vpop.permute.xlu0 %3415
        %v3419 = vsel %vm770, %v3414, 0
        %3421 = vmatprep.subr.mxu0 0.0
        %3422 = vmatpush1.msra.mxu0 0.0
        %3423 = vmatprep.subr.mxu0 0.0
        %3424 = vmatpush1.msra.mxu0 0.0
        %3425 = vmatprep.subr.mxu0 0.0
        %3426 = vmatpush1.msra.mxu0 0.0
        %3427 = vmatprep.subr.mxu0 0.0
        %3428 = vmatpush1.msra.mxu0 0.0
        %3429 = vmatprep.subr.mxu0 0.0
        %3430 = vmatpush1.msra.mxu0 0.0
        %3431 = vmatprep.subr.mxu0 0.0
        %3432 = vmatpush1.msra.mxu0 0.0
        %3433 = vmatprep.subr.mxu0 0.0
        %3434 = vmatpush1.msra.mxu0 0.0
        %3435 = vmatprep.subr.mxu0 0.0
        %3436 = vmatpush1.msra.mxu0 0.0
        %3437 = vmatprep.subr.mxu0 0.0
        %3438 = vmatpush1.msra.mxu0 0.0
        %3439 = vmatprep.subr.mxu0 0.0
        %3440 = vmatpush1.msra.mxu0 0.0
        %3441 = vmatprep.subr.mxu0 0.0
        %3442 = vmatpush1.msra.mxu0 0.0
        %3443 = vmatprep.subr.mxu0 0.0
        %3444 = vmatpush1.msra.mxu0 0.0
        %3445 = vmatprep.subr.mxu0 0.0
        %3446 = vmatpush1.msra.mxu0 0.0
        %3447 = vmatprep.subr.mxu0 0.0
        %3448 = vmatpush1.msra.mxu0 0.0
        %3449 = vmatprep.subr.mxu0 0.0
        %3450 = vmatpush1.msra.mxu0 0.0
        %3451 = vmatprep.subr.mxu0 0.0
        %3452 = vmatpush1.msra.mxu0 %v3416
        %3453 = vmatprep.subr.mxu0 0.0
        %3454 = vmatpush2.msra.mxu0 0.0
        %3455 = vmatprep.subr.mxu0 0.0
        %3456 = vmatpush2.msra.mxu0 0.0
        %3457 = vmatprep.subr.mxu0 0.0
        %3458 = vmatpush2.msra.mxu0 0.0
        %3459 = vmatprep.subr.mxu0 0.0
        %3460 = vmatpush2.msra.mxu0 0.0
        %3461 = vmatprep.subr.mxu0 0.0
        %3462 = vmatpush2.msra.mxu0 0.0
        %3463 = vmatprep.subr.mxu0 0.0
        %3464 = vmatpush2.msra.mxu0 0.0
        %3465 = vmatprep.subr.mxu0 0.0
        %3466 = vmatpush2.msra.mxu0 0.0
        %3467 = vmatprep.subr.mxu0 0.0
        %3468 = vmatpush2.msra.mxu0 0.0
        %3469 = vmatprep.subr.mxu0 0.0
        %3470 = vmatpush2.msra.mxu0 0.0
        %3471 = vmatprep.subr.mxu0 0.0
        %3472 = vmatpush2.msra.mxu0 0.0
        %3473 = vmatprep.subr.mxu0 0.0
        %3474 = vmatpush2.msra.mxu0 0.0
        %3475 = vmatprep.subr.mxu0 0.0
        %3476 = vmatpush2.msra.mxu0 0.0
        %3477 = vmatprep.subr.mxu0 0.0
        %3478 = vmatpush2.msra.mxu0 0.0
        %3479 = vmatprep.subr.mxu0 0.0
        %3480 = vmatpush2.msra.mxu0 0.0
        %3481 = vmatprep.subr.mxu0 0.0
        %3482 = vmatpush2.msra.mxu0 0.0
        %3483 = vmatprep.subr.mxu0 0.0
        %3484 = vmatpush2.msra.mxu0 0.0
        %3485 = vmatprep.mubr.f32.mxu0 0.0
        %3486 = vmatmul.mubr.f32.gmra.mxu0 %v3419
        %v3487 = vpop.f32.mrf.mxu0
        %v3488 = vadd.f32 0.0, %v3487
        %v3489 = vpop.f32.mrf.mxu0
        %3490 = vdwg.mxu0
        %3491 = vrot.lane.b32.xlu0 %v2923, 104
        %v3492 = vpop.permute.xlu0 %3491
        %3493 = vrot.lane.b32.xlu0 %v2995, 104
        %v3494 = vpop.permute.xlu0 %3493
        %v3495 = vsel %vm770, %v3492, 0
        %v3497 = vsel %vm770, %v3494, 0
        %3499 = vmatprep.subr.mxu0 0.0
        %3500 = vmatpush1.xpose.msra.mxu0 0.0
        %3501 = vmatprep.subr.mxu0 0.0
        %3502 = vmatpush1.xpose.msra.mxu0 0.0
        %3503 = vmatprep.subr.mxu0 0.0
        %3504 = vmatpush1.xpose.msra.mxu0 0.0
        %3505 = vmatprep.subr.mxu0 0.0
        %3506 = vmatpush1.xpose.msra.mxu0 0.0
        %3507 = vmatprep.subr.mxu0 0.0
        %3508 = vmatpush1.xpose.msra.mxu0 0.0
        %3509 = vmatprep.subr.mxu0 0.0
        %3510 = vmatpush1.xpose.msra.mxu0 0.0
        %3511 = vmatprep.subr.mxu0 0.0
        %3512 = vmatpush1.xpose.msra.mxu0 0.0
        %3513 = vmatprep.subr.mxu0 0.0
        %3514 = vmatpush1.xpose.msra.mxu0 0.0
        %3515 = vmatprep.subr.mxu0 0.0
        %3516 = vmatpush1.xpose.msra.mxu0 0.0
        %3517 = vmatprep.subr.mxu0 0.0
        %3518 = vmatpush1.xpose.msra.mxu0 0.0
        %3519 = vmatprep.subr.mxu0 0.0
        %3520 = vmatpush1.xpose.msra.mxu0 0.0
        %3521 = vmatprep.subr.mxu0 0.0
        %3522 = vmatpush1.xpose.msra.mxu0 0.0
        %3523 = vmatprep.subr.mxu0 0.0
        %3524 = vmatpush1.xpose.msra.mxu0 0.0
        %3525 = vmatprep.subr.mxu0 0.0
        %3526 = vmatpush1.xpose.msra.mxu0 0.0
        %3527 = vmatprep.subr.mxu0 0.0
        %3528 = vmatpush1.xpose.msra.mxu0 0.0
        %3529 = vmatprep.subr.mxu0 0.0
        %3530 = vmatpush1.xpose.msra.mxu0 %v3497
        %3531 = vmatprep.subr.mxu0 0.0
        %3532 = vmatpush2.xpose.msra.mxu0 0.0
        %3533 = vmatprep.subr.mxu0 0.0
        %3534 = vmatpush2.xpose.msra.mxu0 0.0
        %3535 = vmatprep.subr.mxu0 0.0
        %3536 = vmatpush2.xpose.msra.mxu0 0.0
        %3537 = vmatprep.subr.mxu0 0.0
        %3538 = vmatpush2.xpose.msra.mxu0 0.0
        %3539 = vmatprep.subr.mxu0 0.0
        %3540 = vmatpush2.xpose.msra.mxu0 0.0
        %3541 = vmatprep.subr.mxu0 0.0
        %3542 = vmatpush2.xpose.msra.mxu0 0.0
        %3543 = vmatprep.subr.mxu0 0.0
        %3544 = vmatpush2.xpose.msra.mxu0 0.0
        %3545 = vmatprep.subr.mxu0 0.0
        %3546 = vmatpush2.xpose.msra.mxu0 0.0
        %3547 = vmatprep.subr.mxu0 0.0
        %3548 = vmatpush2.xpose.msra.mxu0 0.0
        %3549 = vmatprep.subr.mxu0 0.0
        %3550 = vmatpush2.xpose.msra.mxu0 0.0
        %3551 = vmatprep.subr.mxu0 0.0
        %3552 = vmatpush2.xpose.msra.mxu0 0.0
        %3553 = vmatprep.subr.mxu0 0.0
        %3554 = vmatpush2.xpose.msra.mxu0 0.0
        %3555 = vmatprep.subr.mxu0 0.0
        %3556 = vmatpush2.xpose.msra.mxu0 0.0
        %3557 = vmatprep.subr.mxu0 0.0
        %3558 = vmatpush2.xpose.msra.mxu0 0.0
        %3559 = vmatprep.subr.mxu0 0.0
        %3560 = vmatpush2.xpose.msra.mxu0 0.0
        %3561 = vmatprep.subr.mxu0 0.0
        %3562 = vmatpush2.xpose.msra.mxu0 0.0
        %3563 = vmatprep.mubr.f32.mxu0 0.0
        %3564 = vmatmul.mubr.f32.gmra.mxu0 %v3495
        %v3565 = vpop.f32.mrf.mxu0
        %v3566 = vadd.f32 %v1880, %v3565
        %v3567 = vpop.f32.mrf.mxu0
        %3568 = vdwg.mxu0
        %v3569 = vsel %vm770, %v3566, -inf
        %3570 = vmax.xlane.f32.xlu0 %v3569
        %v3571 = vpop.xlane.xlu0 %3570
        %v3572 = vsub.f32 %v3566, %v3571
        %v3573 = vmul.f32 %v3572, 1.442695
        %v3574 = vpow.pop %v3573
        %v3575 = vsel %vm770, %v3574, 0.0
        %3576 = vadd.xlane.f32.xlu0 %v3575
        %v3577 = vpop.xlane.xlu0 %3576
        %v3578 = vrcp.pop %v3577
        %v3579 = vmul.f32 %v3574, %v3578
        %3580 = vrot.lane.b32.xlu0 %v2995, 72
        %v3581 = vpop.permute.xlu0 %3580
        %v3584 = vsel %vm770, %v3579, 0
        %3586 = vmatprep.subr.mxu0 0.0
        %3587 = vmatpush1.msra.mxu0 0.0
        %3588 = vmatprep.subr.mxu0 0.0
        %3589 = vmatpush1.msra.mxu0 0.0
        %3590 = vmatprep.subr.mxu0 0.0
        %3591 = vmatpush1.msra.mxu0 0.0
        %3592 = vmatprep.subr.mxu0 0.0
        %3593 = vmatpush1.msra.mxu0 0.0
        %3594 = vmatprep.subr.mxu0 0.0
        %3595 = vmatpush1.msra.mxu0 0.0
        %3596 = vmatprep.subr.mxu0 0.0
        %3597 = vmatpush1.msra.mxu0 0.0
        %3598 = vmatprep.subr.mxu0 0.0
        %3599 = vmatpush1.msra.mxu0 0.0
        %3600 = vmatprep.subr.mxu0 0.0
        %3601 = vmatpush1.msra.mxu0 0.0
        %3602 = vmatprep.subr.mxu0 0.0
        %3603 = vmatpush1.msra.mxu0 0.0
        %3604 = vmatprep.subr.mxu0 0.0
        %3605 = vmatpush1.msra.mxu0 0.0
        %3606 = vmatprep.subr.mxu0 0.0
        %3607 = vmatpush1.msra.mxu0 0.0
        %3608 = vmatprep.subr.mxu0 0.0
        %3609 = vmatpush1.msra.mxu0 0.0
        %3610 = vmatprep.subr.mxu0 0.0
        %3611 = vmatpush1.msra.mxu0 0.0
        %3612 = vmatprep.subr.mxu0 0.0
        %3613 = vmatpush1.msra.mxu0 0.0
        %3614 = vmatprep.subr.mxu0 0.0
        %3615 = vmatpush1.msra.mxu0 0.0
        %3616 = vmatprep.subr.mxu0 0.0
        %3617 = vmatpush1.msra.mxu0 %v3581
        %3618 = vmatprep.subr.mxu0 0.0
        %3619 = vmatpush2.msra.mxu0 0.0
        %3620 = vmatprep.subr.mxu0 0.0
        %3621 = vmatpush2.msra.mxu0 0.0
        %3622 = vmatprep.subr.mxu0 0.0
        %3623 = vmatpush2.msra.mxu0 0.0
        %3624 = vmatprep.subr.mxu0 0.0
        %3625 = vmatpush2.msra.mxu0 0.0
        %3626 = vmatprep.subr.mxu0 0.0
        %3627 = vmatpush2.msra.mxu0 0.0
        %3628 = vmatprep.subr.mxu0 0.0
        %3629 = vmatpush2.msra.mxu0 0.0
        %3630 = vmatprep.subr.mxu0 0.0
        %3631 = vmatpush2.msra.mxu0 0.0
        %3632 = vmatprep.subr.mxu0 0.0
        %3633 = vmatpush2.msra.mxu0 0.0
        %3634 = vmatprep.subr.mxu0 0.0
        %3635 = vmatpush2.msra.mxu0 0.0
        %3636 = vmatprep.subr.mxu0 0.0
        %3637 = vmatpush2.msra.mxu0 0.0
        %3638 = vmatprep.subr.mxu0 0.0
        %3639 = vmatpush2.msra.mxu0 0.0
        %3640 = vmatprep.subr.mxu0 0.0
        %3641 = vmatpush2.msra.mxu0 0.0
        %3642 = vmatprep.subr.mxu0 0.0
        %3643 = vmatpush2.msra.mxu0 0.0
        %3644 = vmatprep.subr.mxu0 0.0
        %3645 = vmatpush2.msra.mxu0 0.0
        %3646 = vmatprep.subr.mxu0 0.0
        %3647 = vmatpush2.msra.mxu0 0.0
        %3648 = vmatprep.subr.mxu0 0.0
        %3649 = vmatpush2.msra.mxu0 0.0
        %3650 = vmatprep.mubr.f32.mxu0 0.0
        %3651 = vmatmul.mubr.f32.gmra.mxu0 %v3584
        %v3652 = vpop.f32.mrf.mxu0
        %v3653 = vadd.f32 0.0, %v3652
        %v3654 = vpop.f32.mrf.mxu0
        %3655 = vdwg.mxu0
        %3657 = vrot.lane.b32.xlu0 %v3323, 8
        %v3658 = vpop.permute.xlu0 %3657
        %3661 = vrot.lane.b32.xlu0 %v3488, 16
        %v3662 = vpop.permute.xlu0 %3661
        %3665 = vrot.lane.b32.xlu0 %v3653, 24
        %v3666 = vpop.permute.xlu0 %3665
        %v3668 = vsel %vm770, %v3158, %v3658
        %v3669 = vsel %vm1442, %v3668, %v3662
        %v3670 = vsel %vm1444, %v3669, %v3666
        %v3671 = vlaneseq
        %v3672 = vshrl.u32 %v3671, 7
        %v3673 = vsub.s32 2, %v3672
        %v3674 = vrot.slane %v2844, %v3673
        %v3676 = vsel %vm612, %v3670, 0
        %3678 = vmatprep.subr.mxu0 0.0
        %3679 = vmatpush1.msra.mxu0 0.0
        %3680 = vmatprep.subr.mxu0 0.0
        %3681 = vmatpush1.msra.mxu0 0.0
        %3682 = vmatprep.subr.mxu0 0.0
        %3683 = vmatpush1.msra.mxu0 0.0
        %3684 = vmatprep.subr.mxu0 0.0
        %3685 = vmatpush1.msra.mxu0 0.0
        %3686 = vmatprep.subr.mxu0 0.0
        %3687 = vmatpush1.msra.mxu0 0.0
        %3688 = vmatprep.subr.mxu0 0.0
        %3689 = vmatpush1.msra.mxu0 0.0
        %3690 = vmatprep.subr.mxu0 0.0
        %3691 = vmatpush1.msra.mxu0 0.0
        %3692 = vmatprep.subr.mxu0 0.0
        %3693 = vmatpush1.msra.mxu0 0.0
        %3694 = vmatprep.subr.mxu0 0.0
        %3695 = vmatpush1.msra.mxu0 0.0
        %3696 = vmatprep.subr.mxu0 0.0
        %3697 = vmatpush1.msra.mxu0 0.0
        %3698 = vmatprep.subr.mxu0 0.0
        %3699 = vmatpush1.msra.mxu0 0.0
        %3700 = vmatprep.subr.mxu0 0.0
        %3701 = vmatpush1.msra.mxu0 0.0
        %3702 = vmatprep.subr.mxu0 0.0
        %3703 = vmatpush1.msra.mxu0 %v2828
        %3704 = vmatprep.subr.mxu0 0.0
        %3705 = vmatpush1.msra.mxu0 %v2827
        %3706 = vmatprep.subr.mxu0 0.0
        %3707 = vmatpush1.msra.mxu0 %v2826
        %3708 = vmatprep.subr.mxu0 0.0
        %3709 = vmatpush1.msra.mxu0 %v2825
        %3710 = vmatprep.subr.mxu0 0.0
        %3711 = vmatpush2.msra.mxu0 0.0
        %3712 = vmatprep.subr.mxu0 0.0
        %3713 = vmatpush2.msra.mxu0 0.0
        %3714 = vmatprep.subr.mxu0 0.0
        %3715 = vmatpush2.msra.mxu0 0.0
        %3716 = vmatprep.subr.mxu0 0.0
        %3717 = vmatpush2.msra.mxu0 0.0
        %3718 = vmatprep.subr.mxu0 0.0
        %3719 = vmatpush2.msra.mxu0 0.0
        %3720 = vmatprep.subr.mxu0 0.0
        %3721 = vmatpush2.msra.mxu0 0.0
        %3722 = vmatprep.subr.mxu0 0.0
        %3723 = vmatpush2.msra.mxu0 0.0
        %3724 = vmatprep.subr.mxu0 0.0
        %3725 = vmatpush2.msra.mxu0 0.0
        %3726 = vmatprep.subr.mxu0 0.0
        %3727 = vmatpush2.msra.mxu0 0.0
        %3728 = vmatprep.subr.mxu0 0.0
        %3729 = vmatpush2.msra.mxu0 0.0
        %3730 = vmatprep.subr.mxu0 0.0
        %3731 = vmatpush2.msra.mxu0 0.0
        %3732 = vmatprep.subr.mxu0 0.0
        %3733 = vmatpush2.msra.mxu0 0.0
        %3734 = vmatprep.subr.mxu0 0.0
        %3735 = vmatpush2.msra.mxu0 0.0
        %3736 = vmatprep.subr.mxu0 0.0
        %3737 = vmatpush2.msra.mxu0 0.0
        %3738 = vmatprep.subr.mxu0 0.0
        %3739 = vmatpush2.msra.mxu0 0.0
        %3740 = vmatprep.subr.mxu0 0.0
        %3741 = vmatpush2.msra.mxu0 0.0
        %3742 = vmatprep.mubr.f32.mxu0 0.0
        %3743 = vmatmul.mubr.f32.gmra.mxu0 %v3676
        %v3744 = vpop.f32.mrf.mxu0
        %v3745 = vadd.f32 %v3674, %v3744
        %v3746 = vpop.f32.mrf.mxu0
        %3747 = vdwg.mxu0
        %v3748 = vadd.f32 %v3745, %v1734
        %v3749 = vsel %vm612, %v3748, 0.0
        %3750 = vadd.xlane.f32.xlu0 %v3749
        %v3751 = vpop.xlane.xlu0 %3750
        %v3752 = vmul.f32 %v3751, %v1527
        %v3753 = vsub.f32 %v3748, %v3752
        %v3754 = vmul.f32 %v3753, %v3753
        %v3755 = vsel %vm612, %v3754, 0.0
        %3756 = vadd.xlane.f32.xlu0 %v3755
        %v3757 = vpop.xlane.xlu0 %3756
        %v3758 = vmul.f32 %v3757, %v1527
        %v3759 = vadd.f32 %v3758, 1e-05
        %v3760 = vrsqrt.pop %v3759
        %v3761 = vmul.f32 %v3753, %v3760
        %v3762 = vlaneseq
        %v3763 = vshrl.u32 %v3762, 7
        %v3764 = vsub.s32 3, %v3763
        %v3765 = vrot.slane %v2844, %v3764
        %v3766 = vmul.f32 %v3761, %v3765
        %v3767 = vlaneseq
        %v3768 = vshrl.u32 %v3767, 7
        %v3769 = vsub.s32 4, %v3768
        %v3770 = vrot.slane %v2844, %v3769
        %v3771 = vadd.f32 %v3766, %v3770
        %v3772 = vmul.f32 %v3771, %v1551
        %v3773 = vlaneseq
        %v3774 = vshrl.u32 %v3773, 7
        %v3775 = vsub.s32 5, %v3774
        %v3776 = vrot.slane %v2844, %v3775
        %v3778 = vsel %vm612, %v3772, 0
        %3780 = vmatprep.subr.mxu0 0.0
        %3781 = vmatpush1.msra.mxu0 0.0
        %3782 = vmatprep.subr.mxu0 0.0
        %3783 = vmatpush1.msra.mxu0 0.0
        %3784 = vmatprep.subr.mxu0 0.0
        %3785 = vmatpush1.msra.mxu0 0.0
        %3786 = vmatprep.subr.mxu0 0.0
        %3787 = vmatpush1.msra.mxu0 0.0
        %3788 = vmatprep.subr.mxu0 0.0
        %3789 = vmatpush1.msra.mxu0 0.0
        %3790 = vmatprep.subr.mxu0 0.0
        %3791 = vmatpush1.msra.mxu0 0.0
        %3792 = vmatprep.subr.mxu0 0.0
        %3793 = vmatpush1.msra.mxu0 0.0
        %3794 = vmatprep.subr.mxu0 0.0
        %3795 = vmatpush1.msra.mxu0 0.0
        %3796 = vmatprep.subr.mxu0 0.0
        %3797 = vmatpush1.msra.mxu0 0.0
        %3798 = vmatprep.subr.mxu0 0.0
        %3799 = vmatpush1.msra.mxu0 0.0
        %3800 = vmatprep.subr.mxu0 0.0
        %3801 = vmatpush1.msra.mxu0 0.0
        %3802 = vmatprep.subr.mxu0 0.0
        %3803 = vmatpush1.msra.mxu0 0.0
        %3804 = vmatprep.subr.mxu0 0.0
        %3805 = vmatpush1.msra.mxu0 %v2833
        %3806 = vmatprep.subr.mxu0 0.0
        %3807 = vmatpush1.msra.mxu0 %v2832
        %3808 = vmatprep.subr.mxu0 0.0
        %3809 = vmatpush1.msra.mxu0 %v2831
        %3810 = vmatprep.subr.mxu0 0.0
        %3811 = vmatpush1.msra.mxu0 %v2830
        %3812 = vmatprep.subr.mxu0 0.0
        %3813 = vmatpush2.msra.mxu0 0.0
        %3814 = vmatprep.subr.mxu0 0.0
        %3815 = vmatpush2.msra.mxu0 0.0
        %3816 = vmatprep.subr.mxu0 0.0
        %3817 = vmatpush2.msra.mxu0 0.0
        %3818 = vmatprep.subr.mxu0 0.0
        %3819 = vmatpush2.msra.mxu0 0.0
        %3820 = vmatprep.subr.mxu0 0.0
        %3821 = vmatpush2.msra.mxu0 0.0
        %3822 = vmatprep.subr.mxu0 0.0
        %3823 = vmatpush2.msra.mxu0 0.0
        %3824 = vmatprep.subr.mxu0 0.0
        %3825 = vmatpush2.msra.mxu0 0.0
        %3826 = vmatprep.subr.mxu0 0.0
        %3827 = vmatpush2.msra.mxu0 0.0
        %3828 = vmatprep.subr.mxu0 0.0
        %3829 = vmatpush2.msra.mxu0 0.0
        %3830 = vmatprep.subr.mxu0 0.0
        %3831 = vmatpush2.msra.mxu0 0.0
        %3832 = vmatprep.subr.mxu0 0.0
        %3833 = vmatpush2.msra.mxu0 0.0
        %3834 = vmatprep.subr.mxu0 0.0
        %3835 = vmatpush2.msra.mxu0 0.0
        %3836 = vmatprep.subr.mxu0 0.0
        %3837 = vmatpush2.msra.mxu0 0.0
        %3838 = vmatprep.subr.mxu0 0.0
        %3839 = vmatpush2.msra.mxu0 0.0
        %3840 = vmatprep.subr.mxu0 0.0
        %3841 = vmatpush2.msra.mxu0 0.0
        %3842 = vmatprep.subr.mxu0 0.0
        %3843 = vmatpush2.msra.mxu0 0.0
        %3844 = vmatprep.mubr.f32.mxu0 0.0
        %3845 = vmatmul.mubr.f32.gmra.mxu0 %v3778
        %v3846 = vpop.f32.mrf.mxu0
        %v3847 = vadd.f32 %v3776, %v3846
        %v3848 = vpop.f32.mrf.mxu0
        %3849 = vdwg.mxu0
        %v3850 = vmax.f32 %v3847, 0.0
        %v3851 = vlaneseq
        %v3852 = vshrl.u32 %v3851, 7
        %v3853 = vsub.s32 6, %v3852
        %v3854 = vrot.slane %v2844, %v3853
        %v3856 = vsel %vm1636, %v3850, 0
        %3858 = vmatprep.subr.mxu0 0.0
        %3859 = vmatpush1.msra.mxu0 0.0
        %3860 = vmatprep.subr.mxu0 0.0
        %3861 = vmatpush1.msra.mxu0 0.0
        %3862 = vmatprep.subr.mxu0 0.0
        %3863 = vmatpush1.msra.mxu0 0.0
        %3864 = vmatprep.subr.mxu0 0.0
        %3865 = vmatpush1.msra.mxu0 0.0
        %3866 = vmatprep.subr.mxu0 0.0
        %3867 = vmatpush1.msra.mxu0 0.0
        %3868 = vmatprep.subr.mxu0 0.0
        %3869 = vmatpush1.msra.mxu0 0.0
        %3870 = vmatprep.subr.mxu0 0.0
        %3871 = vmatpush1.msra.mxu0 0.0
        %3872 = vmatprep.subr.mxu0 0.0
        %3873 = vmatpush1.msra.mxu0 0.0
        %3874 = vmatprep.subr.mxu0 0.0
        %3875 = vmatpush1.msra.mxu0 %v2842
        %3876 = vmatprep.subr.mxu0 0.0
        %3877 = vmatpush1.msra.mxu0 %v2841
        %3878 = vmatprep.subr.mxu0 0.0
        %3879 = vmatpush1.msra.mxu0 %v2840
        %3880 = vmatprep.subr.mxu0 0.0
        %3881 = vmatpush1.msra.mxu0 %v2839
        %3882 = vmatprep.subr.mxu0 0.0
        %3883 = vmatpush1.msra.mxu0 %v2838
        %3884 = vmatprep.subr.mxu0 0.0
        %3885 = vmatpush1.msra.mxu0 %v2837
        %3886 = vmatprep.subr.mxu0 0.0
        %3887 = vmatpush1.msra.mxu0 %v2836
        %3888 = vmatprep.subr.mxu0 0.0
        %3889 = vmatpush1.msra.mxu0 %v2835
        %3890 = vmatprep.subr.mxu0 0.0
        %3891 = vmatpush2.msra.mxu0 0.0
        %3892 = vmatprep.subr.mxu0 0.0
        %3893 = vmatpush2.msra.mxu0 0.0
        %3894 = vmatprep.subr.mxu0 0.0
        %3895 = vmatpush2.msra.mxu0 0.0
        %3896 = vmatprep.subr.mxu0 0.0
        %3897 = vmatpush2.msra.mxu0 0.0
        %3898 = vmatprep.subr.mxu0 0.0
        %3899 = vmatpush2.msra.mxu0 0.0
        %3900 = vmatprep.subr.mxu0 0.0
        %3901 = vmatpush2.msra.mxu0 0.0
        %3902 = vmatprep.subr.mxu0 0.0
        %3903 = vmatpush2.msra.mxu0 0.0
        %3904 = vmatprep.subr.mxu0 0.0
        %3905 = vmatpush2.msra.mxu0 0.0
        %3906 = vmatprep.subr.mxu0 0.0
        %3907 = vmatpush2.msra.mxu0 0.0
        %3908 = vmatprep.subr.mxu0 0.0
        %3909 = vmatpush2.msra.mxu0 0.0
        %3910 = vmatprep.subr.mxu0 0.0
        %3911 = vmatpush2.msra.mxu0 0.0
        %3912 = vmatprep.subr.mxu0 0.0
        %3913 = vmatpush2.msra.mxu0 0.0
        %3914 = vmatprep.subr.mxu0 0.0
        %3915 = vmatpush2.msra.mxu0 0.0
        %3916 = vmatprep.subr.mxu0 0.0
        %3917 = vmatpush2.msra.mxu0 0.0
        %3918 = vmatprep.subr.mxu0 0.0
        %3919 = vmatpush2.msra.mxu0 0.0
        %3920 = vmatprep.subr.mxu0 0.0
        %3921 = vmatpush2.msra.mxu0 0.0
        %3922 = vmatprep.mubr.f32.mxu0 0.0
        %3923 = vmatmul.mubr.f32.gmra.mxu0 %v3856
        %v3924 = vpop.f32.mrf.mxu0
        %v3925 = vadd.f32 %v3854, %v3924
        %v3926 = vpop.f32.mrf.mxu0
        %3927 = vdwg.mxu0
        %v3928 = vadd.f32 %v3925, %v3772
        %v3929 = vsel %vm612, %v3928, 0.0
        %3930 = vadd.xlane.f32.xlu0 %v3929
        %v3931 = vpop.xlane.xlu0 %3930
        %v3932 = vmul.f32 %v3931, %v1527
        %v3933 = vsub.f32 %v3928, %v3932
        %v3934 = vmul.f32 %v3933, %v3933
        %v3935 = vsel %vm612, %v3934, 0.0
        %3936 = vadd.xlane.f32.xlu0 %v3935
        %v3937 = vpop.xlane.xlu0 %3936
        %v3938 = vmul.f32 %v3937, %v1527
        %v3939 = vadd.f32 %v3938, 1e-05
        %v3940 = vrsqrt.pop %v3939
        %v3941 = vmul.f32 %v3933, %v3940
        %v3942 = vlaneseq
        %v3943 = vshrl.u32 %v3942, 7
        %v3944 = vsub.s32 7, %v3943
        %v3945 = vrot.slane %v2844, %v3944
        %v3946 = vmul.f32 %v3941, %v3945
        %v3947 = vlaneseq
        %v3948 = vshrl.u32 %v3947, 7
        %v3949 = vsub.s32 0, %v3948
        %v3950 = vrot.slane %v2845, %v3949
        %v3951 = vadd.f32 %v3946, %v3950
        %v3952 = vmul.f32 %v3951, %v1551
        %v3954 = vsel %vm612, %v2813, 0
        %3956 = vmatprep.subr.mxu0 0.0
        %3957 = vmatpush1.msra.mxu0 0.0
        %3958 = vmatprep.subr.mxu0 0.0
        %3959 = vmatpush1.msra.mxu0 0.0
        %3960 = vmatprep.subr.mxu0 0.0
        %3961 = vmatpush1.msra.mxu0 0.0
        %3962 = vmatprep.subr.mxu0 0.0
        %3963 = vmatpush1.msra.mxu0 0.0
        %3964 = vmatprep.subr.mxu0 0.0
        %3965 = vmatpush1.msra.mxu0 0.0
        %3966 = vmatprep.subr.mxu0 0.0
        %3967 = vmatpush1.msra.mxu0 0.0
        %3968 = vmatprep.subr.mxu0 0.0
        %3969 = vmatpush1.msra.mxu0 0.0
        %3970 = vmatprep.subr.mxu0 0.0
        %3971 = vmatpush1.msra.mxu0 0.0
        %3972 = vmatprep.subr.mxu0 0.0
        %3973 = vmatpush1.msra.mxu0 0.0
        %3974 = vmatprep.subr.mxu0 0.0
        %3975 = vmatpush1.msra.mxu0 0.0
        %3976 = vmatprep.subr.mxu0 0.0
        %3977 = vmatpush1.msra.mxu0 0.0
        %3978 = vmatprep.subr.mxu0 0.0
        %3979 = vmatpush1.msra.mxu0 0.0
        %3980 = vmatprep.subr.mxu0 0.0
        %3981 = vmatpush1.msra.mxu0 %v2818
        %3982 = vmatprep.subr.mxu0 0.0
        %3983 = vmatpush1.msra.mxu0 %v2817
        %3984 = vmatprep.subr.mxu0 0.0
        %3985 = vmatpush1.msra.mxu0 %v2816
        %3986 = vmatprep.subr.mxu0 0.0
        %3987 = vmatpush1.msra.mxu0 %v2815
        %3988 = vmatprep.subr.mxu0 0.0
        %3989 = vmatpush2.msra.mxu0 0.0
        %3990 = vmatprep.subr.mxu0 0.0
        %3991 = vmatpush2.msra.mxu0 0.0
        %3992 = vmatprep.subr.mxu0 0.0
        %3993 = vmatpush2.msra.mxu0 0.0
        %3994 = vmatprep.subr.mxu0 0.0
        %3995 = vmatpush2.msra.mxu0 0.0
        %3996 = vmatprep.subr.mxu0 0.0
        %3997 = vmatpush2.msra.mxu0 0.0
        %3998 = vmatprep.subr.mxu0 0.0
        %3999 = vmatpush2.msra.mxu0 0.0
        %4000 = vmatprep.subr.mxu0 0.0
        %4001 = vmatpush2.msra.mxu0 0.0
        %4002 = vmatprep.subr.mxu0 0.0
        %4003 = vmatpush2.msra.mxu0 0.0
        %4004 = vmatprep.subr.mxu0 0.0
        %4005 = vmatpush2.msra.mxu0 0.0
        %4006 = vmatprep.subr.mxu0 0.0
        %4007 = vmatpush2.msra.mxu0 0.0
        %4008 = vmatprep.subr.mxu0 0.0
        %4009 = vmatpush2.msra.mxu0 0.0
        %4010 = vmatprep.subr.mxu0 0.0
        %4011 = vmatpush2.msra.mxu0 0.0
        %4012 = vmatprep.subr.mxu0 0.0
        %4013 = vmatpush2.msra.mxu0 0.0
        %4014 = vmatprep.subr.mxu0 0.0
        %4015 = vmatpush2.msra.mxu0 0.0
        %4016 = vmatprep.subr.mxu0 0.0
        %4017 = vmatpush2.msra.mxu0 0.0
        %4018 = vmatprep.subr.mxu0 0.0
        %4019 = vmatpush2.msra.mxu0 0.0
        %4020 = vmatprep.mubr.f32.mxu0 0.0
        %4021 = vmatmul.mubr.f32.gmra.mxu0 %v3954
        %v4022 = vpop.f32.mrf.mxu0
        %v4023 = vadd.f32 %v2849, %v4022
        %v4024 = vpop.f32.mrf.mxu0
        %4025 = vdwg.mxu0
        %v4026 = vmul.f32 %v4023, 0.35355338
        %4027 = vmatprep.subr.mxu0 0.0
        %4028 = vmatpush1.msra.mxu0 0.0
        %4029 = vmatprep.subr.mxu0 0.0
        %4030 = vmatpush1.msra.mxu0 0.0
        %4031 = vmatprep.subr.mxu0 0.0
        %4032 = vmatpush1.msra.mxu0 0.0
        %4033 = vmatprep.subr.mxu0 0.0
        %4034 = vmatpush1.msra.mxu0 0.0
        %4035 = vmatprep.subr.mxu0 0.0
        %4036 = vmatpush1.msra.mxu0 0.0
        %4037 = vmatprep.subr.mxu0 0.0
        %4038 = vmatpush1.msra.mxu0 0.0
        %4039 = vmatprep.subr.mxu0 0.0
        %4040 = vmatpush1.msra.mxu0 0.0
        %4041 = vmatprep.subr.mxu0 0.0
        %4042 = vmatpush1.msra.mxu0 0.0
        %4043 = vmatprep.subr.mxu0 0.0
        %4044 = vmatpush1.msra.mxu0 0.0
        %4045 = vmatprep.subr.mxu0 0.0
        %4046 = vmatpush1.msra.mxu0 0.0
        %4047 = vmatprep.subr.mxu0 0.0
        %4048 = vmatpush1.msra.mxu0 0.0
        %4049 = vmatprep.subr.mxu0 0.0
        %4050 = vmatpush1.msra.mxu0 0.0
        %4051 = vmatprep.subr.mxu0 0.0
        %4052 = vmatpush1.msra.mxu0 %v2823
        %4053 = vmatprep.subr.mxu0 0.0
        %4054 = vmatpush1.msra.mxu0 %v2822
        %4055 = vmatprep.subr.mxu0 0.0
        %4056 = vmatpush1.msra.mxu0 %v2821
        %4057 = vmatprep.subr.mxu0 0.0
        %4058 = vmatpush1.msra.mxu0 %v2820
        %4059 = vmatprep.subr.mxu0 0.0
        %4060 = vmatpush2.msra.mxu0 0.0
        %4061 = vmatprep.subr.mxu0 0.0
        %4062 = vmatpush2.msra.mxu0 0.0
        %4063 = vmatprep.subr.mxu0 0.0
        %4064 = vmatpush2.msra.mxu0 0.0
        %4065 = vmatprep.subr.mxu0 0.0
        %4066 = vmatpush2.msra.mxu0 0.0
        %4067 = vmatprep.subr.mxu0 0.0
        %4068 = vmatpush2.msra.mxu0 0.0
        %4069 = vmatprep.subr.mxu0 0.0
        %4070 = vmatpush2.msra.mxu0 0.0
        %4071 = vmatprep.subr.mxu0 0.0
        %4072 = vmatpush2.msra.mxu0 0.0
        %4073 = vmatprep.subr.mxu0 0.0
        %4074 = vmatpush2.msra.mxu0 0.0
        %4075 = vmatprep.subr.mxu0 0.0
        %4076 = vmatpush2.msra.mxu0 0.0
        %4077 = vmatprep.subr.mxu0 0.0
        %4078 = vmatpush2.msra.mxu0 0.0
        %4079 = vmatprep.subr.mxu0 0.0
        %4080 = vmatpush2.msra.mxu0 0.0
        %4081 = vmatprep.subr.mxu0 0.0
        %4082 = vmatpush2.msra.mxu0 0.0
        %4083 = vmatprep.subr.mxu0 0.0
        %4084 = vmatpush2.msra.mxu0 0.0
        %4085 = vmatprep.subr.mxu0 0.0
        %4086 = vmatpush2.msra.mxu0 0.0
        %4087 = vmatprep.subr.mxu0 0.0
        %4088 = vmatpush2.msra.mxu0 0.0
        %4089 = vmatprep.subr.mxu0 0.0
        %4090 = vmatpush2.msra.mxu0 0.0
        %4091 = vmatprep.mubr.f32.mxu0 0.0
        %4092 = vmatmul.mubr.f32.gmra.mxu0 %v3954
        %v4093 = vpop.f32.mrf.mxu0
        %v4094 = vadd.f32 %v2927, %v4093
        %v4095 = vpop.f32.mrf.mxu0
        %4096 = vdwg.mxu0
        %v4098 = vsel %vm770, %v4026, 0
        %v4101 = vsel %vm770, %v4094, 0
        %4103 = vmatprep.subr.mxu0 0.0
        %4104 = vmatpush1.xpose.msra.mxu0 0.0
        %4105 = vmatprep.subr.mxu0 0.0
        %4106 = vmatpush1.xpose.msra.mxu0 0.0
        %4107 = vmatprep.subr.mxu0 0.0
        %4108 = vmatpush1.xpose.msra.mxu0 0.0
        %4109 = vmatprep.subr.mxu0 0.0
        %4110 = vmatpush1.xpose.msra.mxu0 0.0
        %4111 = vmatprep.subr.mxu0 0.0
        %4112 = vmatpush1.xpose.msra.mxu0 0.0
        %4113 = vmatprep.subr.mxu0 0.0
        %4114 = vmatpush1.xpose.msra.mxu0 0.0
        %4115 = vmatprep.subr.mxu0 0.0
        %4116 = vmatpush1.xpose.msra.mxu0 0.0
        %4117 = vmatprep.subr.mxu0 0.0
        %4118 = vmatpush1.xpose.msra.mxu0 0.0
        %4119 = vmatprep.subr.mxu0 0.0
        %4120 = vmatpush1.xpose.msra.mxu0 0.0
        %4121 = vmatprep.subr.mxu0 0.0
        %4122 = vmatpush1.xpose.msra.mxu0 0.0
        %4123 = vmatprep.subr.mxu0 0.0
        %4124 = vmatpush1.xpose.msra.mxu0 0.0
        %4125 = vmatprep.subr.mxu0 0.0
        %4126 = vmatpush1.xpose.msra.mxu0 0.0
        %4127 = vmatprep.subr.mxu0 0.0
        %4128 = vmatpush1.xpose.msra.mxu0 0.0
        %4129 = vmatprep.subr.mxu0 0.0
        %4130 = vmatpush1.xpose.msra.mxu0 0.0
        %4131 = vmatprep.subr.mxu0 0.0
        %4132 = vmatpush1.xpose.msra.mxu0 0.0
        %4133 = vmatprep.subr.mxu0 0.0
        %4134 = vmatpush1.xpose.msra.mxu0 %v4101
        %4135 = vmatprep.subr.mxu0 0.0
        %4136 = vmatpush2.xpose.msra.mxu0 0.0
        %4137 = vmatprep.subr.mxu0 0.0
        %4138 = vmatpush2.xpose.msra.mxu0 0.0
        %4139 = vmatprep.subr.mxu0 0.0
        %4140 = vmatpush2.xpose.msra.mxu0 0.0
        %4141 = vmatprep.subr.mxu0 0.0
        %4142 = vmatpush2.xpose.msra.mxu0 0.0
        %4143 = vmatprep.subr.mxu0 0.0
        %4144 = vmatpush2.xpose.msra.mxu0 0.0
        %4145 = vmatprep.subr.mxu0 0.0
        %4146 = vmatpush2.xpose.msra.mxu0 0.0
        %4147 = vmatprep.subr.mxu0 0.0
        %4148 = vmatpush2.xpose.msra.mxu0 0.0
        %4149 = vmatprep.subr.mxu0 0.0
        %4150 = vmatpush2.xpose.msra.mxu0 0.0
        %4151 = vmatprep.subr.mxu0 0.0
        %4152 = vmatpush2.xpose.msra.mxu0 0.0
        %4153 = vmatprep.subr.mxu0 0.0
        %4154 = vmatpush2.xpose.msra.mxu0 0.0
        %4155 = vmatprep.subr.mxu0 0.0
        %4156 = vmatpush2.xpose.msra.mxu0 0.0
        %4157 = vmatprep.subr.mxu0 0.0
        %4158 = vmatpush2.xpose.msra.mxu0 0.0
        %4159 = vmatprep.subr.mxu0 0.0
        %4160 = vmatpush2.xpose.msra.mxu0 0.0
        %4161 = vmatprep.subr.mxu0 0.0
        %4162 = vmatpush2.xpose.msra.mxu0 0.0
        %4163 = vmatprep.subr.mxu0 0.0
        %4164 = vmatpush2.xpose.msra.mxu0 0.0
        %4165 = vmatprep.subr.mxu0 0.0
        %4166 = vmatpush2.xpose.msra.mxu0 0.0
        %4167 = vmatprep.mubr.f32.mxu0 0.0
        %4168 = vmatmul.mubr.f32.gmra.mxu0 %v4098
        %v4169 = vpop.f32.mrf.mxu0
        %v4170 = vadd.f32 %v768, %v4169
        %v4171 = vpop.f32.mrf.mxu0
        %4172 = vdwg.mxu0
        %v4173 = vsel %vm770, %v4170, -inf
        %4174 = vmax.xlane.f32.xlu0 %v4173
        %v4175 = vpop.xlane.xlu0 %4174
        %v4176 = vsub.f32 %v4170, %v4175
        %v4177 = vmul.f32 %v4176, 1.442695
        %v4178 = vpow.pop %v4177
        %v4179 = vsel %vm770, %v4178, 0.0
        %4180 = vadd.xlane.f32.xlu0 %v4179
        %v4181 = vpop.xlane.xlu0 %4180
        %v4182 = vrcp.pop %v4181
        %v4183 = vmul.f32 %v4178, %v4182
        %4184 = vrot.lane.b32.xlu0 %v4094, 96
        %v4185 = vpop.permute.xlu0 %4184
        %v4188 = vsel %vm770, %v4183, 0
        %4190 = vmatprep.subr.mxu0 0.0
        %4191 = vmatpush1.msra.mxu0 0.0
        %4192 = vmatprep.subr.mxu0 0.0
        %4193 = vmatpush1.msra.mxu0 0.0
        %4194 = vmatprep.subr.mxu0 0.0
        %4195 = vmatpush1.msra.mxu0 0.0
        %4196 = vmatprep.subr.mxu0 0.0
        %4197 = vmatpush1.msra.mxu0 0.0
        %4198 = vmatprep.subr.mxu0 0.0
        %4199 = vmatpush1.msra.mxu0 0.0
        %4200 = vmatprep.subr.mxu0 0.0
        %4201 = vmatpush1.msra.mxu0 0.0
        %4202 = vmatprep.subr.mxu0 0.0
        %4203 = vmatpush1.msra.mxu0 0.0
        %4204 = vmatprep.subr.mxu0 0.0
        %4205 = vmatpush1.msra.mxu0 0.0
        %4206 = vmatprep.subr.mxu0 0.0
        %4207 = vmatpush1.msra.mxu0 0.0
        %4208 = vmatprep.subr.mxu0 0.0
        %4209 = vmatpush1.msra.mxu0 0.0
        %4210 = vmatprep.subr.mxu0 0.0
        %4211 = vmatpush1.msra.mxu0 0.0
        %4212 = vmatprep.subr.mxu0 0.0
        %4213 = vmatpush1.msra.mxu0 0.0
        %4214 = vmatprep.subr.mxu0 0.0
        %4215 = vmatpush1.msra.mxu0 0.0
        %4216 = vmatprep.subr.mxu0 0.0
        %4217 = vmatpush1.msra.mxu0 0.0
        %4218 = vmatprep.subr.mxu0 0.0
        %4219 = vmatpush1.msra.mxu0 0.0
        %4220 = vmatprep.subr.mxu0 0.0
        %4221 = vmatpush1.msra.mxu0 %v4185
        %4222 = vmatprep.subr.mxu0 0.0
        %4223 = vmatpush2.msra.mxu0 0.0
        %4224 = vmatprep.subr.mxu0 0.0
        %4225 = vmatpush2.msra.mxu0 0.0
        %4226 = vmatprep.subr.mxu0 0.0
        %4227 = vmatpush2.msra.mxu0 0.0
        %4228 = vmatprep.subr.mxu0 0.0
        %4229 = vmatpush2.msra.mxu0 0.0
        %4230 = vmatprep.subr.mxu0 0.0
        %4231 = vmatpush2.msra.mxu0 0.0
        %4232 = vmatprep.subr.mxu0 0.0
        %4233 = vmatpush2.msra.mxu0 0.0
        %4234 = vmatprep.subr.mxu0 0.0
        %4235 = vmatpush2.msra.mxu0 0.0
        %4236 = vmatprep.subr.mxu0 0.0
        %4237 = vmatpush2.msra.mxu0 0.0
        %4238 = vmatprep.subr.mxu0 0.0
        %4239 = vmatpush2.msra.mxu0 0.0
        %4240 = vmatprep.subr.mxu0 0.0
        %4241 = vmatpush2.msra.mxu0 0.0
        %4242 = vmatprep.subr.mxu0 0.0
        %4243 = vmatpush2.msra.mxu0 0.0
        %4244 = vmatprep.subr.mxu0 0.0
        %4245 = vmatpush2.msra.mxu0 0.0
        %4246 = vmatprep.subr.mxu0 0.0
        %4247 = vmatpush2.msra.mxu0 0.0
        %4248 = vmatprep.subr.mxu0 0.0
        %4249 = vmatpush2.msra.mxu0 0.0
        %4250 = vmatprep.subr.mxu0 0.0
        %4251 = vmatpush2.msra.mxu0 0.0
        %4252 = vmatprep.subr.mxu0 0.0
        %4253 = vmatpush2.msra.mxu0 0.0
        %4254 = vmatprep.mubr.f32.mxu0 0.0
        %4255 = vmatmul.mubr.f32.gmra.mxu0 %v4188
        %v4256 = vpop.f32.mrf.mxu0
        %v4257 = vadd.f32 0.0, %v4256
        %v4258 = vpop.f32.mrf.mxu0
        %4259 = vdwg.mxu0
        %4260 = vrot.lane.b32.xlu0 %v4026, 120
        %v4261 = vpop.permute.xlu0 %4260
        %4262 = vrot.lane.b32.xlu0 %v4094, 120
        %v4263 = vpop.permute.xlu0 %4262
        %v4264 = vsel %vm770, %v4261, 0
        %v4266 = vsel %vm770, %v4263, 0
        %4268 = vmatprep.subr.mxu0 0.0
        %4269 = vmatpush1.xpose.msra.mxu0 0.0
        %4270 = vmatprep.subr.mxu0 0.0
        %4271 = vmatpush1.xpose.msra.mxu0 0.0
        %4272 = vmatprep.subr.mxu0 0.0
        %4273 = vmatpush1.xpose.msra.mxu0 0.0
        %4274 = vmatprep.subr.mxu0 0.0
        %4275 = vmatpush1.xpose.msra.mxu0 0.0
        %4276 = vmatprep.subr.mxu0 0.0
        %4277 = vmatpush1.xpose.msra.mxu0 0.0
        %4278 = vmatprep.subr.mxu0 0.0
        %4279 = vmatpush1.xpose.msra.mxu0 0.0
        %4280 = vmatprep.subr.mxu0 0.0
        %4281 = vmatpush1.xpose.msra.mxu0 0.0
        %4282 = vmatprep.subr.mxu0 0.0
        %4283 = vmatpush1.xpose.msra.mxu0 0.0
        %4284 = vmatprep.subr.mxu0 0.0
        %4285 = vmatpush1.xpose.msra.mxu0 0.0
        %4286 = vmatprep.subr.mxu0 0.0
        %4287 = vmatpush1.xpose.msra.mxu0 0.0
        %4288 = vmatprep.subr.mxu0 0.0
        %4289 = vmatpush1.xpose.msra.mxu0 0.0
        %4290 = vmatprep.subr.mxu0 0.0
        %4291 = vmatpush1.xpose.msra.mxu0 0.0
        %4292 = vmatprep.subr.mxu0 0.0
        %4293 = vmatpush1.xpose.msra.mxu0 0.0
        %4294 = vmatprep.subr.mxu0 0.0
        %4295 = vmatpush1.xpose.msra.mxu0 0.0
        %4296 = vmatprep.subr.mxu0 0.0
        %4297 = vmatpush1.xpose.msra.mxu0 0.0
        %4298 = vmatprep.subr.mxu0 0.0
        %4299 = vmatpush1.xpose.msra.mxu0 %v4266
        %4300 = vmatprep.subr.mxu0 0.0
        %4301 = vmatpush2.xpose.msra.mxu0 0.0
        %4302 = vmatprep.subr.mxu0 0.0
        %4303 = vmatpush2.xpose.msra.mxu0 0.0
        %4304 = vmatprep.subr.mxu0 0.0
        %4305 = vmatpush2.xpose.msra.mxu0 0.0
        %4306 = vmatprep.subr.mxu0 0.0
        %4307 = vmatpush2.xpose.msra.mxu0 0.0
        %4308 = vmatprep.subr.mxu0 0.0
        %4309 = vmatpush2.xpose.msra.mxu0 0.0
        %4310 = vmatprep.subr.mxu0 0.0
        %4311 = vmatpush2.xpose.msra.mxu0 0.0
        %4312 = vmatprep.subr.mxu0 0.0
        %4313 = vmatpush2.xpose.msra.mxu0 0.0
        %4314 = vmatprep.subr.mxu0 0.0
        %4315 = vmatpush2.xpose.msra.mxu0 0.0
        %4316 = vmatprep.subr.mxu0 0.0
        %4317 = vmatpush2.xpose.msra.mxu0 0.0
        %4318 = vmatprep.subr.mxu0 0.0
        %4319 = vmatpush2.xpose.msra.mxu0 0.0
        %4320 = vmatprep.subr.mxu0 0.0
        %4321 = vmatpush2.xpose.msra.mxu0 0.0
        %4322 = vmatprep.subr.mxu0 0.0
        %4323 = vmatpush2.xpose.msra.mxu0 0.0
        %4324 = vmatprep.subr.mxu0 0.0
        %4325 = vmatpush2.xpose.msra.mxu0 0.0
        %4326 = vmatprep.subr.mxu0 0.0
        %4327 = vmatpush2.xpose.msra.mxu0 0.0
        %4328 = vmatprep.subr.mxu0 0.0
        %4329 = vmatpush2.xpose.msra.mxu0 0.0
        %4330 = vmatprep.subr.mxu0 0.0
        %4331 = vmatpush2.xpose.msra.mxu0 0.0
        %4332 = vmatprep.mubr.f32.mxu0 0.0
        %4333 = vmatmul.mubr.f32.gmra.mxu0 %v4264
        %v4334 = vpop.f32.mrf.mxu0
        %v4335 = vadd.f32 %v768, %v4334
        %v4336 = vpop.f32.mrf.mxu0
        %4337 = vdwg.mxu0
        %v4338 = vsel %vm770, %v4335, -inf
        %4339 = vmax.xlane.f32.xlu0 %v4338
        %v4340 = vpop.xlane.xlu0 %4339
        %v4341 = vsub.f32 %v4335, %v4340
        %v4342 = vmul.f32 %v4341, 1.442695
        %v4343 = vpow.pop %v4342
        %v4344 = vsel %vm770, %v4343, 0.0
        %4345 = vadd.xlane.f32.xlu0 %v4344
        %v4346 = vpop.xlane.xlu0 %4345
        %v4347 = vrcp.pop %v4346
        %v4348 = vmul.f32 %v4343, %v4347
        %4349 = vrot.lane.b32.xlu0 %v4094, 88
        %v4350 = vpop.permute.xlu0 %4349
        %v4353 = vsel %vm770, %v4348, 0
        %4355 = vmatprep.subr.mxu0 0.0
        %4356 = vmatpush1.msra.mxu0 0.0
        %4357 = vmatprep.subr.mxu0 0.0
        %4358 = vmatpush1.msra.mxu0 0.0
        %4359 = vmatprep.subr.mxu0 0.0
        %4360 = vmatpush1.msra.mxu0 0.0
        %4361 = vmatprep.subr.mxu0 0.0
        %4362 = vmatpush1.msra.mxu0 0.0
        %4363 = vmatprep.subr.mxu0 0.0
        %4364 = vmatpush1.msra.mxu0 0.0
        %4365 = vmatprep.subr.mxu0 0.0
        %4366 = vmatpush1.msra.mxu0 0.0
        %4367 = vmatprep.subr.mxu0 0.0
        %4368 = vmatpush1.msra.mxu0 0.0
        %4369 = vmatprep.subr.mxu0 0.0
        %4370 = vmatpush1.msra.mxu0 0.0
        %4371 = vmatprep.subr.mxu0 0.0
        %4372 = vmatpush1.msra.mxu0 0.0
        %4373 = vmatprep.subr.mxu0 0.0
        %4374 = vmatpush1.msra.mxu0 0.0
        %4375 = vmatprep.subr.mxu0 0.0
        %4376 = vmatpush1.msra.mxu0 0.0
        %4377 = vmatprep.subr.mxu0 0.0
        %4378 = vmatpush1.msra.mxu0 0.0
        %4379 = vmatprep.subr.mxu0 0.0
        %4380 = vmatpush1.msra.mxu0 0.0
        %4381 = vmatprep.subr.mxu0 0.0
        %4382 = vmatpush1.msra.mxu0 0.0
        %4383 = vmatprep.subr.mxu0 0.0
        %4384 = vmatpush1.msra.mxu0 0.0
        %4385 = vmatprep.subr.mxu0 0.0
        %4386 = vmatpush1.msra.mxu0 %v4350
        %4387 = vmatprep.subr.mxu0 0.0
        %4388 = vmatpush2.msra.mxu0 0.0
        %4389 = vmatprep.subr.mxu0 0.0
        %4390 = vmatpush2.msra.mxu0 0.0
        %4391 = vmatprep.subr.mxu0 0.0
        %4392 = vmatpush2.msra.mxu0 0.0
        %4393 = vmatprep.subr.mxu0 0.0
        %4394 = vmatpush2.msra.mxu0 0.0
        %4395 = vmatprep.subr.mxu0 0.0
        %4396 = vmatpush2.msra.mxu0 0.0
        %4397 = vmatprep.subr.mxu0 0.0
        %4398 = vmatpush2.msra.mxu0 0.0
        %4399 = vmatprep.subr.mxu0 0.0
        %4400 = vmatpush2.msra.mxu0 0.0
        %4401 = vmatprep.subr.mxu0 0.0
        %4402 = vmatpush2.msra.mxu0 0.0
        %4403 = vmatprep.subr.mxu0 0.0
        %4404 = vmatpush2.msra.mxu0 0.0
        %4405 = vmatprep.subr.mxu0 0.0
        %4406 = vmatpush2.msra.mxu0 0.0
        %4407 = vmatprep.subr.mxu0 0.0
        %4408 = vmatpush2.msra.mxu0 0.0
        %4409 = vmatprep.subr.mxu0 0.0
        %4410 = vmatpush2.msra.mxu0 0.0
        %4411 = vmatprep.subr.mxu0 0.0
        %4412 = vmatpush2.msra.mxu0 0.0
        %4413 = vmatprep.subr.mxu0 0.0
        %4414 = vmatpush2.msra.mxu0 0.0
        %4415 = vmatprep.subr.mxu0 0.0
        %4416 = vmatpush2.msra.mxu0 0.0
        %4417 = vmatprep.subr.mxu0 0.0
        %4418 = vmatpush2.msra.mxu0 0.0
        %4419 = vmatprep.mubr.f32.mxu0 0.0
        %4420 = vmatmul.mubr.f32.gmra.mxu0 %v4353
        %v4421 = vpop.f32.mrf.mxu0
        %v4422 = vadd.f32 0.0, %v4421
        %v4423 = vpop.f32.mrf.mxu0
        %4424 = vdwg.mxu0
        %4425 = vrot.lane.b32.xlu0 %v4026, 112
        %v4426 = vpop.permute.xlu0 %4425
        %4427 = vrot.lane.b32.xlu0 %v4094, 112
        %v4428 = vpop.permute.xlu0 %4427
        %v4429 = vsel %vm770, %v4426, 0
        %v4431 = vsel %vm770, %v4428, 0
        %4433 = vmatprep.subr.mxu0 0.0
        %4434 = vmatpush1.xpose.msra.mxu0 0.0
        %4435 = vmatprep.subr.mxu0 0.0
        %4436 = vmatpush1.xpose.msra.mxu0 0.0
        %4437 = vmatprep.subr.mxu0 0.0
        %4438 = vmatpush1.xpose.msra.mxu0 0.0
        %4439 = vmatprep.subr.mxu0 0.0
        %4440 = vmatpush1.xpose.msra.mxu0 0.0
        %4441 = vmatprep.subr.mxu0 0.0
        %4442 = vmatpush1.xpose.msra.mxu0 0.0
        %4443 = vmatprep.subr.mxu0 0.0
        %4444 = vmatpush1.xpose.msra.mxu0 0.0
        %4445 = vmatprep.subr.mxu0 0.0
        %4446 = vmatpush1.xpose.msra.mxu0 0.0
        %4447 = vmatprep.subr.mxu0 0.0
        %4448 = vmatpush1.xpose.msra.mxu0 0.0
        %4449 = vmatprep.subr.mxu0 0.0
        %4450 = vmatpush1.xpose.msra.mxu0 0.0
        %4451 = vmatprep.subr.mxu0 0.0
        %4452 = vmatpush1.xpose.msra.mxu0 0.0
        %4453 = vmatprep.subr.mxu0 0.0
        %4454 = vmatpush1.xpose.msra.mxu0 0.0
        %4455 = vmatprep.subr.mxu0 0.0
        %4456 = vmatpush1.xpose.msra.mxu0 0.0
        %4457 = vmatprep.subr.mxu0 0.0
        %4458 = vmatpush1.xpose.msra.mxu0 0.0
        %4459 = vmatprep.subr.mxu0 0.0
        %4460 = vmatpush1.xpose.msra.mxu0 0.0
        %4461 = vmatprep.subr.mxu0 0.0
        %4462 = vmatpush1.xpose.msra.mxu0 0.0
        %4463 = vmatprep.subr.mxu0 0.0
        %4464 = vmatpush1.xpose.msra.mxu0 %v4431
        %4465 = vmatprep.subr.mxu0 0.0
        %4466 = vmatpush2.xpose.msra.mxu0 0.0
        %4467 = vmatprep.subr.mxu0 0.0
        %4468 = vmatpush2.xpose.msra.mxu0 0.0
        %4469 = vmatprep.subr.mxu0 0.0
        %4470 = vmatpush2.xpose.msra.mxu0 0.0
        %4471 = vmatprep.subr.mxu0 0.0
        %4472 = vmatpush2.xpose.msra.mxu0 0.0
        %4473 = vmatprep.subr.mxu0 0.0
        %4474 = vmatpush2.xpose.msra.mxu0 0.0
        %4475 = vmatprep.subr.mxu0 0.0
        %4476 = vmatpush2.xpose.msra.mxu0 0.0
        %4477 = vmatprep.subr.mxu0 0.0
        %4478 = vmatpush2.xpose.msra.mxu0 0.0
        %4479 = vmatprep.subr.mxu0 0.0
        %4480 = vmatpush2.xpose.msra.mxu0 0.0
        %4481 = vmatprep.subr.mxu0 0.0
        %4482 = vmatpush2.xpose.msra.mxu0 0.0
        %4483 = vmatprep.subr.mxu0 0.0
        %4484 = vmatpush2.xpose.msra.mxu0 0.0
        %4485 = vmatprep.subr.mxu0 0.0
        %4486 = vmatpush2.xpose.msra.mxu0 0.0
        %4487 = vmatprep.subr.mxu0 0.0
        %4488 = vmatpush2.xpose.msra.mxu0 0.0
        %4489 = vmatprep.subr.mxu0 0.0
        %4490 = vmatpush2.xpose.msra.mxu0 0.0
        %4491 = vmatprep.subr.mxu0 0.0
        %4492 = vmatpush2.xpose.msra.mxu0 0.0
        %4493 = vmatprep.subr.mxu0 0.0
        %4494 = vmatpush2.xpose.msra.mxu0 0.0
        %4495 = vmatprep.subr.mxu0 0.0
        %4496 = vmatpush2.xpose.msra.mxu0 0.0
        %4497 = vmatprep.mubr.f32.mxu0 0.0
        %4498 = vmatmul.mubr.f32.gmra.mxu0 %v4429
        %v4499 = vpop.f32.mrf.mxu0
        %v4500 = vadd.f32 %v768, %v4499
        %v4501 = vpop.f32.mrf.mxu0
        %4502 = vdwg.mxu0
        %v4503 = vsel %vm770, %v4500, -inf
        %4504 = vmax.xlane.f32.xlu0 %v4503
        %v4505 = vpop.xlane.xlu0 %4504
        %v4506 = vsub.f32 %v4500, %v4505
        %v4507 = vmul.f32 %v4506, 1.442695
        %v4508 = vpow.pop %v4507
        %v4509 = vsel %vm770, %v4508, 0.0
        %4510 = vadd.xlane.f32.xlu0 %v4509
        %v4511 = vpop.xlane.xlu0 %4510
        %v4512 = vrcp.pop %v4511
        %v4513 = vmul.f32 %v4508, %v4512
        %4514 = vrot.lane.b32.xlu0 %v4094, 80
        %v4515 = vpop.permute.xlu0 %4514
        %v4518 = vsel %vm770, %v4513, 0
        %4520 = vmatprep.subr.mxu0 0.0
        %4521 = vmatpush1.msra.mxu0 0.0
        %4522 = vmatprep.subr.mxu0 0.0
        %4523 = vmatpush1.msra.mxu0 0.0
        %4524 = vmatprep.subr.mxu0 0.0
        %4525 = vmatpush1.msra.mxu0 0.0
        %4526 = vmatprep.subr.mxu0 0.0
        %4527 = vmatpush1.msra.mxu0 0.0
        %4528 = vmatprep.subr.mxu0 0.0
        %4529 = vmatpush1.msra.mxu0 0.0
        %4530 = vmatprep.subr.mxu0 0.0
        %4531 = vmatpush1.msra.mxu0 0.0
        %4532 = vmatprep.subr.mxu0 0.0
        %4533 = vmatpush1.msra.mxu0 0.0
        %4534 = vmatprep.subr.mxu0 0.0
        %4535 = vmatpush1.msra.mxu0 0.0
        %4536 = vmatprep.subr.mxu0 0.0
        %4537 = vmatpush1.msra.mxu0 0.0
        %4538 = vmatprep.subr.mxu0 0.0
        %4539 = vmatpush1.msra.mxu0 0.0
        %4540 = vmatprep.subr.mxu0 0.0
        %4541 = vmatpush1.msra.mxu0 0.0
        %4542 = vmatprep.subr.mxu0 0.0
        %4543 = vmatpush1.msra.mxu0 0.0
        %4544 = vmatprep.subr.mxu0 0.0
        %4545 = vmatpush1.msra.mxu0 0.0
        %4546 = vmatprep.subr.mxu0 0.0
        %4547 = vmatpush1.msra.mxu0 0.0
        %4548 = vmatprep.subr.mxu0 0.0
        %4549 = vmatpush1.msra.mxu0 0.0
        %4550 = vmatprep.subr.mxu0 0.0
        %4551 = vmatpush1.msra.mxu0 %v4515
        %4552 = vmatprep.subr.mxu0 0.0
        %4553 = vmatpush2.msra.mxu0 0.0
        %4554 = vmatprep.subr.mxu0 0.0
        %4555 = vmatpush2.msra.mxu0 0.0
        %4556 = vmatprep.subr.mxu0 0.0
        %4557 = vmatpush2.msra.mxu0 0.0
        %4558 = vmatprep.subr.mxu0 0.0
        %4559 = vmatpush2.msra.mxu0 0.0
        %4560 = vmatprep.subr.mxu0 0.0
        %4561 = vmatpush2.msra.mxu0 0.0
        %4562 = vmatprep.subr.mxu0 0.0
        %4563 = vmatpush2.msra.mxu0 0.0
        %4564 = vmatprep.subr.mxu0 0.0
        %4565 = vmatpush2.msra.mxu0 0.0
        %4566 = vmatprep.subr.mxu0 0.0
        %4567 = vmatpush2.msra.mxu0 0.0
        %4568 = vmatprep.subr.mxu0 0.0
        %4569 = vmatpush2.msra.mxu0 0.0
        %4570 = vmatprep.subr.mxu0 0.0
        %4571 = vmatpush2.msra.mxu0 0.0
        %4572 = vmatprep.subr.mxu0 0.0
        %4573 = vmatpush2.msra.mxu0 0.0
        %4574 = vmatprep.subr.mxu0 0.0
        %4575 = vmatpush2.msra.mxu0 0.0
        %4576 = vmatprep.subr.mxu0 0.0
        %4577 = vmatpush2.msra.mxu0 0.0
        %4578 = vmatprep.subr.mxu0 0.0
        %4579 = vmatpush2.msra.mxu0 0.0
        %4580 = vmatprep.subr.mxu0 0.0
        %4581 = vmatpush2.msra.mxu0 0.0
        %4582 = vmatprep.subr.mxu0 0.0
        %4583 = vmatpush2.msra.mxu0 0.0
        %4584 = vmatprep.mubr.f32.mxu0 0.0
        %4585 = vmatmul.mubr.f32.gmra.mxu0 %v4518
        %v4586 = vpop.f32.mrf.mxu0
        %v4587 = vadd.f32 0.0, %v4586
        %v4588 = vpop.f32.mrf.mxu0
        %4589 = vdwg.mxu0
        %4590 = vrot.lane.b32.xlu0 %v4026, 104
        %v4591 = vpop.permute.xlu0 %4590
        %4592 = vrot.lane.b32.xlu0 %v4094, 104
        %v4593 = vpop.permute.xlu0 %4592
        %v4594 = vsel %vm770, %v4591, 0
        %v4596 = vsel %vm770, %v4593, 0
        %4598 = vmatprep.subr.mxu0 0.0
        %4599 = vmatpush1.xpose.msra.mxu0 0.0
        %4600 = vmatprep.subr.mxu0 0.0
        %4601 = vmatpush1.xpose.msra.mxu0 0.0
        %4602 = vmatprep.subr.mxu0 0.0
        %4603 = vmatpush1.xpose.msra.mxu0 0.0
        %4604 = vmatprep.subr.mxu0 0.0
        %4605 = vmatpush1.xpose.msra.mxu0 0.0
        %4606 = vmatprep.subr.mxu0 0.0
        %4607 = vmatpush1.xpose.msra.mxu0 0.0
        %4608 = vmatprep.subr.mxu0 0.0
        %4609 = vmatpush1.xpose.msra.mxu0 0.0
        %4610 = vmatprep.subr.mxu0 0.0
        %4611 = vmatpush1.xpose.msra.mxu0 0.0
        %4612 = vmatprep.subr.mxu0 0.0
        %4613 = vmatpush1.xpose.msra.mxu0 0.0
        %4614 = vmatprep.subr.mxu0 0.0
        %4615 = vmatpush1.xpose.msra.mxu0 0.0
        %4616 = vmatprep.subr.mxu0 0.0
        %4617 = vmatpush1.xpose.msra.mxu0 0.0
        %4618 = vmatprep.subr.mxu0 0.0
        %4619 = vmatpush1.xpose.msra.mxu0 0.0
        %4620 = vmatprep.subr.mxu0 0.0
        %4621 = vmatpush1.xpose.msra.mxu0 0.0
        %4622 = vmatprep.subr.mxu0 0.0
        %4623 = vmatpush1.xpose.msra.mxu0 0.0
        %4624 = vmatprep.subr.mxu0 0.0
        %4625 = vmatpush1.xpose.msra.mxu0 0.0
        %4626 = vmatprep.subr.mxu0 0.0
        %4627 = vmatpush1.xpose.msra.mxu0 0.0
        %4628 = vmatprep.subr.mxu0 0.0
        %4629 = vmatpush1.xpose.msra.mxu0 %v4596
        %4630 = vmatprep.subr.mxu0 0.0
        %4631 = vmatpush2.xpose.msra.mxu0 0.0
        %4632 = vmatprep.subr.mxu0 0.0
        %4633 = vmatpush2.xpose.msra.mxu0 0.0
        %4634 = vmatprep.subr.mxu0 0.0
        %4635 = vmatpush2.xpose.msra.mxu0 0.0
        %4636 = vmatprep.subr.mxu0 0.0
        %4637 = vmatpush2.xpose.msra.mxu0 0.0
        %4638 = vmatprep.subr.mxu0 0.0
        %4639 = vmatpush2.xpose.msra.mxu0 0.0
        %4640 = vmatprep.subr.mxu0 0.0
        %4641 = vmatpush2.xpose.msra.mxu0 0.0
        %4642 = vmatprep.subr.mxu0 0.0
        %4643 = vmatpush2.xpose.msra.mxu0 0.0
        %4644 = vmatprep.subr.mxu0 0.0
        %4645 = vmatpush2.xpose.msra.mxu0 0.0
        %4646 = vmatprep.subr.mxu0 0.0
        %4647 = vmatpush2.xpose.msra.mxu0 0.0
        %4648 = vmatprep.subr.mxu0 0.0
        %4649 = vmatpush2.xpose.msra.mxu0 0.0
        %4650 = vmatprep.subr.mxu0 0.0
        %4651 = vmatpush2.xpose.msra.mxu0 0.0
        %4652 = vmatprep.subr.mxu0 0.0
        %4653 = vmatpush2.xpose.msra.mxu0 0.0
        %4654 = vmatprep.subr.mxu0 0.0
        %4655 = vmatpush2.xpose.msra.mxu0 0.0
        %4656 = vmatprep.subr.mxu0 0.0
        %4657 = vmatpush2.xpose.msra.mxu0 0.0
        %4658 = vmatprep.subr.mxu0 0.0
        %4659 = vmatpush2.xpose.msra.mxu0 0.0
        %4660 = vmatprep.subr.mxu0 0.0
        %4661 = vmatpush2.xpose.msra.mxu0 0.0
        %4662 = vmatprep.mubr.f32.mxu0 0.0
        %4663 = vmatmul.mubr.f32.gmra.mxu0 %v4594
        %v4664 = vpop.f32.mrf.mxu0
        %v4665 = vadd.f32 %v768, %v4664
        %v4666 = vpop.f32.mrf.mxu0
        %4667 = vdwg.mxu0
        %v4668 = vsel %vm770, %v4665, -inf
        %4669 = vmax.xlane.f32.xlu0 %v4668
        %v4670 = vpop.xlane.xlu0 %4669
        %v4671 = vsub.f32 %v4665, %v4670
        %v4672 = vmul.f32 %v4671, 1.442695
        %v4673 = vpow.pop %v4672
        %v4674 = vsel %vm770, %v4673, 0.0
        %4675 = vadd.xlane.f32.xlu0 %v4674
        %v4676 = vpop.xlane.xlu0 %4675
        %v4677 = vrcp.pop %v4676
        %v4678 = vmul.f32 %v4673, %v4677
        %4679 = vrot.lane.b32.xlu0 %v4094, 72
        %v4680 = vpop.permute.xlu0 %4679
        %v4683 = vsel %vm770, %v4678, 0
        %4685 = vmatprep.subr.mxu0 0.0
        %4686 = vmatpush1.msra.mxu0 0.0
        %4687 = vmatprep.subr.mxu0 0.0
        %4688 = vmatpush1.msra.mxu0 0.0
        %4689 = vmatprep.subr.mxu0 0.0
        %4690 = vmatpush1.msra.mxu0 0.0
        %4691 = vmatprep.subr.mxu0 0.0
        %4692 = vmatpush1.msra.mxu0 0.0
        %4693 = vmatprep.subr.mxu0 0.0
        %4694 = vmatpush1.msra.mxu0 0.0
        %4695 = vmatprep.subr.mxu0 0.0
        %4696 = vmatpush1.msra.mxu0 0.0
        %4697 = vmatprep.subr.mxu0 0.0
        %4698 = vmatpush1.msra.mxu0 0.0
        %4699 = vmatprep.subr.mxu0 0.0
        %4700 = vmatpush1.msra.mxu0 0.0
        %4701 = vmatprep.subr.mxu0 0.0
        %4702 = vmatpush1.msra.mxu0 0.0
        %4703 = vmatprep.subr.mxu0 0.0
        %4704 = vmatpush1.msra.mxu0 0.0
        %4705 = vmatprep.subr.mxu0 0.0
        %4706 = vmatpush1.msra.mxu0 0.0
        %4707 = vmatprep.subr.mxu0 0.0
        %4708 = vmatpush1.msra.mxu0 0.0
        %4709 = vmatprep.subr.mxu0 0.0
        %4710 = vmatpush1.msra.mxu0 0.0
        %4711 = vmatprep.subr.mxu0 0.0
        %4712 = vmatpush1.msra.mxu0 0.0
        %4713 = vmatprep.subr.mxu0 0.0
        %4714 = vmatpush1.msra.mxu0 0.0
        %4715 = vmatprep.subr.mxu0 0.0
        %4716 = vmatpush1.msra.mxu0 %v4680
        %4717 = vmatprep.subr.mxu0 0.0
        %4718 = vmatpush2.msra.mxu0 0.0
        %4719 = vmatprep.subr.mxu0 0.0
        %4720 = vmatpush2.msra.mxu0 0.0
        %4721 = vmatprep.subr.mxu0 0.0
        %4722 = vmatpush2.msra.mxu0 0.0
        %4723 = vmatprep.subr.mxu0 0.0
        %4724 = vmatpush2.msra.mxu0 0.0
        %4725 = vmatprep.subr.mxu0 0.0
        %4726 = vmatpush2.msra.mxu0 0.0
        %4727 = vmatprep.subr.mxu0 0.0
        %4728 = vmatpush2.msra.mxu0 0.0
        %4729 = vmatprep.subr.mxu0 0.0
        %4730 = vmatpush2.msra.mxu0 0.0
        %4731 = vmatprep.subr.mxu0 0.0
        %4732 = vmatpush2.msra.mxu0 0.0
        %4733 = vmatprep.subr.mxu0 0.0
        %4734 = vmatpush2.msra.mxu0 0.0
        %4735 = vmatprep.subr.mxu0 0.0
        %4736 = vmatpush2.msra.mxu0 0.0
        %4737 = vmatprep.subr.mxu0 0.0
        %4738 = vmatpush2.msra.mxu0 0.0
        %4739 = vmatprep.subr.mxu0 0.0
        %4740 = vmatpush2.msra.mxu0 0.0
        %4741 = vmatprep.subr.mxu0 0.0
        %4742 = vmatpush2.msra.mxu0 0.0
        %4743 = vmatprep.subr.mxu0 0.0
        %4744 = vmatpush2.msra.mxu0 0.0
        %4745 = vmatprep.subr.mxu0 0.0
        %4746 = vmatpush2.msra.mxu0 0.0
        %4747 = vmatprep.subr.mxu0 0.0
        %4748 = vmatpush2.msra.mxu0 0.0
        %4749 = vmatprep.mubr.f32.mxu0 0.0
        %4750 = vmatmul.mubr.f32.gmra.mxu0 %v4683
        %v4751 = vpop.f32.mrf.mxu0
        %v4752 = vadd.f32 0.0, %v4751
        %v4753 = vpop.f32.mrf.mxu0
        %4754 = vdwg.mxu0
        %4756 = vrot.lane.b32.xlu0 %v4422, 8
        %v4757 = vpop.permute.xlu0 %4756
        %4760 = vrot.lane.b32.xlu0 %v4587, 16
        %v4761 = vpop.permute.xlu0 %4760
        %4764 = vrot.lane.b32.xlu0 %v4752, 24
        %v4765 = vpop.permute.xlu0 %4764
        %v4767 = vsel %vm770, %v4257, %v4757
        %v4768 = vsel %vm1442, %v4767, %v4761
        %v4769 = vsel %vm1444, %v4768, %v4765
        %v4771 = vsel %vm612, %v4769, 0
        %4773 = vmatprep.subr.mxu0 0.0
        %4774 = vmatpush1.msra.mxu0 0.0
        %4775 = vmatprep.subr.mxu0 0.0
        %4776 = vmatpush1.msra.mxu0 0.0
        %4777 = vmatprep.subr.mxu0 0.0
        %4778 = vmatpush1.msra.mxu0 0.0
        %4779 = vmatprep.subr.mxu0 0.0
        %4780 = vmatpush1.msra.mxu0 0.0
        %4781 = vmatprep.subr.mxu0 0.0
        %4782 = vmatpush1.msra.mxu0 0.0
        %4783 = vmatprep.subr.mxu0 0.0
        %4784 = vmatpush1.msra.mxu0 0.0
        %4785 = vmatprep.subr.mxu0 0.0
        %4786 = vmatpush1.msra.mxu0 0.0
        %4787 = vmatprep.subr.mxu0 0.0
        %4788 = vmatpush1.msra.mxu0 0.0
        %4789 = vmatprep.subr.mxu0 0.0
        %4790 = vmatpush1.msra.mxu0 0.0
        %4791 = vmatprep.subr.mxu0 0.0
        %4792 = vmatpush1.msra.mxu0 0.0
        %4793 = vmatprep.subr.mxu0 0.0
        %4794 = vmatpush1.msra.mxu0 0.0
        %4795 = vmatprep.subr.mxu0 0.0
        %4796 = vmatpush1.msra.mxu0 0.0
        %4797 = vmatprep.subr.mxu0 0.0
        %4798 = vmatpush1.msra.mxu0 %v2828
        %4799 = vmatprep.subr.mxu0 0.0
        %4800 = vmatpush1.msra.mxu0 %v2827
        %4801 = vmatprep.subr.mxu0 0.0
        %4802 = vmatpush1.msra.mxu0 %v2826
        %4803 = vmatprep.subr.mxu0 0.0
        %4804 = vmatpush1.msra.mxu0 %v2825
        %4805 = vmatprep.subr.mxu0 0.0
        %4806 = vmatpush2.msra.mxu0 0.0
        %4807 = vmatprep.subr.mxu0 0.0
        %4808 = vmatpush2.msra.mxu0 0.0
        %4809 = vmatprep.subr.mxu0 0.0
        %4810 = vmatpush2.msra.mxu0 0.0
        %4811 = vmatprep.subr.mxu0 0.0
        %4812 = vmatpush2.msra.mxu0 0.0
        %4813 = vmatprep.subr.mxu0 0.0
        %4814 = vmatpush2.msra.mxu0 0.0
        %4815 = vmatprep.subr.mxu0 0.0
        %4816 = vmatpush2.msra.mxu0 0.0
        %4817 = vmatprep.subr.mxu0 0.0
        %4818 = vmatpush2.msra.mxu0 0.0
        %4819 = vmatprep.subr.mxu0 0.0
        %4820 = vmatpush2.msra.mxu0 0.0
        %4821 = vmatprep.subr.mxu0 0.0
        %4822 = vmatpush2.msra.mxu0 0.0
        %4823 = vmatprep.subr.mxu0 0.0
        %4824 = vmatpush2.msra.mxu0 0.0
        %4825 = vmatprep.subr.mxu0 0.0
        %4826 = vmatpush2.msra.mxu0 0.0
        %4827 = vmatprep.subr.mxu0 0.0
        %4828 = vmatpush2.msra.mxu0 0.0
        %4829 = vmatprep.subr.mxu0 0.0
        %4830 = vmatpush2.msra.mxu0 0.0
        %4831 = vmatprep.subr.mxu0 0.0
        %4832 = vmatpush2.msra.mxu0 0.0
        %4833 = vmatprep.subr.mxu0 0.0
        %4834 = vmatpush2.msra.mxu0 0.0
        %4835 = vmatprep.subr.mxu0 0.0
        %4836 = vmatpush2.msra.mxu0 0.0
        %4837 = vmatprep.mubr.f32.mxu0 0.0
        %4838 = vmatmul.mubr.f32.gmra.mxu0 %v4771
        %v4839 = vpop.f32.mrf.mxu0
        %v4840 = vadd.f32 %v3674, %v4839
        %v4841 = vpop.f32.mrf.mxu0
        %4842 = vdwg.mxu0
        %v4843 = vadd.f32 %v4840, %v2813
        %v4844 = vsel %vm612, %v4843, 0.0
        %4845 = vadd.xlane.f32.xlu0 %v4844
        %v4846 = vpop.xlane.xlu0 %4845
        %v4847 = vmul.f32 %v4846, %v1527
        %v4848 = vsub.f32 %v4843, %v4847
        %v4849 = vmul.f32 %v4848, %v4848
        %v4850 = vsel %vm612, %v4849, 0.0
        %4851 = vadd.xlane.f32.xlu0 %v4850
        %v4852 = vpop.xlane.xlu0 %4851
        %v4853 = vmul.f32 %v4852, %v1527
        %v4854 = vadd.f32 %v4853, 1e-05
        %v4855 = vrsqrt.pop %v4854
        %v4856 = vmul.f32 %v4848, %v4855
        %v4857 = vmul.f32 %v4856, %v3765
        %v4858 = vadd.f32 %v4857, %v3770
        %v4859 = vmul.f32 %v4858, %v2647
        %v4861 = vsel %vm612, %v4859, 0
        %4863 = vmatprep.subr.mxu0 0.0
        %4864 = vmatpush1.msra.mxu0 0.0
        %4865 = vmatprep.subr.mxu0 0.0
        %4866 = vmatpush1.msra.mxu0 0.0
        %4867 = vmatprep.subr.mxu0 0.0
        %4868 = vmatpush1.msra.mxu0 0.0
        %4869 = vmatprep.subr.mxu0 0.0
        %4870 = vmatpush1.msra.mxu0 0.0
        %4871 = vmatprep.subr.mxu0 0.0
        %4872 = vmatpush1.msra.mxu0 0.0
        %4873 = vmatprep.subr.mxu0 0.0
        %4874 = vmatpush1.msra.mxu0 0.0
        %4875 = vmatprep.subr.mxu0 0.0
        %4876 = vmatpush1.msra.mxu0 0.0
        %4877 = vmatprep.subr.mxu0 0.0
        %4878 = vmatpush1.msra.mxu0 0.0
        %4879 = vmatprep.subr.mxu0 0.0
        %4880 = vmatpush1.msra.mxu0 0.0
        %4881 = vmatprep.subr.mxu0 0.0
        %4882 = vmatpush1.msra.mxu0 0.0
        %4883 = vmatprep.subr.mxu0 0.0
        %4884 = vmatpush1.msra.mxu0 0.0
        %4885 = vmatprep.subr.mxu0 0.0
        %4886 = vmatpush1.msra.mxu0 0.0
        %4887 = vmatprep.subr.mxu0 0.0
        %4888 = vmatpush1.msra.mxu0 %v2833
        %4889 = vmatprep.subr.mxu0 0.0
        %4890 = vmatpush1.msra.mxu0 %v2832
        %4891 = vmatprep.subr.mxu0 0.0
        %4892 = vmatpush1.msra.mxu0 %v2831
        %4893 = vmatprep.subr.mxu0 0.0
        %4894 = vmatpush1.msra.mxu0 %v2830
        %4895 = vmatprep.subr.mxu0 0.0
        %4896 = vmatpush2.msra.mxu0 0.0
        %4897 = vmatprep.subr.mxu0 0.0
        %4898 = vmatpush2.msra.mxu0 0.0
        %4899 = vmatprep.subr.mxu0 0.0
        %4900 = vmatpush2.msra.mxu0 0.0
        %4901 = vmatprep.subr.mxu0 0.0
        %4902 = vmatpush2.msra.mxu0 0.0
        %4903 = vmatprep.subr.mxu0 0.0
        %4904 = vmatpush2.msra.mxu0 0.0
        %4905 = vmatprep.subr.mxu0 0.0
        %4906 = vmatpush2.msra.mxu0 0.0
        %4907 = vmatprep.subr.mxu0 0.0
        %4908 = vmatpush2.msra.mxu0 0.0
        %4909 = vmatprep.subr.mxu0 0.0
        %4910 = vmatpush2.msra.mxu0 0.0
        %4911 = vmatprep.subr.mxu0 0.0
        %4912 = vmatpush2.msra.mxu0 0.0
        %4913 = vmatprep.subr.mxu0 0.0
        %4914 = vmatpush2.msra.mxu0 0.0
        %4915 = vmatprep.subr.mxu0 0.0
        %4916 = vmatpush2.msra.mxu0 0.0
        %4917 = vmatprep.subr.mxu0 0.0
        %4918 = vmatpush2.msra.mxu0 0.0
        %4919 = vmatprep.subr.mxu0 0.0
        %4920 = vmatpush2.msra.mxu0 0.0
        %4921 = vmatprep.subr.mxu0 0.0
        %4922 = vmatpush2.msra.mxu0 0.0
        %4923 = vmatprep.subr.mxu0 0.0
        %4924 = vmatpush2.msra.mxu0 0.0
        %4925 = vmatprep.subr.mxu0 0.0
        %4926 = vmatpush2.msra.mxu0 0.0
        %4927 = vmatprep.mubr.f32.mxu0 0.0
        %4928 = vmatmul.mubr.f32.gmra.mxu0 %v4861
        %v4929 = vpop.f32.mrf.mxu0
        %v4930 = vadd.f32 %v3776, %v4929
        %v4931 = vpop.f32.mrf.mxu0
        %4932 = vdwg.mxu0
        %v4933 = vmax.f32 %v4930, 0.0
        %v4935 = vsel %vm1636, %v4933, 0
        %4937 = vmatprep.subr.mxu0 0.0
        %4938 = vmatpush1.msra.mxu0 0.0
        %4939 = vmatprep.subr.mxu0 0.0
        %4940 = vmatpush1.msra.mxu0 0.0
        %4941 = vmatprep.subr.mxu0 0.0
        %4942 = vmatpush1.msra.mxu0 0.0
        %4943 = vmatprep.subr.mxu0 0.0
        %4944 = vmatpush1.msra.mxu0 0.0
        %4945 = vmatprep.subr.mxu0 0.0
        %4946 = vmatpush1.msra.mxu0 0.0
        %4947 = vmatprep.subr.mxu0 0.0
        %4948 = vmatpush1.msra.mxu0 0.0
        %4949 = vmatprep.subr.mxu0 0.0
        %4950 = vmatpush1.msra.mxu0 0.0
        %4951 = vmatprep.subr.mxu0 0.0
        %4952 = vmatpush1.msra.mxu0 0.0
        %4953 = vmatprep.subr.mxu0 0.0
        %4954 = vmatpush1.msra.mxu0 %v2842
        %4955 = vmatprep.subr.mxu0 0.0
        %4956 = vmatpush1.msra.mxu0 %v2841
        %4957 = vmatprep.subr.mxu0 0.0
        %4958 = vmatpush1.msra.mxu0 %v2840
        %4959 = vmatprep.subr.mxu0 0.0
        %4960 = vmatpush1.msra.mxu0 %v2839
        %4961 = vmatprep.subr.mxu0 0.0
        %4962 = vmatpush1.msra.mxu0 %v2838
        %4963 = vmatprep.subr.mxu0 0.0
        %4964 = vmatpush1.msra.mxu0 %v2837
        %4965 = vmatprep.subr.mxu0 0.0
        %4966 = vmatpush1.msra.mxu0 %v2836
        %4967 = vmatprep.subr.mxu0 0.0
        %4968 = vmatpush1.msra.mxu0 %v2835
        %4969 = vmatprep.subr.mxu0 0.0
        %4970 = vmatpush2.msra.mxu0 0.0
        %4971 = vmatprep.subr.mxu0 0.0
        %4972 = vmatpush2.msra.mxu0 0.0
        %4973 = vmatprep.subr.mxu0 0.0
        %4974 = vmatpush2.msra.mxu0 0.0
        %4975 = vmatprep.subr.mxu0 0.0
        %4976 = vmatpush2.msra.mxu0 0.0
        %4977 = vmatprep.subr.mxu0 0.0
        %4978 = vmatpush2.msra.mxu0 0.0
        %4979 = vmatprep.subr.mxu0 0.0
        %4980 = vmatpush2.msra.mxu0 0.0
        %4981 = vmatprep.subr.mxu0 0.0
        %4982 = vmatpush2.msra.mxu0 0.0
        %4983 = vmatprep.subr.mxu0 0.0
        %4984 = vmatpush2.msra.mxu0 0.0
        %4985 = vmatprep.subr.mxu0 0.0
        %4986 = vmatpush2.msra.mxu0 0.0
        %4987 = vmatprep.subr.mxu0 0.0
        %4988 = vmatpush2.msra.mxu0 0.0
        %4989 = vmatprep.subr.mxu0 0.0
        %4990 = vmatpush2.msra.mxu0 0.0
        %4991 = vmatprep.subr.mxu0 0.0
        %4992 = vmatpush2.msra.mxu0 0.0
        %4993 = vmatprep.subr.mxu0 0.0
        %4994 = vmatpush2.msra.mxu0 0.0
        %4995 = vmatprep.subr.mxu0 0.0
        %4996 = vmatpush2.msra.mxu0 0.0
        %4997 = vmatprep.subr.mxu0 0.0
        %4998 = vmatpush2.msra.mxu0 0.0
        %4999 = vmatprep.subr.mxu0 0.0
        %5000 = vmatpush2.msra.mxu0 0.0
        %5001 = vmatprep.mubr.f32.mxu0 0.0
        %5002 = vmatmul.mubr.f32.gmra.mxu0 %v4935
        %v5003 = vpop.f32.mrf.mxu0
        %v5004 = vadd.f32 %v3854, %v5003
        %v5005 = vpop.f32.mrf.mxu0
        %5006 = vdwg.mxu0
        %v5007 = vadd.f32 %v5004, %v4859
        %v5008 = vsel %vm612, %v5007, 0.0
        %5009 = vadd.xlane.f32.xlu0 %v5008
        %v5010 = vpop.xlane.xlu0 %5009
        %v5011 = vmul.f32 %v5010, %v1527
        %v5012 = vsub.f32 %v5007, %v5011
        %v5013 = vmul.f32 %v5012, %v5012
        %v5014 = vsel %vm612, %v5013, 0.0
        %5015 = vadd.xlane.f32.xlu0 %v5014
        %v5016 = vpop.xlane.xlu0 %5015
        %v5017 = vmul.f32 %v5016, %v1527
        %v5018 = vadd.f32 %v5017, 1e-05
        %v5019 = vrsqrt.pop %v5018
        %v5020 = vmul.f32 %v5012, %v5019
        %v5021 = vmul.f32 %v5020, %v3945
        %v5022 = vadd.f32 %v5021, %v3950
        %v5023 = vmul.f32 %v5022, %v2647
        %v5024 = vld [vmem:[#allocation2] sm:$0xff]
        %v5025 = vld [vmem:[#allocation2 + $0x8] sm:$0xff]
        %v5026 = vld [vmem:[#allocation2 + $0x10] sm:$0xff]
        %v5027 = vld [vmem:[#allocation2 + $0x18] sm:$0xff]
        %v5028 = vld [vmem:[#allocation5] sm:$0x3]
        %v5029 = vlaneseq
        %v5030 = vshrl.u32 %v5029, 7
        %v5031 = vsub.s32 0, %v5030
        %v5032 = vrot.slane %v5028, %v5031
        %v5034 = vsel %vm612, %v5023, 0
        %5036 = vmatprep.subr.mxu0 0.0
        %5037 = vmatpush1.msra.mxu0 0.0
        %5038 = vmatprep.subr.mxu0 0.0
        %5039 = vmatpush1.msra.mxu0 0.0
        %5040 = vmatprep.subr.mxu0 0.0
        %5041 = vmatpush1.msra.mxu0 0.0
        %5042 = vmatprep.subr.mxu0 0.0
        %5043 = vmatpush1.msra.mxu0 0.0
        %5044 = vmatprep.subr.mxu0 0.0
        %5045 = vmatpush1.msra.mxu0 0.0
        %5046 = vmatprep.subr.mxu0 0.0
        %5047 = vmatpush1.msra.mxu0 0.0
        %5048 = vmatprep.subr.mxu0 0.0
        %5049 = vmatpush1.msra.mxu0 0.0
        %5050 = vmatprep.subr.mxu0 0.0
        %5051 = vmatpush1.msra.mxu0 0.0
        %5052 = vmatprep.subr.mxu0 0.0
        %5053 = vmatpush1.msra.mxu0 0.0
        %5054 = vmatprep.subr.mxu0 0.0
        %5055 = vmatpush1.msra.mxu0 0.0
        %5056 = vmatprep.subr.mxu0 0.0
        %5057 = vmatpush1.msra.mxu0 0.0
        %5058 = vmatprep.subr.mxu0 0.0
        %5059 = vmatpush1.msra.mxu0 0.0
        %5060 = vmatprep.subr.mxu0 0.0
        %5061 = vmatpush1.msra.mxu0 %v5027
        %5062 = vmatprep.subr.mxu0 0.0
        %5063 = vmatpush1.msra.mxu0 %v5026
        %5064 = vmatprep.subr.mxu0 0.0
        %5065 = vmatpush1.msra.mxu0 %v5025
        %5066 = vmatprep.subr.mxu0 0.0
        %5067 = vmatpush1.msra.mxu0 %v5024
        %5068 = vmatprep.subr.mxu0 0.0
        %5069 = vmatpush2.msra.mxu0 0.0
        %5070 = vmatprep.subr.mxu0 0.0
        %5071 = vmatpush2.msra.mxu0 0.0
        %5072 = vmatprep.subr.mxu0 0.0
        %5073 = vmatpush2.msra.mxu0 0.0
        %5074 = vmatprep.subr.mxu0 0.0
        %5075 = vmatpush2.msra.mxu0 0.0
        %5076 = vmatprep.subr.mxu0 0.0
        %5077 = vmatpush2.msra.mxu0 0.0
        %5078 = vmatprep.subr.mxu0 0.0
        %5079 = vmatpush2.msra.mxu0 0.0
        %5080 = vmatprep.subr.mxu0 0.0
        %5081 = vmatpush2.msra.mxu0 0.0
        %5082 = vmatprep.subr.mxu0 0.0
        %5083 = vmatpush2.msra.mxu0 0.0
        %5084 = vmatprep.subr.mxu0 0.0
        %5085 = vmatpush2.msra.mxu0 0.0
        %5086 = vmatprep.subr.mxu0 0.0
        %5087 = vmatpush2.msra.mxu0 0.0
        %5088 = vmatprep.subr.mxu0 0.0
        %5089 = vmatpush2.msra.mxu0 0.0
        %5090 = vmatprep.subr.mxu0 0.0
        %5091 = vmatpush2.msra.mxu0 0.0
        %5092 = vmatprep.subr.mxu0 0.0
        %5093 = vmatpush2.msra.mxu0 0.0
        %5094 = vmatprep.subr.mxu0 0.0
        %5095 = vmatpush2.msra.mxu0 0.0
        %5096 = vmatprep.subr.mxu0 0.0
        %5097 = vmatpush2.msra.mxu0 0.0
        %5098 = vmatprep.subr.mxu0 0.0
        %5099 = vmatpush2.msra.mxu0 0.0
        %5100 = vmatprep.mubr.f32.mxu0 0.0
        %5101 = vmatmul.mubr.f32.gmra.mxu0 %v5034
        %v5102 = vpop.f32.mrf.mxu0
        %v5103 = vadd.f32 %v5032, %v5102
        %v5104 = vpop.f32.mrf.mxu0
        %5105 = vdwg.mxu0
        %v5106 = vmul.f32 %v5103, 0.35355338
        %v5107 = vlaneseq
        %v5108 = vshrl.u32 %v5107, 7
        %v5109 = vsub.s32 1, %v5108
        %v5110 = vrot.slane %v5028, %v5109
        %5115 = vrot.lane.b32.xlu0 %v5024, 96
        %v5116 = vpop.permute.xlu0 %5115
        %5117 = vrot.lane.b32.xlu0 %v5025, 96
        %v5118 = vpop.permute.xlu0 %5117
        %5119 = vrot.lane.b32.xlu0 %v5026, 96
        %v5120 = vpop.permute.xlu0 %5119
        %5121 = vrot.lane.b32.xlu0 %v5027, 96
        %v5122 = vpop.permute.xlu0 %5121
        %v5128 = vsel %vm612, %v3952, 0
        %5130 = vmatprep.subr.mxu0 0.0
        %5131 = vmatpush1.msra.mxu0 0.0
        %5132 = vmatprep.subr.mxu0 0.0
        %5133 = vmatpush1.msra.mxu0 0.0
        %5134 = vmatprep.subr.mxu0 0.0
        %5135 = vmatpush1.msra.mxu0 0.0
        %5136 = vmatprep.subr.mxu0 0.0
        %5137 = vmatpush1.msra.mxu0 0.0
        %5138 = vmatprep.subr.mxu0 0.0
        %5139 = vmatpush1.msra.mxu0 0.0
        %5140 = vmatprep.subr.mxu0 0.0
        %5141 = vmatpush1.msra.mxu0 0.0
        %5142 = vmatprep.subr.mxu0 0.0
        %5143 = vmatpush1.msra.mxu0 0.0
        %5144 = vmatprep.subr.mxu0 0.0
        %5145 = vmatpush1.msra.mxu0 0.0
        %5146 = vmatprep.subr.mxu0 0.0
        %5147 = vmatpush1.msra.mxu0 0.0
        %5148 = vmatprep.subr.mxu0 0.0
        %5149 = vmatpush1.msra.mxu0 0.0
        %5150 = vmatprep.subr.mxu0 0.0
        %5151 = vmatpush1.msra.mxu0 0.0
        %5152 = vmatprep.subr.mxu0 0.0
        %5153 = vmatpush1.msra.mxu0 0.0
        %5154 = vmatprep.subr.mxu0 0.0
        %5155 = vmatpush1.msra.mxu0 %v5122
        %5156 = vmatprep.subr.mxu0 0.0
        %5157 = vmatpush1.msra.mxu0 %v5120
        %5158 = vmatprep.subr.mxu0 0.0
        %5159 = vmatpush1.msra.mxu0 %v5118
        %5160 = vmatprep.subr.mxu0 0.0
        %5161 = vmatpush1.msra.mxu0 %v5116
        %5162 = vmatprep.subr.mxu0 0.0
        %5163 = vmatpush2.msra.mxu0 0.0
        %5164 = vmatprep.subr.mxu0 0.0
        %5165 = vmatpush2.msra.mxu0 0.0
        %5166 = vmatprep.subr.mxu0 0.0
        %5167 = vmatpush2.msra.mxu0 0.0
        %5168 = vmatprep.subr.mxu0 0.0
        %5169 = vmatpush2.msra.mxu0 0.0
        %5170 = vmatprep.subr.mxu0 0.0
        %5171 = vmatpush2.msra.mxu0 0.0
        %5172 = vmatprep.subr.mxu0 0.0
        %5173 = vmatpush2.msra.mxu0 0.0
        %5174 = vmatprep.subr.mxu0 0.0
        %5175 = vmatpush2.msra.mxu0 0.0
        %5176 = vmatprep.subr.mxu0 0.0
        %5177 = vmatpush2.msra.mxu0 0.0
        %5178 = vmatprep.subr.mxu0 0.0
        %5179 = vmatpush2.msra.mxu0 0.0
        %5180 = vmatprep.subr.mxu0 0.0
        %5181 = vmatpush2.msra.mxu0 0.0
        %5182 = vmatprep.subr.mxu0 0.0
        %5183 = vmatpush2.msra.mxu0 0.0
        %5184 = vmatprep.subr.mxu0 0.0
        %5185 = vmatpush2.msra.mxu0 0.0
        %5186 = vmatprep.subr.mxu0 0.0
        %5187 = vmatpush2.msra.mxu0 0.0
        %5188 = vmatprep.subr.mxu0 0.0
        %5189 = vmatpush2.msra.mxu0 0.0
        %5190 = vmatprep.subr.mxu0 0.0
        %5191 = vmatpush2.msra.mxu0 0.0
        %5192 = vmatprep.subr.mxu0 0.0
        %5193 = vmatpush2.msra.mxu0 0.0
        %5194 = vmatprep.mubr.f32.mxu0 0.0
        %5195 = vmatmul.mubr.f32.gmra.mxu0 %v5128
        %v5196 = vpop.f32.mrf.mxu0
        %v5197 = vadd.f32 %v5110, %v5196
        %v5198 = vpop.f32.mrf.mxu0
        %5199 = vdwg.mxu0
        %v5201 = vsel %vm770, %v5106, 0
        %v5204 = vsel %vm770, %v5197, 0
        %5206 = vmatprep.subr.mxu0 0.0
        %5207 = vmatpush1.xpose.msra.mxu0 0.0
        %5208 = vmatprep.subr.mxu0 0.0
        %5209 = vmatpush1.xpose.msra.mxu0 0.0
        %5210 = vmatprep.subr.mxu0 0.0
        %5211 = vmatpush1.xpose.msra.mxu0 0.0
        %5212 = vmatprep.subr.mxu0 0.0
        %5213 = vmatpush1.xpose.msra.mxu0 0.0
        %5214 = vmatprep.subr.mxu0 0.0
        %5215 = vmatpush1.xpose.msra.mxu0 0.0
        %5216 = vmatprep.subr.mxu0 0.0
        %5217 = vmatpush1.xpose.msra.mxu0 0.0
        %5218 = vmatprep.subr.mxu0 0.0
        %5219 = vmatpush1.xpose.msra.mxu0 0.0
        %5220 = vmatprep.subr.mxu0 0.0
        %5221 = vmatpush1.xpose.msra.mxu0 0.0
        %5222 = vmatprep.subr.mxu0 0.0
        %5223 = vmatpush1.xpose.msra.mxu0 0.0
        %5224 = vmatprep.subr.mxu0 0.0
        %5225 = vmatpush1.xpose.msra.mxu0 0.0
        %5226 = vmatprep.subr.mxu0 0.0
        %5227 = vmatpush1.xpose.msra.mxu0 0.0
        %5228 = vmatprep.subr.mxu0 0.0
        %5229 = vmatpush1.xpose.msra.mxu0 0.0
        %5230 = vmatprep.subr.mxu0 0.0
        %5231 = vmatpush1.xpose.msra.mxu0 0.0
        %5232 = vmatprep.subr.mxu0 0.0
        %5233 = vmatpush1.xpose.msra.mxu0 0.0
        %5234 = vmatprep.subr.mxu0 0.0
        %5235 = vmatpush1.xpose.msra.mxu0 0.0
        %5236 = vmatprep.subr.mxu0 0.0
        %5237 = vmatpush1.xpose.msra.mxu0 %v5204
        %5238 = vmatprep.subr.mxu0 0.0
        %5239 = vmatpush2.xpose.msra.mxu0 0.0
        %5240 = vmatprep.subr.mxu0 0.0
        %5241 = vmatpush2.xpose.msra.mxu0 0.0
        %5242 = vmatprep.subr.mxu0 0.0
        %5243 = vmatpush2.xpose.msra.mxu0 0.0
        %5244 = vmatprep.subr.mxu0 0.0
        %5245 = vmatpush2.xpose.msra.mxu0 0.0
        %5246 = vmatprep.subr.mxu0 0.0
        %5247 = vmatpush2.xpose.msra.mxu0 0.0
        %5248 = vmatprep.subr.mxu0 0.0
        %5249 = vmatpush2.xpose.msra.mxu0 0.0
        %5250 = vmatprep.subr.mxu0 0.0
        %5251 = vmatpush2.xpose.msra.mxu0 0.0
        %5252 = vmatprep.subr.mxu0 0.0
        %5253 = vmatpush2.xpose.msra.mxu0 0.0
        %5254 = vmatprep.subr.mxu0 0.0
        %5255 = vmatpush2.xpose.msra.mxu0 0.0
        %5256 = vmatprep.subr.mxu0 0.0
        %5257 = vmatpush2.xpose.msra.mxu0 0.0
        %5258 = vmatprep.subr.mxu0 0.0
        %5259 = vmatpush2.xpose.msra.mxu0 0.0
        %5260 = vmatprep.subr.mxu0 0.0
        %5261 = vmatpush2.xpose.msra.mxu0 0.0
        %5262 = vmatprep.subr.mxu0 0.0
        %5263 = vmatpush2.xpose.msra.mxu0 0.0
        %5264 = vmatprep.subr.mxu0 0.0
        %5265 = vmatpush2.xpose.msra.mxu0 0.0
        %5266 = vmatprep.subr.mxu0 0.0
        %5267 = vmatpush2.xpose.msra.mxu0 0.0
        %5268 = vmatprep.subr.mxu0 0.0
        %5269 = vmatpush2.xpose.msra.mxu0 0.0
        %5270 = vmatprep.mubr.f32.mxu0 0.0
        %5271 = vmatmul.mubr.f32.gmra.mxu0 %v5201
        %v5272 = vpop.f32.mrf.mxu0
        %v5273 = vadd.f32 %v1880, %v5272
        %v5274 = vpop.f32.mrf.mxu0
        %5275 = vdwg.mxu0
        %v5276 = vsel %vm770, %v5273, -inf
        %5277 = vmax.xlane.f32.xlu0 %v5276
        %v5278 = vpop.xlane.xlu0 %5277
        %v5279 = vsub.f32 %v5273, %v5278
        %v5280 = vmul.f32 %v5279, 1.442695
        %v5281 = vpow.pop %v5280
        %v5282 = vsel %vm770, %v5281, 0.0
        %5283 = vadd.xlane.f32.xlu0 %v5282
        %v5284 = vpop.xlane.xlu0 %5283
        %v5285 = vrcp.pop %v5284
        %v5286 = vmul.f32 %v5281, %v5285
        %5287 = vrot.lane.b32.xlu0 %v5106, 120
        %v5288 = vpop.permute.xlu0 %5287
        %5289 = vrot.lane.b32.xlu0 %v5197, 120
        %v5290 = vpop.permute.xlu0 %5289
        %v5291 = vsel %vm770, %v5288, 0
        %v5293 = vsel %vm770, %v5290, 0
        %5295 = vmatprep.subr.mxu0 0.0
        %5296 = vmatpush1.xpose.msra.mxu0 0.0
        %5297 = vmatprep.subr.mxu0 0.0
        %5298 = vmatpush1.xpose.msra.mxu0 0.0
        %5299 = vmatprep.subr.mxu0 0.0
        %5300 = vmatpush1.xpose.msra.mxu0 0.0
        %5301 = vmatprep.subr.mxu0 0.0
        %5302 = vmatpush1.xpose.msra.mxu0 0.0
        %5303 = vmatprep.subr.mxu0 0.0
        %5304 = vmatpush1.xpose.msra.mxu0 0.0
        %5305 = vmatprep.subr.mxu0 0.0
        %5306 = vmatpush1.xpose.msra.mxu0 0.0
        %5307 = vmatprep.subr.mxu0 0.0
        %5308 = vmatpush1.xpose.msra.mxu0 0.0
        %5309 = vmatprep.subr.mxu0 0.0
        %5310 = vmatpush1.xpose.msra.mxu0 0.0
        %5311 = vmatprep.subr.mxu0 0.0
        %5312 = vmatpush1.xpose.msra.mxu0 0.0
        %5313 = vmatprep.subr.mxu0 0.0
        %5314 = vmatpush1.xpose.msra.mxu0 0.0
        %5315 = vmatprep.subr.mxu0 0.0
        %5316 = vmatpush1.xpose.msra.mxu0 0.0
        %5317 = vmatprep.subr.mxu0 0.0
        %5318 = vmatpush1.xpose.msra.mxu0 0.0
        %5319 = vmatprep.subr.mxu0 0.0
        %5320 = vmatpush1.xpose.msra.mxu0 0.0
        %5321 = vmatprep.subr.mxu0 0.0
        %5322 = vmatpush1.xpose.msra.mxu0 0.0
        %5323 = vmatprep.subr.mxu0 0.0
        %5324 = vmatpush1.xpose.msra.mxu0 0.0
        %5325 = vmatprep.subr.mxu0 0.0
        %5326 = vmatpush1.xpose.msra.mxu0 %v5293
        %5327 = vmatprep.subr.mxu0 0.0
        %5328 = vmatpush2.xpose.msra.mxu0 0.0
        %5329 = vmatprep.subr.mxu0 0.0
        %5330 = vmatpush2.xpose.msra.mxu0 0.0
        %5331 = vmatprep.subr.mxu0 0.0
        %5332 = vmatpush2.xpose.msra.mxu0 0.0
        %5333 = vmatprep.subr.mxu0 0.0
        %5334 = vmatpush2.xpose.msra.mxu0 0.0
        %5335 = vmatprep.subr.mxu0 0.0
        %5336 = vmatpush2.xpose.msra.mxu0 0.0
        %5337 = vmatprep.subr.mxu0 0.0
        %5338 = vmatpush2.xpose.msra.mxu0 0.0
        %5339 = vmatprep.subr.mxu0 0.0
        %5340 = vmatpush2.xpose.msra.mxu0 0.0
        %5341 = vmatprep.subr.mxu0 0.0
        %5342 = vmatpush2.xpose.msra.mxu0 0.0
        %5343 = vmatprep.subr.mxu0 0.0
        %5344 = vmatpush2.xpose.msra.mxu0 0.0
        %5345 = vmatprep.subr.mxu0 0.0
        %5346 = vmatpush2.xpose.msra.mxu0 0.0
        %5347 = vmatprep.subr.mxu0 0.0
        %5348 = vmatpush2.xpose.msra.mxu0 0.0
        %5349 = vmatprep.subr.mxu0 0.0
        %5350 = vmatpush2.xpose.msra.mxu0 0.0
        %5351 = vmatprep.subr.mxu0 0.0
        %5352 = vmatpush2.xpose.msra.mxu0 0.0
        %5353 = vmatprep.subr.mxu0 0.0
        %5354 = vmatpush2.xpose.msra.mxu0 0.0
        %5355 = vmatprep.subr.mxu0 0.0
        %5356 = vmatpush2.xpose.msra.mxu0 0.0
        %5357 = vmatprep.subr.mxu0 0.0
        %5358 = vmatpush2.xpose.msra.mxu0 0.0
        %5359 = vmatprep.mubr.f32.mxu0 0.0
        %5360 = vmatmul.mubr.f32.gmra.mxu0 %v5291
        %v5361 = vpop.f32.mrf.mxu0
        %v5362 = vadd.f32 %v1880, %v5361
        %v5363 = vpop.f32.mrf.mxu0
        %5364 = vdwg.mxu0
        %v5365 = vsel %vm770, %v5362, -inf
        %5366 = vmax.xlane.f32.xlu0 %v5365
        %v5367 = vpop.xlane.xlu0 %5366
        %v5368 = vsub.f32 %v5362, %v5367
        %v5369 = vmul.f32 %v5368, 1.442695
        %v5370 = vpow.pop %v5369
        %v5371 = vsel %vm770, %v5370, 0.0
        %5372 = vadd.xlane.f32.xlu0 %v5371
        %v5373 = vpop.xlane.xlu0 %5372
        %v5374 = vrcp.pop %v5373
        %v5375 = vmul.f32 %v5370, %v5374
        %5376 = vrot.lane.b32.xlu0 %v5106, 112
        %v5377 = vpop.permute.xlu0 %5376
        %5378 = vrot.lane.b32.xlu0 %v5197, 112
        %v5379 = vpop.permute.xlu0 %5378
        %v5380 = vsel %vm770, %v5377, 0
        %v5382 = vsel %vm770, %v5379, 0
        %5384 = vmatprep.subr.mxu0 0.0
        %5385 = vmatpush1.xpose.msra.mxu0 0.0
        %5386 = vmatprep.subr.mxu0 0.0
        %5387 = vmatpush1.xpose.msra.mxu0 0.0
        %5388 = vmatprep.subr.mxu0 0.0
        %5389 = vmatpush1.xpose.msra.mxu0 0.0
        %5390 = vmatprep.subr.mxu0 0.0
        %5391 = vmatpush1.xpose.msra.mxu0 0.0
        %5392 = vmatprep.subr.mxu0 0.0
        %5393 = vmatpush1.xpose.msra.mxu0 0.0
        %5394 = vmatprep.subr.mxu0 0.0
        %5395 = vmatpush1.xpose.msra.mxu0 0.0
        %5396 = vmatprep.subr.mxu0 0.0
        %5397 = vmatpush1.xpose.msra.mxu0 0.0
        %5398 = vmatprep.subr.mxu0 0.0
        %5399 = vmatpush1.xpose.msra.mxu0 0.0
        %5400 = vmatprep.subr.mxu0 0.0
        %5401 = vmatpush1.xpose.msra.mxu0 0.0
        %5402 = vmatprep.subr.mxu0 0.0
        %5403 = vmatpush1.xpose.msra.mxu0 0.0
        %5404 = vmatprep.subr.mxu0 0.0
        %5405 = vmatpush1.xpose.msra.mxu0 0.0
        %5406 = vmatprep.subr.mxu0 0.0
        %5407 = vmatpush1.xpose.msra.mxu0 0.0
        %5408 = vmatprep.subr.mxu0 0.0
        %5409 = vmatpush1.xpose.msra.mxu0 0.0
        %5410 = vmatprep.subr.mxu0 0.0
        %5411 = vmatpush1.xpose.msra.mxu0 0.0
        %5412 = vmatprep.subr.mxu0 0.0
        %5413 = vmatpush1.xpose.msra.mxu0 0.0
        %5414 = vmatprep.subr.mxu0 0.0
        %5415 = vmatpush1.xpose.msra.mxu0 %v5382
        %5416 = vmatprep.subr.mxu0 0.0
        %5417 = vmatpush2.xpose.msra.mxu0 0.0
        %5418 = vmatprep.subr.mxu0 0.0
        %5419 = vmatpush2.xpose.msra.mxu0 0.0
        %5420 = vmatprep.subr.mxu0 0.0
        %5421 = vmatpush2.xpose.msra.mxu0 0.0
        %5422 = vmatprep.subr.mxu0 0.0
        %5423 = vmatpush2.xpose.msra.mxu0 0.0
        %5424 = vmatprep.subr.mxu0 0.0
        %5425 = vmatpush2.xpose.msra.mxu0 0.0
        %5426 = vmatprep.subr.mxu0 0.0
        %5427 = vmatpush2.xpose.msra.mxu0 0.0
        %5428 = vmatprep.subr.mxu0 0.0
        %5429 = vmatpush2.xpose.msra.mxu0 0.0
        %5430 = vmatprep.subr.mxu0 0.0
        %5431 = vmatpush2.xpose.msra.mxu0 0.0
        %5432 = vmatprep.subr.mxu0 0.0
        %5433 = vmatpush2.xpose.msra.mxu0 0.0
        %5434 = vmatprep.subr.mxu0 0.0
        %5435 = vmatpush2.xpose.msra.mxu0 0.0
        %5436 = vmatprep.subr.mxu0 0.0
        %5437 = vmatpush2.xpose.msra.mxu0 0.0
        %5438 = vmatprep.subr.mxu0 0.0
        %5439 = vmatpush2.xpose.msra.mxu0 0.0
        %5440 = vmatprep.subr.mxu0 0.0
        %5441 = vmatpush2.xpose.msra.mxu0 0.0
        %5442 = vmatprep.subr.mxu0 0.0
        %5443 = vmatpush2.xpose.msra.mxu0 0.0
        %5444 = vmatprep.subr.mxu0 0.0
        %5445 = vmatpush2.xpose.msra.mxu0 0.0
        %5446 = vmatprep.subr.mxu0 0.0
        %5447 = vmatpush2.xpose.msra.mxu0 0.0
        %5448 = vmatprep.mubr.f32.mxu0 0.0
        %5449 = vmatmul.mubr.f32.gmra.mxu0 %v5380
        %v5450 = vpop.f32.mrf.mxu0
        %v5451 = vadd.f32 %v1880, %v5450
        %v5452 = vpop.f32.mrf.mxu0
        %5453 = vdwg.mxu0
        %v5454 = vsel %vm770, %v5451, -inf
        %5455 = vmax.xlane.f32.xlu0 %v5454
        %v5456 = vpop.xlane.xlu0 %5455
        %v5457 = vsub.f32 %v5451, %v5456
        %v5458 = vmul.f32 %v5457, 1.442695
        %v5459 = vpow.pop %v5458
        %v5460 = vsel %vm770, %v5459, 0.0
        %5461 = vadd.xlane.f32.xlu0 %v5460
        %v5462 = vpop.xlane.xlu0 %5461
        %v5463 = vrcp.pop %v5462
        %v5464 = vmul.f32 %v5459, %v5463
        %5465 = vrot.lane.b32.xlu0 %v5106, 104
        %v5466 = vpop.permute.xlu0 %5465
        %5467 = vrot.lane.b32.xlu0 %v5197, 104
        %v5468 = vpop.permute.xlu0 %5467
        %v5469 = vsel %vm770, %v5466, 0
        %v5471 = vsel %vm770, %v5468, 0
        %5473 = vmatprep.subr.mxu0 0.0
        %5474 = vmatpush1.xpose.msra.mxu0 0.0
        %5475 = vmatprep.subr.mxu0 0.0
        %5476 = vmatpush1.xpose.msra.mxu0 0.0
        %5477 = vmatprep.subr.mxu0 0.0
        %5478 = vmatpush1.xpose.msra.mxu0 0.0
        %5479 = vmatprep.subr.mxu0 0.0
        %5480 = vmatpush1.xpose.msra.mxu0 0.0
        %5481 = vmatprep.subr.mxu0 0.0
        %5482 = vmatpush1.xpose.msra.mxu0 0.0
        %5483 = vmatprep.subr.mxu0 0.0
        %5484 = vmatpush1.xpose.msra.mxu0 0.0
        %5485 = vmatprep.subr.mxu0 0.0
        %5486 = vmatpush1.xpose.msra.mxu0 0.0
        %5487 = vmatprep.subr.mxu0 0.0
        %5488 = vmatpush1.xpose.msra.mxu0 0.0
        %5489 = vmatprep.subr.mxu0 0.0
        %5490 = vmatpush1.xpose.msra.mxu0 0.0
        %5491 = vmatprep.subr.mxu0 0.0
        %5492 = vmatpush1.xpose.msra.mxu0 0.0
        %5493 = vmatprep.subr.mxu0 0.0
        %5494 = vmatpush1.xpose.msra.mxu0 0.0
        %5495 = vmatprep.subr.mxu0 0.0
        %5496 = vmatpush1.xpose.msra.mxu0 0.0
        %5497 = vmatprep.subr.mxu0 0.0
        %5498 = vmatpush1.xpose.msra.mxu0 0.0
        %5499 = vmatprep.subr.mxu0 0.0
        %5500 = vmatpush1.xpose.msra.mxu0 0.0
        %5501 = vmatprep.subr.mxu0 0.0
        %5502 = vmatpush1.xpose.msra.mxu0 0.0
        %5503 = vmatprep.subr.mxu0 0.0
        %5504 = vmatpush1.xpose.msra.mxu0 %v5471
        %5505 = vmatprep.subr.mxu0 0.0
        %5506 = vmatpush2.xpose.msra.mxu0 0.0
        %5507 = vmatprep.subr.mxu0 0.0
        %5508 = vmatpush2.xpose.msra.mxu0 0.0
        %5509 = vmatprep.subr.mxu0 0.0
        %5510 = vmatpush2.xpose.msra.mxu0 0.0
        %5511 = vmatprep.subr.mxu0 0.0
        %5512 = vmatpush2.xpose.msra.mxu0 0.0
        %5513 = vmatprep.subr.mxu0 0.0
        %5514 = vmatpush2.xpose.msra.mxu0 0.0
        %5515 = vmatprep.subr.mxu0 0.0
        %5516 = vmatpush2.xpose.msra.mxu0 0.0
        %5517 = vmatprep.subr.mxu0 0.0
        %5518 = vmatpush2.xpose.msra.mxu0 0.0
        %5519 = vmatprep.subr.mxu0 0.0
        %5520 = vmatpush2.xpose.msra.mxu0 0.0
        %5521 = vmatprep.subr.mxu0 0.0
        %5522 = vmatpush2.xpose.msra.mxu0 0.0
        %5523 = vmatprep.subr.mxu0 0.0
        %5524 = vmatpush2.xpose.msra.mxu0 0.0
        %5525 = vmatprep.subr.mxu0 0.0
        %5526 = vmatpush2.xpose.msra.mxu0 0.0
        %5527 = vmatprep.subr.mxu0 0.0
        %5528 = vmatpush2.xpose.msra.mxu0 0.0
        %5529 = vmatprep.subr.mxu0 0.0
        %5530 = vmatpush2.xpose.msra.mxu0 0.0
        %5531 = vmatprep.subr.mxu0 0.0
        %5532 = vmatpush2.xpose.msra.mxu0 0.0
        %5533 = vmatprep.subr.mxu0 0.0
        %5534 = vmatpush2.xpose.msra.mxu0 0.0
        %5535 = vmatprep.subr.mxu0 0.0
        %5536 = vmatpush2.xpose.msra.mxu0 0.0
        %5537 = vmatprep.mubr.f32.mxu0 0.0
        %5538 = vmatmul.mubr.f32.gmra.mxu0 %v5469
        %v5539 = vpop.f32.mrf.mxu0
        %v5540 = vadd.f32 %v1880, %v5539
        %v5541 = vpop.f32.mrf.mxu0
        %5542 = vdwg.mxu0
        %v5543 = vsel %vm770, %v5540, -inf
        %5544 = vmax.xlane.f32.xlu0 %v5543
        %v5545 = vpop.xlane.xlu0 %5544
        %v5546 = vsub.f32 %v5540, %v5545
        %v5547 = vmul.f32 %v5546, 1.442695
        %v5548 = vpow.pop %v5547
        %v5549 = vsel %vm770, %v5548, 0.0
        %5550 = vadd.xlane.f32.xlu0 %v5549
        %v5551 = vpop.xlane.xlu0 %5550
        %v5552 = vrcp.pop %v5551
        %v5553 = vmul.f32 %v5548, %v5552
        %5554 = vst.msk [vmem:[%s547] sm:$0xff] %vm770, %v5286
        %5555 = vst.msk [vmem:[%s547 + $0x8] sm:$0xff] %vm770, %v5375
        %5556 = vst.msk [vmem:[%s547 + $0x10] sm:$0xff] %vm770, %v5464
        %5557 = vst.msk [vmem:[%s547 + $0x18] sm:$0xff] %vm770, %v5553
        %s5558 = sand.u32 %s362, 1
        %s5559 = scalar_lea.sflag [#allocation4], %s5558
        %s5560 = sand.u32 %s362, 1
        %s5561 = smul.addr %s5560, 32
        %s5562 = scalar_lea.vmem [#allocation7], %s5561
        // Predicated region
        $region85: #{transformer_forward.1} parent=75 // pred_check
          %p5563 = pneg %p372
        $region86: #{transformer_forward.1} parent=75 // pred_check_branch
          %5565 = sbr.rel (%p5563) target = $region88
        $region87: #{transformer_forward.1} parent=75 // pred_region
          %s5567 = ssub.s32 512, 512
          %5568 = vsyncadd %s5559, %s5567
          %s5569 = smul.addr %s30, 4
          %s5570 = smul.addr %s5569, 128
          %s5571 = scalar_lea.hbm %s14, %s5570
          %s5572 = sshll.u32 %s5562, 4
          %s5573 = int_to_ptr.vmem [resolvable:$true] %s5572
          %5578 = dma.vmem_to_hbm [thread:$0]  %s5573, 512, %s5571, %s5559, 128, 128, 8
        $region88: #{transformer_forward.1} parent=75 // pred_fallthru
          _
      $region76: #{transformer_forward.1} parent=5 // pred_fallthru
        _
      %p5579 = scmp.le.s32.totalorder 2, %s25
      // Predicated region
      $region89: #{transformer_forward.1} parent=5 // pred_check
        %p5580 = pneg %p5579
      $region90: #{transformer_forward.1} parent=5 // pred_check_branch
        %5582 = sbr.rel (%p5580) target = $region92
      $region91: #{transformer_forward.1} parent=5 // pred_region
        %s5583 = ssub.s32 %s25, 2
        // Predicated region
        $region93: #{transformer_forward.1} parent=91 // pred_check
          %p5584 = pneg %p378
        $region94: #{transformer_forward.1} parent=91 // pred_check_branch
          %5586 = sbr.rel (%p5584) target = $region96
        $region95: #{transformer_forward.1} parent=91 // pred_region
          %s5587 = sand.u32 %s363, 1
          %s5588 = scalar_lea.sflag [#allocation4], %s5587
          %s5589 = sand.u32 %s363, 1
          %s5590 = smul.addr %s5589, 32
          %s5591 = scalar_lea.vmem [#allocation7], %s5590
          %5592 = dma.done %s5588, 512
        $region96: #{transformer_forward.1} parent=91 // pred_fallthru
          _
      $region92: #{transformer_forward.1} parent=5 // pred_fallthru
        _
    $region6: #{transformer_forward.1} parent=1 // loop_footer
      %s29 = sadd.s32 1, %s25
    $region7: #{transformer_forward.1} parent=1 // loop_footer_branch
      %24 = sbr.rel target = $region3
    $region8: #{transformer_forward.1} parent=1 // loop_exit
      _
    %5593 = vsyncpa [#allocation3], 1
    %s5594 = scalar_lea.sflag [#allocation3], 1
    %5595 = vsyncpa %s5594, 1
    %5596 = vsyncpa [#allocation6], 1
    %5597 = vsyncpa [#allocation4], 1
    %s5598 = scalar_lea.sflag [#allocation4], 1
    %5599 = vsyncpa %s5598, 1

</llo_original>
